<compile_context>
chip_gen: v7x
topology: tpu7x:2x2x1
jax: 0.10.0
libtpu: 0.0.40
codegen_flags: <defaults>
</compile_context>

<pallas_src>
import jax
import jax.numpy as jnp
import numpy as np
from jax.experimental import pallas as pl
from jax.experimental.pallas import tpu as pltpu

F1 = 1841
F2 = 1840
F_TOTAL = F1 + F2          # 3681, matches nn.Linear(3681, 1)
N_HEADS = 2                # head1 and head2
LANES = 128                # lane width; head weights are padded to this


# ----------------------------------------------------------------------------
# Sizing helpers (VMEM-capacity aware, safe fallback)
# ----------------------------------------------------------------------------
def _vmem_budget_bytes():
    """~80% of physical VMEM (scoped limit + tile-size budget)."""
    try:
        cap = pltpu.get_tpu_info().vmem_capacity_bytes
    except Exception:
        cap = 64 * 1024 * 1024           # conservative (v7x-sized) fallback
    return min(int(cap * 0.8), 112 * 1024 * 1024)


def _pick_batch_tile(B, cap):
    """Batch tile: multiple of 8 (or the whole batch), <= cap, and giving at
    least 2 grid steps when possible so v7x's two TensorCores both get work."""
    if B <= 8:
        return B
    tb = min(cap, B)
    if B >= 16:
        tb = min(tb, max(8, (B // 2) // 8 * 8))
    return max(8, tb // 8 * 8)


def _pick_k_tile(din, budget):
    """K tile over the projection contraction dim: multiple of 128 dividing
    din (so partial K blocks never feed garbage into the accumulator), else
    the whole din (correct; only matters for very large stand-in dims)."""
    cap = 2048 if budget > (64 << 20) else 1024
    if din <= cap:
        return din
    best = None
    t = 128
    while t <= cap:
        if din % t == 0:
            best = t
        t += 128
    return best if best is not None else din


def _pad_head_weight(w):
    """(F, N_HEADS) f32 -> lane-padded (F, 128) f32 with 2 live columns."""
    return jnp.zeros((w.shape[0], LANES), jnp.float32).at[:, :N_HEADS].set(w)


# ----------------------------------------------------------------------------
# Kernel 1: head-only (base-model features already in HBM, streamed as bf16)
# ----------------------------------------------------------------------------
def nima_heads_kernel(x1_ref, x2_ref, wa_ref, wb_ref, b_ref, o_ref):
    # bf16 feature stream -> widen to f32 immediately (v5e VPU has no bf16).
    a1 = jnp.maximum(x1_ref[...].astype(jnp.float32), 0.0)          # ReLU
    a2 = jnp.maximum(x2_ref[...].astype(jnp.float32), 0.0)
    # Dropout(p=0.75) is identity in eval mode.
    # Head contraction on the MXU (lane-padded weights, 2 live columns);
    # relu(cat(x1,x2)) @ W == relu(x1) @ W[:F1] + relu(x2) @ W[F1:].
    y = (jnp.dot(a1, wa_ref[...], preferred_element_type=jnp.float32)
         + jnp.dot(a2, wb_ref[...], preferred_element_type=jnp.float32))
    o_ref[:, 0:1] = y[:, 0:1] + b_ref[0]
    o_ref[:, 1:2] = y[:, 1:2] + b_ref[1]


def nima_heads(x1, x2, w, b, *, tb=None):
    """x1: (B,F1), x2: (B,F2) features; w: (3681,2) f32; b: (2,) f32 -> (B,2).

    Features are streamed from HBM as bf16 (cast here if the producer did not
    already emit bf16); all arithmetic is f32.
    """
    B = x1.shape[0]
    budget = _vmem_budget_bytes()
    if tb is None:
        cap = 2048 if budget > (64 << 20) else 1024   # f32 temps + bf16 tiles
        tb = _pick_batch_tile(B, cap)
    x1 = x1.astype(jnp.bfloat16)     # ideally the base model already emits bf16
    x2 = x2.astype(jnp.bfloat16)
    wa_pad = _pad_head_weight(w[:F1])                  # (F1, 128) f32
    wb_pad = _pad_head_weight(w[F1:])                  # (F2, 128) f32
    grid = (pl.cdiv(B, tb),)
    return pl.pallas_call(
        nima_heads_kernel,
        out_shape=jax.ShapeDtypeStruct((B, N_HEADS), jnp.float32),
        grid=grid,
        in_specs=[
            pl.BlockSpec((tb, F1), lambda i: (i, 0)),
            pl.BlockSpec((tb, F2), lambda i: (i, 0)),
            pl.BlockSpec((F1, LANES), lambda i: (0, 0)),   # resident weights
            pl.BlockSpec((F2, LANES), lambda i: (0, 0)),
            pl.BlockSpec(memory_space=pltpu.MemorySpace.SMEM),   # bias scalars
        ],
        out_specs=pl.BlockSpec((tb, N_HEADS), lambda i: (i, 0)),
        compiler_params=pltpu.CompilerParams(
            dimension_semantics=("parallel",),
            vmem_limit_bytes=budget),
    )(x1, x2, wa_pad, wb_pad, b)


# ----------------------------------------------------------------------------
# Kernel 2: fused stand-in projection + ReLU + dual head (features stay in VMEM)
# ----------------------------------------------------------------------------
def nima_fused_kernel(xf_ref, p_ref, wpad_ref, b_ref, o_ref, acc_ref):
    k = pl.program_id(1)

    @pl.when(k == 0)
    def _():
        acc_ref[...] = jnp.zeros_like(acc_ref)

    # In-kernel bf16 cast (hides under the MXU matmul; avoids an extra HBM pass).
    xk = xf_ref[...].astype(jnp.bfloat16)                        # (tb, tk)
    acc_ref[...] += jnp.dot(xk, p_ref[...],
                            preferred_element_type=jnp.float32)  # (tb, 3681) f32

    @pl.when(k == pl.num_programs(1) - 1)
    def _():
        feats = jnp.maximum(acc_ref[...], 0.0)     # ReLU; Dropout=id (eval mode)
        # Head contraction on the MXU right after the projection matmul.
        y = jnp.dot(feats, wpad_ref[...], preferred_element_type=jnp.float32)
        o_ref[:, 0:1] = y[:, 0:1] + b_ref[0]
        o_ref[:, 1:2] = y[:, 1:2] + b_ref[1]


def nima_forward(x, params, *, tb=None, tk=None):
    """Full forward: (B,C,H,W) f32 -> (B,2) f32; (B,3681) features never hit HBM."""
    B = x.shape[0]
    xf = x.reshape(B, -1)                     # stays f32; bf16 cast is in-kernel
    din = xf.shape[1]
    budget = _vmem_budget_bytes()
    if tb is None:
        tb = _pick_batch_tile(B, 256)         # 256 rows = full MXU M occupancy
    if tk is None:
        tk = _pick_k_tile(din, budget)
    nk = pl.cdiv(din, tk)                     # chooser guarantees tk == din or tk | din
    w_pad = _pad_head_weight(params["w_heads"])          # (3681, 128) f32
    p = params["p"]                                      # (din, 3681) bf16, merged

    return pl.pallas_call(
        nima_fused_kernel,
        out_shape=jax.ShapeDtypeStruct((B, N_HEADS), jnp.float32),
        grid=(pl.cdiv(B, tb), nk),
        in_specs=[
            pl.BlockSpec((tb, tk), lambda i, k: (i, k)),
            pl.BlockSpec((tk, F_TOTAL), lambda i, k: (k, 0)),       # streamed over K
            pl.BlockSpec((F_TOTAL, LANES), lambda i, k: (0, 0)),    # resident head W
            pl.BlockSpec(memory_space=pltpu.MemorySpace.SMEM),      # bias scalars
        ],
        out_specs=pl.BlockSpec((tb, N_HEADS), lambda i, k: (i, 0)),
        scratch_shapes=[pltpu.VMEM((tb, F_TOTAL), jnp.float32)],    # f32 accumulator
        compiler_params=pltpu.CompilerParams(
            dimension_semantics=("parallel", "arbitrary"),
            vmem_limit_bytes=budget),
    )(xf, p, w_pad, params["b_heads"])


# ----------------------------------------------------------------------------
# Stand-in base model + pure-JAX references
# ----------------------------------------------------------------------------
def cat_net_standin(x, p):
    """Deterministic stand-in for the undefined cat_net base model (f32 feats)."""
    B = x.shape[0]
    xf = x.reshape(B, -1).astype(jnp.bfloat16)
    feats = jnp.dot(xf, p, preferred_element_type=jnp.float32)   # (B, 3681)
    return feats[:, :F1], feats[:, F1:]


def reference_forward(x, params):
    """Pure-JAX reference mirroring the PyTorch forward (eval mode)."""
    x1, x2 = cat_net_standin(x, params["p"])
    feats = jnp.maximum(jnp.concatenate([x1, x2], axis=1), 0.0)  # ReLU; Dropout=id
    head = jnp.dot(feats, params["w_heads"], precision=jax.lax.Precision.HIGHEST)
    return head + params["b_heads"][None, :]


def reference_heads(x1, x2, w, b):
    """Head-only reference on (possibly bf16) precomputed features."""
    feats = jnp.concatenate([x1, x2], axis=1).astype(jnp.float32)
    feats = jnp.maximum(feats, 0.0)
    head = jnp.dot(feats, w, precision=jax.lax.Precision.HIGHEST)
    return head + b[None, :]


def init_params(key, in_features):
    k1, k2, k3 = jax.random.split(key, 3)
    lim = 1.0 / np.sqrt(F_TOTAL)            # nn.Linear(3681, 1) default init scale
    w_heads = jax.random.uniform(k1, (F_TOTAL, N_HEADS), jnp.float32, -lim, lim)
    b_heads = jax.random.uniform(k2, (N_HEADS,), jnp.float32, -lim, lim)
    # Stand-in base-model projection, merged into one (din, 3681) bf16 weight.
    p = (jax.random.normal(k3, (in_features, F_TOTAL), jnp.float32) * 0.02
         ).astype(jnp.bfloat16)
    return {"w_heads": w_heads, "b_heads": b_heads, "p": p}


if __name__ == "__main__":
    key = jax.random.PRNGKey(0)
    kx, kp = jax.random.split(key)

    B, C, H, W = 2, 3, 16, 16
    x = jax.random.normal(kx, (B, C, H, W), jnp.float32)
    params = init_params(kp, C * H * W)

    # Tolerance covers f32 MXU pass decomposition differences vs the
    # Precision.HIGHEST XLA reference; real layout/indexing bugs are O(0.1+).
    RTOL = ATOL = 2e-3

    # Fused kernel (merged projection + ReLU + MXU dual head in one pallas_call).
    ref = reference_forward(x, params)
    out_fused = jax.block_until_ready(nima_forward(x, params))
    np.testing.assert_allclose(np.asarray(out_fused), np.asarray(ref),
                               rtol=RTOL, atol=ATOL)

    # Head-only kernel (consumes a bf16 feature stream from the base model).
    x1, x2 = cat_net_standin(x, params["p"])
    x1b, x2b = x1.astype(jnp.bfloat16), x2.astype(jnp.bfloat16)
    out_heads = jax.block_until_ready(
        nima_heads(x1b, x2b, params["w_heads"], params["b_heads"]))
    ref_heads = reference_heads(x1b, x2b, params["w_heads"], params["b_heads"])
    np.testing.assert_allclose(np.asarray(out_heads), np.asarray(ref_heads),
                               rtol=RTOL, atol=ATOL)

    assert out_fused.shape == (B, N_HEADS) and out_heads.shape == (B, N_HEADS)
    print("KERNEL_OK")
</pallas_src>

<mosaic_0001>
module attributes {stable_mosaic.version = 11 : i64} {
  func.func @nima_fused_kernel(%arg0: i32, %arg1: i32, %arg2: memref<2x768xf32, #tpu.memory_space<vmem>>, %arg3: memref<768x3681xbf16, #tpu.memory_space<vmem>>, %arg4: memref<3681x128xf32, #tpu.memory_space<vmem>>, %arg5: memref<2xf32, #tpu.memory_space<smem>>, %arg6: memref<2x2xf32, #tpu.memory_space<vmem>>, %arg7: memref<2x3681xf32, #tpu.memory_space<vmem>>) attributes {dimension_semantics = [#tpu.dimension_semantics<parallel>, #tpu.dimension_semantics<arbitrary>], iteration_bounds = array<i64: 1, 1>, scalar_prefetch = 0 : i64, scratch_operands = 1 : i64, tpu.core_type = #tpu.core_type<tc>, window_params = [{transform_indices = @transform_0, window_bounds = array<i64: 2, 768>}, {transform_indices = @transform_1, window_bounds = array<i64: 768, 3681>}, {pipeline_mode = #tpu.pipeline_mode<synchronous>, transform_indices = @transform_2, window_bounds = array<i64: 3681, 128>}, {transform_indices = @transform_3, window_bounds = array<i64: 2>}, {transform_indices = @transform_4, window_bounds = array<i64: 2, 2>}]} {
    %c0_i32 = arith.constant 0 : i32
    %0 = arith.cmpi eq, %arg1, %c0_i32 : i32
    %1 = arith.extui %0 : i1 to i32
    %c0_i32_0 = arith.constant 0 : i32
    %2 = arith.cmpi ne, %1, %c0_i32_0 : i32
    scf.if %2 {
      %cst_10 = arith.constant 0.000000e+00 : f32
      %13 = vector.broadcast %cst_10 : f32 to vector<2x3681xf32>
      %c0_11 = arith.constant 0 : index
      %c0_12 = arith.constant 0 : index
      %14 = vector.load %arg7[%c0_11, %c0_12] : memref<2x3681xf32, #tpu.memory_space<vmem>>, vector<2x3681xf32>
      tpu.vector_store %arg7[%c0_11, %c0_12], %13 {strides = array<i32>} : memref<2x3681xf32, #tpu.memory_space<vmem>>, vector<2x3681xf32>,
    } else {
    }
    %c0 = arith.constant 0 : index
    %c0_1 = arith.constant 0 : index
    %3 = vector.load %arg2[%c0, %c0_1] : memref<2x768xf32, #tpu.memory_space<vmem>>, vector<2x768xf32>
    %4 = arith.truncf %3 : vector<2x768xf32> to vector<2x768xbf16>
    %c0_2 = arith.constant 0 : index
    %c0_3 = arith.constant 0 : index
    %5 = vector.load %arg7[%c0_2, %c0_3] : memref<2x3681xf32, #tpu.memory_space<vmem>>, vector<2x3681xf32>
    %c0_4 = arith.constant 0 : index
    %c0_5 = arith.constant 0 : index
    %6 = vector.load %arg3[%c0_4, %c0_5] : memref<768x3681xbf16, #tpu.memory_space<vmem>>, vector<768x3681xbf16>
    %cst = arith.constant dense<0.000000e+00> : vector<2x3681xf32>
    %7 = tpu.matmul %4, %6, %cst {dimension_numbers = #tpu.dot_dimension_numbers<[1], [0], [0], [1], [0, 0, 1, 1], [], []>} : vector<2x768xbf16>, vector<768x3681xbf16>, vector<2x3681xf32> -> vector<2x3681xf32>
    %8 = arith.addf %5, %7 : vector<2x3681xf32>
    %c0_6 = arith.constant 0 : index
    %c0_7 = arith.constant 0 : index
    %9 = vector.load %arg7[%c0_6, %c0_7] : memref<2x3681xf32, #tpu.memory_space<vmem>>, vector<2x3681xf32>
    tpu.vector_store %arg7[%c0_6, %c0_7], %8 {strides = array<i32>} : memref<2x3681xf32, #tpu.memory_space<vmem>>, vector<2x3681xf32>,
    %c0_i32_8 = arith.constant 0 : i32
    %10 = arith.cmpi eq, %arg1, %c0_i32_8 : i32
    %11 = arith.extui %10 : i1 to i32
    %c0_i32_9 = arith.constant 0 : i32
    %12 = arith.cmpi ne, %11, %c0_i32_9 : i32
    scf.if %12 {
      %c0_10 = arith.constant 0 : index
      %c0_11 = arith.constant 0 : index
      %13 = vector.load %arg7[%c0_10, %c0_11] : memref<2x3681xf32, #tpu.memory_space<vmem>>, vector<2x3681xf32>
      %cst_12 = arith.constant 0.000000e+00 : f32
      %14 = vector.broadcast %cst_12 : f32 to vector<2x3681xf32>
      %15 = arith.maximumf %13, %14 : vector<2x3681xf32>
      %c0_13 = arith.constant 0 : index
      %c0_14 = arith.constant 0 : index
      %16 = vector.load %arg4[%c0_13, %c0_14] : memref<3681x128xf32, #tpu.memory_space<vmem>>, vector<3681x128xf32>
      %cst_15 = arith.constant dense<0.000000e+00> : vector<2x128xf32>
      %17 = tpu.matmul %15, %16, %cst_15 {dimension_numbers = #tpu.dot_dimension_numbers<[1], [0], [0], [1], [0, 0, 1, 1], [], []>} : vector<2x3681xf32>, vector<3681x128xf32>, vector<2x128xf32> -> vector<2x128xf32>
      %18 = vector.extract_strided_slice %17 {offsets = [0, 0], sizes = [2, 1], strides = [1, 1]} : vector<2x128xf32> to vector<2x1xf32>
      %c0_16 = arith.constant 0 : index
      %19 = memref.load %arg5[%c0_16] : memref<2xf32, #tpu.memory_space<smem>>
      %20 = vector.broadcast %19 : f32 to vector<2x1xf32>
      %21 = arith.addf %18, %20 : vector<2x1xf32>
      %c0_17 = arith.constant 0 : index
      %c0_18 = arith.constant 0 : index
      %22 = vector.load %arg6[%c0_17, %c0_18] : memref<2x2xf32, #tpu.memory_space<vmem>>, vector<2x1xf32>
      tpu.vector_store %arg6[%c0_17, %c0_18], %21 {strides = array<i32>} : memref<2x2xf32, #tpu.memory_space<vmem>>, vector<2x1xf32>,
      %23 = vector.extract_strided_slice %17 {offsets = [0, 1], sizes = [2, 1], strides = [1, 1]} : vector<2x128xf32> to vector<2x1xf32>
      %c1 = arith.constant 1 : index
      %24 = memref.load %arg5[%c1] : memref<2xf32, #tpu.memory_space<smem>>
      %25 = vector.broadcast %24 : f32 to vector<2x1xf32>
      %26 = arith.addf %23, %25 : vector<2x1xf32>
      %c0_19 = arith.constant 0 : index
      %c1_20 = arith.constant 1 : index
      %27 = vector.load %arg6[%c0_19, %c1_20] : memref<2x2xf32, #tpu.memory_space<vmem>>, vector<2x1xf32>
      tpu.vector_store %arg6[%c0_19, %c1_20], %26 {strides = array<i32>} : memref<2x2xf32, #tpu.memory_space<vmem>>, vector<2x1xf32>,
    } else {
    }
    return
  }
  func.func @transform_0(%arg0: i32, %arg1: i32) -> (i32, i32) {
    %c0_i32 = arith.constant 0 : i32
    return %arg0, %arg1 : i32, i32
  }
  func.func @transform_1(%arg0: i32, %arg1: i32) -> (i32, i32) {
    %c0_i32 = arith.constant 0 : i32
    %c0_i32_0 = arith.constant 0 : i32
    return %arg1, %c0_i32 : i32, i32
  }
  func.func @transform_2(%arg0: i32, %arg1: i32) -> (i32, i32) {
    %c0_i32 = arith.constant 0 : i32
    %c0_i32_0 = arith.constant 0 : i32
    %c0_i32_1 = arith.constant 0 : i32
    return %c0_i32, %c0_i32_0 : i32, i32
  }
  func.func @transform_3(%arg0: i32, %arg1: i32) -> i32 {
    %c0_i32 = arith.constant 0 : i32
    %c0_i32_0 = arith.constant 0 : i32
    return %c0_i32 : i32
  }
  func.func @transform_4(%arg0: i32, %arg1: i32) -> (i32, i32) {
    %c0_i32 = arith.constant 0 : i32
    %c0_i32_0 = arith.constant 0 : i32
    return %arg0, %c0_i32 : i32, i32
  }
}

</mosaic_0001>

<llo_original>
// kernel: tpu_custom_call.1
$region0: #{tpu_custom_call.1}
  #allocation0 [shape = 'u32[]', space=smem, size = 0x4, offset = 0x4, fixed_abs, tag = 'smem constant byte address 0x4 - core index']
  #allocation1 [shape = 'u32[144,128]{1,0:T(1,128)}', space=vmem, size = 0x12000, scoped, tag = 'internal scratch']
  #allocation2 [shape = 'f32[2,3681]{1,0:T(2,128)}', space=vmem, size = 0x7400, scoped, tag = 'scratch operand']
  %s0 = inlined_call_operand.vmem [shape: f32[2,768], index: 0, kind: input, shape index: {}]
  %s1 = inlined_call_operand.vmem [shape: bf16[768,3681], index: 1, kind: input, shape index: {}]
  %s2 = inlined_call_operand.vmem [shape: f32[3681,128], index: 2, kind: input, shape index: {}]
  %s3 = inlined_call_operand.vmem [shape: f32[2], index: 3, kind: input, shape index: {}]
  %s4 = inlined_call_operand.hbm [shape: f32[2,2], index: 4, kind: output, shape index: {}]
  %s5 = sld [smem:[#allocation0]]
  $region38: #{tpu_custom_call.1} parent=0
    _
  %s7 = ssub.s32 1, %s5
  %s8 = scalar_select 0, %s7, %s5
  $region1: #{tpu_custom_call.1} parent=0
    #allocation3 [shape = 'u8[512]{0}', space=smem, size = 0x200, scoped, tag = 'input window, operand 3, single buffered']
    #allocation4 [shape = 's32[1]{0}', space=sflag, size = 0x4, scoped, tag = 'scoped memory for tpu_custom_call.1']
    #allocation5 [shape = 's32[1]{0}', space=sflag, size = 0x4, scoped, tag = 'scoped memory for tpu_custom_call.1']
    #allocation6 [shape = 'u8[1024]{0}', space=vmem, size = 0x400, scoped, tag = 'output window, operand 0, single buffered']
    %9 = vsyncpa [#allocation5], 0
    %10 = vsyncpa [#allocation4], 0
    // Predicated region
    $region2: #{tpu_custom_call.1} parent=1 // pred_check
      _
    $region3: #{tpu_custom_call.1} parent=1 // pred_check_branch
      %12 = sbr.rel (0) target = $region5
    $region4: #{tpu_custom_call.1} parent=1 // pred_region
      _
    $region5: #{tpu_custom_call.1} parent=1 // pred_fallthru
      _
    // Predicated region
    $region6: #{tpu_custom_call.1} parent=1 // pred_check
      _
    $region7: #{tpu_custom_call.1} parent=1 // pred_check_branch
      %14 = sbr.rel (0) target = $region9
    $region8: #{tpu_custom_call.1} parent=1 // pred_region
      _
    $region9: #{tpu_custom_call.1} parent=1 // pred_fallthru
      _
    // Predicated region
    $region10: #{tpu_custom_call.1} parent=1 // pred_check
      _
    $region11: #{tpu_custom_call.1} parent=1 // pred_check_branch
      %16 = sbr.rel (0) target = $region13
    $region12: #{tpu_custom_call.1} parent=1 // pred_region
      _
    $region13: #{tpu_custom_call.1} parent=1 // pred_fallthru
      _
    // Predicated region
    $region14: #{tpu_custom_call.1} parent=1 // pred_check
      _
    $region15: #{tpu_custom_call.1} parent=1 // pred_check_branch
      %18 = sbr.rel (0) target = $region17
    $region16: #{tpu_custom_call.1} parent=1 // pred_region
      %s20 = ssub.s32 16, 16
      %21 = vsyncadd [#allocation5], %s20
      %s23 = sshll.u32 %s3, 4
      %s24 = int_to_ptr.vmem [resolvable:$true] %s23
      %26 = dma.vmem_to_smem %s24, 16, [#allocation3], [#allocation5]
    $region17: #{tpu_custom_call.1} parent=1 // pred_fallthru
      _
    // Predicated region
    $region18: #{tpu_custom_call.1} parent=1 // pred_check
      _
    $region19: #{tpu_custom_call.1} parent=1 // pred_check_branch
      %28 = sbr.rel (0) target = $region21
    $region20: #{tpu_custom_call.1} parent=1 // pred_region
      %29 = dma.done [#allocation5], 16
    $region21: #{tpu_custom_call.1} parent=1 // pred_fallthru
      _
    %30 = sfence
    %p32 = scmp.eq.s32.totalorder 0, 0
    // Predicated region
    $region22: #{tpu_custom_call.1} parent=1 // pred_check
      %p33 = pneg %p32
    $region23: #{tpu_custom_call.1} parent=1 // pred_check_branch
      %35 = sbr.rel (%p33) target = $region25
    $region24: #{tpu_custom_call.1} parent=1 // pred_region
      %36 = vst [vmem:[#allocation2] sm:$0xff] 0.0
      %37 = vst [vmem:[#allocation2 + $0x8] sm:$0xff] 0.0
      %38 = vst [vmem:[#allocation2 + $0x10] sm:$0xff] 0.0
      %39 = vst [vmem:[#allocation2 + $0x18] sm:$0xff] 0.0
      %40 = vst [vmem:[#allocation2 + $0x20] sm:$0xff] 0.0
      %41 = vst [vmem:[#allocation2 + $0x28] sm:$0xff] 0.0
      %42 = vst [vmem:[#allocation2 + $0x30] sm:$0xff] 0.0
      %vm43 = vcmask 787456
      %44 = vst.msk [vmem:[#allocation2 + $0x38] sm:$0x3] %vm43, 0.0
    $region25: #{tpu_custom_call.1} parent=1 // pred_fallthru
      _
    %v45 = vld [vmem:[%s0] sm:$0xff]
    %v46 = vld [vmem:[%s0 + $0x8] sm:$0xf]
    %v49 = vcombine.high %v45, %v45
    %v51 = vunpack.c.l.s4 1983009808
    %v52 = vunpack.c.0.s8 %v51
    %v53 = vlaneseq
    %v54 = vshrl.u32 %v53, 7
    %v55 = vsub.s32 %v52, %v54
    %v56 = vrot.slane %v45, %v55
    %v58 = vunpack.c.l.s4 1983009808
    %v59 = vunpack.c.0.s8 %v58
    %v60 = vlaneseq
    %v61 = vshrl.u32 %v60, 7
    %v62 = vsub.s32 %v59, %v61
    %v63 = vrot.slane %v49, %v62
    %v64 = vcombine.high %v56, %v56
    %v65 = vcombine.high %v63, %v63
    %v67 = vunpack.c.l.s4 1983009808
    %v68 = vunpack.c.0.s8 %v67
    %v69 = vlaneseq
    %v70 = vshrl.u32 %v69, 7
    %v71 = vsub.s32 %v68, %v70
    %v72 = vrot.slane %v46, %v71
    %v73 = vcombine.high %v72, %v72
    %v80 = vpack.c.bf16 %v56, %v56
    %v81 = vpack.c.bf16 %v64, %v64
    %v82 = vpack.c.bf16 %v63, %v63
    %v83 = vpack.c.bf16 %v65, %v65
    %v84 = vpack.c.bf16 %v72, %v72
    %v85 = vpack.c.bf16 %v73, %v73
    %v86 = vld [vmem:[#allocation2] sm:$0xff]
    %v87 = vld [vmem:[#allocation2 + $0x8] sm:$0xff]
    %v88 = vld [vmem:[#allocation2 + $0x10] sm:$0xff]
    %v89 = vld [vmem:[#allocation2 + $0x18] sm:$0xff]
    %v90 = vld [vmem:[#allocation2 + $0x20] sm:$0xff]
    %v91 = vld [vmem:[#allocation2 + $0x28] sm:$0xff]
    %v92 = vld [vmem:[#allocation2 + $0x30] sm:$0xff]
    %v93 = vld [vmem:[#allocation2 + $0x38] sm:$0x3]
    %v94 = vld [vmem:[%s1] sm:$0xff]
    %v95 = vld [vmem:[%s1 + $0x8] sm:$0xff]
    %v96 = vld [vmem:[%s1 + $0x10] sm:$0xff]
    %v97 = vld [vmem:[%s1 + $0x18] sm:$0xff]
    %v98 = vld [vmem:[%s1 + $0x20] sm:$0xff]
    %v99 = vld [vmem:[%s1 + $0x28] sm:$0xff]
    %v100 = vld [vmem:[%s1 + $0x30] sm:$0xff]
    %v101 = vld [vmem:[%s1 + $0x38] sm:$0xff]
    %v102 = vld [vmem:[%s1 + $0x40] sm:$0xff]
    %v103 = vld [vmem:[%s1 + $0x48] sm:$0xff]
    %v104 = vld [vmem:[%s1 + $0x50] sm:$0xff]
    %v105 = vld [vmem:[%s1 + $0x58] sm:$0xff]
    %v106 = vld [vmem:[%s1 + $0x60] sm:$0xff]
    %v107 = vld [vmem:[%s1 + $0x68] sm:$0xff]
    %v108 = vld [vmem:[%s1 + $0x70] sm:$0xf]
    %v109 = vld [vmem:[%s1 + $0x74] sm:$0xff]
    %v110 = vld [vmem:[%s1 + $0x7c] sm:$0xff]
    %v111 = vld [vmem:[%s1 + $0x84] sm:$0xff]
    %v112 = vld [vmem:[%s1 + $0x8c] sm:$0xff]
    %v113 = vld [vmem:[%s1 + $0x94] sm:$0xff]
    %v114 = vld [vmem:[%s1 + $0x9c] sm:$0xff]
    %v115 = vld [vmem:[%s1 + $0xa4] sm:$0xff]
    %v116 = vld [vmem:[%s1 + $0xac] sm:$0xff]
    %v117 = vld [vmem:[%s1 + $0xb4] sm:$0xff]
    %v118 = vld [vmem:[%s1 + $0xbc] sm:$0xff]
    %v119 = vld [vmem:[%s1 + $0xc4] sm:$0xff]
    %v120 = vld [vmem:[%s1 + $0xcc] sm:$0xff]
    %v121 = vld [vmem:[%s1 + $0xd4] sm:$0xff]
    %v122 = vld [vmem:[%s1 + $0xdc] sm:$0xff]
    %v123 = vld [vmem:[%s1 + $0xe4] sm:$0xf]
    %v124 = vld [vmem:[%s1 + $0xe8] sm:$0xff]
    %v125 = vld [vmem:[%s1 + $0xf0] sm:$0xff]
    %v126 = vld [vmem:[%s1 + $0xf8] sm:$0xff]
    %v127 = vld [vmem:[%s1 + $0x100] sm:$0xff]
    %v128 = vld [vmem:[%s1 + $0x108] sm:$0xff]
    %v129 = vld [vmem:[%s1 + $0x110] sm:$0xff]
    %v130 = vld [vmem:[%s1 + $0x118] sm:$0xff]
    %v131 = vld [vmem:[%s1 + $0x120] sm:$0xff]
    %v132 = vld [vmem:[%s1 + $0x128] sm:$0xff]
    %v133 = vld [vmem:[%s1 + $0x130] sm:$0xff]
    %v134 = vld [vmem:[%s1 + $0x138] sm:$0xff]
    %v135 = vld [vmem:[%s1 + $0x140] sm:$0xff]
    %v136 = vld [vmem:[%s1 + $0x148] sm:$0xff]
    %v137 = vld [vmem:[%s1 + $0x150] sm:$0xff]
    %v138 = vld [vmem:[%s1 + $0x158] sm:$0xf]
    %v139 = vld [vmem:[%s1 + $0x15c] sm:$0xff]
    %v140 = vld [vmem:[%s1 + $0x164] sm:$0xff]
    %v141 = vld [vmem:[%s1 + $0x16c] sm:$0xff]
    %v142 = vld [vmem:[%s1 + $0x174] sm:$0xff]
    %v143 = vld [vmem:[%s1 + $0x17c] sm:$0xff]
    %v144 = vld [vmem:[%s1 + $0x184] sm:$0xff]
    %v145 = vld [vmem:[%s1 + $0x18c] sm:$0xff]
    %v146 = vld [vmem:[%s1 + $0x194] sm:$0xff]
    %v147 = vld [vmem:[%s1 + $0x19c] sm:$0xff]
    %v148 = vld [vmem:[%s1 + $0x1a4] sm:$0xff]
    %v149 = vld [vmem:[%s1 + $0x1ac] sm:$0xff]
    %v150 = vld [vmem:[%s1 + $0x1b4] sm:$0xff]
    %v151 = vld [vmem:[%s1 + $0x1bc] sm:$0xff]
    %v152 = vld [vmem:[%s1 + $0x1c4] sm:$0xff]
    %v153 = vld [vmem:[%s1 + $0x1cc] sm:$0xf]
    %v154 = vld [vmem:[%s1 + $0x1d0] sm:$0xff]
    %v155 = vld [vmem:[%s1 + $0x1d8] sm:$0xff]
    %v156 = vld [vmem:[%s1 + $0x1e0] sm:$0xff]
    %v157 = vld [vmem:[%s1 + $0x1e8] sm:$0xff]
    %v158 = vld [vmem:[%s1 + $0x1f0] sm:$0xff]
    %v159 = vld [vmem:[%s1 + $0x1f8] sm:$0xff]
    %v160 = vld [vmem:[%s1 + $0x200] sm:$0xff]
    %v161 = vld [vmem:[%s1 + $0x208] sm:$0xff]
    %v162 = vld [vmem:[%s1 + $0x210] sm:$0xff]
    %v163 = vld [vmem:[%s1 + $0x218] sm:$0xff]
    %v164 = vld [vmem:[%s1 + $0x220] sm:$0xff]
    %v165 = vld [vmem:[%s1 + $0x228] sm:$0xff]
    %v166 = vld [vmem:[%s1 + $0x230] sm:$0xff]
    %v167 = vld [vmem:[%s1 + $0x238] sm:$0xff]
    %v168 = vld [vmem:[%s1 + $0x240] sm:$0xf]
    %v169 = vld [vmem:[%s1 + $0x244] sm:$0xff]
    %v170 = vld [vmem:[%s1 + $0x24c] sm:$0xff]
    %v171 = vld [vmem:[%s1 + $0x254] sm:$0xff]
    %v172 = vld [vmem:[%s1 + $0x25c] sm:$0xff]
    %v173 = vld [vmem:[%s1 + $0x264] sm:$0xff]
    %v174 = vld [vmem:[%s1 + $0x26c] sm:$0xff]
    %v175 = vld [vmem:[%s1 + $0x274] sm:$0xff]
    %v176 = vld [vmem:[%s1 + $0x27c] sm:$0xff]
    %v177 = vld [vmem:[%s1 + $0x284] sm:$0xff]
    %v178 = vld [vmem:[%s1 + $0x28c] sm:$0xff]
    %v179 = vld [vmem:[%s1 + $0x294] sm:$0xff]
    %v180 = vld [vmem:[%s1 + $0x29c] sm:$0xff]
    %v181 = vld [vmem:[%s1 + $0x2a4] sm:$0xff]
    %v182 = vld [vmem:[%s1 + $0x2ac] sm:$0xff]
    %v183 = vld [vmem:[%s1 + $0x2b4] sm:$0xf]
    %v184 = vld [vmem:[%s1 + $0x2b8] sm:$0xff]
    %v185 = vld [vmem:[%s1 + $0x2c0] sm:$0xff]
    %v186 = vld [vmem:[%s1 + $0x2c8] sm:$0xff]
    %v187 = vld [vmem:[%s1 + $0x2d0] sm:$0xff]
    %v188 = vld [vmem:[%s1 + $0x2d8] sm:$0xff]
    %v189 = vld [vmem:[%s1 + $0x2e0] sm:$0xff]
    %v190 = vld [vmem:[%s1 + $0x2e8] sm:$0xff]
    %v191 = vld [vmem:[%s1 + $0x2f0] sm:$0xff]
    %v192 = vld [vmem:[%s1 + $0x2f8] sm:$0xff]
    %v193 = vld [vmem:[%s1 + $0x300] sm:$0xff]
    %v194 = vld [vmem:[%s1 + $0x308] sm:$0xff]
    %v195 = vld [vmem:[%s1 + $0x310] sm:$0xff]
    %v196 = vld [vmem:[%s1 + $0x318] sm:$0xff]
    %v197 = vld [vmem:[%s1 + $0x320] sm:$0xff]
    %v198 = vld [vmem:[%s1 + $0x328] sm:$0xf]
    %v199 = vld [vmem:[%s1 + $0x32c] sm:$0xff]
    %v200 = vld [vmem:[%s1 + $0x334] sm:$0xff]
    %v201 = vld [vmem:[%s1 + $0x33c] sm:$0xff]
    %v202 = vld [vmem:[%s1 + $0x344] sm:$0xff]
    %v203 = vld [vmem:[%s1 + $0x34c] sm:$0xff]
    %v204 = vld [vmem:[%s1 + $0x354] sm:$0xff]
    %v205 = vld [vmem:[%s1 + $0x35c] sm:$0xff]
    %v206 = vld [vmem:[%s1 + $0x364] sm:$0xff]
    %v207 = vld [vmem:[%s1 + $0x36c] sm:$0xff]
    %v208 = vld [vmem:[%s1 + $0x374] sm:$0xff]
    %v209 = vld [vmem:[%s1 + $0x37c] sm:$0xff]
    %v210 = vld [vmem:[%s1 + $0x384] sm:$0xff]
    %v211 = vld [vmem:[%s1 + $0x38c] sm:$0xff]
    %v212 = vld [vmem:[%s1 + $0x394] sm:$0xff]
    %v213 = vld [vmem:[%s1 + $0x39c] sm:$0xf]
    %v214 = vld [vmem:[%s1 + $0x3a0] sm:$0xff]
    %v215 = vld [vmem:[%s1 + $0x3a8] sm:$0xff]
    %v216 = vld [vmem:[%s1 + $0x3b0] sm:$0xff]
    %v217 = vld [vmem:[%s1 + $0x3b8] sm:$0xff]
    %v218 = vld [vmem:[%s1 + $0x3c0] sm:$0xff]
    %v219 = vld [vmem:[%s1 + $0x3c8] sm:$0xff]
    %v220 = vld [vmem:[%s1 + $0x3d0] sm:$0xff]
    %v221 = vld [vmem:[%s1 + $0x3d8] sm:$0xff]
    %v222 = vld [vmem:[%s1 + $0x3e0] sm:$0xff]
    %v223 = vld [vmem:[%s1 + $0x3e8] sm:$0xff]
    %v224 = vld [vmem:[%s1 + $0x3f0] sm:$0xff]
    %v225 = vld [vmem:[%s1 + $0x3f8] sm:$0xff]
    %v226 = vld [vmem:[%s1 + $0x400] sm:$0xff]
    %v227 = vld [vmem:[%s1 + $0x408] sm:$0xff]
    %v228 = vld [vmem:[%s1 + $0x410] sm:$0xf]
    %v229 = vld [vmem:[%s1 + $0x414] sm:$0xff]
    %v230 = vld [vmem:[%s1 + $0x41c] sm:$0xff]
    %v231 = vld [vmem:[%s1 + $0x424] sm:$0xff]
    %v232 = vld [vmem:[%s1 + $0x42c] sm:$0xff]
    %v233 = vld [vmem:[%s1 + $0x434] sm:$0xff]
    %v234 = vld [vmem:[%s1 + $0x43c] sm:$0xff]
    %v235 = vld [vmem:[%s1 + $0x444] sm:$0xff]
    %v236 = vld [vmem:[%s1 + $0x44c] sm:$0xff]
    %v237 = vld [vmem:[%s1 + $0x454] sm:$0xff]
    %v238 = vld [vmem:[%s1 + $0x45c] sm:$0xff]
    %v239 = vld [vmem:[%s1 + $0x464] sm:$0xff]
    %v240 = vld [vmem:[%s1 + $0x46c] sm:$0xff]
    %v241 = vld [vmem:[%s1 + $0x474] sm:$0xff]
    %v242 = vld [vmem:[%s1 + $0x47c] sm:$0xff]
    %v243 = vld [vmem:[%s1 + $0x484] sm:$0xf]
    %v244 = vld [vmem:[%s1 + $0x488] sm:$0xff]
    %v245 = vld [vmem:[%s1 + $0x490] sm:$0xff]
    %v246 = vld [vmem:[%s1 + $0x498] sm:$0xff]
    %v247 = vld [vmem:[%s1 + $0x4a0] sm:$0xff]
    %v248 = vld [vmem:[%s1 + $0x4a8] sm:$0xff]
    %v249 = vld [vmem:[%s1 + $0x4b0] sm:$0xff]
    %v250 = vld [vmem:[%s1 + $0x4b8] sm:$0xff]
    %v251 = vld [vmem:[%s1 + $0x4c0] sm:$0xff]
    %v252 = vld [vmem:[%s1 + $0x4c8] sm:$0xff]
    %v253 = vld [vmem:[%s1 + $0x4d0] sm:$0xff]
    %v254 = vld [vmem:[%s1 + $0x4d8] sm:$0xff]
    %v255 = vld [vmem:[%s1 + $0x4e0] sm:$0xff]
    %v256 = vld [vmem:[%s1 + $0x4e8] sm:$0xff]
    %v257 = vld [vmem:[%s1 + $0x4f0] sm:$0xff]
    %v258 = vld [vmem:[%s1 + $0x4f8] sm:$0xf]
    %v259 = vld [vmem:[%s1 + $0x4fc] sm:$0xff]
    %v260 = vld [vmem:[%s1 + $0x504] sm:$0xff]
    %v261 = vld [vmem:[%s1 + $0x50c] sm:$0xff]
    %v262 = vld [vmem:[%s1 + $0x514] sm:$0xff]
    %v263 = vld [vmem:[%s1 + $0x51c] sm:$0xff]
    %v264 = vld [vmem:[%s1 + $0x524] sm:$0xff]
    %v265 = vld [vmem:[%s1 + $0x52c] sm:$0xff]
    %v266 = vld [vmem:[%s1 + $0x534] sm:$0xff]
    %v267 = vld [vmem:[%s1 + $0x53c] sm:$0xff]
    %v268 = vld [vmem:[%s1 + $0x544] sm:$0xff]
    %v269 = vld [vmem:[%s1 + $0x54c] sm:$0xff]
    %v270 = vld [vmem:[%s1 + $0x554] sm:$0xff]
    %v271 = vld [vmem:[%s1 + $0x55c] sm:$0xff]
    %v272 = vld [vmem:[%s1 + $0x564] sm:$0xff]
    %v273 = vld [vmem:[%s1 + $0x56c] sm:$0xf]
    %v274 = vld [vmem:[%s1 + $0x570] sm:$0xff]
    %v275 = vld [vmem:[%s1 + $0x578] sm:$0xff]
    %v276 = vld [vmem:[%s1 + $0x580] sm:$0xff]
    %v277 = vld [vmem:[%s1 + $0x588] sm:$0xff]
    %v278 = vld [vmem:[%s1 + $0x590] sm:$0xff]
    %v279 = vld [vmem:[%s1 + $0x598] sm:$0xff]
    %v280 = vld [vmem:[%s1 + $0x5a0] sm:$0xff]
    %v281 = vld [vmem:[%s1 + $0x5a8] sm:$0xff]
    %v282 = vld [vmem:[%s1 + $0x5b0] sm:$0xff]
    %v283 = vld [vmem:[%s1 + $0x5b8] sm:$0xff]
    %v284 = vld [vmem:[%s1 + $0x5c0] sm:$0xff]
    %v285 = vld [vmem:[%s1 + $0x5c8] sm:$0xff]
    %v286 = vld [vmem:[%s1 + $0x5d0] sm:$0xff]
    %v287 = vld [vmem:[%s1 + $0x5d8] sm:$0xff]
    %v288 = vld [vmem:[%s1 + $0x5e0] sm:$0xf]
    %v289 = vld [vmem:[%s1 + $0x5e4] sm:$0xff]
    %v290 = vld [vmem:[%s1 + $0x5ec] sm:$0xff]
    %v291 = vld [vmem:[%s1 + $0x5f4] sm:$0xff]
    %v292 = vld [vmem:[%s1 + $0x5fc] sm:$0xff]
    %v293 = vld [vmem:[%s1 + $0x604] sm:$0xff]
    %v294 = vld [vmem:[%s1 + $0x60c] sm:$0xff]
    %v295 = vld [vmem:[%s1 + $0x614] sm:$0xff]
    %v296 = vld [vmem:[%s1 + $0x61c] sm:$0xff]
    %v297 = vld [vmem:[%s1 + $0x624] sm:$0xff]
    %v298 = vld [vmem:[%s1 + $0x62c] sm:$0xff]
    %v299 = vld [vmem:[%s1 + $0x634] sm:$0xff]
    %v300 = vld [vmem:[%s1 + $0x63c] sm:$0xff]
    %v301 = vld [vmem:[%s1 + $0x644] sm:$0xff]
    %v302 = vld [vmem:[%s1 + $0x64c] sm:$0xff]
    %v303 = vld [vmem:[%s1 + $0x654] sm:$0xf]
    %v304 = vld [vmem:[%s1 + $0x658] sm:$0xff]
    %v305 = vld [vmem:[%s1 + $0x660] sm:$0xff]
    %v306 = vld [vmem:[%s1 + $0x668] sm:$0xff]
    %v307 = vld [vmem:[%s1 + $0x670] sm:$0xff]
    %v308 = vld [vmem:[%s1 + $0x678] sm:$0xff]
    %v309 = vld [vmem:[%s1 + $0x680] sm:$0xff]
    %v310 = vld [vmem:[%s1 + $0x688] sm:$0xff]
    %v311 = vld [vmem:[%s1 + $0x690] sm:$0xff]
    %v312 = vld [vmem:[%s1 + $0x698] sm:$0xff]
    %v313 = vld [vmem:[%s1 + $0x6a0] sm:$0xff]
    %v314 = vld [vmem:[%s1 + $0x6a8] sm:$0xff]
    %v315 = vld [vmem:[%s1 + $0x6b0] sm:$0xff]
    %v316 = vld [vmem:[%s1 + $0x6b8] sm:$0xff]
    %v317 = vld [vmem:[%s1 + $0x6c0] sm:$0xff]
    %v318 = vld [vmem:[%s1 + $0x6c8] sm:$0xf]
    %v319 = vld [vmem:[%s1 + $0x6cc] sm:$0xff]
    %v320 = vld [vmem:[%s1 + $0x6d4] sm:$0xff]
    %v321 = vld [vmem:[%s1 + $0x6dc] sm:$0xff]
    %v322 = vld [vmem:[%s1 + $0x6e4] sm:$0xff]
    %v323 = vld [vmem:[%s1 + $0x6ec] sm:$0xff]
    %v324 = vld [vmem:[%s1 + $0x6f4] sm:$0xff]
    %v325 = vld [vmem:[%s1 + $0x6fc] sm:$0xff]
    %v326 = vld [vmem:[%s1 + $0x704] sm:$0xff]
    %v327 = vld [vmem:[%s1 + $0x70c] sm:$0xff]
    %v328 = vld [vmem:[%s1 + $0x714] sm:$0xff]
    %v329 = vld [vmem:[%s1 + $0x71c] sm:$0xff]
    %v330 = vld [vmem:[%s1 + $0x724] sm:$0xff]
    %v331 = vld [vmem:[%s1 + $0x72c] sm:$0xff]
    %v332 = vld [vmem:[%s1 + $0x734] sm:$0xff]
    %v333 = vld [vmem:[%s1 + $0x73c] sm:$0xf]
    %v334 = vld [vmem:[%s1 + $0x740] sm:$0xff]
    %v335 = vld [vmem:[%s1 + $0x748] sm:$0xff]
    %v336 = vld [vmem:[%s1 + $0x750] sm:$0xff]
    %v337 = vld [vmem:[%s1 + $0x758] sm:$0xff]
    %v338 = vld [vmem:[%s1 + $0x760] sm:$0xff]
    %v339 = vld [vmem:[%s1 + $0x768] sm:$0xff]
    %v340 = vld [vmem:[%s1 + $0x770] sm:$0xff]
    %v341 = vld [vmem:[%s1 + $0x778] sm:$0xff]
    %v342 = vld [vmem:[%s1 + $0x780] sm:$0xff]
    %v343 = vld [vmem:[%s1 + $0x788] sm:$0xff]
    %v344 = vld [vmem:[%s1 + $0x790] sm:$0xff]
    %v345 = vld [vmem:[%s1 + $0x798] sm:$0xff]
    %v346 = vld [vmem:[%s1 + $0x7a0] sm:$0xff]
    %v347 = vld [vmem:[%s1 + $0x7a8] sm:$0xff]
    %v348 = vld [vmem:[%s1 + $0x7b0] sm:$0xf]
    %v349 = vld [vmem:[%s1 + $0x7b4] sm:$0xff]
    %v350 = vld [vmem:[%s1 + $0x7bc] sm:$0xff]
    %v351 = vld [vmem:[%s1 + $0x7c4] sm:$0xff]
    %v352 = vld [vmem:[%s1 + $0x7cc] sm:$0xff]
    %v353 = vld [vmem:[%s1 + $0x7d4] sm:$0xff]
    %v354 = vld [vmem:[%s1 + $0x7dc] sm:$0xff]
    %v355 = vld [vmem:[%s1 + $0x7e4] sm:$0xff]
    %v356 = vld [vmem:[%s1 + $0x7ec] sm:$0xff]
    %v357 = vld [vmem:[%s1 + $0x7f4] sm:$0xff]
    %v358 = vld [vmem:[%s1 + $0x7fc] sm:$0xff]
    %v359 = vld [vmem:[%s1 + $0x804] sm:$0xff]
    %v360 = vld [vmem:[%s1 + $0x80c] sm:$0xff]
    %v361 = vld [vmem:[%s1 + $0x814] sm:$0xff]
    %v362 = vld [vmem:[%s1 + $0x81c] sm:$0xff]
    %v363 = vld [vmem:[%s1 + $0x824] sm:$0xf]
    %v364 = vld [vmem:[%s1 + $0x828] sm:$0xff]
    %v365 = vld [vmem:[%s1 + $0x830] sm:$0xff]
    %v366 = vld [vmem:[%s1 + $0x838] sm:$0xff]
    %v367 = vld [vmem:[%s1 + $0x840] sm:$0xff]
    %v368 = vld [vmem:[%s1 + $0x848] sm:$0xff]
    %v369 = vld [vmem:[%s1 + $0x850] sm:$0xff]
    %v370 = vld [vmem:[%s1 + $0x858] sm:$0xff]
    %v371 = vld [vmem:[%s1 + $0x860] sm:$0xff]
    %v372 = vld [vmem:[%s1 + $0x868] sm:$0xff]
    %v373 = vld [vmem:[%s1 + $0x870] sm:$0xff]
    %v374 = vld [vmem:[%s1 + $0x878] sm:$0xff]
    %v375 = vld [vmem:[%s1 + $0x880] sm:$0xff]
    %v376 = vld [vmem:[%s1 + $0x888] sm:$0xff]
    %v377 = vld [vmem:[%s1 + $0x890] sm:$0xff]
    %v378 = vld [vmem:[%s1 + $0x898] sm:$0xf]
    %v379 = vld [vmem:[%s1 + $0x89c] sm:$0xff]
    %v380 = vld [vmem:[%s1 + $0x8a4] sm:$0xff]
    %v381 = vld [vmem:[%s1 + $0x8ac] sm:$0xff]
    %v382 = vld [vmem:[%s1 + $0x8b4] sm:$0xff]
    %v383 = vld [vmem:[%s1 + $0x8bc] sm:$0xff]
    %v384 = vld [vmem:[%s1 + $0x8c4] sm:$0xff]
    %v385 = vld [vmem:[%s1 + $0x8cc] sm:$0xff]
    %v386 = vld [vmem:[%s1 + $0x8d4] sm:$0xff]
    %v387 = vld [vmem:[%s1 + $0x8dc] sm:$0xff]
    %v388 = vld [vmem:[%s1 + $0x8e4] sm:$0xff]
    %v389 = vld [vmem:[%s1 + $0x8ec] sm:$0xff]
    %v390 = vld [vmem:[%s1 + $0x8f4] sm:$0xff]
    %v391 = vld [vmem:[%s1 + $0x8fc] sm:$0xff]
    %v392 = vld [vmem:[%s1 + $0x904] sm:$0xff]
    %v393 = vld [vmem:[%s1 + $0x90c] sm:$0xf]
    %v394 = vld [vmem:[%s1 + $0x910] sm:$0xff]
    %v395 = vld [vmem:[%s1 + $0x918] sm:$0xff]
    %v396 = vld [vmem:[%s1 + $0x920] sm:$0xff]
    %v397 = vld [vmem:[%s1 + $0x928] sm:$0xff]
    %v398 = vld [vmem:[%s1 + $0x930] sm:$0xff]
    %v399 = vld [vmem:[%s1 + $0x938] sm:$0xff]
    %v400 = vld [vmem:[%s1 + $0x940] sm:$0xff]
    %v401 = vld [vmem:[%s1 + $0x948] sm:$0xff]
    %v402 = vld [vmem:[%s1 + $0x950] sm:$0xff]
    %v403 = vld [vmem:[%s1 + $0x958] sm:$0xff]
    %v404 = vld [vmem:[%s1 + $0x960] sm:$0xff]
    %v405 = vld [vmem:[%s1 + $0x968] sm:$0xff]
    %v406 = vld [vmem:[%s1 + $0x970] sm:$0xff]
    %v407 = vld [vmem:[%s1 + $0x978] sm:$0xff]
    %v408 = vld [vmem:[%s1 + $0x980] sm:$0xf]
    %v409 = vld [vmem:[%s1 + $0x984] sm:$0xff]
    %v410 = vld [vmem:[%s1 + $0x98c] sm:$0xff]
    %v411 = vld [vmem:[%s1 + $0x994] sm:$0xff]
    %v412 = vld [vmem:[%s1 + $0x99c] sm:$0xff]
    %v413 = vld [vmem:[%s1 + $0x9a4] sm:$0xff]
    %v414 = vld [vmem:[%s1 + $0x9ac] sm:$0xff]
    %v415 = vld [vmem:[%s1 + $0x9b4] sm:$0xff]
    %v416 = vld [vmem:[%s1 + $0x9bc] sm:$0xff]
    %v417 = vld [vmem:[%s1 + $0x9c4] sm:$0xff]
    %v418 = vld [vmem:[%s1 + $0x9cc] sm:$0xff]
    %v419 = vld [vmem:[%s1 + $0x9d4] sm:$0xff]
    %v420 = vld [vmem:[%s1 + $0x9dc] sm:$0xff]
    %v421 = vld [vmem:[%s1 + $0x9e4] sm:$0xff]
    %v422 = vld [vmem:[%s1 + $0x9ec] sm:$0xff]
    %v423 = vld [vmem:[%s1 + $0x9f4] sm:$0xf]
    %v424 = vld [vmem:[%s1 + $0x9f8] sm:$0xff]
    %v425 = vld [vmem:[%s1 + $0xa00] sm:$0xff]
    %v426 = vld [vmem:[%s1 + $0xa08] sm:$0xff]
    %v427 = vld [vmem:[%s1 + $0xa10] sm:$0xff]
    %v428 = vld [vmem:[%s1 + $0xa18] sm:$0xff]
    %v429 = vld [vmem:[%s1 + $0xa20] sm:$0xff]
    %v430 = vld [vmem:[%s1 + $0xa28] sm:$0xff]
    %v431 = vld [vmem:[%s1 + $0xa30] sm:$0xff]
    %v432 = vld [vmem:[%s1 + $0xa38] sm:$0xff]
    %v433 = vld [vmem:[%s1 + $0xa40] sm:$0xff]
    %v434 = vld [vmem:[%s1 + $0xa48] sm:$0xff]
    %v435 = vld [vmem:[%s1 + $0xa50] sm:$0xff]
    %v436 = vld [vmem:[%s1 + $0xa58] sm:$0xff]
    %v437 = vld [vmem:[%s1 + $0xa60] sm:$0xff]
    %v438 = vld [vmem:[%s1 + $0xa68] sm:$0xf]
    %v439 = vld [vmem:[%s1 + $0xa6c] sm:$0xff]
    %v440 = vld [vmem:[%s1 + $0xa74] sm:$0xff]
    %v441 = vld [vmem:[%s1 + $0xa7c] sm:$0xff]
    %v442 = vld [vmem:[%s1 + $0xa84] sm:$0xff]
    %v443 = vld [vmem:[%s1 + $0xa8c] sm:$0xff]
    %v444 = vld [vmem:[%s1 + $0xa94] sm:$0xff]
    %v445 = vld [vmem:[%s1 + $0xa9c] sm:$0xff]
    %v446 = vld [vmem:[%s1 + $0xaa4] sm:$0xff]
    %v447 = vld [vmem:[%s1 + $0xaac] sm:$0xff]
    %v448 = vld [vmem:[%s1 + $0xab4] sm:$0xff]
    %v449 = vld [vmem:[%s1 + $0xabc] sm:$0xff]
    %v450 = vld [vmem:[%s1 + $0xac4] sm:$0xff]
    %v451 = vld [vmem:[%s1 + $0xacc] sm:$0xff]
    %v452 = vld [vmem:[%s1 + $0xad4] sm:$0xff]
    %v453 = vld [vmem:[%s1 + $0xadc] sm:$0xf]
    %v454 = vld [vmem:[%s1 + $0xae0] sm:$0xff]
    %v455 = vld [vmem:[%s1 + $0xae8] sm:$0xff]
    %v456 = vld [vmem:[%s1 + $0xaf0] sm:$0xff]
    %v457 = vld [vmem:[%s1 + $0xaf8] sm:$0xff]
    %v458 = vld [vmem:[%s1 + $0xb00] sm:$0xff]
    %v459 = vld [vmem:[%s1 + $0xb08] sm:$0xff]
    %v460 = vld [vmem:[%s1 + $0xb10] sm:$0xff]
    %v461 = vld [vmem:[%s1 + $0xb18] sm:$0xff]
    %v462 = vld [vmem:[%s1 + $0xb20] sm:$0xff]
    %v463 = vld [vmem:[%s1 + $0xb28] sm:$0xff]
    %v464 = vld [vmem:[%s1 + $0xb30] sm:$0xff]
    %v465 = vld [vmem:[%s1 + $0xb38] sm:$0xff]
    %v466 = vld [vmem:[%s1 + $0xb40] sm:$0xff]
    %v467 = vld [vmem:[%s1 + $0xb48] sm:$0xff]
    %v468 = vld [vmem:[%s1 + $0xb50] sm:$0xf]
    %v469 = vld [vmem:[%s1 + $0xb54] sm:$0xff]
    %v470 = vld [vmem:[%s1 + $0xb5c] sm:$0xff]
    %v471 = vld [vmem:[%s1 + $0xb64] sm:$0xff]
    %v472 = vld [vmem:[%s1 + $0xb6c] sm:$0xff]
    %v473 = vld [vmem:[%s1 + $0xb74] sm:$0xff]
    %v474 = vld [vmem:[%s1 + $0xb7c] sm:$0xff]
    %v475 = vld [vmem:[%s1 + $0xb84] sm:$0xff]
    %v476 = vld [vmem:[%s1 + $0xb8c] sm:$0xff]
    %v477 = vld [vmem:[%s1 + $0xb94] sm:$0xff]
    %v478 = vld [vmem:[%s1 + $0xb9c] sm:$0xff]
    %v479 = vld [vmem:[%s1 + $0xba4] sm:$0xff]
    %v480 = vld [vmem:[%s1 + $0xbac] sm:$0xff]
    %v481 = vld [vmem:[%s1 + $0xbb4] sm:$0xff]
    %v482 = vld [vmem:[%s1 + $0xbbc] sm:$0xff]
    %v483 = vld [vmem:[%s1 + $0xbc4] sm:$0xf]
    %v484 = vld [vmem:[%s1 + $0xbc8] sm:$0xff]
    %v485 = vld [vmem:[%s1 + $0xbd0] sm:$0xff]
    %v486 = vld [vmem:[%s1 + $0xbd8] sm:$0xff]
    %v487 = vld [vmem:[%s1 + $0xbe0] sm:$0xff]
    %v488 = vld [vmem:[%s1 + $0xbe8] sm:$0xff]
    %v489 = vld [vmem:[%s1 + $0xbf0] sm:$0xff]
    %v490 = vld [vmem:[%s1 + $0xbf8] sm:$0xff]
    %v491 = vld [vmem:[%s1 + $0xc00] sm:$0xff]
    %v492 = vld [vmem:[%s1 + $0xc08] sm:$0xff]
    %v493 = vld [vmem:[%s1 + $0xc10] sm:$0xff]
    %v494 = vld [vmem:[%s1 + $0xc18] sm:$0xff]
    %v495 = vld [vmem:[%s1 + $0xc20] sm:$0xff]
    %v496 = vld [vmem:[%s1 + $0xc28] sm:$0xff]
    %v497 = vld [vmem:[%s1 + $0xc30] sm:$0xff]
    %v498 = vld [vmem:[%s1 + $0xc38] sm:$0xf]
    %v499 = vld [vmem:[%s1 + $0xc3c] sm:$0xff]
    %v500 = vld [vmem:[%s1 + $0xc44] sm:$0xff]
    %v501 = vld [vmem:[%s1 + $0xc4c] sm:$0xff]
    %v502 = vld [vmem:[%s1 + $0xc54] sm:$0xff]
    %v503 = vld [vmem:[%s1 + $0xc5c] sm:$0xff]
    %v504 = vld [vmem:[%s1 + $0xc64] sm:$0xff]
    %v505 = vld [vmem:[%s1 + $0xc6c] sm:$0xff]
    %v506 = vld [vmem:[%s1 + $0xc74] sm:$0xff]
    %v507 = vld [vmem:[%s1 + $0xc7c] sm:$0xff]
    %v508 = vld [vmem:[%s1 + $0xc84] sm:$0xff]
    %v509 = vld [vmem:[%s1 + $0xc8c] sm:$0xff]
    %v510 = vld [vmem:[%s1 + $0xc94] sm:$0xff]
    %v511 = vld [vmem:[%s1 + $0xc9c] sm:$0xff]
    %v512 = vld [vmem:[%s1 + $0xca4] sm:$0xff]
    %v513 = vld [vmem:[%s1 + $0xcac] sm:$0xf]
    %v514 = vld [vmem:[%s1 + $0xcb0] sm:$0xff]
    %v515 = vld [vmem:[%s1 + $0xcb8] sm:$0xff]
    %v516 = vld [vmem:[%s1 + $0xcc0] sm:$0xff]
    %v517 = vld [vmem:[%s1 + $0xcc8] sm:$0xff]
    %v518 = vld [vmem:[%s1 + $0xcd0] sm:$0xff]
    %v519 = vld [vmem:[%s1 + $0xcd8] sm:$0xff]
    %v520 = vld [vmem:[%s1 + $0xce0] sm:$0xff]
    %v521 = vld [vmem:[%s1 + $0xce8] sm:$0xff]
    %v522 = vld [vmem:[%s1 + $0xcf0] sm:$0xff]
    %v523 = vld [vmem:[%s1 + $0xcf8] sm:$0xff]
    %v524 = vld [vmem:[%s1 + $0xd00] sm:$0xff]
    %v525 = vld [vmem:[%s1 + $0xd08] sm:$0xff]
    %v526 = vld [vmem:[%s1 + $0xd10] sm:$0xff]
    %v527 = vld [vmem:[%s1 + $0xd18] sm:$0xff]
    %v528 = vld [vmem:[%s1 + $0xd20] sm:$0xf]
    %v529 = vld [vmem:[%s1 + $0xd24] sm:$0xff]
    %v530 = vld [vmem:[%s1 + $0xd2c] sm:$0xff]
    %v531 = vld [vmem:[%s1 + $0xd34] sm:$0xff]
    %v532 = vld [vmem:[%s1 + $0xd3c] sm:$0xff]
    %v533 = vld [vmem:[%s1 + $0xd44] sm:$0xff]
    %v534 = vld [vmem:[%s1 + $0xd4c] sm:$0xff]
    %v535 = vld [vmem:[%s1 + $0xd54] sm:$0xff]
    %v536 = vld [vmem:[%s1 + $0xd5c] sm:$0xff]
    %v537 = vld [vmem:[%s1 + $0xd64] sm:$0xff]
    %v538 = vld [vmem:[%s1 + $0xd6c] sm:$0xff]
    %v539 = vld [vmem:[%s1 + $0xd74] sm:$0xff]
    %v540 = vld [vmem:[%s1 + $0xd7c] sm:$0xff]
    %v541 = vld [vmem:[%s1 + $0xd84] sm:$0xff]
    %v542 = vld [vmem:[%s1 + $0xd8c] sm:$0xff]
    %v543 = vld [vmem:[%s1 + $0xd94] sm:$0xf]
    %v544 = vld [vmem:[%s1 + $0xd98] sm:$0xff]
    %v545 = vld [vmem:[%s1 + $0xda0] sm:$0xff]
    %v546 = vld [vmem:[%s1 + $0xda8] sm:$0xff]
    %v547 = vld [vmem:[%s1 + $0xdb0] sm:$0xff]
    %v548 = vld [vmem:[%s1 + $0xdb8] sm:$0xff]
    %v549 = vld [vmem:[%s1 + $0xdc0] sm:$0xff]
    %v550 = vld [vmem:[%s1 + $0xdc8] sm:$0xff]
    %v551 = vld [vmem:[%s1 + $0xdd0] sm:$0xff]
    %v552 = vld [vmem:[%s1 + $0xdd8] sm:$0xff]
    %v553 = vld [vmem:[%s1 + $0xde0] sm:$0xff]
    %v554 = vld [vmem:[%s1 + $0xde8] sm:$0xff]
    %v555 = vld [vmem:[%s1 + $0xdf0] sm:$0xff]
    %v556 = vld [vmem:[%s1 + $0xdf8] sm:$0xff]
    %v557 = vld [vmem:[%s1 + $0xe00] sm:$0xff]
    %v558 = vld [vmem:[%s1 + $0xe08] sm:$0xf]
    %v559 = vld [vmem:[%s1 + $0xe0c] sm:$0xff]
    %v560 = vld [vmem:[%s1 + $0xe14] sm:$0xff]
    %v561 = vld [vmem:[%s1 + $0xe1c] sm:$0xff]
    %v562 = vld [vmem:[%s1 + $0xe24] sm:$0xff]
    %v563 = vld [vmem:[%s1 + $0xe2c] sm:$0xff]
    %v564 = vld [vmem:[%s1 + $0xe34] sm:$0xff]
    %v565 = vld [vmem:[%s1 + $0xe3c] sm:$0xff]
    %v566 = vld [vmem:[%s1 + $0xe44] sm:$0xff]
    %v567 = vld [vmem:[%s1 + $0xe4c] sm:$0xff]
    %v568 = vld [vmem:[%s1 + $0xe54] sm:$0xff]
    %v569 = vld [vmem:[%s1 + $0xe5c] sm:$0xff]
    %v570 = vld [vmem:[%s1 + $0xe64] sm:$0xff]
    %v571 = vld [vmem:[%s1 + $0xe6c] sm:$0xff]
    %v572 = vld [vmem:[%s1 + $0xe74] sm:$0xff]
    %v573 = vld [vmem:[%s1 + $0xe7c] sm:$0xf]
    %v574 = vld [vmem:[%s1 + $0xe80] sm:$0xff]
    %v575 = vld [vmem:[%s1 + $0xe88] sm:$0xff]
    %v576 = vld [vmem:[%s1 + $0xe90] sm:$0xff]
    %v577 = vld [vmem:[%s1 + $0xe98] sm:$0xff]
    %v578 = vld [vmem:[%s1 + $0xea0] sm:$0xff]
    %v579 = vld [vmem:[%s1 + $0xea8] sm:$0xff]
    %v580 = vld [vmem:[%s1 + $0xeb0] sm:$0xff]
    %v581 = vld [vmem:[%s1 + $0xeb8] sm:$0xff]
    %v582 = vld [vmem:[%s1 + $0xec0] sm:$0xff]
    %v583 = vld [vmem:[%s1 + $0xec8] sm:$0xff]
    %v584 = vld [vmem:[%s1 + $0xed0] sm:$0xff]
    %v585 = vld [vmem:[%s1 + $0xed8] sm:$0xff]
    %v586 = vld [vmem:[%s1 + $0xee0] sm:$0xff]
    %v587 = vld [vmem:[%s1 + $0xee8] sm:$0xff]
    %v588 = vld [vmem:[%s1 + $0xef0] sm:$0xf]
    %v589 = vld [vmem:[%s1 + $0xef4] sm:$0xff]
    %v590 = vld [vmem:[%s1 + $0xefc] sm:$0xff]
    %v591 = vld [vmem:[%s1 + $0xf04] sm:$0xff]
    %v592 = vld [vmem:[%s1 + $0xf0c] sm:$0xff]
    %v593 = vld [vmem:[%s1 + $0xf14] sm:$0xff]
    %v594 = vld [vmem:[%s1 + $0xf1c] sm:$0xff]
    %v595 = vld [vmem:[%s1 + $0xf24] sm:$0xff]
    %v596 = vld [vmem:[%s1 + $0xf2c] sm:$0xff]
    %v597 = vld [vmem:[%s1 + $0xf34] sm:$0xff]
    %v598 = vld [vmem:[%s1 + $0xf3c] sm:$0xff]
    %v599 = vld [vmem:[%s1 + $0xf44] sm:$0xff]
    %v600 = vld [vmem:[%s1 + $0xf4c] sm:$0xff]
    %v601 = vld [vmem:[%s1 + $0xf54] sm:$0xff]
    %v602 = vld [vmem:[%s1 + $0xf5c] sm:$0xff]
    %v603 = vld [vmem:[%s1 + $0xf64] sm:$0xf]
    %v604 = vld [vmem:[%s1 + $0xf68] sm:$0xff]
    %v605 = vld [vmem:[%s1 + $0xf70] sm:$0xff]
    %v606 = vld [vmem:[%s1 + $0xf78] sm:$0xff]
    %v607 = vld [vmem:[%s1 + $0xf80] sm:$0xff]
    %v608 = vld [vmem:[%s1 + $0xf88] sm:$0xff]
    %v609 = vld [vmem:[%s1 + $0xf90] sm:$0xff]
    %v610 = vld [vmem:[%s1 + $0xf98] sm:$0xff]
    %v611 = vld [vmem:[%s1 + $0xfa0] sm:$0xff]
    %v612 = vld [vmem:[%s1 + $0xfa8] sm:$0xff]
    %v613 = vld [vmem:[%s1 + $0xfb0] sm:$0xff]
    %v614 = vld [vmem:[%s1 + $0xfb8] sm:$0xff]
    %v615 = vld [vmem:[%s1 + $0xfc0] sm:$0xff]
    %v616 = vld [vmem:[%s1 + $0xfc8] sm:$0xff]
    %v617 = vld [vmem:[%s1 + $0xfd0] sm:$0xff]
    %v618 = vld [vmem:[%s1 + $0xfd8] sm:$0xf]
    %v619 = vld [vmem:[%s1 + $0xfdc] sm:$0xff]
    %v620 = vld [vmem:[%s1 + $0xfe4] sm:$0xff]
    %v621 = vld [vmem:[%s1 + $0xfec] sm:$0xff]
    %v622 = vld [vmem:[%s1 + $0xff4] sm:$0xff]
    %v623 = vld [vmem:[%s1 + $0xffc] sm:$0xff]
    %v624 = vld [vmem:[%s1 + $0x1004] sm:$0xff]
    %v625 = vld [vmem:[%s1 + $0x100c] sm:$0xff]
    %v626 = vld [vmem:[%s1 + $0x1014] sm:$0xff]
    %v627 = vld [vmem:[%s1 + $0x101c] sm:$0xff]
    %v628 = vld [vmem:[%s1 + $0x1024] sm:$0xff]
    %v629 = vld [vmem:[%s1 + $0x102c] sm:$0xff]
    %v630 = vld [vmem:[%s1 + $0x1034] sm:$0xff]
    %v631 = vld [vmem:[%s1 + $0x103c] sm:$0xff]
    %v632 = vld [vmem:[%s1 + $0x1044] sm:$0xff]
    %v633 = vld [vmem:[%s1 + $0x104c] sm:$0xf]
    %v634 = vld [vmem:[%s1 + $0x1050] sm:$0xff]
    %v635 = vld [vmem:[%s1 + $0x1058] sm:$0xff]
    %v636 = vld [vmem:[%s1 + $0x1060] sm:$0xff]
    %v637 = vld [vmem:[%s1 + $0x1068] sm:$0xff]
    %v638 = vld [vmem:[%s1 + $0x1070] sm:$0xff]
    %v639 = vld [vmem:[%s1 + $0x1078] sm:$0xff]
    %v640 = vld [vmem:[%s1 + $0x1080] sm:$0xff]
    %v641 = vld [vmem:[%s1 + $0x1088] sm:$0xff]
    %v642 = vld [vmem:[%s1 + $0x1090] sm:$0xff]
    %v643 = vld [vmem:[%s1 + $0x1098] sm:$0xff]
    %v644 = vld [vmem:[%s1 + $0x10a0] sm:$0xff]
    %v645 = vld [vmem:[%s1 + $0x10a8] sm:$0xff]
    %v646 = vld [vmem:[%s1 + $0x10b0] sm:$0xff]
    %v647 = vld [vmem:[%s1 + $0x10b8] sm:$0xff]
    %v648 = vld [vmem:[%s1 + $0x10c0] sm:$0xf]
    %v649 = vld [vmem:[%s1 + $0x10c4] sm:$0xff]
    %v650 = vld [vmem:[%s1 + $0x10cc] sm:$0xff]
    %v651 = vld [vmem:[%s1 + $0x10d4] sm:$0xff]
    %v652 = vld [vmem:[%s1 + $0x10dc] sm:$0xff]
    %v653 = vld [vmem:[%s1 + $0x10e4] sm:$0xff]
    %v654 = vld [vmem:[%s1 + $0x10ec] sm:$0xff]
    %v655 = vld [vmem:[%s1 + $0x10f4] sm:$0xff]
    %v656 = vld [vmem:[%s1 + $0x10fc] sm:$0xff]
    %v657 = vld [vmem:[%s1 + $0x1104] sm:$0xff]
    %v658 = vld [vmem:[%s1 + $0x110c] sm:$0xff]
    %v659 = vld [vmem:[%s1 + $0x1114] sm:$0xff]
    %v660 = vld [vmem:[%s1 + $0x111c] sm:$0xff]
    %v661 = vld [vmem:[%s1 + $0x1124] sm:$0xff]
    %v662 = vld [vmem:[%s1 + $0x112c] sm:$0xff]
    %v663 = vld [vmem:[%s1 + $0x1134] sm:$0xf]
    %v664 = vld [vmem:[%s1 + $0x1138] sm:$0xff]
    %v665 = vld [vmem:[%s1 + $0x1140] sm:$0xff]
    %v666 = vld [vmem:[%s1 + $0x1148] sm:$0xff]
    %v667 = vld [vmem:[%s1 + $0x1150] sm:$0xff]
    %v668 = vld [vmem:[%s1 + $0x1158] sm:$0xff]
    %v669 = vld [vmem:[%s1 + $0x1160] sm:$0xff]
    %v670 = vld [vmem:[%s1 + $0x1168] sm:$0xff]
    %v671 = vld [vmem:[%s1 + $0x1170] sm:$0xff]
    %v672 = vld [vmem:[%s1 + $0x1178] sm:$0xff]
    %v673 = vld [vmem:[%s1 + $0x1180] sm:$0xff]
    %v674 = vld [vmem:[%s1 + $0x1188] sm:$0xff]
    %v675 = vld [vmem:[%s1 + $0x1190] sm:$0xff]
    %v676 = vld [vmem:[%s1 + $0x1198] sm:$0xff]
    %v677 = vld [vmem:[%s1 + $0x11a0] sm:$0xff]
    %v678 = vld [vmem:[%s1 + $0x11a8] sm:$0xf]
    %v679 = vld [vmem:[%s1 + $0x11ac] sm:$0xff]
    %v680 = vld [vmem:[%s1 + $0x11b4] sm:$0xff]
    %v681 = vld [vmem:[%s1 + $0x11bc] sm:$0xff]
    %v682 = vld [vmem:[%s1 + $0x11c4] sm:$0xff]
    %v683 = vld [vmem:[%s1 + $0x11cc] sm:$0xff]
    %v684 = vld [vmem:[%s1 + $0x11d4] sm:$0xff]
    %v685 = vld [vmem:[%s1 + $0x11dc] sm:$0xff]
    %v686 = vld [vmem:[%s1 + $0x11e4] sm:$0xff]
    %v687 = vld [vmem:[%s1 + $0x11ec] sm:$0xff]
    %v688 = vld [vmem:[%s1 + $0x11f4] sm:$0xff]
    %v689 = vld [vmem:[%s1 + $0x11fc] sm:$0xff]
    %v690 = vld [vmem:[%s1 + $0x1204] sm:$0xff]
    %v691 = vld [vmem:[%s1 + $0x120c] sm:$0xff]
    %v692 = vld [vmem:[%s1 + $0x1214] sm:$0xff]
    %v693 = vld [vmem:[%s1 + $0x121c] sm:$0xf]
    %v694 = vld [vmem:[%s1 + $0x1220] sm:$0xff]
    %v695 = vld [vmem:[%s1 + $0x1228] sm:$0xff]
    %v696 = vld [vmem:[%s1 + $0x1230] sm:$0xff]
    %v697 = vld [vmem:[%s1 + $0x1238] sm:$0xff]
    %v698 = vld [vmem:[%s1 + $0x1240] sm:$0xff]
    %v699 = vld [vmem:[%s1 + $0x1248] sm:$0xff]
    %v700 = vld [vmem:[%s1 + $0x1250] sm:$0xff]
    %v701 = vld [vmem:[%s1 + $0x1258] sm:$0xff]
    %v702 = vld [vmem:[%s1 + $0x1260] sm:$0xff]
    %v703 = vld [vmem:[%s1 + $0x1268] sm:$0xff]
    %v704 = vld [vmem:[%s1 + $0x1270] sm:$0xff]
    %v705 = vld [vmem:[%s1 + $0x1278] sm:$0xff]
    %v706 = vld [vmem:[%s1 + $0x1280] sm:$0xff]
    %v707 = vld [vmem:[%s1 + $0x1288] sm:$0xff]
    %v708 = vld [vmem:[%s1 + $0x1290] sm:$0xf]
    %v709 = vld [vmem:[%s1 + $0x1294] sm:$0xff]
    %v710 = vld [vmem:[%s1 + $0x129c] sm:$0xff]
    %v711 = vld [vmem:[%s1 + $0x12a4] sm:$0xff]
    %v712 = vld [vmem:[%s1 + $0x12ac] sm:$0xff]
    %v713 = vld [vmem:[%s1 + $0x12b4] sm:$0xff]
    %v714 = vld [vmem:[%s1 + $0x12bc] sm:$0xff]
    %v715 = vld [vmem:[%s1 + $0x12c4] sm:$0xff]
    %v716 = vld [vmem:[%s1 + $0x12cc] sm:$0xff]
    %v717 = vld [vmem:[%s1 + $0x12d4] sm:$0xff]
    %v718 = vld [vmem:[%s1 + $0x12dc] sm:$0xff]
    %v719 = vld [vmem:[%s1 + $0x12e4] sm:$0xff]
    %v720 = vld [vmem:[%s1 + $0x12ec] sm:$0xff]
    %v721 = vld [vmem:[%s1 + $0x12f4] sm:$0xff]
    %v722 = vld [vmem:[%s1 + $0x12fc] sm:$0xff]
    %v723 = vld [vmem:[%s1 + $0x1304] sm:$0xf]
    %v724 = vld [vmem:[%s1 + $0x1308] sm:$0xff]
    %v725 = vld [vmem:[%s1 + $0x1310] sm:$0xff]
    %v726 = vld [vmem:[%s1 + $0x1318] sm:$0xff]
    %v727 = vld [vmem:[%s1 + $0x1320] sm:$0xff]
    %v728 = vld [vmem:[%s1 + $0x1328] sm:$0xff]
    %v729 = vld [vmem:[%s1 + $0x1330] sm:$0xff]
    %v730 = vld [vmem:[%s1 + $0x1338] sm:$0xff]
    %v731 = vld [vmem:[%s1 + $0x1340] sm:$0xff]
    %v732 = vld [vmem:[%s1 + $0x1348] sm:$0xff]
    %v733 = vld [vmem:[%s1 + $0x1350] sm:$0xff]
    %v734 = vld [vmem:[%s1 + $0x1358] sm:$0xff]
    %v735 = vld [vmem:[%s1 + $0x1360] sm:$0xff]
    %v736 = vld [vmem:[%s1 + $0x1368] sm:$0xff]
    %v737 = vld [vmem:[%s1 + $0x1370] sm:$0xff]
    %v738 = vld [vmem:[%s1 + $0x1378] sm:$0xf]
    %v739 = vld [vmem:[%s1 + $0x137c] sm:$0xff]
    %v740 = vld [vmem:[%s1 + $0x1384] sm:$0xff]
    %v741 = vld [vmem:[%s1 + $0x138c] sm:$0xff]
    %v742 = vld [vmem:[%s1 + $0x1394] sm:$0xff]
    %v743 = vld [vmem:[%s1 + $0x139c] sm:$0xff]
    %v744 = vld [vmem:[%s1 + $0x13a4] sm:$0xff]
    %v745 = vld [vmem:[%s1 + $0x13ac] sm:$0xff]
    %v746 = vld [vmem:[%s1 + $0x13b4] sm:$0xff]
    %v747 = vld [vmem:[%s1 + $0x13bc] sm:$0xff]
    %v748 = vld [vmem:[%s1 + $0x13c4] sm:$0xff]
    %v749 = vld [vmem:[%s1 + $0x13cc] sm:$0xff]
    %v750 = vld [vmem:[%s1 + $0x13d4] sm:$0xff]
    %v751 = vld [vmem:[%s1 + $0x13dc] sm:$0xff]
    %v752 = vld [vmem:[%s1 + $0x13e4] sm:$0xff]
    %v753 = vld [vmem:[%s1 + $0x13ec] sm:$0xf]
    %v754 = vld [vmem:[%s1 + $0x13f0] sm:$0xff]
    %v755 = vld [vmem:[%s1 + $0x13f8] sm:$0xff]
    %v756 = vld [vmem:[%s1 + $0x1400] sm:$0xff]
    %v757 = vld [vmem:[%s1 + $0x1408] sm:$0xff]
    %v758 = vld [vmem:[%s1 + $0x1410] sm:$0xff]
    %v759 = vld [vmem:[%s1 + $0x1418] sm:$0xff]
    %v760 = vld [vmem:[%s1 + $0x1420] sm:$0xff]
    %v761 = vld [vmem:[%s1 + $0x1428] sm:$0xff]
    %v762 = vld [vmem:[%s1 + $0x1430] sm:$0xff]
    %v763 = vld [vmem:[%s1 + $0x1438] sm:$0xff]
    %v764 = vld [vmem:[%s1 + $0x1440] sm:$0xff]
    %v765 = vld [vmem:[%s1 + $0x1448] sm:$0xff]
    %v766 = vld [vmem:[%s1 + $0x1450] sm:$0xff]
    %v767 = vld [vmem:[%s1 + $0x1458] sm:$0xff]
    %v768 = vld [vmem:[%s1 + $0x1460] sm:$0xf]
    %v769 = vld [vmem:[%s1 + $0x1464] sm:$0xff]
    %v770 = vld [vmem:[%s1 + $0x146c] sm:$0xff]
    %v771 = vld [vmem:[%s1 + $0x1474] sm:$0xff]
    %v772 = vld [vmem:[%s1 + $0x147c] sm:$0xff]
    %v773 = vld [vmem:[%s1 + $0x1484] sm:$0xff]
    %v774 = vld [vmem:[%s1 + $0x148c] sm:$0xff]
    %v775 = vld [vmem:[%s1 + $0x1494] sm:$0xff]
    %v776 = vld [vmem:[%s1 + $0x149c] sm:$0xff]
    %v777 = vld [vmem:[%s1 + $0x14a4] sm:$0xff]
    %v778 = vld [vmem:[%s1 + $0x14ac] sm:$0xff]
    %v779 = vld [vmem:[%s1 + $0x14b4] sm:$0xff]
    %v780 = vld [vmem:[%s1 + $0x14bc] sm:$0xff]
    %v781 = vld [vmem:[%s1 + $0x14c4] sm:$0xff]
    %v782 = vld [vmem:[%s1 + $0x14cc] sm:$0xff]
    %v783 = vld [vmem:[%s1 + $0x14d4] sm:$0xf]
    %v784 = vld [vmem:[%s1 + $0x14d8] sm:$0xff]
    %v785 = vld [vmem:[%s1 + $0x14e0] sm:$0xff]
    %v786 = vld [vmem:[%s1 + $0x14e8] sm:$0xff]
    %v787 = vld [vmem:[%s1 + $0x14f0] sm:$0xff]
    %v788 = vld [vmem:[%s1 + $0x14f8] sm:$0xff]
    %v789 = vld [vmem:[%s1 + $0x1500] sm:$0xff]
    %v790 = vld [vmem:[%s1 + $0x1508] sm:$0xff]
    %v791 = vld [vmem:[%s1 + $0x1510] sm:$0xff]
    %v792 = vld [vmem:[%s1 + $0x1518] sm:$0xff]
    %v793 = vld [vmem:[%s1 + $0x1520] sm:$0xff]
    %v794 = vld [vmem:[%s1 + $0x1528] sm:$0xff]
    %v795 = vld [vmem:[%s1 + $0x1530] sm:$0xff]
    %v796 = vld [vmem:[%s1 + $0x1538] sm:$0xff]
    %v797 = vld [vmem:[%s1 + $0x1540] sm:$0xff]
    %v798 = vld [vmem:[%s1 + $0x1548] sm:$0xf]
    %v799 = vld [vmem:[%s1 + $0x154c] sm:$0xff]
    %v800 = vld [vmem:[%s1 + $0x1554] sm:$0xff]
    %v801 = vld [vmem:[%s1 + $0x155c] sm:$0xff]
    %v802 = vld [vmem:[%s1 + $0x1564] sm:$0xff]
    %v803 = vld [vmem:[%s1 + $0x156c] sm:$0xff]
    %v804 = vld [vmem:[%s1 + $0x1574] sm:$0xff]
    %v805 = vld [vmem:[%s1 + $0x157c] sm:$0xff]
    %v806 = vld [vmem:[%s1 + $0x1584] sm:$0xff]
    %v807 = vld [vmem:[%s1 + $0x158c] sm:$0xff]
    %v808 = vld [vmem:[%s1 + $0x1594] sm:$0xff]
    %v809 = vld [vmem:[%s1 + $0x159c] sm:$0xff]
    %v810 = vld [vmem:[%s1 + $0x15a4] sm:$0xff]
    %v811 = vld [vmem:[%s1 + $0x15ac] sm:$0xff]
    %v812 = vld [vmem:[%s1 + $0x15b4] sm:$0xff]
    %v813 = vld [vmem:[%s1 + $0x15bc] sm:$0xf]
    %v814 = vld [vmem:[%s1 + $0x15c0] sm:$0xff]
    %v815 = vld [vmem:[%s1 + $0x15c8] sm:$0xff]
    %v816 = vld [vmem:[%s1 + $0x15d0] sm:$0xff]
    %v817 = vld [vmem:[%s1 + $0x15d8] sm:$0xff]
    %v818 = vld [vmem:[%s1 + $0x15e0] sm:$0xff]
    %v819 = vld [vmem:[%s1 + $0x15e8] sm:$0xff]
    %v820 = vld [vmem:[%s1 + $0x15f0] sm:$0xff]
    %v821 = vld [vmem:[%s1 + $0x15f8] sm:$0xff]
    %v822 = vld [vmem:[%s1 + $0x1600] sm:$0xff]
    %v823 = vld [vmem:[%s1 + $0x1608] sm:$0xff]
    %v824 = vld [vmem:[%s1 + $0x1610] sm:$0xff]
    %v825 = vld [vmem:[%s1 + $0x1618] sm:$0xff]
    %v826 = vld [vmem:[%s1 + $0x1620] sm:$0xff]
    %v827 = vld [vmem:[%s1 + $0x1628] sm:$0xff]
    %v828 = vld [vmem:[%s1 + $0x1630] sm:$0xf]
    %v829 = vld [vmem:[%s1 + $0x1634] sm:$0xff]
    %v830 = vld [vmem:[%s1 + $0x163c] sm:$0xff]
    %v831 = vld [vmem:[%s1 + $0x1644] sm:$0xff]
    %v832 = vld [vmem:[%s1 + $0x164c] sm:$0xff]
    %v833 = vld [vmem:[%s1 + $0x1654] sm:$0xff]
    %v834 = vld [vmem:[%s1 + $0x165c] sm:$0xff]
    %v835 = vld [vmem:[%s1 + $0x1664] sm:$0xff]
    %v836 = vld [vmem:[%s1 + $0x166c] sm:$0xff]
    %v837 = vld [vmem:[%s1 + $0x1674] sm:$0xff]
    %v838 = vld [vmem:[%s1 + $0x167c] sm:$0xff]
    %v839 = vld [vmem:[%s1 + $0x1684] sm:$0xff]
    %v840 = vld [vmem:[%s1 + $0x168c] sm:$0xff]
    %v841 = vld [vmem:[%s1 + $0x1694] sm:$0xff]
    %v842 = vld [vmem:[%s1 + $0x169c] sm:$0xff]
    %v843 = vld [vmem:[%s1 + $0x16a4] sm:$0xf]
    %v844 = vld [vmem:[%s1 + $0x16a8] sm:$0xff]
    %v845 = vld [vmem:[%s1 + $0x16b0] sm:$0xff]
    %v846 = vld [vmem:[%s1 + $0x16b8] sm:$0xff]
    %v847 = vld [vmem:[%s1 + $0x16c0] sm:$0xff]
    %v848 = vld [vmem:[%s1 + $0x16c8] sm:$0xff]
    %v849 = vld [vmem:[%s1 + $0x16d0] sm:$0xff]
    %v850 = vld [vmem:[%s1 + $0x16d8] sm:$0xff]
    %v851 = vld [vmem:[%s1 + $0x16e0] sm:$0xff]
    %v852 = vld [vmem:[%s1 + $0x16e8] sm:$0xff]
    %v853 = vld [vmem:[%s1 + $0x16f0] sm:$0xff]
    %v854 = vld [vmem:[%s1 + $0x16f8] sm:$0xff]
    %v855 = vld [vmem:[%s1 + $0x1700] sm:$0xff]
    %v856 = vld [vmem:[%s1 + $0x1708] sm:$0xff]
    %v857 = vld [vmem:[%s1 + $0x1710] sm:$0xff]
    %v858 = vld [vmem:[%s1 + $0x1718] sm:$0xf]
    %v859 = vld [vmem:[%s1 + $0x171c] sm:$0xff]
    %v860 = vld [vmem:[%s1 + $0x1724] sm:$0xff]
    %v861 = vld [vmem:[%s1 + $0x172c] sm:$0xff]
    %v862 = vld [vmem:[%s1 + $0x1734] sm:$0xff]
    %v863 = vld [vmem:[%s1 + $0x173c] sm:$0xff]
    %v864 = vld [vmem:[%s1 + $0x1744] sm:$0xff]
    %v865 = vld [vmem:[%s1 + $0x174c] sm:$0xff]
    %v866 = vld [vmem:[%s1 + $0x1754] sm:$0xff]
    %v867 = vld [vmem:[%s1 + $0x175c] sm:$0xff]
    %v868 = vld [vmem:[%s1 + $0x1764] sm:$0xff]
    %v869 = vld [vmem:[%s1 + $0x176c] sm:$0xff]
    %v870 = vld [vmem:[%s1 + $0x1774] sm:$0xff]
    %v871 = vld [vmem:[%s1 + $0x177c] sm:$0xff]
    %v872 = vld [vmem:[%s1 + $0x1784] sm:$0xff]
    %v873 = vld [vmem:[%s1 + $0x178c] sm:$0xf]
    %v874 = vld [vmem:[%s1 + $0x1790] sm:$0xff]
    %v875 = vld [vmem:[%s1 + $0x1798] sm:$0xff]
    %v876 = vld [vmem:[%s1 + $0x17a0] sm:$0xff]
    %v877 = vld [vmem:[%s1 + $0x17a8] sm:$0xff]
    %v878 = vld [vmem:[%s1 + $0x17b0] sm:$0xff]
    %v879 = vld [vmem:[%s1 + $0x17b8] sm:$0xff]
    %v880 = vld [vmem:[%s1 + $0x17c0] sm:$0xff]
    %v881 = vld [vmem:[%s1 + $0x17c8] sm:$0xff]
    %v882 = vld [vmem:[%s1 + $0x17d0] sm:$0xff]
    %v883 = vld [vmem:[%s1 + $0x17d8] sm:$0xff]
    %v884 = vld [vmem:[%s1 + $0x17e0] sm:$0xff]
    %v885 = vld [vmem:[%s1 + $0x17e8] sm:$0xff]
    %v886 = vld [vmem:[%s1 + $0x17f0] sm:$0xff]
    %v887 = vld [vmem:[%s1 + $0x17f8] sm:$0xff]
    %v888 = vld [vmem:[%s1 + $0x1800] sm:$0xf]
    %v889 = vld [vmem:[%s1 + $0x1804] sm:$0xff]
    %v890 = vld [vmem:[%s1 + $0x180c] sm:$0xff]
    %v891 = vld [vmem:[%s1 + $0x1814] sm:$0xff]
    %v892 = vld [vmem:[%s1 + $0x181c] sm:$0xff]
    %v893 = vld [vmem:[%s1 + $0x1824] sm:$0xff]
    %v894 = vld [vmem:[%s1 + $0x182c] sm:$0xff]
    %v895 = vld [vmem:[%s1 + $0x1834] sm:$0xff]
    %v896 = vld [vmem:[%s1 + $0x183c] sm:$0xff]
    %v897 = vld [vmem:[%s1 + $0x1844] sm:$0xff]
    %v898 = vld [vmem:[%s1 + $0x184c] sm:$0xff]
    %v899 = vld [vmem:[%s1 + $0x1854] sm:$0xff]
    %v900 = vld [vmem:[%s1 + $0x185c] sm:$0xff]
    %v901 = vld [vmem:[%s1 + $0x1864] sm:$0xff]
    %v902 = vld [vmem:[%s1 + $0x186c] sm:$0xff]
    %v903 = vld [vmem:[%s1 + $0x1874] sm:$0xf]
    %v904 = vld [vmem:[%s1 + $0x1878] sm:$0xff]
    %v905 = vld [vmem:[%s1 + $0x1880] sm:$0xff]
    %v906 = vld [vmem:[%s1 + $0x1888] sm:$0xff]
    %v907 = vld [vmem:[%s1 + $0x1890] sm:$0xff]
    %v908 = vld [vmem:[%s1 + $0x1898] sm:$0xff]
    %v909 = vld [vmem:[%s1 + $0x18a0] sm:$0xff]
    %v910 = vld [vmem:[%s1 + $0x18a8] sm:$0xff]
    %v911 = vld [vmem:[%s1 + $0x18b0] sm:$0xff]
    %v912 = vld [vmem:[%s1 + $0x18b8] sm:$0xff]
    %v913 = vld [vmem:[%s1 + $0x18c0] sm:$0xff]
    %v914 = vld [vmem:[%s1 + $0x18c8] sm:$0xff]
    %v915 = vld [vmem:[%s1 + $0x18d0] sm:$0xff]
    %v916 = vld [vmem:[%s1 + $0x18d8] sm:$0xff]
    %v917 = vld [vmem:[%s1 + $0x18e0] sm:$0xff]
    %v918 = vld [vmem:[%s1 + $0x18e8] sm:$0xf]
    %v919 = vld [vmem:[%s1 + $0x18ec] sm:$0xff]
    %v920 = vld [vmem:[%s1 + $0x18f4] sm:$0xff]
    %v921 = vld [vmem:[%s1 + $0x18fc] sm:$0xff]
    %v922 = vld [vmem:[%s1 + $0x1904] sm:$0xff]
    %v923 = vld [vmem:[%s1 + $0x190c] sm:$0xff]
    %v924 = vld [vmem:[%s1 + $0x1914] sm:$0xff]
    %v925 = vld [vmem:[%s1 + $0x191c] sm:$0xff]
    %v926 = vld [vmem:[%s1 + $0x1924] sm:$0xff]
    %v927 = vld [vmem:[%s1 + $0x192c] sm:$0xff]
    %v928 = vld [vmem:[%s1 + $0x1934] sm:$0xff]
    %v929 = vld [vmem:[%s1 + $0x193c] sm:$0xff]
    %v930 = vld [vmem:[%s1 + $0x1944] sm:$0xff]
    %v931 = vld [vmem:[%s1 + $0x194c] sm:$0xff]
    %v932 = vld [vmem:[%s1 + $0x1954] sm:$0xff]
    %v933 = vld [vmem:[%s1 + $0x195c] sm:$0xf]
    %v934 = vld [vmem:[%s1 + $0x1960] sm:$0xff]
    %v935 = vld [vmem:[%s1 + $0x1968] sm:$0xff]
    %v936 = vld [vmem:[%s1 + $0x1970] sm:$0xff]
    %v937 = vld [vmem:[%s1 + $0x1978] sm:$0xff]
    %v938 = vld [vmem:[%s1 + $0x1980] sm:$0xff]
    %v939 = vld [vmem:[%s1 + $0x1988] sm:$0xff]
    %v940 = vld [vmem:[%s1 + $0x1990] sm:$0xff]
    %v941 = vld [vmem:[%s1 + $0x1998] sm:$0xff]
    %v942 = vld [vmem:[%s1 + $0x19a0] sm:$0xff]
    %v943 = vld [vmem:[%s1 + $0x19a8] sm:$0xff]
    %v944 = vld [vmem:[%s1 + $0x19b0] sm:$0xff]
    %v945 = vld [vmem:[%s1 + $0x19b8] sm:$0xff]
    %v946 = vld [vmem:[%s1 + $0x19c0] sm:$0xff]
    %v947 = vld [vmem:[%s1 + $0x19c8] sm:$0xff]
    %v948 = vld [vmem:[%s1 + $0x19d0] sm:$0xf]
    %v949 = vld [vmem:[%s1 + $0x19d4] sm:$0xff]
    %v950 = vld [vmem:[%s1 + $0x19dc] sm:$0xff]
    %v951 = vld [vmem:[%s1 + $0x19e4] sm:$0xff]
    %v952 = vld [vmem:[%s1 + $0x19ec] sm:$0xff]
    %v953 = vld [vmem:[%s1 + $0x19f4] sm:$0xff]
    %v954 = vld [vmem:[%s1 + $0x19fc] sm:$0xff]
    %v955 = vld [vmem:[%s1 + $0x1a04] sm:$0xff]
    %v956 = vld [vmem:[%s1 + $0x1a0c] sm:$0xff]
    %v957 = vld [vmem:[%s1 + $0x1a14] sm:$0xff]
    %v958 = vld [vmem:[%s1 + $0x1a1c] sm:$0xff]
    %v959 = vld [vmem:[%s1 + $0x1a24] sm:$0xff]
    %v960 = vld [vmem:[%s1 + $0x1a2c] sm:$0xff]
    %v961 = vld [vmem:[%s1 + $0x1a34] sm:$0xff]
    %v962 = vld [vmem:[%s1 + $0x1a3c] sm:$0xff]
    %v963 = vld [vmem:[%s1 + $0x1a44] sm:$0xf]
    %v964 = vld [vmem:[%s1 + $0x1a48] sm:$0xff]
    %v965 = vld [vmem:[%s1 + $0x1a50] sm:$0xff]
    %v966 = vld [vmem:[%s1 + $0x1a58] sm:$0xff]
    %v967 = vld [vmem:[%s1 + $0x1a60] sm:$0xff]
    %v968 = vld [vmem:[%s1 + $0x1a68] sm:$0xff]
    %v969 = vld [vmem:[%s1 + $0x1a70] sm:$0xff]
    %v970 = vld [vmem:[%s1 + $0x1a78] sm:$0xff]
    %v971 = vld [vmem:[%s1 + $0x1a80] sm:$0xff]
    %v972 = vld [vmem:[%s1 + $0x1a88] sm:$0xff]
    %v973 = vld [vmem:[%s1 + $0x1a90] sm:$0xff]
    %v974 = vld [vmem:[%s1 + $0x1a98] sm:$0xff]
    %v975 = vld [vmem:[%s1 + $0x1aa0] sm:$0xff]
    %v976 = vld [vmem:[%s1 + $0x1aa8] sm:$0xff]
    %v977 = vld [vmem:[%s1 + $0x1ab0] sm:$0xff]
    %v978 = vld [vmem:[%s1 + $0x1ab8] sm:$0xf]
    %v979 = vld [vmem:[%s1 + $0x1abc] sm:$0xff]
    %v980 = vld [vmem:[%s1 + $0x1ac4] sm:$0xff]
    %v981 = vld [vmem:[%s1 + $0x1acc] sm:$0xff]
    %v982 = vld [vmem:[%s1 + $0x1ad4] sm:$0xff]
    %v983 = vld [vmem:[%s1 + $0x1adc] sm:$0xff]
    %v984 = vld [vmem:[%s1 + $0x1ae4] sm:$0xff]
    %v985 = vld [vmem:[%s1 + $0x1aec] sm:$0xff]
    %v986 = vld [vmem:[%s1 + $0x1af4] sm:$0xff]
    %v987 = vld [vmem:[%s1 + $0x1afc] sm:$0xff]
    %v988 = vld [vmem:[%s1 + $0x1b04] sm:$0xff]
    %v989 = vld [vmem:[%s1 + $0x1b0c] sm:$0xff]
    %v990 = vld [vmem:[%s1 + $0x1b14] sm:$0xff]
    %v991 = vld [vmem:[%s1 + $0x1b1c] sm:$0xff]
    %v992 = vld [vmem:[%s1 + $0x1b24] sm:$0xff]
    %v993 = vld [vmem:[%s1 + $0x1b2c] sm:$0xf]
    %v994 = vld [vmem:[%s1 + $0x1b30] sm:$0xff]
    %v995 = vld [vmem:[%s1 + $0x1b38] sm:$0xff]
    %v996 = vld [vmem:[%s1 + $0x1b40] sm:$0xff]
    %v997 = vld [vmem:[%s1 + $0x1b48] sm:$0xff]
    %v998 = vld [vmem:[%s1 + $0x1b50] sm:$0xff]
    %v999 = vld [vmem:[%s1 + $0x1b58] sm:$0xff]
    %v1000 = vld [vmem:[%s1 + $0x1b60] sm:$0xff]
    %v1001 = vld [vmem:[%s1 + $0x1b68] sm:$0xff]
    %v1002 = vld [vmem:[%s1 + $0x1b70] sm:$0xff]
    %v1003 = vld [vmem:[%s1 + $0x1b78] sm:$0xff]
    %v1004 = vld [vmem:[%s1 + $0x1b80] sm:$0xff]
    %v1005 = vld [vmem:[%s1 + $0x1b88] sm:$0xff]
    %v1006 = vld [vmem:[%s1 + $0x1b90] sm:$0xff]
    %v1007 = vld [vmem:[%s1 + $0x1b98] sm:$0xff]
    %v1008 = vld [vmem:[%s1 + $0x1ba0] sm:$0xf]
    %v1009 = vld [vmem:[%s1 + $0x1ba4] sm:$0xff]
    %v1010 = vld [vmem:[%s1 + $0x1bac] sm:$0xff]
    %v1011 = vld [vmem:[%s1 + $0x1bb4] sm:$0xff]
    %v1012 = vld [vmem:[%s1 + $0x1bbc] sm:$0xff]
    %v1013 = vld [vmem:[%s1 + $0x1bc4] sm:$0xff]
    %v1014 = vld [vmem:[%s1 + $0x1bcc] sm:$0xff]
    %v1015 = vld [vmem:[%s1 + $0x1bd4] sm:$0xff]
    %v1016 = vld [vmem:[%s1 + $0x1bdc] sm:$0xff]
    %v1017 = vld [vmem:[%s1 + $0x1be4] sm:$0xff]
    %v1018 = vld [vmem:[%s1 + $0x1bec] sm:$0xff]
    %v1019 = vld [vmem:[%s1 + $0x1bf4] sm:$0xff]
    %v1020 = vld [vmem:[%s1 + $0x1bfc] sm:$0xff]
    %v1021 = vld [vmem:[%s1 + $0x1c04] sm:$0xff]
    %v1022 = vld [vmem:[%s1 + $0x1c0c] sm:$0xff]
    %v1023 = vld [vmem:[%s1 + $0x1c14] sm:$0xf]
    %v1024 = vld [vmem:[%s1 + $0x1c18] sm:$0xff]
    %v1025 = vld [vmem:[%s1 + $0x1c20] sm:$0xff]
    %v1026 = vld [vmem:[%s1 + $0x1c28] sm:$0xff]
    %v1027 = vld [vmem:[%s1 + $0x1c30] sm:$0xff]
    %v1028 = vld [vmem:[%s1 + $0x1c38] sm:$0xff]
    %v1029 = vld [vmem:[%s1 + $0x1c40] sm:$0xff]
    %v1030 = vld [vmem:[%s1 + $0x1c48] sm:$0xff]
    %v1031 = vld [vmem:[%s1 + $0x1c50] sm:$0xff]
    %v1032 = vld [vmem:[%s1 + $0x1c58] sm:$0xff]
    %v1033 = vld [vmem:[%s1 + $0x1c60] sm:$0xff]
    %v1034 = vld [vmem:[%s1 + $0x1c68] sm:$0xff]
    %v1035 = vld [vmem:[%s1 + $0x1c70] sm:$0xff]
    %v1036 = vld [vmem:[%s1 + $0x1c78] sm:$0xff]
    %v1037 = vld [vmem:[%s1 + $0x1c80] sm:$0xff]
    %v1038 = vld [vmem:[%s1 + $0x1c88] sm:$0xf]
    %v1039 = vld [vmem:[%s1 + $0x1c8c] sm:$0xff]
    %v1040 = vld [vmem:[%s1 + $0x1c94] sm:$0xff]
    %v1041 = vld [vmem:[%s1 + $0x1c9c] sm:$0xff]
    %v1042 = vld [vmem:[%s1 + $0x1ca4] sm:$0xff]
    %v1043 = vld [vmem:[%s1 + $0x1cac] sm:$0xff]
    %v1044 = vld [vmem:[%s1 + $0x1cb4] sm:$0xff]
    %v1045 = vld [vmem:[%s1 + $0x1cbc] sm:$0xff]
    %v1046 = vld [vmem:[%s1 + $0x1cc4] sm:$0xff]
    %v1047 = vld [vmem:[%s1 + $0x1ccc] sm:$0xff]
    %v1048 = vld [vmem:[%s1 + $0x1cd4] sm:$0xff]
    %v1049 = vld [vmem:[%s1 + $0x1cdc] sm:$0xff]
    %v1050 = vld [vmem:[%s1 + $0x1ce4] sm:$0xff]
    %v1051 = vld [vmem:[%s1 + $0x1cec] sm:$0xff]
    %v1052 = vld [vmem:[%s1 + $0x1cf4] sm:$0xff]
    %v1053 = vld [vmem:[%s1 + $0x1cfc] sm:$0xf]
    %v1054 = vld [vmem:[%s1 + $0x1d00] sm:$0xff]
    %v1055 = vld [vmem:[%s1 + $0x1d08] sm:$0xff]
    %v1056 = vld [vmem:[%s1 + $0x1d10] sm:$0xff]
    %v1057 = vld [vmem:[%s1 + $0x1d18] sm:$0xff]
    %v1058 = vld [vmem:[%s1 + $0x1d20] sm:$0xff]
    %v1059 = vld [vmem:[%s1 + $0x1d28] sm:$0xff]
    %v1060 = vld [vmem:[%s1 + $0x1d30] sm:$0xff]
    %v1061 = vld [vmem:[%s1 + $0x1d38] sm:$0xff]
    %v1062 = vld [vmem:[%s1 + $0x1d40] sm:$0xff]
    %v1063 = vld [vmem:[%s1 + $0x1d48] sm:$0xff]
    %v1064 = vld [vmem:[%s1 + $0x1d50] sm:$0xff]
    %v1065 = vld [vmem:[%s1 + $0x1d58] sm:$0xff]
    %v1066 = vld [vmem:[%s1 + $0x1d60] sm:$0xff]
    %v1067 = vld [vmem:[%s1 + $0x1d68] sm:$0xff]
    %v1068 = vld [vmem:[%s1 + $0x1d70] sm:$0xf]
    %v1069 = vld [vmem:[%s1 + $0x1d74] sm:$0xff]
    %v1070 = vld [vmem:[%s1 + $0x1d7c] sm:$0xff]
    %v1071 = vld [vmem:[%s1 + $0x1d84] sm:$0xff]
    %v1072 = vld [vmem:[%s1 + $0x1d8c] sm:$0xff]
    %v1073 = vld [vmem:[%s1 + $0x1d94] sm:$0xff]
    %v1074 = vld [vmem:[%s1 + $0x1d9c] sm:$0xff]
    %v1075 = vld [vmem:[%s1 + $0x1da4] sm:$0xff]
    %v1076 = vld [vmem:[%s1 + $0x1dac] sm:$0xff]
    %v1077 = vld [vmem:[%s1 + $0x1db4] sm:$0xff]
    %v1078 = vld [vmem:[%s1 + $0x1dbc] sm:$0xff]
    %v1079 = vld [vmem:[%s1 + $0x1dc4] sm:$0xff]
    %v1080 = vld [vmem:[%s1 + $0x1dcc] sm:$0xff]
    %v1081 = vld [vmem:[%s1 + $0x1dd4] sm:$0xff]
    %v1082 = vld [vmem:[%s1 + $0x1ddc] sm:$0xff]
    %v1083 = vld [vmem:[%s1 + $0x1de4] sm:$0xf]
    %v1084 = vld [vmem:[%s1 + $0x1de8] sm:$0xff]
    %v1085 = vld [vmem:[%s1 + $0x1df0] sm:$0xff]
    %v1086 = vld [vmem:[%s1 + $0x1df8] sm:$0xff]
    %v1087 = vld [vmem:[%s1 + $0x1e00] sm:$0xff]
    %v1088 = vld [vmem:[%s1 + $0x1e08] sm:$0xff]
    %v1089 = vld [vmem:[%s1 + $0x1e10] sm:$0xff]
    %v1090 = vld [vmem:[%s1 + $0x1e18] sm:$0xff]
    %v1091 = vld [vmem:[%s1 + $0x1e20] sm:$0xff]
    %v1092 = vld [vmem:[%s1 + $0x1e28] sm:$0xff]
    %v1093 = vld [vmem:[%s1 + $0x1e30] sm:$0xff]
    %v1094 = vld [vmem:[%s1 + $0x1e38] sm:$0xff]
    %v1095 = vld [vmem:[%s1 + $0x1e40] sm:$0xff]
    %v1096 = vld [vmem:[%s1 + $0x1e48] sm:$0xff]
    %v1097 = vld [vmem:[%s1 + $0x1e50] sm:$0xff]
    %v1098 = vld [vmem:[%s1 + $0x1e58] sm:$0xf]
    %v1099 = vld [vmem:[%s1 + $0x1e5c] sm:$0xff]
    %v1100 = vld [vmem:[%s1 + $0x1e64] sm:$0xff]
    %v1101 = vld [vmem:[%s1 + $0x1e6c] sm:$0xff]
    %v1102 = vld [vmem:[%s1 + $0x1e74] sm:$0xff]
    %v1103 = vld [vmem:[%s1 + $0x1e7c] sm:$0xff]
    %v1104 = vld [vmem:[%s1 + $0x1e84] sm:$0xff]
    %v1105 = vld [vmem:[%s1 + $0x1e8c] sm:$0xff]
    %v1106 = vld [vmem:[%s1 + $0x1e94] sm:$0xff]
    %v1107 = vld [vmem:[%s1 + $0x1e9c] sm:$0xff]
    %v1108 = vld [vmem:[%s1 + $0x1ea4] sm:$0xff]
    %v1109 = vld [vmem:[%s1 + $0x1eac] sm:$0xff]
    %v1110 = vld [vmem:[%s1 + $0x1eb4] sm:$0xff]
    %v1111 = vld [vmem:[%s1 + $0x1ebc] sm:$0xff]
    %v1112 = vld [vmem:[%s1 + $0x1ec4] sm:$0xff]
    %v1113 = vld [vmem:[%s1 + $0x1ecc] sm:$0xf]
    %v1114 = vld [vmem:[%s1 + $0x1ed0] sm:$0xff]
    %v1115 = vld [vmem:[%s1 + $0x1ed8] sm:$0xff]
    %v1116 = vld [vmem:[%s1 + $0x1ee0] sm:$0xff]
    %v1117 = vld [vmem:[%s1 + $0x1ee8] sm:$0xff]
    %v1118 = vld [vmem:[%s1 + $0x1ef0] sm:$0xff]
    %v1119 = vld [vmem:[%s1 + $0x1ef8] sm:$0xff]
    %v1120 = vld [vmem:[%s1 + $0x1f00] sm:$0xff]
    %v1121 = vld [vmem:[%s1 + $0x1f08] sm:$0xff]
    %v1122 = vld [vmem:[%s1 + $0x1f10] sm:$0xff]
    %v1123 = vld [vmem:[%s1 + $0x1f18] sm:$0xff]
    %v1124 = vld [vmem:[%s1 + $0x1f20] sm:$0xff]
    %v1125 = vld [vmem:[%s1 + $0x1f28] sm:$0xff]
    %v1126 = vld [vmem:[%s1 + $0x1f30] sm:$0xff]
    %v1127 = vld [vmem:[%s1 + $0x1f38] sm:$0xff]
    %v1128 = vld [vmem:[%s1 + $0x1f40] sm:$0xf]
    %v1129 = vld [vmem:[%s1 + $0x1f44] sm:$0xff]
    %v1130 = vld [vmem:[%s1 + $0x1f4c] sm:$0xff]
    %v1131 = vld [vmem:[%s1 + $0x1f54] sm:$0xff]
    %v1132 = vld [vmem:[%s1 + $0x1f5c] sm:$0xff]
    %v1133 = vld [vmem:[%s1 + $0x1f64] sm:$0xff]
    %v1134 = vld [vmem:[%s1 + $0x1f6c] sm:$0xff]
    %v1135 = vld [vmem:[%s1 + $0x1f74] sm:$0xff]
    %v1136 = vld [vmem:[%s1 + $0x1f7c] sm:$0xff]
    %v1137 = vld [vmem:[%s1 + $0x1f84] sm:$0xff]
    %v1138 = vld [vmem:[%s1 + $0x1f8c] sm:$0xff]
    %v1139 = vld [vmem:[%s1 + $0x1f94] sm:$0xff]
    %v1140 = vld [vmem:[%s1 + $0x1f9c] sm:$0xff]
    %v1141 = vld [vmem:[%s1 + $0x1fa4] sm:$0xff]
    %v1142 = vld [vmem:[%s1 + $0x1fac] sm:$0xff]
    %v1143 = vld [vmem:[%s1 + $0x1fb4] sm:$0xf]
    %v1144 = vld [vmem:[%s1 + $0x1fb8] sm:$0xff]
    %v1145 = vld [vmem:[%s1 + $0x1fc0] sm:$0xff]
    %v1146 = vld [vmem:[%s1 + $0x1fc8] sm:$0xff]
    %v1147 = vld [vmem:[%s1 + $0x1fd0] sm:$0xff]
    %v1148 = vld [vmem:[%s1 + $0x1fd8] sm:$0xff]
    %v1149 = vld [vmem:[%s1 + $0x1fe0] sm:$0xff]
    %v1150 = vld [vmem:[%s1 + $0x1fe8] sm:$0xff]
    %v1151 = vld [vmem:[%s1 + $0x1ff0] sm:$0xff]
    %v1152 = vld [vmem:[%s1 + $0x1ff8] sm:$0xff]
    %v1153 = vld [vmem:[%s1 + $0x2000] sm:$0xff]
    %v1154 = vld [vmem:[%s1 + $0x2008] sm:$0xff]
    %v1155 = vld [vmem:[%s1 + $0x2010] sm:$0xff]
    %v1156 = vld [vmem:[%s1 + $0x2018] sm:$0xff]
    %v1157 = vld [vmem:[%s1 + $0x2020] sm:$0xff]
    %v1158 = vld [vmem:[%s1 + $0x2028] sm:$0xf]
    %v1159 = vld [vmem:[%s1 + $0x202c] sm:$0xff]
    %v1160 = vld [vmem:[%s1 + $0x2034] sm:$0xff]
    %v1161 = vld [vmem:[%s1 + $0x203c] sm:$0xff]
    %v1162 = vld [vmem:[%s1 + $0x2044] sm:$0xff]
    %v1163 = vld [vmem:[%s1 + $0x204c] sm:$0xff]
    %v1164 = vld [vmem:[%s1 + $0x2054] sm:$0xff]
    %v1165 = vld [vmem:[%s1 + $0x205c] sm:$0xff]
    %v1166 = vld [vmem:[%s1 + $0x2064] sm:$0xff]
    %v1167 = vld [vmem:[%s1 + $0x206c] sm:$0xff]
    %v1168 = vld [vmem:[%s1 + $0x2074] sm:$0xff]
    %v1169 = vld [vmem:[%s1 + $0x207c] sm:$0xff]
    %v1170 = vld [vmem:[%s1 + $0x2084] sm:$0xff]
    %v1171 = vld [vmem:[%s1 + $0x208c] sm:$0xff]
    %v1172 = vld [vmem:[%s1 + $0x2094] sm:$0xff]
    %v1173 = vld [vmem:[%s1 + $0x209c] sm:$0xf]
    %v1174 = vld [vmem:[%s1 + $0x20a0] sm:$0xff]
    %v1175 = vld [vmem:[%s1 + $0x20a8] sm:$0xff]
    %v1176 = vld [vmem:[%s1 + $0x20b0] sm:$0xff]
    %v1177 = vld [vmem:[%s1 + $0x20b8] sm:$0xff]
    %v1178 = vld [vmem:[%s1 + $0x20c0] sm:$0xff]
    %v1179 = vld [vmem:[%s1 + $0x20c8] sm:$0xff]
    %v1180 = vld [vmem:[%s1 + $0x20d0] sm:$0xff]
    %v1181 = vld [vmem:[%s1 + $0x20d8] sm:$0xff]
    %v1182 = vld [vmem:[%s1 + $0x20e0] sm:$0xff]
    %v1183 = vld [vmem:[%s1 + $0x20e8] sm:$0xff]
    %v1184 = vld [vmem:[%s1 + $0x20f0] sm:$0xff]
    %v1185 = vld [vmem:[%s1 + $0x20f8] sm:$0xff]
    %v1186 = vld [vmem:[%s1 + $0x2100] sm:$0xff]
    %v1187 = vld [vmem:[%s1 + $0x2108] sm:$0xff]
    %v1188 = vld [vmem:[%s1 + $0x2110] sm:$0xf]
    %v1189 = vld [vmem:[%s1 + $0x2114] sm:$0xff]
    %v1190 = vld [vmem:[%s1 + $0x211c] sm:$0xff]
    %v1191 = vld [vmem:[%s1 + $0x2124] sm:$0xff]
    %v1192 = vld [vmem:[%s1 + $0x212c] sm:$0xff]
    %v1193 = vld [vmem:[%s1 + $0x2134] sm:$0xff]
    %v1194 = vld [vmem:[%s1 + $0x213c] sm:$0xff]
    %v1195 = vld [vmem:[%s1 + $0x2144] sm:$0xff]
    %v1196 = vld [vmem:[%s1 + $0x214c] sm:$0xff]
    %v1197 = vld [vmem:[%s1 + $0x2154] sm:$0xff]
    %v1198 = vld [vmem:[%s1 + $0x215c] sm:$0xff]
    %v1199 = vld [vmem:[%s1 + $0x2164] sm:$0xff]
    %v1200 = vld [vmem:[%s1 + $0x216c] sm:$0xff]
    %v1201 = vld [vmem:[%s1 + $0x2174] sm:$0xff]
    %v1202 = vld [vmem:[%s1 + $0x217c] sm:$0xff]
    %v1203 = vld [vmem:[%s1 + $0x2184] sm:$0xf]
    %v1204 = vld [vmem:[%s1 + $0x2188] sm:$0xff]
    %v1205 = vld [vmem:[%s1 + $0x2190] sm:$0xff]
    %v1206 = vld [vmem:[%s1 + $0x2198] sm:$0xff]
    %v1207 = vld [vmem:[%s1 + $0x21a0] sm:$0xff]
    %v1208 = vld [vmem:[%s1 + $0x21a8] sm:$0xff]
    %v1209 = vld [vmem:[%s1 + $0x21b0] sm:$0xff]
    %v1210 = vld [vmem:[%s1 + $0x21b8] sm:$0xff]
    %v1211 = vld [vmem:[%s1 + $0x21c0] sm:$0xff]
    %v1212 = vld [vmem:[%s1 + $0x21c8] sm:$0xff]
    %v1213 = vld [vmem:[%s1 + $0x21d0] sm:$0xff]
    %v1214 = vld [vmem:[%s1 + $0x21d8] sm:$0xff]
    %v1215 = vld [vmem:[%s1 + $0x21e0] sm:$0xff]
    %v1216 = vld [vmem:[%s1 + $0x21e8] sm:$0xff]
    %v1217 = vld [vmem:[%s1 + $0x21f0] sm:$0xff]
    %v1218 = vld [vmem:[%s1 + $0x21f8] sm:$0xf]
    %v1219 = vld [vmem:[%s1 + $0x21fc] sm:$0xff]
    %v1220 = vld [vmem:[%s1 + $0x2204] sm:$0xff]
    %v1221 = vld [vmem:[%s1 + $0x220c] sm:$0xff]
    %v1222 = vld [vmem:[%s1 + $0x2214] sm:$0xff]
    %v1223 = vld [vmem:[%s1 + $0x221c] sm:$0xff]
    %v1224 = vld [vmem:[%s1 + $0x2224] sm:$0xff]
    %v1225 = vld [vmem:[%s1 + $0x222c] sm:$0xff]
    %v1226 = vld [vmem:[%s1 + $0x2234] sm:$0xff]
    %v1227 = vld [vmem:[%s1 + $0x223c] sm:$0xff]
    %v1228 = vld [vmem:[%s1 + $0x2244] sm:$0xff]
    %v1229 = vld [vmem:[%s1 + $0x224c] sm:$0xff]
    %v1230 = vld [vmem:[%s1 + $0x2254] sm:$0xff]
    %v1231 = vld [vmem:[%s1 + $0x225c] sm:$0xff]
    %v1232 = vld [vmem:[%s1 + $0x2264] sm:$0xff]
    %v1233 = vld [vmem:[%s1 + $0x226c] sm:$0xf]
    %v1234 = vld [vmem:[%s1 + $0x2270] sm:$0xff]
    %v1235 = vld [vmem:[%s1 + $0x2278] sm:$0xff]
    %v1236 = vld [vmem:[%s1 + $0x2280] sm:$0xff]
    %v1237 = vld [vmem:[%s1 + $0x2288] sm:$0xff]
    %v1238 = vld [vmem:[%s1 + $0x2290] sm:$0xff]
    %v1239 = vld [vmem:[%s1 + $0x2298] sm:$0xff]
    %v1240 = vld [vmem:[%s1 + $0x22a0] sm:$0xff]
    %v1241 = vld [vmem:[%s1 + $0x22a8] sm:$0xff]
    %v1242 = vld [vmem:[%s1 + $0x22b0] sm:$0xff]
    %v1243 = vld [vmem:[%s1 + $0x22b8] sm:$0xff]
    %v1244 = vld [vmem:[%s1 + $0x22c0] sm:$0xff]
    %v1245 = vld [vmem:[%s1 + $0x22c8] sm:$0xff]
    %v1246 = vld [vmem:[%s1 + $0x22d0] sm:$0xff]
    %v1247 = vld [vmem:[%s1 + $0x22d8] sm:$0xff]
    %v1248 = vld [vmem:[%s1 + $0x22e0] sm:$0xf]
    %v1249 = vld [vmem:[%s1 + $0x22e4] sm:$0xff]
    %v1250 = vld [vmem:[%s1 + $0x22ec] sm:$0xff]
    %v1251 = vld [vmem:[%s1 + $0x22f4] sm:$0xff]
    %v1252 = vld [vmem:[%s1 + $0x22fc] sm:$0xff]
    %v1253 = vld [vmem:[%s1 + $0x2304] sm:$0xff]
    %v1254 = vld [vmem:[%s1 + $0x230c] sm:$0xff]
    %v1255 = vld [vmem:[%s1 + $0x2314] sm:$0xff]
    %v1256 = vld [vmem:[%s1 + $0x231c] sm:$0xff]
    %v1257 = vld [vmem:[%s1 + $0x2324] sm:$0xff]
    %v1258 = vld [vmem:[%s1 + $0x232c] sm:$0xff]
    %v1259 = vld [vmem:[%s1 + $0x2334] sm:$0xff]
    %v1260 = vld [vmem:[%s1 + $0x233c] sm:$0xff]
    %v1261 = vld [vmem:[%s1 + $0x2344] sm:$0xff]
    %v1262 = vld [vmem:[%s1 + $0x234c] sm:$0xff]
    %v1263 = vld [vmem:[%s1 + $0x2354] sm:$0xf]
    %v1264 = vld [vmem:[%s1 + $0x2358] sm:$0xff]
    %v1265 = vld [vmem:[%s1 + $0x2360] sm:$0xff]
    %v1266 = vld [vmem:[%s1 + $0x2368] sm:$0xff]
    %v1267 = vld [vmem:[%s1 + $0x2370] sm:$0xff]
    %v1268 = vld [vmem:[%s1 + $0x2378] sm:$0xff]
    %v1269 = vld [vmem:[%s1 + $0x2380] sm:$0xff]
    %v1270 = vld [vmem:[%s1 + $0x2388] sm:$0xff]
    %v1271 = vld [vmem:[%s1 + $0x2390] sm:$0xff]
    %v1272 = vld [vmem:[%s1 + $0x2398] sm:$0xff]
    %v1273 = vld [vmem:[%s1 + $0x23a0] sm:$0xff]
    %v1274 = vld [vmem:[%s1 + $0x23a8] sm:$0xff]
    %v1275 = vld [vmem:[%s1 + $0x23b0] sm:$0xff]
    %v1276 = vld [vmem:[%s1 + $0x23b8] sm:$0xff]
    %v1277 = vld [vmem:[%s1 + $0x23c0] sm:$0xff]
    %v1278 = vld [vmem:[%s1 + $0x23c8] sm:$0xf]
    %v1279 = vld [vmem:[%s1 + $0x23cc] sm:$0xff]
    %v1280 = vld [vmem:[%s1 + $0x23d4] sm:$0xff]
    %v1281 = vld [vmem:[%s1 + $0x23dc] sm:$0xff]
    %v1282 = vld [vmem:[%s1 + $0x23e4] sm:$0xff]
    %v1283 = vld [vmem:[%s1 + $0x23ec] sm:$0xff]
    %v1284 = vld [vmem:[%s1 + $0x23f4] sm:$0xff]
    %v1285 = vld [vmem:[%s1 + $0x23fc] sm:$0xff]
    %v1286 = vld [vmem:[%s1 + $0x2404] sm:$0xff]
    %v1287 = vld [vmem:[%s1 + $0x240c] sm:$0xff]
    %v1288 = vld [vmem:[%s1 + $0x2414] sm:$0xff]
    %v1289 = vld [vmem:[%s1 + $0x241c] sm:$0xff]
    %v1290 = vld [vmem:[%s1 + $0x2424] sm:$0xff]
    %v1291 = vld [vmem:[%s1 + $0x242c] sm:$0xff]
    %v1292 = vld [vmem:[%s1 + $0x2434] sm:$0xff]
    %v1293 = vld [vmem:[%s1 + $0x243c] sm:$0xf]
    %v1294 = vld [vmem:[%s1 + $0x2440] sm:$0xff]
    %v1295 = vld [vmem:[%s1 + $0x2448] sm:$0xff]
    %v1296 = vld [vmem:[%s1 + $0x2450] sm:$0xff]
    %v1297 = vld [vmem:[%s1 + $0x2458] sm:$0xff]
    %v1298 = vld [vmem:[%s1 + $0x2460] sm:$0xff]
    %v1299 = vld [vmem:[%s1 + $0x2468] sm:$0xff]
    %v1300 = vld [vmem:[%s1 + $0x2470] sm:$0xff]
    %v1301 = vld [vmem:[%s1 + $0x2478] sm:$0xff]
    %v1302 = vld [vmem:[%s1 + $0x2480] sm:$0xff]
    %v1303 = vld [vmem:[%s1 + $0x2488] sm:$0xff]
    %v1304 = vld [vmem:[%s1 + $0x2490] sm:$0xff]
    %v1305 = vld [vmem:[%s1 + $0x2498] sm:$0xff]
    %v1306 = vld [vmem:[%s1 + $0x24a0] sm:$0xff]
    %v1307 = vld [vmem:[%s1 + $0x24a8] sm:$0xff]
    %v1308 = vld [vmem:[%s1 + $0x24b0] sm:$0xf]
    %v1309 = vld [vmem:[%s1 + $0x24b4] sm:$0xff]
    %v1310 = vld [vmem:[%s1 + $0x24bc] sm:$0xff]
    %v1311 = vld [vmem:[%s1 + $0x24c4] sm:$0xff]
    %v1312 = vld [vmem:[%s1 + $0x24cc] sm:$0xff]
    %v1313 = vld [vmem:[%s1 + $0x24d4] sm:$0xff]
    %v1314 = vld [vmem:[%s1 + $0x24dc] sm:$0xff]
    %v1315 = vld [vmem:[%s1 + $0x24e4] sm:$0xff]
    %v1316 = vld [vmem:[%s1 + $0x24ec] sm:$0xff]
    %v1317 = vld [vmem:[%s1 + $0x24f4] sm:$0xff]
    %v1318 = vld [vmem:[%s1 + $0x24fc] sm:$0xff]
    %v1319 = vld [vmem:[%s1 + $0x2504] sm:$0xff]
    %v1320 = vld [vmem:[%s1 + $0x250c] sm:$0xff]
    %v1321 = vld [vmem:[%s1 + $0x2514] sm:$0xff]
    %v1322 = vld [vmem:[%s1 + $0x251c] sm:$0xff]
    %v1323 = vld [vmem:[%s1 + $0x2524] sm:$0xf]
    %v1324 = vld [vmem:[%s1 + $0x2528] sm:$0xff]
    %v1325 = vld [vmem:[%s1 + $0x2530] sm:$0xff]
    %v1326 = vld [vmem:[%s1 + $0x2538] sm:$0xff]
    %v1327 = vld [vmem:[%s1 + $0x2540] sm:$0xff]
    %v1328 = vld [vmem:[%s1 + $0x2548] sm:$0xff]
    %v1329 = vld [vmem:[%s1 + $0x2550] sm:$0xff]
    %v1330 = vld [vmem:[%s1 + $0x2558] sm:$0xff]
    %v1331 = vld [vmem:[%s1 + $0x2560] sm:$0xff]
    %v1332 = vld [vmem:[%s1 + $0x2568] sm:$0xff]
    %v1333 = vld [vmem:[%s1 + $0x2570] sm:$0xff]
    %v1334 = vld [vmem:[%s1 + $0x2578] sm:$0xff]
    %v1335 = vld [vmem:[%s1 + $0x2580] sm:$0xff]
    %v1336 = vld [vmem:[%s1 + $0x2588] sm:$0xff]
    %v1337 = vld [vmem:[%s1 + $0x2590] sm:$0xff]
    %v1338 = vld [vmem:[%s1 + $0x2598] sm:$0xf]
    %v1339 = vld [vmem:[%s1 + $0x259c] sm:$0xff]
    %v1340 = vld [vmem:[%s1 + $0x25a4] sm:$0xff]
    %v1341 = vld [vmem:[%s1 + $0x25ac] sm:$0xff]
    %v1342 = vld [vmem:[%s1 + $0x25b4] sm:$0xff]
    %v1343 = vld [vmem:[%s1 + $0x25bc] sm:$0xff]
    %v1344 = vld [vmem:[%s1 + $0x25c4] sm:$0xff]
    %v1345 = vld [vmem:[%s1 + $0x25cc] sm:$0xff]
    %v1346 = vld [vmem:[%s1 + $0x25d4] sm:$0xff]
    %v1347 = vld [vmem:[%s1 + $0x25dc] sm:$0xff]
    %v1348 = vld [vmem:[%s1 + $0x25e4] sm:$0xff]
    %v1349 = vld [vmem:[%s1 + $0x25ec] sm:$0xff]
    %v1350 = vld [vmem:[%s1 + $0x25f4] sm:$0xff]
    %v1351 = vld [vmem:[%s1 + $0x25fc] sm:$0xff]
    %v1352 = vld [vmem:[%s1 + $0x2604] sm:$0xff]
    %v1353 = vld [vmem:[%s1 + $0x260c] sm:$0xf]
    %v1354 = vld [vmem:[%s1 + $0x2610] sm:$0xff]
    %v1355 = vld [vmem:[%s1 + $0x2618] sm:$0xff]
    %v1356 = vld [vmem:[%s1 + $0x2620] sm:$0xff]
    %v1357 = vld [vmem:[%s1 + $0x2628] sm:$0xff]
    %v1358 = vld [vmem:[%s1 + $0x2630] sm:$0xff]
    %v1359 = vld [vmem:[%s1 + $0x2638] sm:$0xff]
    %v1360 = vld [vmem:[%s1 + $0x2640] sm:$0xff]
    %v1361 = vld [vmem:[%s1 + $0x2648] sm:$0xff]
    %v1362 = vld [vmem:[%s1 + $0x2650] sm:$0xff]
    %v1363 = vld [vmem:[%s1 + $0x2658] sm:$0xff]
    %v1364 = vld [vmem:[%s1 + $0x2660] sm:$0xff]
    %v1365 = vld [vmem:[%s1 + $0x2668] sm:$0xff]
    %v1366 = vld [vmem:[%s1 + $0x2670] sm:$0xff]
    %v1367 = vld [vmem:[%s1 + $0x2678] sm:$0xff]
    %v1368 = vld [vmem:[%s1 + $0x2680] sm:$0xf]
    %v1369 = vld [vmem:[%s1 + $0x2684] sm:$0xff]
    %v1370 = vld [vmem:[%s1 + $0x268c] sm:$0xff]
    %v1371 = vld [vmem:[%s1 + $0x2694] sm:$0xff]
    %v1372 = vld [vmem:[%s1 + $0x269c] sm:$0xff]
    %v1373 = vld [vmem:[%s1 + $0x26a4] sm:$0xff]
    %v1374 = vld [vmem:[%s1 + $0x26ac] sm:$0xff]
    %v1375 = vld [vmem:[%s1 + $0x26b4] sm:$0xff]
    %v1376 = vld [vmem:[%s1 + $0x26bc] sm:$0xff]
    %v1377 = vld [vmem:[%s1 + $0x26c4] sm:$0xff]
    %v1378 = vld [vmem:[%s1 + $0x26cc] sm:$0xff]
    %v1379 = vld [vmem:[%s1 + $0x26d4] sm:$0xff]
    %v1380 = vld [vmem:[%s1 + $0x26dc] sm:$0xff]
    %v1381 = vld [vmem:[%s1 + $0x26e4] sm:$0xff]
    %v1382 = vld [vmem:[%s1 + $0x26ec] sm:$0xff]
    %v1383 = vld [vmem:[%s1 + $0x26f4] sm:$0xf]
    %v1384 = vld [vmem:[%s1 + $0x26f8] sm:$0xff]
    %v1385 = vld [vmem:[%s1 + $0x2700] sm:$0xff]
    %v1386 = vld [vmem:[%s1 + $0x2708] sm:$0xff]
    %v1387 = vld [vmem:[%s1 + $0x2710] sm:$0xff]
    %v1388 = vld [vmem:[%s1 + $0x2718] sm:$0xff]
    %v1389 = vld [vmem:[%s1 + $0x2720] sm:$0xff]
    %v1390 = vld [vmem:[%s1 + $0x2728] sm:$0xff]
    %v1391 = vld [vmem:[%s1 + $0x2730] sm:$0xff]
    %v1392 = vld [vmem:[%s1 + $0x2738] sm:$0xff]
    %v1393 = vld [vmem:[%s1 + $0x2740] sm:$0xff]
    %v1394 = vld [vmem:[%s1 + $0x2748] sm:$0xff]
    %v1395 = vld [vmem:[%s1 + $0x2750] sm:$0xff]
    %v1396 = vld [vmem:[%s1 + $0x2758] sm:$0xff]
    %v1397 = vld [vmem:[%s1 + $0x2760] sm:$0xff]
    %v1398 = vld [vmem:[%s1 + $0x2768] sm:$0xf]
    %v1399 = vld [vmem:[%s1 + $0x276c] sm:$0xff]
    %v1400 = vld [vmem:[%s1 + $0x2774] sm:$0xff]
    %v1401 = vld [vmem:[%s1 + $0x277c] sm:$0xff]
    %v1402 = vld [vmem:[%s1 + $0x2784] sm:$0xff]
    %v1403 = vld [vmem:[%s1 + $0x278c] sm:$0xff]
    %v1404 = vld [vmem:[%s1 + $0x2794] sm:$0xff]
    %v1405 = vld [vmem:[%s1 + $0x279c] sm:$0xff]
    %v1406 = vld [vmem:[%s1 + $0x27a4] sm:$0xff]
    %v1407 = vld [vmem:[%s1 + $0x27ac] sm:$0xff]
    %v1408 = vld [vmem:[%s1 + $0x27b4] sm:$0xff]
    %v1409 = vld [vmem:[%s1 + $0x27bc] sm:$0xff]
    %v1410 = vld [vmem:[%s1 + $0x27c4] sm:$0xff]
    %v1411 = vld [vmem:[%s1 + $0x27cc] sm:$0xff]
    %v1412 = vld [vmem:[%s1 + $0x27d4] sm:$0xff]
    %v1413 = vld [vmem:[%s1 + $0x27dc] sm:$0xf]
    %v1414 = vld [vmem:[%s1 + $0x27e0] sm:$0xff]
    %v1415 = vld [vmem:[%s1 + $0x27e8] sm:$0xff]
    %v1416 = vld [vmem:[%s1 + $0x27f0] sm:$0xff]
    %v1417 = vld [vmem:[%s1 + $0x27f8] sm:$0xff]
    %v1418 = vld [vmem:[%s1 + $0x2800] sm:$0xff]
    %v1419 = vld [vmem:[%s1 + $0x2808] sm:$0xff]
    %v1420 = vld [vmem:[%s1 + $0x2810] sm:$0xff]
    %v1421 = vld [vmem:[%s1 + $0x2818] sm:$0xff]
    %v1422 = vld [vmem:[%s1 + $0x2820] sm:$0xff]
    %v1423 = vld [vmem:[%s1 + $0x2828] sm:$0xff]
    %v1424 = vld [vmem:[%s1 + $0x2830] sm:$0xff]
    %v1425 = vld [vmem:[%s1 + $0x2838] sm:$0xff]
    %v1426 = vld [vmem:[%s1 + $0x2840] sm:$0xff]
    %v1427 = vld [vmem:[%s1 + $0x2848] sm:$0xff]
    %v1428 = vld [vmem:[%s1 + $0x2850] sm:$0xf]
    %v1429 = vld [vmem:[%s1 + $0x2854] sm:$0xff]
    %v1430 = vld [vmem:[%s1 + $0x285c] sm:$0xff]
    %v1431 = vld [vmem:[%s1 + $0x2864] sm:$0xff]
    %v1432 = vld [vmem:[%s1 + $0x286c] sm:$0xff]
    %v1433 = vld [vmem:[%s1 + $0x2874] sm:$0xff]
    %v1434 = vld [vmem:[%s1 + $0x287c] sm:$0xff]
    %v1435 = vld [vmem:[%s1 + $0x2884] sm:$0xff]
    %v1436 = vld [vmem:[%s1 + $0x288c] sm:$0xff]
    %v1437 = vld [vmem:[%s1 + $0x2894] sm:$0xff]
    %v1438 = vld [vmem:[%s1 + $0x289c] sm:$0xff]
    %v1439 = vld [vmem:[%s1 + $0x28a4] sm:$0xff]
    %v1440 = vld [vmem:[%s1 + $0x28ac] sm:$0xff]
    %v1441 = vld [vmem:[%s1 + $0x28b4] sm:$0xff]
    %v1442 = vld [vmem:[%s1 + $0x28bc] sm:$0xff]
    %v1443 = vld [vmem:[%s1 + $0x28c4] sm:$0xf]
    %v1444 = vld [vmem:[%s1 + $0x28c8] sm:$0xff]
    %v1445 = vld [vmem:[%s1 + $0x28d0] sm:$0xff]
    %v1446 = vld [vmem:[%s1 + $0x28d8] sm:$0xff]
    %v1447 = vld [vmem:[%s1 + $0x28e0] sm:$0xff]
    %v1448 = vld [vmem:[%s1 + $0x28e8] sm:$0xff]
    %v1449 = vld [vmem:[%s1 + $0x28f0] sm:$0xff]
    %v1450 = vld [vmem:[%s1 + $0x28f8] sm:$0xff]
    %v1451 = vld [vmem:[%s1 + $0x2900] sm:$0xff]
    %v1452 = vld [vmem:[%s1 + $0x2908] sm:$0xff]
    %v1453 = vld [vmem:[%s1 + $0x2910] sm:$0xff]
    %v1454 = vld [vmem:[%s1 + $0x2918] sm:$0xff]
    %v1455 = vld [vmem:[%s1 + $0x2920] sm:$0xff]
    %v1456 = vld [vmem:[%s1 + $0x2928] sm:$0xff]
    %v1457 = vld [vmem:[%s1 + $0x2930] sm:$0xff]
    %v1458 = vld [vmem:[%s1 + $0x2938] sm:$0xf]
    %v1459 = vld [vmem:[%s1 + $0x293c] sm:$0xff]
    %v1460 = vld [vmem:[%s1 + $0x2944] sm:$0xff]
    %v1461 = vld [vmem:[%s1 + $0x294c] sm:$0xff]
    %v1462 = vld [vmem:[%s1 + $0x2954] sm:$0xff]
    %v1463 = vld [vmem:[%s1 + $0x295c] sm:$0xff]
    %v1464 = vld [vmem:[%s1 + $0x2964] sm:$0xff]
    %v1465 = vld [vmem:[%s1 + $0x296c] sm:$0xff]
    %v1466 = vld [vmem:[%s1 + $0x2974] sm:$0xff]
    %v1467 = vld [vmem:[%s1 + $0x297c] sm:$0xff]
    %v1468 = vld [vmem:[%s1 + $0x2984] sm:$0xff]
    %v1469 = vld [vmem:[%s1 + $0x298c] sm:$0xff]
    %v1470 = vld [vmem:[%s1 + $0x2994] sm:$0xff]
    %v1471 = vld [vmem:[%s1 + $0x299c] sm:$0xff]
    %v1472 = vld [vmem:[%s1 + $0x29a4] sm:$0xff]
    %v1473 = vld [vmem:[%s1 + $0x29ac] sm:$0xf]
    %v1474 = vld [vmem:[%s1 + $0x29b0] sm:$0xff]
    %v1475 = vld [vmem:[%s1 + $0x29b8] sm:$0xff]
    %v1476 = vld [vmem:[%s1 + $0x29c0] sm:$0xff]
    %v1477 = vld [vmem:[%s1 + $0x29c8] sm:$0xff]
    %v1478 = vld [vmem:[%s1 + $0x29d0] sm:$0xff]
    %v1479 = vld [vmem:[%s1 + $0x29d8] sm:$0xff]
    %v1480 = vld [vmem:[%s1 + $0x29e0] sm:$0xff]
    %v1481 = vld [vmem:[%s1 + $0x29e8] sm:$0xff]
    %v1482 = vld [vmem:[%s1 + $0x29f0] sm:$0xff]
    %v1483 = vld [vmem:[%s1 + $0x29f8] sm:$0xff]
    %v1484 = vld [vmem:[%s1 + $0x2a00] sm:$0xff]
    %v1485 = vld [vmem:[%s1 + $0x2a08] sm:$0xff]
    %v1486 = vld [vmem:[%s1 + $0x2a10] sm:$0xff]
    %v1487 = vld [vmem:[%s1 + $0x2a18] sm:$0xff]
    %v1488 = vld [vmem:[%s1 + $0x2a20] sm:$0xf]
    %v1489 = vld [vmem:[%s1 + $0x2a24] sm:$0xff]
    %v1490 = vld [vmem:[%s1 + $0x2a2c] sm:$0xff]
    %v1491 = vld [vmem:[%s1 + $0x2a34] sm:$0xff]
    %v1492 = vld [vmem:[%s1 + $0x2a3c] sm:$0xff]
    %v1493 = vld [vmem:[%s1 + $0x2a44] sm:$0xff]
    %v1494 = vld [vmem:[%s1 + $0x2a4c] sm:$0xff]
    %v1495 = vld [vmem:[%s1 + $0x2a54] sm:$0xff]
    %v1496 = vld [vmem:[%s1 + $0x2a5c] sm:$0xff]
    %v1497 = vld [vmem:[%s1 + $0x2a64] sm:$0xff]
    %v1498 = vld [vmem:[%s1 + $0x2a6c] sm:$0xff]
    %v1499 = vld [vmem:[%s1 + $0x2a74] sm:$0xff]
    %v1500 = vld [vmem:[%s1 + $0x2a7c] sm:$0xff]
    %v1501 = vld [vmem:[%s1 + $0x2a84] sm:$0xff]
    %v1502 = vld [vmem:[%s1 + $0x2a8c] sm:$0xff]
    %v1503 = vld [vmem:[%s1 + $0x2a94] sm:$0xf]
    %v1504 = vld [vmem:[%s1 + $0x2a98] sm:$0xff]
    %v1505 = vld [vmem:[%s1 + $0x2aa0] sm:$0xff]
    %v1506 = vld [vmem:[%s1 + $0x2aa8] sm:$0xff]
    %v1507 = vld [vmem:[%s1 + $0x2ab0] sm:$0xff]
    %v1508 = vld [vmem:[%s1 + $0x2ab8] sm:$0xff]
    %v1509 = vld [vmem:[%s1 + $0x2ac0] sm:$0xff]
    %v1510 = vld [vmem:[%s1 + $0x2ac8] sm:$0xff]
    %v1511 = vld [vmem:[%s1 + $0x2ad0] sm:$0xff]
    %v1512 = vld [vmem:[%s1 + $0x2ad8] sm:$0xff]
    %v1513 = vld [vmem:[%s1 + $0x2ae0] sm:$0xff]
    %v1514 = vld [vmem:[%s1 + $0x2ae8] sm:$0xff]
    %v1515 = vld [vmem:[%s1 + $0x2af0] sm:$0xff]
    %v1516 = vld [vmem:[%s1 + $0x2af8] sm:$0xff]
    %v1517 = vld [vmem:[%s1 + $0x2b00] sm:$0xff]
    %v1518 = vld [vmem:[%s1 + $0x2b08] sm:$0xf]
    %v1519 = vld [vmem:[%s1 + $0x2b0c] sm:$0xff]
    %v1520 = vld [vmem:[%s1 + $0x2b14] sm:$0xff]
    %v1521 = vld [vmem:[%s1 + $0x2b1c] sm:$0xff]
    %v1522 = vld [vmem:[%s1 + $0x2b24] sm:$0xff]
    %v1523 = vld [vmem:[%s1 + $0x2b2c] sm:$0xff]
    %v1524 = vld [vmem:[%s1 + $0x2b34] sm:$0xff]
    %v1525 = vld [vmem:[%s1 + $0x2b3c] sm:$0xff]
    %v1526 = vld [vmem:[%s1 + $0x2b44] sm:$0xff]
    %v1527 = vld [vmem:[%s1 + $0x2b4c] sm:$0xff]
    %v1528 = vld [vmem:[%s1 + $0x2b54] sm:$0xff]
    %v1529 = vld [vmem:[%s1 + $0x2b5c] sm:$0xff]
    %v1530 = vld [vmem:[%s1 + $0x2b64] sm:$0xff]
    %v1531 = vld [vmem:[%s1 + $0x2b6c] sm:$0xff]
    %v1532 = vld [vmem:[%s1 + $0x2b74] sm:$0xff]
    %v1533 = vld [vmem:[%s1 + $0x2b7c] sm:$0xf]
    %v2974 = vunpack.c.l.b16 %v94
    %v2975 = vunpack.c.h.b16 %v94
    %v2976 = vunpack.c.l.b16 %v95
    %v2977 = vunpack.c.h.b16 %v95
    %v2978 = vunpack.c.l.b16 %v96
    %v2979 = vunpack.c.h.b16 %v96
    %v2980 = vunpack.c.l.b16 %v97
    %v2981 = vunpack.c.h.b16 %v97
    %v2982 = vunpack.c.l.b16 %v98
    %v2983 = vunpack.c.h.b16 %v98
    %v2984 = vunpack.c.l.b16 %v99
    %v2985 = vunpack.c.h.b16 %v99
    %v2986 = vunpack.c.l.b16 %v100
    %v2987 = vunpack.c.h.b16 %v100
    %v2988 = vunpack.c.l.b16 %v101
    %v2989 = vunpack.c.h.b16 %v101
    %v2990 = vunpack.c.l.b16 %v102
    %v2991 = vunpack.c.h.b16 %v102
    %v2992 = vunpack.c.l.b16 %v103
    %v2993 = vunpack.c.h.b16 %v103
    %v2994 = vunpack.c.l.b16 %v104
    %v2995 = vunpack.c.h.b16 %v104
    %v2996 = vunpack.c.l.b16 %v105
    %v2997 = vunpack.c.h.b16 %v105
    %v2998 = vunpack.c.l.b16 %v106
    %v2999 = vunpack.c.h.b16 %v106
    %v3000 = vunpack.c.l.b16 %v107
    %v3001 = vunpack.c.h.b16 %v107
    %v3002 = vunpack.c.l.b16 %v108
    %v3003 = vunpack.c.l.b16 %v109
    %v3004 = vunpack.c.h.b16 %v109
    %v3005 = vunpack.c.l.b16 %v110
    %v3006 = vunpack.c.h.b16 %v110
    %v3007 = vunpack.c.l.b16 %v111
    %v3008 = vunpack.c.h.b16 %v111
    %v3009 = vunpack.c.l.b16 %v112
    %v3010 = vunpack.c.h.b16 %v112
    %v3011 = vunpack.c.l.b16 %v113
    %v3012 = vunpack.c.h.b16 %v113
    %v3013 = vunpack.c.l.b16 %v114
    %v3014 = vunpack.c.h.b16 %v114
    %v3015 = vunpack.c.l.b16 %v115
    %v3016 = vunpack.c.h.b16 %v115
    %v3017 = vunpack.c.l.b16 %v116
    %v3018 = vunpack.c.h.b16 %v116
    %v3019 = vunpack.c.l.b16 %v117
    %v3020 = vunpack.c.h.b16 %v117
    %v3021 = vunpack.c.l.b16 %v118
    %v3022 = vunpack.c.h.b16 %v118
    %v3023 = vunpack.c.l.b16 %v119
    %v3024 = vunpack.c.h.b16 %v119
    %v3025 = vunpack.c.l.b16 %v120
    %v3026 = vunpack.c.h.b16 %v120
    %v3027 = vunpack.c.l.b16 %v121
    %v3028 = vunpack.c.h.b16 %v121
    %v3029 = vunpack.c.l.b16 %v122
    %v3030 = vunpack.c.h.b16 %v122
    %v3031 = vunpack.c.l.b16 %v123
    %v3032 = vunpack.c.l.b16 %v124
    %v3033 = vunpack.c.h.b16 %v124
    %v3034 = vunpack.c.l.b16 %v125
    %v3035 = vunpack.c.h.b16 %v125
    %v3036 = vunpack.c.l.b16 %v126
    %v3037 = vunpack.c.h.b16 %v126
    %v3038 = vunpack.c.l.b16 %v127
    %v3039 = vunpack.c.h.b16 %v127
    %v3040 = vunpack.c.l.b16 %v128
    %v3041 = vunpack.c.h.b16 %v128
    %v3042 = vunpack.c.l.b16 %v129
    %v3043 = vunpack.c.h.b16 %v129
    %v3044 = vunpack.c.l.b16 %v130
    %v3045 = vunpack.c.h.b16 %v130
    %v3046 = vunpack.c.l.b16 %v131
    %v3047 = vunpack.c.h.b16 %v131
    %v3048 = vunpack.c.l.b16 %v132
    %v3049 = vunpack.c.h.b16 %v132
    %v3050 = vunpack.c.l.b16 %v133
    %v3051 = vunpack.c.h.b16 %v133
    %v3052 = vunpack.c.l.b16 %v134
    %v3053 = vunpack.c.h.b16 %v134
    %v3054 = vunpack.c.l.b16 %v135
    %v3055 = vunpack.c.h.b16 %v135
    %v3056 = vunpack.c.l.b16 %v136
    %v3057 = vunpack.c.h.b16 %v136
    %v3058 = vunpack.c.l.b16 %v137
    %v3059 = vunpack.c.h.b16 %v137
    %v3060 = vunpack.c.l.b16 %v138
    %v3061 = vunpack.c.l.b16 %v139
    %v3062 = vunpack.c.h.b16 %v139
    %v3063 = vunpack.c.l.b16 %v140
    %v3064 = vunpack.c.h.b16 %v140
    %v3065 = vunpack.c.l.b16 %v141
    %v3066 = vunpack.c.h.b16 %v141
    %v3067 = vunpack.c.l.b16 %v142
    %v3068 = vunpack.c.h.b16 %v142
    %v3069 = vunpack.c.l.b16 %v143
    %v3070 = vunpack.c.h.b16 %v143
    %v3071 = vunpack.c.l.b16 %v144
    %v3072 = vunpack.c.h.b16 %v144
    %v3073 = vunpack.c.l.b16 %v145
    %v3074 = vunpack.c.h.b16 %v145
    %v3075 = vunpack.c.l.b16 %v146
    %v3076 = vunpack.c.h.b16 %v146
    %v3077 = vunpack.c.l.b16 %v147
    %v3078 = vunpack.c.h.b16 %v147
    %v3079 = vunpack.c.l.b16 %v148
    %v3080 = vunpack.c.h.b16 %v148
    %v3081 = vunpack.c.l.b16 %v149
    %v3082 = vunpack.c.h.b16 %v149
    %v3083 = vunpack.c.l.b16 %v150
    %v3084 = vunpack.c.h.b16 %v150
    %v3085 = vunpack.c.l.b16 %v151
    %v3086 = vunpack.c.h.b16 %v151
    %v3087 = vunpack.c.l.b16 %v152
    %v3088 = vunpack.c.h.b16 %v152
    %v3089 = vunpack.c.l.b16 %v153
    %v3090 = vunpack.c.l.b16 %v154
    %v3091 = vunpack.c.h.b16 %v154
    %v3092 = vunpack.c.l.b16 %v155
    %v3093 = vunpack.c.h.b16 %v155
    %v3094 = vunpack.c.l.b16 %v156
    %v3095 = vunpack.c.h.b16 %v156
    %v3096 = vunpack.c.l.b16 %v157
    %v3097 = vunpack.c.h.b16 %v157
    %v3098 = vunpack.c.l.b16 %v158
    %v3099 = vunpack.c.h.b16 %v158
    %v3100 = vunpack.c.l.b16 %v159
    %v3101 = vunpack.c.h.b16 %v159
    %v3102 = vunpack.c.l.b16 %v160
    %v3103 = vunpack.c.h.b16 %v160
    %v3104 = vunpack.c.l.b16 %v161
    %v3105 = vunpack.c.h.b16 %v161
    %v3106 = vunpack.c.l.b16 %v162
    %v3107 = vunpack.c.h.b16 %v162
    %v3108 = vunpack.c.l.b16 %v163
    %v3109 = vunpack.c.h.b16 %v163
    %v3110 = vunpack.c.l.b16 %v164
    %v3111 = vunpack.c.h.b16 %v164
    %v3112 = vunpack.c.l.b16 %v165
    %v3113 = vunpack.c.h.b16 %v165
    %v3114 = vunpack.c.l.b16 %v166
    %v3115 = vunpack.c.h.b16 %v166
    %v3116 = vunpack.c.l.b16 %v167
    %v3117 = vunpack.c.h.b16 %v167
    %v3118 = vunpack.c.l.b16 %v168
    %v3119 = vunpack.c.l.b16 %v169
    %v3120 = vunpack.c.h.b16 %v169
    %v3121 = vunpack.c.l.b16 %v170
    %v3122 = vunpack.c.h.b16 %v170
    %v3123 = vunpack.c.l.b16 %v171
    %v3124 = vunpack.c.h.b16 %v171
    %v3125 = vunpack.c.l.b16 %v172
    %v3126 = vunpack.c.h.b16 %v172
    %v3127 = vunpack.c.l.b16 %v173
    %v3128 = vunpack.c.h.b16 %v173
    %v3129 = vunpack.c.l.b16 %v174
    %v3130 = vunpack.c.h.b16 %v174
    %v3131 = vunpack.c.l.b16 %v175
    %v3132 = vunpack.c.h.b16 %v175
    %v3133 = vunpack.c.l.b16 %v176
    %v3134 = vunpack.c.h.b16 %v176
    %v3135 = vunpack.c.l.b16 %v177
    %v3136 = vunpack.c.h.b16 %v177
    %v3137 = vunpack.c.l.b16 %v178
    %v3138 = vunpack.c.h.b16 %v178
    %v3139 = vunpack.c.l.b16 %v179
    %v3140 = vunpack.c.h.b16 %v179
    %v3141 = vunpack.c.l.b16 %v180
    %v3142 = vunpack.c.h.b16 %v180
    %v3143 = vunpack.c.l.b16 %v181
    %v3144 = vunpack.c.h.b16 %v181
    %v3145 = vunpack.c.l.b16 %v182
    %v3146 = vunpack.c.h.b16 %v182
    %v3147 = vunpack.c.l.b16 %v183
    %v3148 = vunpack.c.l.b16 %v184
    %v3149 = vunpack.c.h.b16 %v184
    %v3150 = vunpack.c.l.b16 %v185
    %v3151 = vunpack.c.h.b16 %v185
    %v3152 = vunpack.c.l.b16 %v186
    %v3153 = vunpack.c.h.b16 %v186
    %v3154 = vunpack.c.l.b16 %v187
    %v3155 = vunpack.c.h.b16 %v187
    %v3156 = vunpack.c.l.b16 %v188
    %v3157 = vunpack.c.h.b16 %v188
    %v3158 = vunpack.c.l.b16 %v189
    %v3159 = vunpack.c.h.b16 %v189
    %v3160 = vunpack.c.l.b16 %v190
    %v3161 = vunpack.c.h.b16 %v190
    %v3162 = vunpack.c.l.b16 %v191
    %v3163 = vunpack.c.h.b16 %v191
    %v3164 = vunpack.c.l.b16 %v192
    %v3165 = vunpack.c.h.b16 %v192
    %v3166 = vunpack.c.l.b16 %v193
    %v3167 = vunpack.c.h.b16 %v193
    %v3168 = vunpack.c.l.b16 %v194
    %v3169 = vunpack.c.h.b16 %v194
    %v3170 = vunpack.c.l.b16 %v195
    %v3171 = vunpack.c.h.b16 %v195
    %v3172 = vunpack.c.l.b16 %v196
    %v3173 = vunpack.c.h.b16 %v196
    %v3174 = vunpack.c.l.b16 %v197
    %v3175 = vunpack.c.h.b16 %v197
    %v3176 = vunpack.c.l.b16 %v198
    %v3177 = vunpack.c.l.b16 %v199
    %v3178 = vunpack.c.h.b16 %v199
    %v3179 = vunpack.c.l.b16 %v200
    %v3180 = vunpack.c.h.b16 %v200
    %v3181 = vunpack.c.l.b16 %v201
    %v3182 = vunpack.c.h.b16 %v201
    %v3183 = vunpack.c.l.b16 %v202
    %v3184 = vunpack.c.h.b16 %v202
    %v3185 = vunpack.c.l.b16 %v203
    %v3186 = vunpack.c.h.b16 %v203
    %v3187 = vunpack.c.l.b16 %v204
    %v3188 = vunpack.c.h.b16 %v204
    %v3189 = vunpack.c.l.b16 %v205
    %v3190 = vunpack.c.h.b16 %v205
    %v3191 = vunpack.c.l.b16 %v206
    %v3192 = vunpack.c.h.b16 %v206
    %v3193 = vunpack.c.l.b16 %v207
    %v3194 = vunpack.c.h.b16 %v207
    %v3195 = vunpack.c.l.b16 %v208
    %v3196 = vunpack.c.h.b16 %v208
    %v3197 = vunpack.c.l.b16 %v209
    %v3198 = vunpack.c.h.b16 %v209
    %v3199 = vunpack.c.l.b16 %v210
    %v3200 = vunpack.c.h.b16 %v210
    %v3201 = vunpack.c.l.b16 %v211
    %v3202 = vunpack.c.h.b16 %v211
    %v3203 = vunpack.c.l.b16 %v212
    %v3204 = vunpack.c.h.b16 %v212
    %v3205 = vunpack.c.l.b16 %v213
    %v3206 = vunpack.c.l.b16 %v214
    %v3207 = vunpack.c.h.b16 %v214
    %v3208 = vunpack.c.l.b16 %v215
    %v3209 = vunpack.c.h.b16 %v215
    %v3210 = vunpack.c.l.b16 %v216
    %v3211 = vunpack.c.h.b16 %v216
    %v3212 = vunpack.c.l.b16 %v217
    %v3213 = vunpack.c.h.b16 %v217
    %v3214 = vunpack.c.l.b16 %v218
    %v3215 = vunpack.c.h.b16 %v218
    %v3216 = vunpack.c.l.b16 %v219
    %v3217 = vunpack.c.h.b16 %v219
    %v3218 = vunpack.c.l.b16 %v220
    %v3219 = vunpack.c.h.b16 %v220
    %v3220 = vunpack.c.l.b16 %v221
    %v3221 = vunpack.c.h.b16 %v221
    %v3222 = vunpack.c.l.b16 %v222
    %v3223 = vunpack.c.h.b16 %v222
    %v3224 = vunpack.c.l.b16 %v223
    %v3225 = vunpack.c.h.b16 %v223
    %v3226 = vunpack.c.l.b16 %v224
    %v3227 = vunpack.c.h.b16 %v224
    %v3228 = vunpack.c.l.b16 %v225
    %v3229 = vunpack.c.h.b16 %v225
    %v3230 = vunpack.c.l.b16 %v226
    %v3231 = vunpack.c.h.b16 %v226
    %v3232 = vunpack.c.l.b16 %v227
    %v3233 = vunpack.c.h.b16 %v227
    %v3234 = vunpack.c.l.b16 %v228
    %v3235 = vunpack.c.l.b16 %v229
    %v3236 = vunpack.c.h.b16 %v229
    %v3237 = vunpack.c.l.b16 %v230
    %v3238 = vunpack.c.h.b16 %v230
    %v3239 = vunpack.c.l.b16 %v231
    %v3240 = vunpack.c.h.b16 %v231
    %v3241 = vunpack.c.l.b16 %v232
    %v3242 = vunpack.c.h.b16 %v232
    %v3243 = vunpack.c.l.b16 %v233
    %v3244 = vunpack.c.h.b16 %v233
    %v3245 = vunpack.c.l.b16 %v234
    %v3246 = vunpack.c.h.b16 %v234
    %v3247 = vunpack.c.l.b16 %v235
    %v3248 = vunpack.c.h.b16 %v235
    %v3249 = vunpack.c.l.b16 %v236
    %v3250 = vunpack.c.h.b16 %v236
    %v3251 = vunpack.c.l.b16 %v237
    %v3252 = vunpack.c.h.b16 %v237
    %v3253 = vunpack.c.l.b16 %v238
    %v3254 = vunpack.c.h.b16 %v238
    %v3255 = vunpack.c.l.b16 %v239
    %v3256 = vunpack.c.h.b16 %v239
    %v3257 = vunpack.c.l.b16 %v240
    %v3258 = vunpack.c.h.b16 %v240
    %v3259 = vunpack.c.l.b16 %v241
    %v3260 = vunpack.c.h.b16 %v241
    %v3261 = vunpack.c.l.b16 %v242
    %v3262 = vunpack.c.h.b16 %v242
    %v3263 = vunpack.c.l.b16 %v243
    %v3264 = vunpack.c.l.b16 %v244
    %v3265 = vunpack.c.h.b16 %v244
    %v3266 = vunpack.c.l.b16 %v245
    %v3267 = vunpack.c.h.b16 %v245
    %v3268 = vunpack.c.l.b16 %v246
    %v3269 = vunpack.c.h.b16 %v246
    %v3270 = vunpack.c.l.b16 %v247
    %v3271 = vunpack.c.h.b16 %v247
    %v3272 = vunpack.c.l.b16 %v248
    %v3273 = vunpack.c.h.b16 %v248
    %v3274 = vunpack.c.l.b16 %v249
    %v3275 = vunpack.c.h.b16 %v249
    %v3276 = vunpack.c.l.b16 %v250
    %v3277 = vunpack.c.h.b16 %v250
    %v3278 = vunpack.c.l.b16 %v251
    %v3279 = vunpack.c.h.b16 %v251
    %v3280 = vunpack.c.l.b16 %v252
    %v3281 = vunpack.c.h.b16 %v252
    %v3282 = vunpack.c.l.b16 %v253
    %v3283 = vunpack.c.h.b16 %v253
    %v3284 = vunpack.c.l.b16 %v254
    %v3285 = vunpack.c.h.b16 %v254
    %v3286 = vunpack.c.l.b16 %v255
    %v3287 = vunpack.c.h.b16 %v255
    %v3288 = vunpack.c.l.b16 %v256
    %v3289 = vunpack.c.h.b16 %v256
    %v3290 = vunpack.c.l.b16 %v257
    %v3291 = vunpack.c.h.b16 %v257
    %v3292 = vunpack.c.l.b16 %v258
    %v3293 = vunpack.c.l.b16 %v259
    %v3294 = vunpack.c.h.b16 %v259
    %v3295 = vunpack.c.l.b16 %v260
    %v3296 = vunpack.c.h.b16 %v260
    %v3297 = vunpack.c.l.b16 %v261
    %v3298 = vunpack.c.h.b16 %v261
    %v3299 = vunpack.c.l.b16 %v262
    %v3300 = vunpack.c.h.b16 %v262
    %v3301 = vunpack.c.l.b16 %v263
    %v3302 = vunpack.c.h.b16 %v263
    %v3303 = vunpack.c.l.b16 %v264
    %v3304 = vunpack.c.h.b16 %v264
    %v3305 = vunpack.c.l.b16 %v265
    %v3306 = vunpack.c.h.b16 %v265
    %v3307 = vunpack.c.l.b16 %v266
    %v3308 = vunpack.c.h.b16 %v266
    %v3309 = vunpack.c.l.b16 %v267
    %v3310 = vunpack.c.h.b16 %v267
    %v3311 = vunpack.c.l.b16 %v268
    %v3312 = vunpack.c.h.b16 %v268
    %v3313 = vunpack.c.l.b16 %v269
    %v3314 = vunpack.c.h.b16 %v269
    %v3315 = vunpack.c.l.b16 %v270
    %v3316 = vunpack.c.h.b16 %v270
    %v3317 = vunpack.c.l.b16 %v271
    %v3318 = vunpack.c.h.b16 %v271
    %v3319 = vunpack.c.l.b16 %v272
    %v3320 = vunpack.c.h.b16 %v272
    %v3321 = vunpack.c.l.b16 %v273
    %v3322 = vunpack.c.l.b16 %v274
    %v3323 = vunpack.c.h.b16 %v274
    %v3324 = vunpack.c.l.b16 %v275
    %v3325 = vunpack.c.h.b16 %v275
    %v3326 = vunpack.c.l.b16 %v276
    %v3327 = vunpack.c.h.b16 %v276
    %v3328 = vunpack.c.l.b16 %v277
    %v3329 = vunpack.c.h.b16 %v277
    %v3330 = vunpack.c.l.b16 %v278
    %v3331 = vunpack.c.h.b16 %v278
    %v3332 = vunpack.c.l.b16 %v279
    %v3333 = vunpack.c.h.b16 %v279
    %v3334 = vunpack.c.l.b16 %v280
    %v3335 = vunpack.c.h.b16 %v280
    %v3336 = vunpack.c.l.b16 %v281
    %v3337 = vunpack.c.h.b16 %v281
    %v3338 = vunpack.c.l.b16 %v282
    %v3339 = vunpack.c.h.b16 %v282
    %v3340 = vunpack.c.l.b16 %v283
    %v3341 = vunpack.c.h.b16 %v283
    %v3342 = vunpack.c.l.b16 %v284
    %v3343 = vunpack.c.h.b16 %v284
    %v3344 = vunpack.c.l.b16 %v285
    %v3345 = vunpack.c.h.b16 %v285
    %v3346 = vunpack.c.l.b16 %v286
    %v3347 = vunpack.c.h.b16 %v286
    %v3348 = vunpack.c.l.b16 %v287
    %v3349 = vunpack.c.h.b16 %v287
    %v3350 = vunpack.c.l.b16 %v288
    %v3351 = vunpack.c.l.b16 %v289
    %v3352 = vunpack.c.h.b16 %v289
    %v3353 = vunpack.c.l.b16 %v290
    %v3354 = vunpack.c.h.b16 %v290
    %v3355 = vunpack.c.l.b16 %v291
    %v3356 = vunpack.c.h.b16 %v291
    %v3357 = vunpack.c.l.b16 %v292
    %v3358 = vunpack.c.h.b16 %v292
    %v3359 = vunpack.c.l.b16 %v293
    %v3360 = vunpack.c.h.b16 %v293
    %v3361 = vunpack.c.l.b16 %v294
    %v3362 = vunpack.c.h.b16 %v294
    %v3363 = vunpack.c.l.b16 %v295
    %v3364 = vunpack.c.h.b16 %v295
    %v3365 = vunpack.c.l.b16 %v296
    %v3366 = vunpack.c.h.b16 %v296
    %v3367 = vunpack.c.l.b16 %v297
    %v3368 = vunpack.c.h.b16 %v297
    %v3369 = vunpack.c.l.b16 %v298
    %v3370 = vunpack.c.h.b16 %v298
    %v3371 = vunpack.c.l.b16 %v299
    %v3372 = vunpack.c.h.b16 %v299
    %v3373 = vunpack.c.l.b16 %v300
    %v3374 = vunpack.c.h.b16 %v300
    %v3375 = vunpack.c.l.b16 %v301
    %v3376 = vunpack.c.h.b16 %v301
    %v3377 = vunpack.c.l.b16 %v302
    %v3378 = vunpack.c.h.b16 %v302
    %v3379 = vunpack.c.l.b16 %v303
    %v3380 = vunpack.c.l.b16 %v304
    %v3381 = vunpack.c.h.b16 %v304
    %v3382 = vunpack.c.l.b16 %v305
    %v3383 = vunpack.c.h.b16 %v305
    %v3384 = vunpack.c.l.b16 %v306
    %v3385 = vunpack.c.h.b16 %v306
    %v3386 = vunpack.c.l.b16 %v307
    %v3387 = vunpack.c.h.b16 %v307
    %v3388 = vunpack.c.l.b16 %v308
    %v3389 = vunpack.c.h.b16 %v308
    %v3390 = vunpack.c.l.b16 %v309
    %v3391 = vunpack.c.h.b16 %v309
    %v3392 = vunpack.c.l.b16 %v310
    %v3393 = vunpack.c.h.b16 %v310
    %v3394 = vunpack.c.l.b16 %v311
    %v3395 = vunpack.c.h.b16 %v311
    %v3396 = vunpack.c.l.b16 %v312
    %v3397 = vunpack.c.h.b16 %v312
    %v3398 = vunpack.c.l.b16 %v313
    %v3399 = vunpack.c.h.b16 %v313
    %v3400 = vunpack.c.l.b16 %v314
    %v3401 = vunpack.c.h.b16 %v314
    %v3402 = vunpack.c.l.b16 %v315
    %v3403 = vunpack.c.h.b16 %v315
    %v3404 = vunpack.c.l.b16 %v316
    %v3405 = vunpack.c.h.b16 %v316
    %v3406 = vunpack.c.l.b16 %v317
    %v3407 = vunpack.c.h.b16 %v317
    %v3408 = vunpack.c.l.b16 %v318
    %v3409 = vunpack.c.l.b16 %v319
    %v3410 = vunpack.c.h.b16 %v319
    %v3411 = vunpack.c.l.b16 %v320
    %v3412 = vunpack.c.h.b16 %v320
    %v3413 = vunpack.c.l.b16 %v321
    %v3414 = vunpack.c.h.b16 %v321
    %v3415 = vunpack.c.l.b16 %v322
    %v3416 = vunpack.c.h.b16 %v322
    %v3417 = vunpack.c.l.b16 %v323
    %v3418 = vunpack.c.h.b16 %v323
    %v3419 = vunpack.c.l.b16 %v324
    %v3420 = vunpack.c.h.b16 %v324
    %v3421 = vunpack.c.l.b16 %v325
    %v3422 = vunpack.c.h.b16 %v325
    %v3423 = vunpack.c.l.b16 %v326
    %v3424 = vunpack.c.h.b16 %v326
    %v3425 = vunpack.c.l.b16 %v327
    %v3426 = vunpack.c.h.b16 %v327
    %v3427 = vunpack.c.l.b16 %v328
    %v3428 = vunpack.c.h.b16 %v328
    %v3429 = vunpack.c.l.b16 %v329
    %v3430 = vunpack.c.h.b16 %v329
    %v3431 = vunpack.c.l.b16 %v330
    %v3432 = vunpack.c.h.b16 %v330
    %v3433 = vunpack.c.l.b16 %v331
    %v3434 = vunpack.c.h.b16 %v331
    %v3435 = vunpack.c.l.b16 %v332
    %v3436 = vunpack.c.h.b16 %v332
    %v3437 = vunpack.c.l.b16 %v333
    %v3438 = vunpack.c.l.b16 %v334
    %v3439 = vunpack.c.h.b16 %v334
    %v3440 = vunpack.c.l.b16 %v335
    %v3441 = vunpack.c.h.b16 %v335
    %v3442 = vunpack.c.l.b16 %v336
    %v3443 = vunpack.c.h.b16 %v336
    %v3444 = vunpack.c.l.b16 %v337
    %v3445 = vunpack.c.h.b16 %v337
    %v3446 = vunpack.c.l.b16 %v338
    %v3447 = vunpack.c.h.b16 %v338
    %v3448 = vunpack.c.l.b16 %v339
    %v3449 = vunpack.c.h.b16 %v339
    %v3450 = vunpack.c.l.b16 %v340
    %v3451 = vunpack.c.h.b16 %v340
    %v3452 = vunpack.c.l.b16 %v341
    %v3453 = vunpack.c.h.b16 %v341
    %v3454 = vunpack.c.l.b16 %v342
    %v3455 = vunpack.c.h.b16 %v342
    %v3456 = vunpack.c.l.b16 %v343
    %v3457 = vunpack.c.h.b16 %v343
    %v3458 = vunpack.c.l.b16 %v344
    %v3459 = vunpack.c.h.b16 %v344
    %v3460 = vunpack.c.l.b16 %v345
    %v3461 = vunpack.c.h.b16 %v345
    %v3462 = vunpack.c.l.b16 %v346
    %v3463 = vunpack.c.h.b16 %v346
    %v3464 = vunpack.c.l.b16 %v347
    %v3465 = vunpack.c.h.b16 %v347
    %v3466 = vunpack.c.l.b16 %v348
    %v3467 = vunpack.c.l.b16 %v349
    %v3468 = vunpack.c.h.b16 %v349
    %v3469 = vunpack.c.l.b16 %v350
    %v3470 = vunpack.c.h.b16 %v350
    %v3471 = vunpack.c.l.b16 %v351
    %v3472 = vunpack.c.h.b16 %v351
    %v3473 = vunpack.c.l.b16 %v352
    %v3474 = vunpack.c.h.b16 %v352
    %v3475 = vunpack.c.l.b16 %v353
    %v3476 = vunpack.c.h.b16 %v353
    %v3477 = vunpack.c.l.b16 %v354
    %v3478 = vunpack.c.h.b16 %v354
    %v3479 = vunpack.c.l.b16 %v355
    %v3480 = vunpack.c.h.b16 %v355
    %v3481 = vunpack.c.l.b16 %v356
    %v3482 = vunpack.c.h.b16 %v356
    %v3483 = vunpack.c.l.b16 %v357
    %v3484 = vunpack.c.h.b16 %v357
    %v3485 = vunpack.c.l.b16 %v358
    %v3486 = vunpack.c.h.b16 %v358
    %v3487 = vunpack.c.l.b16 %v359
    %v3488 = vunpack.c.h.b16 %v359
    %v3489 = vunpack.c.l.b16 %v360
    %v3490 = vunpack.c.h.b16 %v360
    %v3491 = vunpack.c.l.b16 %v361
    %v3492 = vunpack.c.h.b16 %v361
    %v3493 = vunpack.c.l.b16 %v362
    %v3494 = vunpack.c.h.b16 %v362
    %v3495 = vunpack.c.l.b16 %v363
    %v3496 = vunpack.c.l.b16 %v364
    %v3497 = vunpack.c.h.b16 %v364
    %v3498 = vunpack.c.l.b16 %v365
    %v3499 = vunpack.c.h.b16 %v365
    %v3500 = vunpack.c.l.b16 %v366
    %v3501 = vunpack.c.h.b16 %v366
    %v3502 = vunpack.c.l.b16 %v367
    %v3503 = vunpack.c.h.b16 %v367
    %v3504 = vunpack.c.l.b16 %v368
    %v3505 = vunpack.c.h.b16 %v368
    %v3506 = vunpack.c.l.b16 %v369
    %v3507 = vunpack.c.h.b16 %v369
    %v3508 = vunpack.c.l.b16 %v370
    %v3509 = vunpack.c.h.b16 %v370
    %v3510 = vunpack.c.l.b16 %v371
    %v3511 = vunpack.c.h.b16 %v371
    %v3512 = vunpack.c.l.b16 %v372
    %v3513 = vunpack.c.h.b16 %v372
    %v3514 = vunpack.c.l.b16 %v373
    %v3515 = vunpack.c.h.b16 %v373
    %v3516 = vunpack.c.l.b16 %v374
    %v3517 = vunpack.c.h.b16 %v374
    %v3518 = vunpack.c.l.b16 %v375
    %v3519 = vunpack.c.h.b16 %v375
    %v3520 = vunpack.c.l.b16 %v376
    %v3521 = vunpack.c.h.b16 %v376
    %v3522 = vunpack.c.l.b16 %v377
    %v3523 = vunpack.c.h.b16 %v377
    %v3524 = vunpack.c.l.b16 %v378
    %v3525 = vunpack.c.l.b16 %v379
    %v3526 = vunpack.c.h.b16 %v379
    %v3527 = vunpack.c.l.b16 %v380
    %v3528 = vunpack.c.h.b16 %v380
    %v3529 = vunpack.c.l.b16 %v381
    %v3530 = vunpack.c.h.b16 %v381
    %v3531 = vunpack.c.l.b16 %v382
    %v3532 = vunpack.c.h.b16 %v382
    %v3533 = vunpack.c.l.b16 %v383
    %v3534 = vunpack.c.h.b16 %v383
    %v3535 = vunpack.c.l.b16 %v384
    %v3536 = vunpack.c.h.b16 %v384
    %v3537 = vunpack.c.l.b16 %v385
    %v3538 = vunpack.c.h.b16 %v385
    %v3539 = vunpack.c.l.b16 %v386
    %v3540 = vunpack.c.h.b16 %v386
    %v3541 = vunpack.c.l.b16 %v387
    %v3542 = vunpack.c.h.b16 %v387
    %v3543 = vunpack.c.l.b16 %v388
    %v3544 = vunpack.c.h.b16 %v388
    %v3545 = vunpack.c.l.b16 %v389
    %v3546 = vunpack.c.h.b16 %v389
    %v3547 = vunpack.c.l.b16 %v390
    %v3548 = vunpack.c.h.b16 %v390
    %v3549 = vunpack.c.l.b16 %v391
    %v3550 = vunpack.c.h.b16 %v391
    %v3551 = vunpack.c.l.b16 %v392
    %v3552 = vunpack.c.h.b16 %v392
    %v3553 = vunpack.c.l.b16 %v393
    %v3554 = vunpack.c.l.b16 %v394
    %v3555 = vunpack.c.h.b16 %v394
    %v3556 = vunpack.c.l.b16 %v395
    %v3557 = vunpack.c.h.b16 %v395
    %v3558 = vunpack.c.l.b16 %v396
    %v3559 = vunpack.c.h.b16 %v396
    %v3560 = vunpack.c.l.b16 %v397
    %v3561 = vunpack.c.h.b16 %v397
    %v3562 = vunpack.c.l.b16 %v398
    %v3563 = vunpack.c.h.b16 %v398
    %v3564 = vunpack.c.l.b16 %v399
    %v3565 = vunpack.c.h.b16 %v399
    %v3566 = vunpack.c.l.b16 %v400
    %v3567 = vunpack.c.h.b16 %v400
    %v3568 = vunpack.c.l.b16 %v401
    %v3569 = vunpack.c.h.b16 %v401
    %v3570 = vunpack.c.l.b16 %v402
    %v3571 = vunpack.c.h.b16 %v402
    %v3572 = vunpack.c.l.b16 %v403
    %v3573 = vunpack.c.h.b16 %v403
    %v3574 = vunpack.c.l.b16 %v404
    %v3575 = vunpack.c.h.b16 %v404
    %v3576 = vunpack.c.l.b16 %v405
    %v3577 = vunpack.c.h.b16 %v405
    %v3578 = vunpack.c.l.b16 %v406
    %v3579 = vunpack.c.h.b16 %v406
    %v3580 = vunpack.c.l.b16 %v407
    %v3581 = vunpack.c.h.b16 %v407
    %v3582 = vunpack.c.l.b16 %v408
    %v3583 = vunpack.c.l.b16 %v409
    %v3584 = vunpack.c.h.b16 %v409
    %v3585 = vunpack.c.l.b16 %v410
    %v3586 = vunpack.c.h.b16 %v410
    %v3587 = vunpack.c.l.b16 %v411
    %v3588 = vunpack.c.h.b16 %v411
    %v3589 = vunpack.c.l.b16 %v412
    %v3590 = vunpack.c.h.b16 %v412
    %v3591 = vunpack.c.l.b16 %v413
    %v3592 = vunpack.c.h.b16 %v413
    %v3593 = vunpack.c.l.b16 %v414
    %v3594 = vunpack.c.h.b16 %v414
    %v3595 = vunpack.c.l.b16 %v415
    %v3596 = vunpack.c.h.b16 %v415
    %v3597 = vunpack.c.l.b16 %v416
    %v3598 = vunpack.c.h.b16 %v416
    %v3599 = vunpack.c.l.b16 %v417
    %v3600 = vunpack.c.h.b16 %v417
    %v3601 = vunpack.c.l.b16 %v418
    %v3602 = vunpack.c.h.b16 %v418
    %v3603 = vunpack.c.l.b16 %v419
    %v3604 = vunpack.c.h.b16 %v419
    %v3605 = vunpack.c.l.b16 %v420
    %v3606 = vunpack.c.h.b16 %v420
    %v3607 = vunpack.c.l.b16 %v421
    %v3608 = vunpack.c.h.b16 %v421
    %v3609 = vunpack.c.l.b16 %v422
    %v3610 = vunpack.c.h.b16 %v422
    %v3611 = vunpack.c.l.b16 %v423
    %v3612 = vunpack.c.l.b16 %v424
    %v3613 = vunpack.c.h.b16 %v424
    %v3614 = vunpack.c.l.b16 %v425
    %v3615 = vunpack.c.h.b16 %v425
    %v3616 = vunpack.c.l.b16 %v426
    %v3617 = vunpack.c.h.b16 %v426
    %v3618 = vunpack.c.l.b16 %v427
    %v3619 = vunpack.c.h.b16 %v427
    %v3620 = vunpack.c.l.b16 %v428
    %v3621 = vunpack.c.h.b16 %v428
    %v3622 = vunpack.c.l.b16 %v429
    %v3623 = vunpack.c.h.b16 %v429
    %v3624 = vunpack.c.l.b16 %v430
    %v3625 = vunpack.c.h.b16 %v430
    %v3626 = vunpack.c.l.b16 %v431
    %v3627 = vunpack.c.h.b16 %v431
    %v3628 = vunpack.c.l.b16 %v432
    %v3629 = vunpack.c.h.b16 %v432
    %v3630 = vunpack.c.l.b16 %v433
    %v3631 = vunpack.c.h.b16 %v433
    %v3632 = vunpack.c.l.b16 %v434
    %v3633 = vunpack.c.h.b16 %v434
    %v3634 = vunpack.c.l.b16 %v435
    %v3635 = vunpack.c.h.b16 %v435
    %v3636 = vunpack.c.l.b16 %v436
    %v3637 = vunpack.c.h.b16 %v436
    %v3638 = vunpack.c.l.b16 %v437
    %v3639 = vunpack.c.h.b16 %v437
    %v3640 = vunpack.c.l.b16 %v438
    %v3641 = vunpack.c.l.b16 %v439
    %v3642 = vunpack.c.h.b16 %v439
    %v3643 = vunpack.c.l.b16 %v440
    %v3644 = vunpack.c.h.b16 %v440
    %v3645 = vunpack.c.l.b16 %v441
    %v3646 = vunpack.c.h.b16 %v441
    %v3647 = vunpack.c.l.b16 %v442
    %v3648 = vunpack.c.h.b16 %v442
    %v3649 = vunpack.c.l.b16 %v443
    %v3650 = vunpack.c.h.b16 %v443
    %v3651 = vunpack.c.l.b16 %v444
    %v3652 = vunpack.c.h.b16 %v444
    %v3653 = vunpack.c.l.b16 %v445
    %v3654 = vunpack.c.h.b16 %v445
    %v3655 = vunpack.c.l.b16 %v446
    %v3656 = vunpack.c.h.b16 %v446
    %v3657 = vunpack.c.l.b16 %v447
    %v3658 = vunpack.c.h.b16 %v447
    %v3659 = vunpack.c.l.b16 %v448
    %v3660 = vunpack.c.h.b16 %v448
    %v3661 = vunpack.c.l.b16 %v449
    %v3662 = vunpack.c.h.b16 %v449
    %v3663 = vunpack.c.l.b16 %v450
    %v3664 = vunpack.c.h.b16 %v450
    %v3665 = vunpack.c.l.b16 %v451
    %v3666 = vunpack.c.h.b16 %v451
    %v3667 = vunpack.c.l.b16 %v452
    %v3668 = vunpack.c.h.b16 %v452
    %v3669 = vunpack.c.l.b16 %v453
    %v3670 = vunpack.c.l.b16 %v454
    %v3671 = vunpack.c.h.b16 %v454
    %v3672 = vunpack.c.l.b16 %v455
    %v3673 = vunpack.c.h.b16 %v455
    %v3674 = vunpack.c.l.b16 %v456
    %v3675 = vunpack.c.h.b16 %v456
    %v3676 = vunpack.c.l.b16 %v457
    %v3677 = vunpack.c.h.b16 %v457
    %v3678 = vunpack.c.l.b16 %v458
    %v3679 = vunpack.c.h.b16 %v458
    %v3680 = vunpack.c.l.b16 %v459
    %v3681 = vunpack.c.h.b16 %v459
    %v3682 = vunpack.c.l.b16 %v460
    %v3683 = vunpack.c.h.b16 %v460
    %v3684 = vunpack.c.l.b16 %v461
    %v3685 = vunpack.c.h.b16 %v461
    %v3686 = vunpack.c.l.b16 %v462
    %v3687 = vunpack.c.h.b16 %v462
    %v3688 = vunpack.c.l.b16 %v463
    %v3689 = vunpack.c.h.b16 %v463
    %v3690 = vunpack.c.l.b16 %v464
    %v3691 = vunpack.c.h.b16 %v464
    %v3692 = vunpack.c.l.b16 %v465
    %v3693 = vunpack.c.h.b16 %v465
    %v3694 = vunpack.c.l.b16 %v466
    %v3695 = vunpack.c.h.b16 %v466
    %v3696 = vunpack.c.l.b16 %v467
    %v3697 = vunpack.c.h.b16 %v467
    %v3698 = vunpack.c.l.b16 %v468
    %v3699 = vunpack.c.l.b16 %v469
    %v3700 = vunpack.c.h.b16 %v469
    %v3701 = vunpack.c.l.b16 %v470
    %v3702 = vunpack.c.h.b16 %v470
    %v3703 = vunpack.c.l.b16 %v471
    %v3704 = vunpack.c.h.b16 %v471
    %v3705 = vunpack.c.l.b16 %v472
    %v3706 = vunpack.c.h.b16 %v472
    %v3707 = vunpack.c.l.b16 %v473
    %v3708 = vunpack.c.h.b16 %v473
    %v3709 = vunpack.c.l.b16 %v474
    %v3710 = vunpack.c.h.b16 %v474
    %v3711 = vunpack.c.l.b16 %v475
    %v3712 = vunpack.c.h.b16 %v475
    %v3713 = vunpack.c.l.b16 %v476
    %v3714 = vunpack.c.h.b16 %v476
    %v3715 = vunpack.c.l.b16 %v477
    %v3716 = vunpack.c.h.b16 %v477
    %v3717 = vunpack.c.l.b16 %v478
    %v3718 = vunpack.c.h.b16 %v478
    %v3719 = vunpack.c.l.b16 %v479
    %v3720 = vunpack.c.h.b16 %v479
    %v3721 = vunpack.c.l.b16 %v480
    %v3722 = vunpack.c.h.b16 %v480
    %v3723 = vunpack.c.l.b16 %v481
    %v3724 = vunpack.c.h.b16 %v481
    %v3725 = vunpack.c.l.b16 %v482
    %v3726 = vunpack.c.h.b16 %v482
    %v3727 = vunpack.c.l.b16 %v483
    %v3728 = vunpack.c.l.b16 %v484
    %v3729 = vunpack.c.h.b16 %v484
    %v3730 = vunpack.c.l.b16 %v485
    %v3731 = vunpack.c.h.b16 %v485
    %v3732 = vunpack.c.l.b16 %v486
    %v3733 = vunpack.c.h.b16 %v486
    %v3734 = vunpack.c.l.b16 %v487
    %v3735 = vunpack.c.h.b16 %v487
    %v3736 = vunpack.c.l.b16 %v488
    %v3737 = vunpack.c.h.b16 %v488
    %v3738 = vunpack.c.l.b16 %v489
    %v3739 = vunpack.c.h.b16 %v489
    %v3740 = vunpack.c.l.b16 %v490
    %v3741 = vunpack.c.h.b16 %v490
    %v3742 = vunpack.c.l.b16 %v491
    %v3743 = vunpack.c.h.b16 %v491
    %v3744 = vunpack.c.l.b16 %v492
    %v3745 = vunpack.c.h.b16 %v492
    %v3746 = vunpack.c.l.b16 %v493
    %v3747 = vunpack.c.h.b16 %v493
    %v3748 = vunpack.c.l.b16 %v494
    %v3749 = vunpack.c.h.b16 %v494
    %v3750 = vunpack.c.l.b16 %v495
    %v3751 = vunpack.c.h.b16 %v495
    %v3752 = vunpack.c.l.b16 %v496
    %v3753 = vunpack.c.h.b16 %v496
    %v3754 = vunpack.c.l.b16 %v497
    %v3755 = vunpack.c.h.b16 %v497
    %v3756 = vunpack.c.l.b16 %v498
    %v3757 = vunpack.c.l.b16 %v499
    %v3758 = vunpack.c.h.b16 %v499
    %v3759 = vunpack.c.l.b16 %v500
    %v3760 = vunpack.c.h.b16 %v500
    %v3761 = vunpack.c.l.b16 %v501
    %v3762 = vunpack.c.h.b16 %v501
    %v3763 = vunpack.c.l.b16 %v502
    %v3764 = vunpack.c.h.b16 %v502
    %v3765 = vunpack.c.l.b16 %v503
    %v3766 = vunpack.c.h.b16 %v503
    %v3767 = vunpack.c.l.b16 %v504
    %v3768 = vunpack.c.h.b16 %v504
    %v3769 = vunpack.c.l.b16 %v505
    %v3770 = vunpack.c.h.b16 %v505
    %v3771 = vunpack.c.l.b16 %v506
    %v3772 = vunpack.c.h.b16 %v506
    %v3773 = vunpack.c.l.b16 %v507
    %v3774 = vunpack.c.h.b16 %v507
    %v3775 = vunpack.c.l.b16 %v508
    %v3776 = vunpack.c.h.b16 %v508
    %v3777 = vunpack.c.l.b16 %v509
    %v3778 = vunpack.c.h.b16 %v509
    %v3779 = vunpack.c.l.b16 %v510
    %v3780 = vunpack.c.h.b16 %v510
    %v3781 = vunpack.c.l.b16 %v511
    %v3782 = vunpack.c.h.b16 %v511
    %v3783 = vunpack.c.l.b16 %v512
    %v3784 = vunpack.c.h.b16 %v512
    %v3785 = vunpack.c.l.b16 %v513
    %v3786 = vunpack.c.l.b16 %v514
    %v3787 = vunpack.c.h.b16 %v514
    %v3788 = vunpack.c.l.b16 %v515
    %v3789 = vunpack.c.h.b16 %v515
    %v3790 = vunpack.c.l.b16 %v516
    %v3791 = vunpack.c.h.b16 %v516
    %v3792 = vunpack.c.l.b16 %v517
    %v3793 = vunpack.c.h.b16 %v517
    %v3794 = vunpack.c.l.b16 %v518
    %v3795 = vunpack.c.h.b16 %v518
    %v3796 = vunpack.c.l.b16 %v519
    %v3797 = vunpack.c.h.b16 %v519
    %v3798 = vunpack.c.l.b16 %v520
    %v3799 = vunpack.c.h.b16 %v520
    %v3800 = vunpack.c.l.b16 %v521
    %v3801 = vunpack.c.h.b16 %v521
    %v3802 = vunpack.c.l.b16 %v522
    %v3803 = vunpack.c.h.b16 %v522
    %v3804 = vunpack.c.l.b16 %v523
    %v3805 = vunpack.c.h.b16 %v523
    %v3806 = vunpack.c.l.b16 %v524
    %v3807 = vunpack.c.h.b16 %v524
    %v3808 = vunpack.c.l.b16 %v525
    %v3809 = vunpack.c.h.b16 %v525
    %v3810 = vunpack.c.l.b16 %v526
    %v3811 = vunpack.c.h.b16 %v526
    %v3812 = vunpack.c.l.b16 %v527
    %v3813 = vunpack.c.h.b16 %v527
    %v3814 = vunpack.c.l.b16 %v528
    %v3815 = vunpack.c.l.b16 %v529
    %v3816 = vunpack.c.h.b16 %v529
    %v3817 = vunpack.c.l.b16 %v530
    %v3818 = vunpack.c.h.b16 %v530
    %v3819 = vunpack.c.l.b16 %v531
    %v3820 = vunpack.c.h.b16 %v531
    %v3821 = vunpack.c.l.b16 %v532
    %v3822 = vunpack.c.h.b16 %v532
    %v3823 = vunpack.c.l.b16 %v533
    %v3824 = vunpack.c.h.b16 %v533
    %v3825 = vunpack.c.l.b16 %v534
    %v3826 = vunpack.c.h.b16 %v534
    %v3827 = vunpack.c.l.b16 %v535
    %v3828 = vunpack.c.h.b16 %v535
    %v3829 = vunpack.c.l.b16 %v536
    %v3830 = vunpack.c.h.b16 %v536
    %v3831 = vunpack.c.l.b16 %v537
    %v3832 = vunpack.c.h.b16 %v537
    %v3833 = vunpack.c.l.b16 %v538
    %v3834 = vunpack.c.h.b16 %v538
    %v3835 = vunpack.c.l.b16 %v539
    %v3836 = vunpack.c.h.b16 %v539
    %v3837 = vunpack.c.l.b16 %v540
    %v3838 = vunpack.c.h.b16 %v540
    %v3839 = vunpack.c.l.b16 %v541
    %v3840 = vunpack.c.h.b16 %v541
    %v3841 = vunpack.c.l.b16 %v542
    %v3842 = vunpack.c.h.b16 %v542
    %v3843 = vunpack.c.l.b16 %v543
    %v3844 = vunpack.c.l.b16 %v544
    %v3845 = vunpack.c.h.b16 %v544
    %v3846 = vunpack.c.l.b16 %v545
    %v3847 = vunpack.c.h.b16 %v545
    %v3848 = vunpack.c.l.b16 %v546
    %v3849 = vunpack.c.h.b16 %v546
    %v3850 = vunpack.c.l.b16 %v547
    %v3851 = vunpack.c.h.b16 %v547
    %v3852 = vunpack.c.l.b16 %v548
    %v3853 = vunpack.c.h.b16 %v548
    %v3854 = vunpack.c.l.b16 %v549
    %v3855 = vunpack.c.h.b16 %v549
    %v3856 = vunpack.c.l.b16 %v550
    %v3857 = vunpack.c.h.b16 %v550
    %v3858 = vunpack.c.l.b16 %v551
    %v3859 = vunpack.c.h.b16 %v551
    %v3860 = vunpack.c.l.b16 %v552
    %v3861 = vunpack.c.h.b16 %v552
    %v3862 = vunpack.c.l.b16 %v553
    %v3863 = vunpack.c.h.b16 %v553
    %v3864 = vunpack.c.l.b16 %v554
    %v3865 = vunpack.c.h.b16 %v554
    %v3866 = vunpack.c.l.b16 %v555
    %v3867 = vunpack.c.h.b16 %v555
    %v3868 = vunpack.c.l.b16 %v556
    %v3869 = vunpack.c.h.b16 %v556
    %v3870 = vunpack.c.l.b16 %v557
    %v3871 = vunpack.c.h.b16 %v557
    %v3872 = vunpack.c.l.b16 %v558
    %v3873 = vunpack.c.l.b16 %v559
    %v3874 = vunpack.c.h.b16 %v559
    %v3875 = vunpack.c.l.b16 %v560
    %v3876 = vunpack.c.h.b16 %v560
    %v3877 = vunpack.c.l.b16 %v561
    %v3878 = vunpack.c.h.b16 %v561
    %v3879 = vunpack.c.l.b16 %v562
    %v3880 = vunpack.c.h.b16 %v562
    %v3881 = vunpack.c.l.b16 %v563
    %v3882 = vunpack.c.h.b16 %v563
    %v3883 = vunpack.c.l.b16 %v564
    %v3884 = vunpack.c.h.b16 %v564
    %v3885 = vunpack.c.l.b16 %v565
    %v3886 = vunpack.c.h.b16 %v565
    %v3887 = vunpack.c.l.b16 %v566
    %v3888 = vunpack.c.h.b16 %v566
    %v3889 = vunpack.c.l.b16 %v567
    %v3890 = vunpack.c.h.b16 %v567
    %v3891 = vunpack.c.l.b16 %v568
    %v3892 = vunpack.c.h.b16 %v568
    %v3893 = vunpack.c.l.b16 %v569
    %v3894 = vunpack.c.h.b16 %v569
    %v3895 = vunpack.c.l.b16 %v570
    %v3896 = vunpack.c.h.b16 %v570
    %v3897 = vunpack.c.l.b16 %v571
    %v3898 = vunpack.c.h.b16 %v571
    %v3899 = vunpack.c.l.b16 %v572
    %v3900 = vunpack.c.h.b16 %v572
    %v3901 = vunpack.c.l.b16 %v573
    %v3902 = vunpack.c.l.b16 %v574
    %v3903 = vunpack.c.h.b16 %v574
    %v3904 = vunpack.c.l.b16 %v575
    %v3905 = vunpack.c.h.b16 %v575
    %v3906 = vunpack.c.l.b16 %v576
    %v3907 = vunpack.c.h.b16 %v576
    %v3908 = vunpack.c.l.b16 %v577
    %v3909 = vunpack.c.h.b16 %v577
    %v3910 = vunpack.c.l.b16 %v578
    %v3911 = vunpack.c.h.b16 %v578
    %v3912 = vunpack.c.l.b16 %v579
    %v3913 = vunpack.c.h.b16 %v579
    %v3914 = vunpack.c.l.b16 %v580
    %v3915 = vunpack.c.h.b16 %v580
    %v3916 = vunpack.c.l.b16 %v581
    %v3917 = vunpack.c.h.b16 %v581
    %v3918 = vunpack.c.l.b16 %v582
    %v3919 = vunpack.c.h.b16 %v582
    %v3920 = vunpack.c.l.b16 %v583
    %v3921 = vunpack.c.h.b16 %v583
    %v3922 = vunpack.c.l.b16 %v584
    %v3923 = vunpack.c.h.b16 %v584
    %v3924 = vunpack.c.l.b16 %v585
    %v3925 = vunpack.c.h.b16 %v585
    %v3926 = vunpack.c.l.b16 %v586
    %v3927 = vunpack.c.h.b16 %v586
    %v3928 = vunpack.c.l.b16 %v587
    %v3929 = vunpack.c.h.b16 %v587
    %v3930 = vunpack.c.l.b16 %v588
    %v3931 = vunpack.c.l.b16 %v589
    %v3932 = vunpack.c.h.b16 %v589
    %v3933 = vunpack.c.l.b16 %v590
    %v3934 = vunpack.c.h.b16 %v590
    %v3935 = vunpack.c.l.b16 %v591
    %v3936 = vunpack.c.h.b16 %v591
    %v3937 = vunpack.c.l.b16 %v592
    %v3938 = vunpack.c.h.b16 %v592
    %v3939 = vunpack.c.l.b16 %v593
    %v3940 = vunpack.c.h.b16 %v593
    %v3941 = vunpack.c.l.b16 %v594
    %v3942 = vunpack.c.h.b16 %v594
    %v3943 = vunpack.c.l.b16 %v595
    %v3944 = vunpack.c.h.b16 %v595
    %v3945 = vunpack.c.l.b16 %v596
    %v3946 = vunpack.c.h.b16 %v596
    %v3947 = vunpack.c.l.b16 %v597
    %v3948 = vunpack.c.h.b16 %v597
    %v3949 = vunpack.c.l.b16 %v598
    %v3950 = vunpack.c.h.b16 %v598
    %v3951 = vunpack.c.l.b16 %v599
    %v3952 = vunpack.c.h.b16 %v599
    %v3953 = vunpack.c.l.b16 %v600
    %v3954 = vunpack.c.h.b16 %v600
    %v3955 = vunpack.c.l.b16 %v601
    %v3956 = vunpack.c.h.b16 %v601
    %v3957 = vunpack.c.l.b16 %v602
    %v3958 = vunpack.c.h.b16 %v602
    %v3959 = vunpack.c.l.b16 %v603
    %v3960 = vunpack.c.l.b16 %v604
    %v3961 = vunpack.c.h.b16 %v604
    %v3962 = vunpack.c.l.b16 %v605
    %v3963 = vunpack.c.h.b16 %v605
    %v3964 = vunpack.c.l.b16 %v606
    %v3965 = vunpack.c.h.b16 %v606
    %v3966 = vunpack.c.l.b16 %v607
    %v3967 = vunpack.c.h.b16 %v607
    %v3968 = vunpack.c.l.b16 %v608
    %v3969 = vunpack.c.h.b16 %v608
    %v3970 = vunpack.c.l.b16 %v609
    %v3971 = vunpack.c.h.b16 %v609
    %v3972 = vunpack.c.l.b16 %v610
    %v3973 = vunpack.c.h.b16 %v610
    %v3974 = vunpack.c.l.b16 %v611
    %v3975 = vunpack.c.h.b16 %v611
    %v3976 = vunpack.c.l.b16 %v612
    %v3977 = vunpack.c.h.b16 %v612
    %v3978 = vunpack.c.l.b16 %v613
    %v3979 = vunpack.c.h.b16 %v613
    %v3980 = vunpack.c.l.b16 %v614
    %v3981 = vunpack.c.h.b16 %v614
    %v3982 = vunpack.c.l.b16 %v615
    %v3983 = vunpack.c.h.b16 %v615
    %v3984 = vunpack.c.l.b16 %v616
    %v3985 = vunpack.c.h.b16 %v616
    %v3986 = vunpack.c.l.b16 %v617
    %v3987 = vunpack.c.h.b16 %v617
    %v3988 = vunpack.c.l.b16 %v618
    %v3989 = vunpack.c.l.b16 %v619
    %v3990 = vunpack.c.h.b16 %v619
    %v3991 = vunpack.c.l.b16 %v620
    %v3992 = vunpack.c.h.b16 %v620
    %v3993 = vunpack.c.l.b16 %v621
    %v3994 = vunpack.c.h.b16 %v621
    %v3995 = vunpack.c.l.b16 %v622
    %v3996 = vunpack.c.h.b16 %v622
    %v3997 = vunpack.c.l.b16 %v623
    %v3998 = vunpack.c.h.b16 %v623
    %v3999 = vunpack.c.l.b16 %v624
    %v4000 = vunpack.c.h.b16 %v624
    %v4001 = vunpack.c.l.b16 %v625
    %v4002 = vunpack.c.h.b16 %v625
    %v4003 = vunpack.c.l.b16 %v626
    %v4004 = vunpack.c.h.b16 %v626
    %v4005 = vunpack.c.l.b16 %v627
    %v4006 = vunpack.c.h.b16 %v627
    %v4007 = vunpack.c.l.b16 %v628
    %v4008 = vunpack.c.h.b16 %v628
    %v4009 = vunpack.c.l.b16 %v629
    %v4010 = vunpack.c.h.b16 %v629
    %v4011 = vunpack.c.l.b16 %v630
    %v4012 = vunpack.c.h.b16 %v630
    %v4013 = vunpack.c.l.b16 %v631
    %v4014 = vunpack.c.h.b16 %v631
    %v4015 = vunpack.c.l.b16 %v632
    %v4016 = vunpack.c.h.b16 %v632
    %v4017 = vunpack.c.l.b16 %v633
    %v4018 = vunpack.c.l.b16 %v634
    %v4019 = vunpack.c.h.b16 %v634
    %v4020 = vunpack.c.l.b16 %v635
    %v4021 = vunpack.c.h.b16 %v635
    %v4022 = vunpack.c.l.b16 %v636
    %v4023 = vunpack.c.h.b16 %v636
    %v4024 = vunpack.c.l.b16 %v637
    %v4025 = vunpack.c.h.b16 %v637
    %v4026 = vunpack.c.l.b16 %v638
    %v4027 = vunpack.c.h.b16 %v638
    %v4028 = vunpack.c.l.b16 %v639
    %v4029 = vunpack.c.h.b16 %v639
    %v4030 = vunpack.c.l.b16 %v640
    %v4031 = vunpack.c.h.b16 %v640
    %v4032 = vunpack.c.l.b16 %v641
    %v4033 = vunpack.c.h.b16 %v641
    %v4034 = vunpack.c.l.b16 %v642
    %v4035 = vunpack.c.h.b16 %v642
    %v4036 = vunpack.c.l.b16 %v643
    %v4037 = vunpack.c.h.b16 %v643
    %v4038 = vunpack.c.l.b16 %v644
    %v4039 = vunpack.c.h.b16 %v644
    %v4040 = vunpack.c.l.b16 %v645
    %v4041 = vunpack.c.h.b16 %v645
    %v4042 = vunpack.c.l.b16 %v646
    %v4043 = vunpack.c.h.b16 %v646
    %v4044 = vunpack.c.l.b16 %v647
    %v4045 = vunpack.c.h.b16 %v647
    %v4046 = vunpack.c.l.b16 %v648
    %v4047 = vunpack.c.l.b16 %v649
    %v4048 = vunpack.c.h.b16 %v649
    %v4049 = vunpack.c.l.b16 %v650
    %v4050 = vunpack.c.h.b16 %v650
    %v4051 = vunpack.c.l.b16 %v651
    %v4052 = vunpack.c.h.b16 %v651
    %v4053 = vunpack.c.l.b16 %v652
    %v4054 = vunpack.c.h.b16 %v652
    %v4055 = vunpack.c.l.b16 %v653
    %v4056 = vunpack.c.h.b16 %v653
    %v4057 = vunpack.c.l.b16 %v654
    %v4058 = vunpack.c.h.b16 %v654
    %v4059 = vunpack.c.l.b16 %v655
    %v4060 = vunpack.c.h.b16 %v655
    %v4061 = vunpack.c.l.b16 %v656
    %v4062 = vunpack.c.h.b16 %v656
    %v4063 = vunpack.c.l.b16 %v657
    %v4064 = vunpack.c.h.b16 %v657
    %v4065 = vunpack.c.l.b16 %v658
    %v4066 = vunpack.c.h.b16 %v658
    %v4067 = vunpack.c.l.b16 %v659
    %v4068 = vunpack.c.h.b16 %v659
    %v4069 = vunpack.c.l.b16 %v660
    %v4070 = vunpack.c.h.b16 %v660
    %v4071 = vunpack.c.l.b16 %v661
    %v4072 = vunpack.c.h.b16 %v661
    %v4073 = vunpack.c.l.b16 %v662
    %v4074 = vunpack.c.h.b16 %v662
    %v4075 = vunpack.c.l.b16 %v663
    %v4076 = vunpack.c.l.b16 %v664
    %v4077 = vunpack.c.h.b16 %v664
    %v4078 = vunpack.c.l.b16 %v665
    %v4079 = vunpack.c.h.b16 %v665
    %v4080 = vunpack.c.l.b16 %v666
    %v4081 = vunpack.c.h.b16 %v666
    %v4082 = vunpack.c.l.b16 %v667
    %v4083 = vunpack.c.h.b16 %v667
    %v4084 = vunpack.c.l.b16 %v668
    %v4085 = vunpack.c.h.b16 %v668
    %v4086 = vunpack.c.l.b16 %v669
    %v4087 = vunpack.c.h.b16 %v669
    %v4088 = vunpack.c.l.b16 %v670
    %v4089 = vunpack.c.h.b16 %v670
    %v4090 = vunpack.c.l.b16 %v671
    %v4091 = vunpack.c.h.b16 %v671
    %v4092 = vunpack.c.l.b16 %v672
    %v4093 = vunpack.c.h.b16 %v672
    %v4094 = vunpack.c.l.b16 %v673
    %v4095 = vunpack.c.h.b16 %v673
    %v4096 = vunpack.c.l.b16 %v674
    %v4097 = vunpack.c.h.b16 %v674
    %v4098 = vunpack.c.l.b16 %v675
    %v4099 = vunpack.c.h.b16 %v675
    %v4100 = vunpack.c.l.b16 %v676
    %v4101 = vunpack.c.h.b16 %v676
    %v4102 = vunpack.c.l.b16 %v677
    %v4103 = vunpack.c.h.b16 %v677
    %v4104 = vunpack.c.l.b16 %v678
    %v4105 = vunpack.c.l.b16 %v679
    %v4106 = vunpack.c.h.b16 %v679
    %v4107 = vunpack.c.l.b16 %v680
    %v4108 = vunpack.c.h.b16 %v680
    %v4109 = vunpack.c.l.b16 %v681
    %v4110 = vunpack.c.h.b16 %v681
    %v4111 = vunpack.c.l.b16 %v682
    %v4112 = vunpack.c.h.b16 %v682
    %v4113 = vunpack.c.l.b16 %v683
    %v4114 = vunpack.c.h.b16 %v683
    %v4115 = vunpack.c.l.b16 %v684
    %v4116 = vunpack.c.h.b16 %v684
    %v4117 = vunpack.c.l.b16 %v685
    %v4118 = vunpack.c.h.b16 %v685
    %v4119 = vunpack.c.l.b16 %v686
    %v4120 = vunpack.c.h.b16 %v686
    %v4121 = vunpack.c.l.b16 %v687
    %v4122 = vunpack.c.h.b16 %v687
    %v4123 = vunpack.c.l.b16 %v688
    %v4124 = vunpack.c.h.b16 %v688
    %v4125 = vunpack.c.l.b16 %v689
    %v4126 = vunpack.c.h.b16 %v689
    %v4127 = vunpack.c.l.b16 %v690
    %v4128 = vunpack.c.h.b16 %v690
    %v4129 = vunpack.c.l.b16 %v691
    %v4130 = vunpack.c.h.b16 %v691
    %v4131 = vunpack.c.l.b16 %v692
    %v4132 = vunpack.c.h.b16 %v692
    %v4133 = vunpack.c.l.b16 %v693
    %v4134 = vunpack.c.l.b16 %v694
    %v4135 = vunpack.c.h.b16 %v694
    %v4136 = vunpack.c.l.b16 %v695
    %v4137 = vunpack.c.h.b16 %v695
    %v4138 = vunpack.c.l.b16 %v696
    %v4139 = vunpack.c.h.b16 %v696
    %v4140 = vunpack.c.l.b16 %v697
    %v4141 = vunpack.c.h.b16 %v697
    %v4142 = vunpack.c.l.b16 %v698
    %v4143 = vunpack.c.h.b16 %v698
    %v4144 = vunpack.c.l.b16 %v699
    %v4145 = vunpack.c.h.b16 %v699
    %v4146 = vunpack.c.l.b16 %v700
    %v4147 = vunpack.c.h.b16 %v700
    %v4148 = vunpack.c.l.b16 %v701
    %v4149 = vunpack.c.h.b16 %v701
    %v4150 = vunpack.c.l.b16 %v702
    %v4151 = vunpack.c.h.b16 %v702
    %v4152 = vunpack.c.l.b16 %v703
    %v4153 = vunpack.c.h.b16 %v703
    %v4154 = vunpack.c.l.b16 %v704
    %v4155 = vunpack.c.h.b16 %v704
    %v4156 = vunpack.c.l.b16 %v705
    %v4157 = vunpack.c.h.b16 %v705
    %v4158 = vunpack.c.l.b16 %v706
    %v4159 = vunpack.c.h.b16 %v706
    %v4160 = vunpack.c.l.b16 %v707
    %v4161 = vunpack.c.h.b16 %v707
    %v4162 = vunpack.c.l.b16 %v708
    %v4163 = vunpack.c.l.b16 %v709
    %v4164 = vunpack.c.h.b16 %v709
    %v4165 = vunpack.c.l.b16 %v710
    %v4166 = vunpack.c.h.b16 %v710
    %v4167 = vunpack.c.l.b16 %v711
    %v4168 = vunpack.c.h.b16 %v711
    %v4169 = vunpack.c.l.b16 %v712
    %v4170 = vunpack.c.h.b16 %v712
    %v4171 = vunpack.c.l.b16 %v713
    %v4172 = vunpack.c.h.b16 %v713
    %v4173 = vunpack.c.l.b16 %v714
    %v4174 = vunpack.c.h.b16 %v714
    %v4175 = vunpack.c.l.b16 %v715
    %v4176 = vunpack.c.h.b16 %v715
    %v4177 = vunpack.c.l.b16 %v716
    %v4178 = vunpack.c.h.b16 %v716
    %v4179 = vunpack.c.l.b16 %v717
    %v4180 = vunpack.c.h.b16 %v717
    %v4181 = vunpack.c.l.b16 %v718
    %v4182 = vunpack.c.h.b16 %v718
    %v4183 = vunpack.c.l.b16 %v719
    %v4184 = vunpack.c.h.b16 %v719
    %v4185 = vunpack.c.l.b16 %v720
    %v4186 = vunpack.c.h.b16 %v720
    %v4187 = vunpack.c.l.b16 %v721
    %v4188 = vunpack.c.h.b16 %v721
    %v4189 = vunpack.c.l.b16 %v722
    %v4190 = vunpack.c.h.b16 %v722
    %v4191 = vunpack.c.l.b16 %v723
    %v4192 = vunpack.c.l.b16 %v724
    %v4193 = vunpack.c.h.b16 %v724
    %v4194 = vunpack.c.l.b16 %v725
    %v4195 = vunpack.c.h.b16 %v725
    %v4196 = vunpack.c.l.b16 %v726
    %v4197 = vunpack.c.h.b16 %v726
    %v4198 = vunpack.c.l.b16 %v727
    %v4199 = vunpack.c.h.b16 %v727
    %v4200 = vunpack.c.l.b16 %v728
    %v4201 = vunpack.c.h.b16 %v728
    %v4202 = vunpack.c.l.b16 %v729
    %v4203 = vunpack.c.h.b16 %v729
    %v4204 = vunpack.c.l.b16 %v730
    %v4205 = vunpack.c.h.b16 %v730
    %v4206 = vunpack.c.l.b16 %v731
    %v4207 = vunpack.c.h.b16 %v731
    %v4208 = vunpack.c.l.b16 %v732
    %v4209 = vunpack.c.h.b16 %v732
    %v4210 = vunpack.c.l.b16 %v733
    %v4211 = vunpack.c.h.b16 %v733
    %v4212 = vunpack.c.l.b16 %v734
    %v4213 = vunpack.c.h.b16 %v734
    %v4214 = vunpack.c.l.b16 %v735
    %v4215 = vunpack.c.h.b16 %v735
    %v4216 = vunpack.c.l.b16 %v736
    %v4217 = vunpack.c.h.b16 %v736
    %v4218 = vunpack.c.l.b16 %v737
    %v4219 = vunpack.c.h.b16 %v737
    %v4220 = vunpack.c.l.b16 %v738
    %v4221 = vunpack.c.l.b16 %v739
    %v4222 = vunpack.c.h.b16 %v739
    %v4223 = vunpack.c.l.b16 %v740
    %v4224 = vunpack.c.h.b16 %v740
    %v4225 = vunpack.c.l.b16 %v741
    %v4226 = vunpack.c.h.b16 %v741
    %v4227 = vunpack.c.l.b16 %v742
    %v4228 = vunpack.c.h.b16 %v742
    %v4229 = vunpack.c.l.b16 %v743
    %v4230 = vunpack.c.h.b16 %v743
    %v4231 = vunpack.c.l.b16 %v744
    %v4232 = vunpack.c.h.b16 %v744
    %v4233 = vunpack.c.l.b16 %v745
    %v4234 = vunpack.c.h.b16 %v745
    %v4235 = vunpack.c.l.b16 %v746
    %v4236 = vunpack.c.h.b16 %v746
    %v4237 = vunpack.c.l.b16 %v747
    %v4238 = vunpack.c.h.b16 %v747
    %v4239 = vunpack.c.l.b16 %v748
    %v4240 = vunpack.c.h.b16 %v748
    %v4241 = vunpack.c.l.b16 %v749
    %v4242 = vunpack.c.h.b16 %v749
    %v4243 = vunpack.c.l.b16 %v750
    %v4244 = vunpack.c.h.b16 %v750
    %v4245 = vunpack.c.l.b16 %v751
    %v4246 = vunpack.c.h.b16 %v751
    %v4247 = vunpack.c.l.b16 %v752
    %v4248 = vunpack.c.h.b16 %v752
    %v4249 = vunpack.c.l.b16 %v753
    %v4250 = vunpack.c.l.b16 %v754
    %v4251 = vunpack.c.h.b16 %v754
    %v4252 = vunpack.c.l.b16 %v755
    %v4253 = vunpack.c.h.b16 %v755
    %v4254 = vunpack.c.l.b16 %v756
    %v4255 = vunpack.c.h.b16 %v756
    %v4256 = vunpack.c.l.b16 %v757
    %v4257 = vunpack.c.h.b16 %v757
    %v4258 = vunpack.c.l.b16 %v758
    %v4259 = vunpack.c.h.b16 %v758
    %v4260 = vunpack.c.l.b16 %v759
    %v4261 = vunpack.c.h.b16 %v759
    %v4262 = vunpack.c.l.b16 %v760
    %v4263 = vunpack.c.h.b16 %v760
    %v4264 = vunpack.c.l.b16 %v761
    %v4265 = vunpack.c.h.b16 %v761
    %v4266 = vunpack.c.l.b16 %v762
    %v4267 = vunpack.c.h.b16 %v762
    %v4268 = vunpack.c.l.b16 %v763
    %v4269 = vunpack.c.h.b16 %v763
    %v4270 = vunpack.c.l.b16 %v764
    %v4271 = vunpack.c.h.b16 %v764
    %v4272 = vunpack.c.l.b16 %v765
    %v4273 = vunpack.c.h.b16 %v765
    %v4274 = vunpack.c.l.b16 %v766
    %v4275 = vunpack.c.h.b16 %v766
    %v4276 = vunpack.c.l.b16 %v767
    %v4277 = vunpack.c.h.b16 %v767
    %v4278 = vunpack.c.l.b16 %v768
    %v4279 = vunpack.c.l.b16 %v769
    %v4280 = vunpack.c.h.b16 %v769
    %v4281 = vunpack.c.l.b16 %v770
    %v4282 = vunpack.c.h.b16 %v770
    %v4283 = vunpack.c.l.b16 %v771
    %v4284 = vunpack.c.h.b16 %v771
    %v4285 = vunpack.c.l.b16 %v772
    %v4286 = vunpack.c.h.b16 %v772
    %v4287 = vunpack.c.l.b16 %v773
    %v4288 = vunpack.c.h.b16 %v773
    %v4289 = vunpack.c.l.b16 %v774
    %v4290 = vunpack.c.h.b16 %v774
    %v4291 = vunpack.c.l.b16 %v775
    %v4292 = vunpack.c.h.b16 %v775
    %v4293 = vunpack.c.l.b16 %v776
    %v4294 = vunpack.c.h.b16 %v776
    %v4295 = vunpack.c.l.b16 %v777
    %v4296 = vunpack.c.h.b16 %v777
    %v4297 = vunpack.c.l.b16 %v778
    %v4298 = vunpack.c.h.b16 %v778
    %v4299 = vunpack.c.l.b16 %v779
    %v4300 = vunpack.c.h.b16 %v779
    %v4301 = vunpack.c.l.b16 %v780
    %v4302 = vunpack.c.h.b16 %v780
    %v4303 = vunpack.c.l.b16 %v781
    %v4304 = vunpack.c.h.b16 %v781
    %v4305 = vunpack.c.l.b16 %v782
    %v4306 = vunpack.c.h.b16 %v782
    %v4307 = vunpack.c.l.b16 %v783
    %v4308 = vunpack.c.l.b16 %v784
    %v4309 = vunpack.c.h.b16 %v784
    %v4310 = vunpack.c.l.b16 %v785
    %v4311 = vunpack.c.h.b16 %v785
    %v4312 = vunpack.c.l.b16 %v786
    %v4313 = vunpack.c.h.b16 %v786
    %v4314 = vunpack.c.l.b16 %v787
    %v4315 = vunpack.c.h.b16 %v787
    %v4316 = vunpack.c.l.b16 %v788
    %v4317 = vunpack.c.h.b16 %v788
    %v4318 = vunpack.c.l.b16 %v789
    %v4319 = vunpack.c.h.b16 %v789
    %v4320 = vunpack.c.l.b16 %v790
    %v4321 = vunpack.c.h.b16 %v790
    %v4322 = vunpack.c.l.b16 %v791
    %v4323 = vunpack.c.h.b16 %v791
    %v4324 = vunpack.c.l.b16 %v792
    %v4325 = vunpack.c.h.b16 %v792
    %v4326 = vunpack.c.l.b16 %v793
    %v4327 = vunpack.c.h.b16 %v793
    %v4328 = vunpack.c.l.b16 %v794
    %v4329 = vunpack.c.h.b16 %v794
    %v4330 = vunpack.c.l.b16 %v795
    %v4331 = vunpack.c.h.b16 %v795
    %v4332 = vunpack.c.l.b16 %v796
    %v4333 = vunpack.c.h.b16 %v796
    %v4334 = vunpack.c.l.b16 %v797
    %v4335 = vunpack.c.h.b16 %v797
    %v4336 = vunpack.c.l.b16 %v798
    %v4337 = vunpack.c.l.b16 %v799
    %v4338 = vunpack.c.h.b16 %v799
    %v4339 = vunpack.c.l.b16 %v800
    %v4340 = vunpack.c.h.b16 %v800
    %v4341 = vunpack.c.l.b16 %v801
    %v4342 = vunpack.c.h.b16 %v801
    %v4343 = vunpack.c.l.b16 %v802
    %v4344 = vunpack.c.h.b16 %v802
    %v4345 = vunpack.c.l.b16 %v803
    %v4346 = vunpack.c.h.b16 %v803
    %v4347 = vunpack.c.l.b16 %v804
    %v4348 = vunpack.c.h.b16 %v804
    %v4349 = vunpack.c.l.b16 %v805
    %v4350 = vunpack.c.h.b16 %v805
    %v4351 = vunpack.c.l.b16 %v806
    %v4352 = vunpack.c.h.b16 %v806
    %v4353 = vunpack.c.l.b16 %v807
    %v4354 = vunpack.c.h.b16 %v807
    %v4355 = vunpack.c.l.b16 %v808
    %v4356 = vunpack.c.h.b16 %v808
    %v4357 = vunpack.c.l.b16 %v809
    %v4358 = vunpack.c.h.b16 %v809
    %v4359 = vunpack.c.l.b16 %v810
    %v4360 = vunpack.c.h.b16 %v810
    %v4361 = vunpack.c.l.b16 %v811
    %v4362 = vunpack.c.h.b16 %v811
    %v4363 = vunpack.c.l.b16 %v812
    %v4364 = vunpack.c.h.b16 %v812
    %v4365 = vunpack.c.l.b16 %v813
    %v4366 = vunpack.c.l.b16 %v814
    %v4367 = vunpack.c.h.b16 %v814
    %v4368 = vunpack.c.l.b16 %v815
    %v4369 = vunpack.c.h.b16 %v815
    %v4370 = vunpack.c.l.b16 %v816
    %v4371 = vunpack.c.h.b16 %v816
    %v4372 = vunpack.c.l.b16 %v817
    %v4373 = vunpack.c.h.b16 %v817
    %v4374 = vunpack.c.l.b16 %v818
    %v4375 = vunpack.c.h.b16 %v818
    %v4376 = vunpack.c.l.b16 %v819
    %v4377 = vunpack.c.h.b16 %v819
    %v4378 = vunpack.c.l.b16 %v820
    %v4379 = vunpack.c.h.b16 %v820
    %v4380 = vunpack.c.l.b16 %v821
    %v4381 = vunpack.c.h.b16 %v821
    %v4382 = vunpack.c.l.b16 %v822
    %v4383 = vunpack.c.h.b16 %v822
    %v4384 = vunpack.c.l.b16 %v823
    %v4385 = vunpack.c.h.b16 %v823
    %v4386 = vunpack.c.l.b16 %v824
    %v4387 = vunpack.c.h.b16 %v824
    %v4388 = vunpack.c.l.b16 %v825
    %v4389 = vunpack.c.h.b16 %v825
    %v4390 = vunpack.c.l.b16 %v826
    %v4391 = vunpack.c.h.b16 %v826
    %v4392 = vunpack.c.l.b16 %v827
    %v4393 = vunpack.c.h.b16 %v827
    %v4394 = vunpack.c.l.b16 %v828
    %v4395 = vunpack.c.l.b16 %v829
    %v4396 = vunpack.c.h.b16 %v829
    %v4397 = vunpack.c.l.b16 %v830
    %v4398 = vunpack.c.h.b16 %v830
    %v4399 = vunpack.c.l.b16 %v831
    %v4400 = vunpack.c.h.b16 %v831
    %v4401 = vunpack.c.l.b16 %v832
    %v4402 = vunpack.c.h.b16 %v832
    %v4403 = vunpack.c.l.b16 %v833
    %v4404 = vunpack.c.h.b16 %v833
    %v4405 = vunpack.c.l.b16 %v834
    %v4406 = vunpack.c.h.b16 %v834
    %v4407 = vunpack.c.l.b16 %v835
    %v4408 = vunpack.c.h.b16 %v835
    %v4409 = vunpack.c.l.b16 %v836
    %v4410 = vunpack.c.h.b16 %v836
    %v4411 = vunpack.c.l.b16 %v837
    %v4412 = vunpack.c.h.b16 %v837
    %v4413 = vunpack.c.l.b16 %v838
    %v4414 = vunpack.c.h.b16 %v838
    %v4415 = vunpack.c.l.b16 %v839
    %v4416 = vunpack.c.h.b16 %v839
    %v4417 = vunpack.c.l.b16 %v840
    %v4418 = vunpack.c.h.b16 %v840
    %v4419 = vunpack.c.l.b16 %v841
    %v4420 = vunpack.c.h.b16 %v841
    %v4421 = vunpack.c.l.b16 %v842
    %v4422 = vunpack.c.h.b16 %v842
    %v4423 = vunpack.c.l.b16 %v843
    %v4424 = vunpack.c.l.b16 %v844
    %v4425 = vunpack.c.h.b16 %v844
    %v4426 = vunpack.c.l.b16 %v845
    %v4427 = vunpack.c.h.b16 %v845
    %v4428 = vunpack.c.l.b16 %v846
    %v4429 = vunpack.c.h.b16 %v846
    %v4430 = vunpack.c.l.b16 %v847
    %v4431 = vunpack.c.h.b16 %v847
    %v4432 = vunpack.c.l.b16 %v848
    %v4433 = vunpack.c.h.b16 %v848
    %v4434 = vunpack.c.l.b16 %v849
    %v4435 = vunpack.c.h.b16 %v849
    %v4436 = vunpack.c.l.b16 %v850
    %v4437 = vunpack.c.h.b16 %v850
    %v4438 = vunpack.c.l.b16 %v851
    %v4439 = vunpack.c.h.b16 %v851
    %v4440 = vunpack.c.l.b16 %v852
    %v4441 = vunpack.c.h.b16 %v852
    %v4442 = vunpack.c.l.b16 %v853
    %v4443 = vunpack.c.h.b16 %v853
    %v4444 = vunpack.c.l.b16 %v854
    %v4445 = vunpack.c.h.b16 %v854
    %v4446 = vunpack.c.l.b16 %v855
    %v4447 = vunpack.c.h.b16 %v855
    %v4448 = vunpack.c.l.b16 %v856
    %v4449 = vunpack.c.h.b16 %v856
    %v4450 = vunpack.c.l.b16 %v857
    %v4451 = vunpack.c.h.b16 %v857
    %v4452 = vunpack.c.l.b16 %v858
    %v4453 = vunpack.c.l.b16 %v859
    %v4454 = vunpack.c.h.b16 %v859
    %v4455 = vunpack.c.l.b16 %v860
    %v4456 = vunpack.c.h.b16 %v860
    %v4457 = vunpack.c.l.b16 %v861
    %v4458 = vunpack.c.h.b16 %v861
    %v4459 = vunpack.c.l.b16 %v862
    %v4460 = vunpack.c.h.b16 %v862
    %v4461 = vunpack.c.l.b16 %v863
    %v4462 = vunpack.c.h.b16 %v863
    %v4463 = vunpack.c.l.b16 %v864
    %v4464 = vunpack.c.h.b16 %v864
    %v4465 = vunpack.c.l.b16 %v865
    %v4466 = vunpack.c.h.b16 %v865
    %v4467 = vunpack.c.l.b16 %v866
    %v4468 = vunpack.c.h.b16 %v866
    %v4469 = vunpack.c.l.b16 %v867
    %v4470 = vunpack.c.h.b16 %v867
    %v4471 = vunpack.c.l.b16 %v868
    %v4472 = vunpack.c.h.b16 %v868
    %v4473 = vunpack.c.l.b16 %v869
    %v4474 = vunpack.c.h.b16 %v869
    %v4475 = vunpack.c.l.b16 %v870
    %v4476 = vunpack.c.h.b16 %v870
    %v4477 = vunpack.c.l.b16 %v871
    %v4478 = vunpack.c.h.b16 %v871
    %v4479 = vunpack.c.l.b16 %v872
    %v4480 = vunpack.c.h.b16 %v872
    %v4481 = vunpack.c.l.b16 %v873
    %v4482 = vunpack.c.l.b16 %v874
    %v4483 = vunpack.c.h.b16 %v874
    %v4484 = vunpack.c.l.b16 %v875
    %v4485 = vunpack.c.h.b16 %v875
    %v4486 = vunpack.c.l.b16 %v876
    %v4487 = vunpack.c.h.b16 %v876
    %v4488 = vunpack.c.l.b16 %v877
    %v4489 = vunpack.c.h.b16 %v877
    %v4490 = vunpack.c.l.b16 %v878
    %v4491 = vunpack.c.h.b16 %v878
    %v4492 = vunpack.c.l.b16 %v879
    %v4493 = vunpack.c.h.b16 %v879
    %v4494 = vunpack.c.l.b16 %v880
    %v4495 = vunpack.c.h.b16 %v880
    %v4496 = vunpack.c.l.b16 %v881
    %v4497 = vunpack.c.h.b16 %v881
    %v4498 = vunpack.c.l.b16 %v882
    %v4499 = vunpack.c.h.b16 %v882
    %v4500 = vunpack.c.l.b16 %v883
    %v4501 = vunpack.c.h.b16 %v883
    %v4502 = vunpack.c.l.b16 %v884
    %v4503 = vunpack.c.h.b16 %v884
    %v4504 = vunpack.c.l.b16 %v885
    %v4505 = vunpack.c.h.b16 %v885
    %v4506 = vunpack.c.l.b16 %v886
    %v4507 = vunpack.c.h.b16 %v886
    %v4508 = vunpack.c.l.b16 %v887
    %v4509 = vunpack.c.h.b16 %v887
    %v4510 = vunpack.c.l.b16 %v888
    %v4511 = vunpack.c.l.b16 %v889
    %v4512 = vunpack.c.h.b16 %v889
    %v4513 = vunpack.c.l.b16 %v890
    %v4514 = vunpack.c.h.b16 %v890
    %v4515 = vunpack.c.l.b16 %v891
    %v4516 = vunpack.c.h.b16 %v891
    %v4517 = vunpack.c.l.b16 %v892
    %v4518 = vunpack.c.h.b16 %v892
    %v4519 = vunpack.c.l.b16 %v893
    %v4520 = vunpack.c.h.b16 %v893
    %v4521 = vunpack.c.l.b16 %v894
    %v4522 = vunpack.c.h.b16 %v894
    %v4523 = vunpack.c.l.b16 %v895
    %v4524 = vunpack.c.h.b16 %v895
    %v4525 = vunpack.c.l.b16 %v896
    %v4526 = vunpack.c.h.b16 %v896
    %v4527 = vunpack.c.l.b16 %v897
    %v4528 = vunpack.c.h.b16 %v897
    %v4529 = vunpack.c.l.b16 %v898
    %v4530 = vunpack.c.h.b16 %v898
    %v4531 = vunpack.c.l.b16 %v899
    %v4532 = vunpack.c.h.b16 %v899
    %v4533 = vunpack.c.l.b16 %v900
    %v4534 = vunpack.c.h.b16 %v900
    %v4535 = vunpack.c.l.b16 %v901
    %v4536 = vunpack.c.h.b16 %v901
    %v4537 = vunpack.c.l.b16 %v902
    %v4538 = vunpack.c.h.b16 %v902
    %v4539 = vunpack.c.l.b16 %v903
    %v4540 = vunpack.c.l.b16 %v904
    %v4541 = vunpack.c.h.b16 %v904
    %v4542 = vunpack.c.l.b16 %v905
    %v4543 = vunpack.c.h.b16 %v905
    %v4544 = vunpack.c.l.b16 %v906
    %v4545 = vunpack.c.h.b16 %v906
    %v4546 = vunpack.c.l.b16 %v907
    %v4547 = vunpack.c.h.b16 %v907
    %v4548 = vunpack.c.l.b16 %v908
    %v4549 = vunpack.c.h.b16 %v908
    %v4550 = vunpack.c.l.b16 %v909
    %v4551 = vunpack.c.h.b16 %v909
    %v4552 = vunpack.c.l.b16 %v910
    %v4553 = vunpack.c.h.b16 %v910
    %v4554 = vunpack.c.l.b16 %v911
    %v4555 = vunpack.c.h.b16 %v911
    %v4556 = vunpack.c.l.b16 %v912
    %v4557 = vunpack.c.h.b16 %v912
    %v4558 = vunpack.c.l.b16 %v913
    %v4559 = vunpack.c.h.b16 %v913
    %v4560 = vunpack.c.l.b16 %v914
    %v4561 = vunpack.c.h.b16 %v914
    %v4562 = vunpack.c.l.b16 %v915
    %v4563 = vunpack.c.h.b16 %v915
    %v4564 = vunpack.c.l.b16 %v916
    %v4565 = vunpack.c.h.b16 %v916
    %v4566 = vunpack.c.l.b16 %v917
    %v4567 = vunpack.c.h.b16 %v917
    %v4568 = vunpack.c.l.b16 %v918
    %v4569 = vunpack.c.l.b16 %v919
    %v4570 = vunpack.c.h.b16 %v919
    %v4571 = vunpack.c.l.b16 %v920
    %v4572 = vunpack.c.h.b16 %v920
    %v4573 = vunpack.c.l.b16 %v921
    %v4574 = vunpack.c.h.b16 %v921
    %v4575 = vunpack.c.l.b16 %v922
    %v4576 = vunpack.c.h.b16 %v922
    %v4577 = vunpack.c.l.b16 %v923
    %v4578 = vunpack.c.h.b16 %v923
    %v4579 = vunpack.c.l.b16 %v924
    %v4580 = vunpack.c.h.b16 %v924
    %v4581 = vunpack.c.l.b16 %v925
    %v4582 = vunpack.c.h.b16 %v925
    %v4583 = vunpack.c.l.b16 %v926
    %v4584 = vunpack.c.h.b16 %v926
    %v4585 = vunpack.c.l.b16 %v927
    %v4586 = vunpack.c.h.b16 %v927
    %v4587 = vunpack.c.l.b16 %v928
    %v4588 = vunpack.c.h.b16 %v928
    %v4589 = vunpack.c.l.b16 %v929
    %v4590 = vunpack.c.h.b16 %v929
    %v4591 = vunpack.c.l.b16 %v930
    %v4592 = vunpack.c.h.b16 %v930
    %v4593 = vunpack.c.l.b16 %v931
    %v4594 = vunpack.c.h.b16 %v931
    %v4595 = vunpack.c.l.b16 %v932
    %v4596 = vunpack.c.h.b16 %v932
    %v4597 = vunpack.c.l.b16 %v933
    %v4598 = vunpack.c.l.b16 %v934
    %v4599 = vunpack.c.h.b16 %v934
    %v4600 = vunpack.c.l.b16 %v935
    %v4601 = vunpack.c.h.b16 %v935
    %v4602 = vunpack.c.l.b16 %v936
    %v4603 = vunpack.c.h.b16 %v936
    %v4604 = vunpack.c.l.b16 %v937
    %v4605 = vunpack.c.h.b16 %v937
    %v4606 = vunpack.c.l.b16 %v938
    %v4607 = vunpack.c.h.b16 %v938
    %v4608 = vunpack.c.l.b16 %v939
    %v4609 = vunpack.c.h.b16 %v939
    %v4610 = vunpack.c.l.b16 %v940
    %v4611 = vunpack.c.h.b16 %v940
    %v4612 = vunpack.c.l.b16 %v941
    %v4613 = vunpack.c.h.b16 %v941
    %v4614 = vunpack.c.l.b16 %v942
    %v4615 = vunpack.c.h.b16 %v942
    %v4616 = vunpack.c.l.b16 %v943
    %v4617 = vunpack.c.h.b16 %v943
    %v4618 = vunpack.c.l.b16 %v944
    %v4619 = vunpack.c.h.b16 %v944
    %v4620 = vunpack.c.l.b16 %v945
    %v4621 = vunpack.c.h.b16 %v945
    %v4622 = vunpack.c.l.b16 %v946
    %v4623 = vunpack.c.h.b16 %v946
    %v4624 = vunpack.c.l.b16 %v947
    %v4625 = vunpack.c.h.b16 %v947
    %v4626 = vunpack.c.l.b16 %v948
    %v4627 = vunpack.c.l.b16 %v949
    %v4628 = vunpack.c.h.b16 %v949
    %v4629 = vunpack.c.l.b16 %v950
    %v4630 = vunpack.c.h.b16 %v950
    %v4631 = vunpack.c.l.b16 %v951
    %v4632 = vunpack.c.h.b16 %v951
    %v4633 = vunpack.c.l.b16 %v952
    %v4634 = vunpack.c.h.b16 %v952
    %v4635 = vunpack.c.l.b16 %v953
    %v4636 = vunpack.c.h.b16 %v953
    %v4637 = vunpack.c.l.b16 %v954
    %v4638 = vunpack.c.h.b16 %v954
    %v4639 = vunpack.c.l.b16 %v955
    %v4640 = vunpack.c.h.b16 %v955
    %v4641 = vunpack.c.l.b16 %v956
    %v4642 = vunpack.c.h.b16 %v956
    %v4643 = vunpack.c.l.b16 %v957
    %v4644 = vunpack.c.h.b16 %v957
    %v4645 = vunpack.c.l.b16 %v958
    %v4646 = vunpack.c.h.b16 %v958
    %v4647 = vunpack.c.l.b16 %v959
    %v4648 = vunpack.c.h.b16 %v959
    %v4649 = vunpack.c.l.b16 %v960
    %v4650 = vunpack.c.h.b16 %v960
    %v4651 = vunpack.c.l.b16 %v961
    %v4652 = vunpack.c.h.b16 %v961
    %v4653 = vunpack.c.l.b16 %v962
    %v4654 = vunpack.c.h.b16 %v962
    %v4655 = vunpack.c.l.b16 %v963
    %v4656 = vunpack.c.l.b16 %v964
    %v4657 = vunpack.c.h.b16 %v964
    %v4658 = vunpack.c.l.b16 %v965
    %v4659 = vunpack.c.h.b16 %v965
    %v4660 = vunpack.c.l.b16 %v966
    %v4661 = vunpack.c.h.b16 %v966
    %v4662 = vunpack.c.l.b16 %v967
    %v4663 = vunpack.c.h.b16 %v967
    %v4664 = vunpack.c.l.b16 %v968
    %v4665 = vunpack.c.h.b16 %v968
    %v4666 = vunpack.c.l.b16 %v969
    %v4667 = vunpack.c.h.b16 %v969
    %v4668 = vunpack.c.l.b16 %v970
    %v4669 = vunpack.c.h.b16 %v970
    %v4670 = vunpack.c.l.b16 %v971
    %v4671 = vunpack.c.h.b16 %v971
    %v4672 = vunpack.c.l.b16 %v972
    %v4673 = vunpack.c.h.b16 %v972
    %v4674 = vunpack.c.l.b16 %v973
    %v4675 = vunpack.c.h.b16 %v973
    %v4676 = vunpack.c.l.b16 %v974
    %v4677 = vunpack.c.h.b16 %v974
    %v4678 = vunpack.c.l.b16 %v975
    %v4679 = vunpack.c.h.b16 %v975
    %v4680 = vunpack.c.l.b16 %v976
    %v4681 = vunpack.c.h.b16 %v976
    %v4682 = vunpack.c.l.b16 %v977
    %v4683 = vunpack.c.h.b16 %v977
    %v4684 = vunpack.c.l.b16 %v978
    %v4685 = vunpack.c.l.b16 %v979
    %v4686 = vunpack.c.h.b16 %v979
    %v4687 = vunpack.c.l.b16 %v980
    %v4688 = vunpack.c.h.b16 %v980
    %v4689 = vunpack.c.l.b16 %v981
    %v4690 = vunpack.c.h.b16 %v981
    %v4691 = vunpack.c.l.b16 %v982
    %v4692 = vunpack.c.h.b16 %v982
    %v4693 = vunpack.c.l.b16 %v983
    %v4694 = vunpack.c.h.b16 %v983
    %v4695 = vunpack.c.l.b16 %v984
    %v4696 = vunpack.c.h.b16 %v984
    %v4697 = vunpack.c.l.b16 %v985
    %v4698 = vunpack.c.h.b16 %v985
    %v4699 = vunpack.c.l.b16 %v986
    %v4700 = vunpack.c.h.b16 %v986
    %v4701 = vunpack.c.l.b16 %v987
    %v4702 = vunpack.c.h.b16 %v987
    %v4703 = vunpack.c.l.b16 %v988
    %v4704 = vunpack.c.h.b16 %v988
    %v4705 = vunpack.c.l.b16 %v989
    %v4706 = vunpack.c.h.b16 %v989
    %v4707 = vunpack.c.l.b16 %v990
    %v4708 = vunpack.c.h.b16 %v990
    %v4709 = vunpack.c.l.b16 %v991
    %v4710 = vunpack.c.h.b16 %v991
    %v4711 = vunpack.c.l.b16 %v992
    %v4712 = vunpack.c.h.b16 %v992
    %v4713 = vunpack.c.l.b16 %v993
    %v4714 = vunpack.c.l.b16 %v994
    %v4715 = vunpack.c.h.b16 %v994
    %v4716 = vunpack.c.l.b16 %v995
    %v4717 = vunpack.c.h.b16 %v995
    %v4718 = vunpack.c.l.b16 %v996
    %v4719 = vunpack.c.h.b16 %v996
    %v4720 = vunpack.c.l.b16 %v997
    %v4721 = vunpack.c.h.b16 %v997
    %v4722 = vunpack.c.l.b16 %v998
    %v4723 = vunpack.c.h.b16 %v998
    %v4724 = vunpack.c.l.b16 %v999
    %v4725 = vunpack.c.h.b16 %v999
    %v4726 = vunpack.c.l.b16 %v1000
    %v4727 = vunpack.c.h.b16 %v1000
    %v4728 = vunpack.c.l.b16 %v1001
    %v4729 = vunpack.c.h.b16 %v1001
    %v4730 = vunpack.c.l.b16 %v1002
    %v4731 = vunpack.c.h.b16 %v1002
    %v4732 = vunpack.c.l.b16 %v1003
    %v4733 = vunpack.c.h.b16 %v1003
    %v4734 = vunpack.c.l.b16 %v1004
    %v4735 = vunpack.c.h.b16 %v1004
    %v4736 = vunpack.c.l.b16 %v1005
    %v4737 = vunpack.c.h.b16 %v1005
    %v4738 = vunpack.c.l.b16 %v1006
    %v4739 = vunpack.c.h.b16 %v1006
    %v4740 = vunpack.c.l.b16 %v1007
    %v4741 = vunpack.c.h.b16 %v1007
    %v4742 = vunpack.c.l.b16 %v1008
    %v4743 = vunpack.c.l.b16 %v1009
    %v4744 = vunpack.c.h.b16 %v1009
    %v4745 = vunpack.c.l.b16 %v1010
    %v4746 = vunpack.c.h.b16 %v1010
    %v4747 = vunpack.c.l.b16 %v1011
    %v4748 = vunpack.c.h.b16 %v1011
    %v4749 = vunpack.c.l.b16 %v1012
    %v4750 = vunpack.c.h.b16 %v1012
    %v4751 = vunpack.c.l.b16 %v1013
    %v4752 = vunpack.c.h.b16 %v1013
    %v4753 = vunpack.c.l.b16 %v1014
    %v4754 = vunpack.c.h.b16 %v1014
    %v4755 = vunpack.c.l.b16 %v1015
    %v4756 = vunpack.c.h.b16 %v1015
    %v4757 = vunpack.c.l.b16 %v1016
    %v4758 = vunpack.c.h.b16 %v1016
    %v4759 = vunpack.c.l.b16 %v1017
    %v4760 = vunpack.c.h.b16 %v1017
    %v4761 = vunpack.c.l.b16 %v1018
    %v4762 = vunpack.c.h.b16 %v1018
    %v4763 = vunpack.c.l.b16 %v1019
    %v4764 = vunpack.c.h.b16 %v1019
    %v4765 = vunpack.c.l.b16 %v1020
    %v4766 = vunpack.c.h.b16 %v1020
    %v4767 = vunpack.c.l.b16 %v1021
    %v4768 = vunpack.c.h.b16 %v1021
    %v4769 = vunpack.c.l.b16 %v1022
    %v4770 = vunpack.c.h.b16 %v1022
    %v4771 = vunpack.c.l.b16 %v1023
    %v4772 = vunpack.c.l.b16 %v1024
    %v4773 = vunpack.c.h.b16 %v1024
    %v4774 = vunpack.c.l.b16 %v1025
    %v4775 = vunpack.c.h.b16 %v1025
    %v4776 = vunpack.c.l.b16 %v1026
    %v4777 = vunpack.c.h.b16 %v1026
    %v4778 = vunpack.c.l.b16 %v1027
    %v4779 = vunpack.c.h.b16 %v1027
    %v4780 = vunpack.c.l.b16 %v1028
    %v4781 = vunpack.c.h.b16 %v1028
    %v4782 = vunpack.c.l.b16 %v1029
    %v4783 = vunpack.c.h.b16 %v1029
    %v4784 = vunpack.c.l.b16 %v1030
    %v4785 = vunpack.c.h.b16 %v1030
    %v4786 = vunpack.c.l.b16 %v1031
    %v4787 = vunpack.c.h.b16 %v1031
    %v4788 = vunpack.c.l.b16 %v1032
    %v4789 = vunpack.c.h.b16 %v1032
    %v4790 = vunpack.c.l.b16 %v1033
    %v4791 = vunpack.c.h.b16 %v1033
    %v4792 = vunpack.c.l.b16 %v1034
    %v4793 = vunpack.c.h.b16 %v1034
    %v4794 = vunpack.c.l.b16 %v1035
    %v4795 = vunpack.c.h.b16 %v1035
    %v4796 = vunpack.c.l.b16 %v1036
    %v4797 = vunpack.c.h.b16 %v1036
    %v4798 = vunpack.c.l.b16 %v1037
    %v4799 = vunpack.c.h.b16 %v1037
    %v4800 = vunpack.c.l.b16 %v1038
    %v4801 = vunpack.c.l.b16 %v1039
    %v4802 = vunpack.c.h.b16 %v1039
    %v4803 = vunpack.c.l.b16 %v1040
    %v4804 = vunpack.c.h.b16 %v1040
    %v4805 = vunpack.c.l.b16 %v1041
    %v4806 = vunpack.c.h.b16 %v1041
    %v4807 = vunpack.c.l.b16 %v1042
    %v4808 = vunpack.c.h.b16 %v1042
    %v4809 = vunpack.c.l.b16 %v1043
    %v4810 = vunpack.c.h.b16 %v1043
    %v4811 = vunpack.c.l.b16 %v1044
    %v4812 = vunpack.c.h.b16 %v1044
    %v4813 = vunpack.c.l.b16 %v1045
    %v4814 = vunpack.c.h.b16 %v1045
    %v4815 = vunpack.c.l.b16 %v1046
    %v4816 = vunpack.c.h.b16 %v1046
    %v4817 = vunpack.c.l.b16 %v1047
    %v4818 = vunpack.c.h.b16 %v1047
    %v4819 = vunpack.c.l.b16 %v1048
    %v4820 = vunpack.c.h.b16 %v1048
    %v4821 = vunpack.c.l.b16 %v1049
    %v4822 = vunpack.c.h.b16 %v1049
    %v4823 = vunpack.c.l.b16 %v1050
    %v4824 = vunpack.c.h.b16 %v1050
    %v4825 = vunpack.c.l.b16 %v1051
    %v4826 = vunpack.c.h.b16 %v1051
    %v4827 = vunpack.c.l.b16 %v1052
    %v4828 = vunpack.c.h.b16 %v1052
    %v4829 = vunpack.c.l.b16 %v1053
    %v4830 = vunpack.c.l.b16 %v1054
    %v4831 = vunpack.c.h.b16 %v1054
    %v4832 = vunpack.c.l.b16 %v1055
    %v4833 = vunpack.c.h.b16 %v1055
    %v4834 = vunpack.c.l.b16 %v1056
    %v4835 = vunpack.c.h.b16 %v1056
    %v4836 = vunpack.c.l.b16 %v1057
    %v4837 = vunpack.c.h.b16 %v1057
    %v4838 = vunpack.c.l.b16 %v1058
    %v4839 = vunpack.c.h.b16 %v1058
    %v4840 = vunpack.c.l.b16 %v1059
    %v4841 = vunpack.c.h.b16 %v1059
    %v4842 = vunpack.c.l.b16 %v1060
    %v4843 = vunpack.c.h.b16 %v1060
    %v4844 = vunpack.c.l.b16 %v1061
    %v4845 = vunpack.c.h.b16 %v1061
    %v4846 = vunpack.c.l.b16 %v1062
    %v4847 = vunpack.c.h.b16 %v1062
    %v4848 = vunpack.c.l.b16 %v1063
    %v4849 = vunpack.c.h.b16 %v1063
    %v4850 = vunpack.c.l.b16 %v1064
    %v4851 = vunpack.c.h.b16 %v1064
    %v4852 = vunpack.c.l.b16 %v1065
    %v4853 = vunpack.c.h.b16 %v1065
    %v4854 = vunpack.c.l.b16 %v1066
    %v4855 = vunpack.c.h.b16 %v1066
    %v4856 = vunpack.c.l.b16 %v1067
    %v4857 = vunpack.c.h.b16 %v1067
    %v4858 = vunpack.c.l.b16 %v1068
    %v4859 = vunpack.c.l.b16 %v1069
    %v4860 = vunpack.c.h.b16 %v1069
    %v4861 = vunpack.c.l.b16 %v1070
    %v4862 = vunpack.c.h.b16 %v1070
    %v4863 = vunpack.c.l.b16 %v1071
    %v4864 = vunpack.c.h.b16 %v1071
    %v4865 = vunpack.c.l.b16 %v1072
    %v4866 = vunpack.c.h.b16 %v1072
    %v4867 = vunpack.c.l.b16 %v1073
    %v4868 = vunpack.c.h.b16 %v1073
    %v4869 = vunpack.c.l.b16 %v1074
    %v4870 = vunpack.c.h.b16 %v1074
    %v4871 = vunpack.c.l.b16 %v1075
    %v4872 = vunpack.c.h.b16 %v1075
    %v4873 = vunpack.c.l.b16 %v1076
    %v4874 = vunpack.c.h.b16 %v1076
    %v4875 = vunpack.c.l.b16 %v1077
    %v4876 = vunpack.c.h.b16 %v1077
    %v4877 = vunpack.c.l.b16 %v1078
    %v4878 = vunpack.c.h.b16 %v1078
    %v4879 = vunpack.c.l.b16 %v1079
    %v4880 = vunpack.c.h.b16 %v1079
    %v4881 = vunpack.c.l.b16 %v1080
    %v4882 = vunpack.c.h.b16 %v1080
    %v4883 = vunpack.c.l.b16 %v1081
    %v4884 = vunpack.c.h.b16 %v1081
    %v4885 = vunpack.c.l.b16 %v1082
    %v4886 = vunpack.c.h.b16 %v1082
    %v4887 = vunpack.c.l.b16 %v1083
    %v4888 = vunpack.c.l.b16 %v1084
    %v4889 = vunpack.c.h.b16 %v1084
    %v4890 = vunpack.c.l.b16 %v1085
    %v4891 = vunpack.c.h.b16 %v1085
    %v4892 = vunpack.c.l.b16 %v1086
    %v4893 = vunpack.c.h.b16 %v1086
    %v4894 = vunpack.c.l.b16 %v1087
    %v4895 = vunpack.c.h.b16 %v1087
    %v4896 = vunpack.c.l.b16 %v1088
    %v4897 = vunpack.c.h.b16 %v1088
    %v4898 = vunpack.c.l.b16 %v1089
    %v4899 = vunpack.c.h.b16 %v1089
    %v4900 = vunpack.c.l.b16 %v1090
    %v4901 = vunpack.c.h.b16 %v1090
    %v4902 = vunpack.c.l.b16 %v1091
    %v4903 = vunpack.c.h.b16 %v1091
    %v4904 = vunpack.c.l.b16 %v1092
    %v4905 = vunpack.c.h.b16 %v1092
    %v4906 = vunpack.c.l.b16 %v1093
    %v4907 = vunpack.c.h.b16 %v1093
    %v4908 = vunpack.c.l.b16 %v1094
    %v4909 = vunpack.c.h.b16 %v1094
    %v4910 = vunpack.c.l.b16 %v1095
    %v4911 = vunpack.c.h.b16 %v1095
    %v4912 = vunpack.c.l.b16 %v1096
    %v4913 = vunpack.c.h.b16 %v1096
    %v4914 = vunpack.c.l.b16 %v1097
    %v4915 = vunpack.c.h.b16 %v1097
    %v4916 = vunpack.c.l.b16 %v1098
    %v4917 = vunpack.c.l.b16 %v1099
    %v4918 = vunpack.c.h.b16 %v1099
    %v4919 = vunpack.c.l.b16 %v1100
    %v4920 = vunpack.c.h.b16 %v1100
    %v4921 = vunpack.c.l.b16 %v1101
    %v4922 = vunpack.c.h.b16 %v1101
    %v4923 = vunpack.c.l.b16 %v1102
    %v4924 = vunpack.c.h.b16 %v1102
    %v4925 = vunpack.c.l.b16 %v1103
    %v4926 = vunpack.c.h.b16 %v1103
    %v4927 = vunpack.c.l.b16 %v1104
    %v4928 = vunpack.c.h.b16 %v1104
    %v4929 = vunpack.c.l.b16 %v1105
    %v4930 = vunpack.c.h.b16 %v1105
    %v4931 = vunpack.c.l.b16 %v1106
    %v4932 = vunpack.c.h.b16 %v1106
    %v4933 = vunpack.c.l.b16 %v1107
    %v4934 = vunpack.c.h.b16 %v1107
    %v4935 = vunpack.c.l.b16 %v1108
    %v4936 = vunpack.c.h.b16 %v1108
    %v4937 = vunpack.c.l.b16 %v1109
    %v4938 = vunpack.c.h.b16 %v1109
    %v4939 = vunpack.c.l.b16 %v1110
    %v4940 = vunpack.c.h.b16 %v1110
    %v4941 = vunpack.c.l.b16 %v1111
    %v4942 = vunpack.c.h.b16 %v1111
    %v4943 = vunpack.c.l.b16 %v1112
    %v4944 = vunpack.c.h.b16 %v1112
    %v4945 = vunpack.c.l.b16 %v1113
    %v4946 = vunpack.c.l.b16 %v1114
    %v4947 = vunpack.c.h.b16 %v1114
    %v4948 = vunpack.c.l.b16 %v1115
    %v4949 = vunpack.c.h.b16 %v1115
    %v4950 = vunpack.c.l.b16 %v1116
    %v4951 = vunpack.c.h.b16 %v1116
    %v4952 = vunpack.c.l.b16 %v1117
    %v4953 = vunpack.c.h.b16 %v1117
    %v4954 = vunpack.c.l.b16 %v1118
    %v4955 = vunpack.c.h.b16 %v1118
    %v4956 = vunpack.c.l.b16 %v1119
    %v4957 = vunpack.c.h.b16 %v1119
    %v4958 = vunpack.c.l.b16 %v1120
    %v4959 = vunpack.c.h.b16 %v1120
    %v4960 = vunpack.c.l.b16 %v1121
    %v4961 = vunpack.c.h.b16 %v1121
    %v4962 = vunpack.c.l.b16 %v1122
    %v4963 = vunpack.c.h.b16 %v1122
    %v4964 = vunpack.c.l.b16 %v1123
    %v4965 = vunpack.c.h.b16 %v1123
    %v4966 = vunpack.c.l.b16 %v1124
    %v4967 = vunpack.c.h.b16 %v1124
    %v4968 = vunpack.c.l.b16 %v1125
    %v4969 = vunpack.c.h.b16 %v1125
    %v4970 = vunpack.c.l.b16 %v1126
    %v4971 = vunpack.c.h.b16 %v1126
    %v4972 = vunpack.c.l.b16 %v1127
    %v4973 = vunpack.c.h.b16 %v1127
    %v4974 = vunpack.c.l.b16 %v1128
    %v4975 = vunpack.c.l.b16 %v1129
    %v4976 = vunpack.c.h.b16 %v1129
    %v4977 = vunpack.c.l.b16 %v1130
    %v4978 = vunpack.c.h.b16 %v1130
    %v4979 = vunpack.c.l.b16 %v1131
    %v4980 = vunpack.c.h.b16 %v1131
    %v4981 = vunpack.c.l.b16 %v1132
    %v4982 = vunpack.c.h.b16 %v1132
    %v4983 = vunpack.c.l.b16 %v1133
    %v4984 = vunpack.c.h.b16 %v1133
    %v4985 = vunpack.c.l.b16 %v1134
    %v4986 = vunpack.c.h.b16 %v1134
    %v4987 = vunpack.c.l.b16 %v1135
    %v4988 = vunpack.c.h.b16 %v1135
    %v4989 = vunpack.c.l.b16 %v1136
    %v4990 = vunpack.c.h.b16 %v1136
    %v4991 = vunpack.c.l.b16 %v1137
    %v4992 = vunpack.c.h.b16 %v1137
    %v4993 = vunpack.c.l.b16 %v1138
    %v4994 = vunpack.c.h.b16 %v1138
    %v4995 = vunpack.c.l.b16 %v1139
    %v4996 = vunpack.c.h.b16 %v1139
    %v4997 = vunpack.c.l.b16 %v1140
    %v4998 = vunpack.c.h.b16 %v1140
    %v4999 = vunpack.c.l.b16 %v1141
    %v5000 = vunpack.c.h.b16 %v1141
    %v5001 = vunpack.c.l.b16 %v1142
    %v5002 = vunpack.c.h.b16 %v1142
    %v5003 = vunpack.c.l.b16 %v1143
    %v5004 = vunpack.c.l.b16 %v1144
    %v5005 = vunpack.c.h.b16 %v1144
    %v5006 = vunpack.c.l.b16 %v1145
    %v5007 = vunpack.c.h.b16 %v1145
    %v5008 = vunpack.c.l.b16 %v1146
    %v5009 = vunpack.c.h.b16 %v1146
    %v5010 = vunpack.c.l.b16 %v1147
    %v5011 = vunpack.c.h.b16 %v1147
    %v5012 = vunpack.c.l.b16 %v1148
    %v5013 = vunpack.c.h.b16 %v1148
    %v5014 = vunpack.c.l.b16 %v1149
    %v5015 = vunpack.c.h.b16 %v1149
    %v5016 = vunpack.c.l.b16 %v1150
    %v5017 = vunpack.c.h.b16 %v1150
    %v5018 = vunpack.c.l.b16 %v1151
    %v5019 = vunpack.c.h.b16 %v1151
    %v5020 = vunpack.c.l.b16 %v1152
    %v5021 = vunpack.c.h.b16 %v1152
    %v5022 = vunpack.c.l.b16 %v1153
    %v5023 = vunpack.c.h.b16 %v1153
    %v5024 = vunpack.c.l.b16 %v1154
    %v5025 = vunpack.c.h.b16 %v1154
    %v5026 = vunpack.c.l.b16 %v1155
    %v5027 = vunpack.c.h.b16 %v1155
    %v5028 = vunpack.c.l.b16 %v1156
    %v5029 = vunpack.c.h.b16 %v1156
    %v5030 = vunpack.c.l.b16 %v1157
    %v5031 = vunpack.c.h.b16 %v1157
    %v5032 = vunpack.c.l.b16 %v1158
    %v5033 = vunpack.c.l.b16 %v1159
    %v5034 = vunpack.c.h.b16 %v1159
    %v5035 = vunpack.c.l.b16 %v1160
    %v5036 = vunpack.c.h.b16 %v1160
    %v5037 = vunpack.c.l.b16 %v1161
    %v5038 = vunpack.c.h.b16 %v1161
    %v5039 = vunpack.c.l.b16 %v1162
    %v5040 = vunpack.c.h.b16 %v1162
    %v5041 = vunpack.c.l.b16 %v1163
    %v5042 = vunpack.c.h.b16 %v1163
    %v5043 = vunpack.c.l.b16 %v1164
    %v5044 = vunpack.c.h.b16 %v1164
    %v5045 = vunpack.c.l.b16 %v1165
    %v5046 = vunpack.c.h.b16 %v1165
    %v5047 = vunpack.c.l.b16 %v1166
    %v5048 = vunpack.c.h.b16 %v1166
    %v5049 = vunpack.c.l.b16 %v1167
    %v5050 = vunpack.c.h.b16 %v1167
    %v5051 = vunpack.c.l.b16 %v1168
    %v5052 = vunpack.c.h.b16 %v1168
    %v5053 = vunpack.c.l.b16 %v1169
    %v5054 = vunpack.c.h.b16 %v1169
    %v5055 = vunpack.c.l.b16 %v1170
    %v5056 = vunpack.c.h.b16 %v1170
    %v5057 = vunpack.c.l.b16 %v1171
    %v5058 = vunpack.c.h.b16 %v1171
    %v5059 = vunpack.c.l.b16 %v1172
    %v5060 = vunpack.c.h.b16 %v1172
    %v5061 = vunpack.c.l.b16 %v1173
    %v5062 = vunpack.c.l.b16 %v1174
    %v5063 = vunpack.c.h.b16 %v1174
    %v5064 = vunpack.c.l.b16 %v1175
    %v5065 = vunpack.c.h.b16 %v1175
    %v5066 = vunpack.c.l.b16 %v1176
    %v5067 = vunpack.c.h.b16 %v1176
    %v5068 = vunpack.c.l.b16 %v1177
    %v5069 = vunpack.c.h.b16 %v1177
    %v5070 = vunpack.c.l.b16 %v1178
    %v5071 = vunpack.c.h.b16 %v1178
    %v5072 = vunpack.c.l.b16 %v1179
    %v5073 = vunpack.c.h.b16 %v1179
    %v5074 = vunpack.c.l.b16 %v1180
    %v5075 = vunpack.c.h.b16 %v1180
    %v5076 = vunpack.c.l.b16 %v1181
    %v5077 = vunpack.c.h.b16 %v1181
    %v5078 = vunpack.c.l.b16 %v1182
    %v5079 = vunpack.c.h.b16 %v1182
    %v5080 = vunpack.c.l.b16 %v1183
    %v5081 = vunpack.c.h.b16 %v1183
    %v5082 = vunpack.c.l.b16 %v1184
    %v5083 = vunpack.c.h.b16 %v1184
    %v5084 = vunpack.c.l.b16 %v1185
    %v5085 = vunpack.c.h.b16 %v1185
    %v5086 = vunpack.c.l.b16 %v1186
    %v5087 = vunpack.c.h.b16 %v1186
    %v5088 = vunpack.c.l.b16 %v1187
    %v5089 = vunpack.c.h.b16 %v1187
    %v5090 = vunpack.c.l.b16 %v1188
    %v5091 = vunpack.c.l.b16 %v1189
    %v5092 = vunpack.c.h.b16 %v1189
    %v5093 = vunpack.c.l.b16 %v1190
    %v5094 = vunpack.c.h.b16 %v1190
    %v5095 = vunpack.c.l.b16 %v1191
    %v5096 = vunpack.c.h.b16 %v1191
    %v5097 = vunpack.c.l.b16 %v1192
    %v5098 = vunpack.c.h.b16 %v1192
    %v5099 = vunpack.c.l.b16 %v1193
    %v5100 = vunpack.c.h.b16 %v1193
    %v5101 = vunpack.c.l.b16 %v1194
    %v5102 = vunpack.c.h.b16 %v1194
    %v5103 = vunpack.c.l.b16 %v1195
    %v5104 = vunpack.c.h.b16 %v1195
    %v5105 = vunpack.c.l.b16 %v1196
    %v5106 = vunpack.c.h.b16 %v1196
    %v5107 = vunpack.c.l.b16 %v1197
    %v5108 = vunpack.c.h.b16 %v1197
    %v5109 = vunpack.c.l.b16 %v1198
    %v5110 = vunpack.c.h.b16 %v1198
    %v5111 = vunpack.c.l.b16 %v1199
    %v5112 = vunpack.c.h.b16 %v1199
    %v5113 = vunpack.c.l.b16 %v1200
    %v5114 = vunpack.c.h.b16 %v1200
    %v5115 = vunpack.c.l.b16 %v1201
    %v5116 = vunpack.c.h.b16 %v1201
    %v5117 = vunpack.c.l.b16 %v1202
    %v5118 = vunpack.c.h.b16 %v1202
    %v5119 = vunpack.c.l.b16 %v1203
    %v5120 = vunpack.c.l.b16 %v1204
    %v5121 = vunpack.c.h.b16 %v1204
    %v5122 = vunpack.c.l.b16 %v1205
    %v5123 = vunpack.c.h.b16 %v1205
    %v5124 = vunpack.c.l.b16 %v1206
    %v5125 = vunpack.c.h.b16 %v1206
    %v5126 = vunpack.c.l.b16 %v1207
    %v5127 = vunpack.c.h.b16 %v1207
    %v5128 = vunpack.c.l.b16 %v1208
    %v5129 = vunpack.c.h.b16 %v1208
    %v5130 = vunpack.c.l.b16 %v1209
    %v5131 = vunpack.c.h.b16 %v1209
    %v5132 = vunpack.c.l.b16 %v1210
    %v5133 = vunpack.c.h.b16 %v1210
    %v5134 = vunpack.c.l.b16 %v1211
    %v5135 = vunpack.c.h.b16 %v1211
    %v5136 = vunpack.c.l.b16 %v1212
    %v5137 = vunpack.c.h.b16 %v1212
    %v5138 = vunpack.c.l.b16 %v1213
    %v5139 = vunpack.c.h.b16 %v1213
    %v5140 = vunpack.c.l.b16 %v1214
    %v5141 = vunpack.c.h.b16 %v1214
    %v5142 = vunpack.c.l.b16 %v1215
    %v5143 = vunpack.c.h.b16 %v1215
    %v5144 = vunpack.c.l.b16 %v1216
    %v5145 = vunpack.c.h.b16 %v1216
    %v5146 = vunpack.c.l.b16 %v1217
    %v5147 = vunpack.c.h.b16 %v1217
    %v5148 = vunpack.c.l.b16 %v1218
    %v5149 = vunpack.c.l.b16 %v1219
    %v5150 = vunpack.c.h.b16 %v1219
    %v5151 = vunpack.c.l.b16 %v1220
    %v5152 = vunpack.c.h.b16 %v1220
    %v5153 = vunpack.c.l.b16 %v1221
    %v5154 = vunpack.c.h.b16 %v1221
    %v5155 = vunpack.c.l.b16 %v1222
    %v5156 = vunpack.c.h.b16 %v1222
    %v5157 = vunpack.c.l.b16 %v1223
    %v5158 = vunpack.c.h.b16 %v1223
    %v5159 = vunpack.c.l.b16 %v1224
    %v5160 = vunpack.c.h.b16 %v1224
    %v5161 = vunpack.c.l.b16 %v1225
    %v5162 = vunpack.c.h.b16 %v1225
    %v5163 = vunpack.c.l.b16 %v1226
    %v5164 = vunpack.c.h.b16 %v1226
    %v5165 = vunpack.c.l.b16 %v1227
    %v5166 = vunpack.c.h.b16 %v1227
    %v5167 = vunpack.c.l.b16 %v1228
    %v5168 = vunpack.c.h.b16 %v1228
    %v5169 = vunpack.c.l.b16 %v1229
    %v5170 = vunpack.c.h.b16 %v1229
    %v5171 = vunpack.c.l.b16 %v1230
    %v5172 = vunpack.c.h.b16 %v1230
    %v5173 = vunpack.c.l.b16 %v1231
    %v5174 = vunpack.c.h.b16 %v1231
    %v5175 = vunpack.c.l.b16 %v1232
    %v5176 = vunpack.c.h.b16 %v1232
    %v5177 = vunpack.c.l.b16 %v1233
    %v5178 = vunpack.c.l.b16 %v1234
    %v5179 = vunpack.c.h.b16 %v1234
    %v5180 = vunpack.c.l.b16 %v1235
    %v5181 = vunpack.c.h.b16 %v1235
    %v5182 = vunpack.c.l.b16 %v1236
    %v5183 = vunpack.c.h.b16 %v1236
    %v5184 = vunpack.c.l.b16 %v1237
    %v5185 = vunpack.c.h.b16 %v1237
    %v5186 = vunpack.c.l.b16 %v1238
    %v5187 = vunpack.c.h.b16 %v1238
    %v5188 = vunpack.c.l.b16 %v1239
    %v5189 = vunpack.c.h.b16 %v1239
    %v5190 = vunpack.c.l.b16 %v1240
    %v5191 = vunpack.c.h.b16 %v1240
    %v5192 = vunpack.c.l.b16 %v1241
    %v5193 = vunpack.c.h.b16 %v1241
    %v5194 = vunpack.c.l.b16 %v1242
    %v5195 = vunpack.c.h.b16 %v1242
    %v5196 = vunpack.c.l.b16 %v1243
    %v5197 = vunpack.c.h.b16 %v1243
    %v5198 = vunpack.c.l.b16 %v1244
    %v5199 = vunpack.c.h.b16 %v1244
    %v5200 = vunpack.c.l.b16 %v1245
    %v5201 = vunpack.c.h.b16 %v1245
    %v5202 = vunpack.c.l.b16 %v1246
    %v5203 = vunpack.c.h.b16 %v1246
    %v5204 = vunpack.c.l.b16 %v1247
    %v5205 = vunpack.c.h.b16 %v1247
    %v5206 = vunpack.c.l.b16 %v1248
    %v5207 = vunpack.c.l.b16 %v1249
    %v5208 = vunpack.c.h.b16 %v1249
    %v5209 = vunpack.c.l.b16 %v1250
    %v5210 = vunpack.c.h.b16 %v1250
    %v5211 = vunpack.c.l.b16 %v1251
    %v5212 = vunpack.c.h.b16 %v1251
    %v5213 = vunpack.c.l.b16 %v1252
    %v5214 = vunpack.c.h.b16 %v1252
    %v5215 = vunpack.c.l.b16 %v1253
    %v5216 = vunpack.c.h.b16 %v1253
    %v5217 = vunpack.c.l.b16 %v1254
    %v5218 = vunpack.c.h.b16 %v1254
    %v5219 = vunpack.c.l.b16 %v1255
    %v5220 = vunpack.c.h.b16 %v1255
    %v5221 = vunpack.c.l.b16 %v1256
    %v5222 = vunpack.c.h.b16 %v1256
    %v5223 = vunpack.c.l.b16 %v1257
    %v5224 = vunpack.c.h.b16 %v1257
    %v5225 = vunpack.c.l.b16 %v1258
    %v5226 = vunpack.c.h.b16 %v1258
    %v5227 = vunpack.c.l.b16 %v1259
    %v5228 = vunpack.c.h.b16 %v1259
    %v5229 = vunpack.c.l.b16 %v1260
    %v5230 = vunpack.c.h.b16 %v1260
    %v5231 = vunpack.c.l.b16 %v1261
    %v5232 = vunpack.c.h.b16 %v1261
    %v5233 = vunpack.c.l.b16 %v1262
    %v5234 = vunpack.c.h.b16 %v1262
    %v5235 = vunpack.c.l.b16 %v1263
    %v5236 = vunpack.c.l.b16 %v1264
    %v5237 = vunpack.c.h.b16 %v1264
    %v5238 = vunpack.c.l.b16 %v1265
    %v5239 = vunpack.c.h.b16 %v1265
    %v5240 = vunpack.c.l.b16 %v1266
    %v5241 = vunpack.c.h.b16 %v1266
    %v5242 = vunpack.c.l.b16 %v1267
    %v5243 = vunpack.c.h.b16 %v1267
    %v5244 = vunpack.c.l.b16 %v1268
    %v5245 = vunpack.c.h.b16 %v1268
    %v5246 = vunpack.c.l.b16 %v1269
    %v5247 = vunpack.c.h.b16 %v1269
    %v5248 = vunpack.c.l.b16 %v1270
    %v5249 = vunpack.c.h.b16 %v1270
    %v5250 = vunpack.c.l.b16 %v1271
    %v5251 = vunpack.c.h.b16 %v1271
    %v5252 = vunpack.c.l.b16 %v1272
    %v5253 = vunpack.c.h.b16 %v1272
    %v5254 = vunpack.c.l.b16 %v1273
    %v5255 = vunpack.c.h.b16 %v1273
    %v5256 = vunpack.c.l.b16 %v1274
    %v5257 = vunpack.c.h.b16 %v1274
    %v5258 = vunpack.c.l.b16 %v1275
    %v5259 = vunpack.c.h.b16 %v1275
    %v5260 = vunpack.c.l.b16 %v1276
    %v5261 = vunpack.c.h.b16 %v1276
    %v5262 = vunpack.c.l.b16 %v1277
    %v5263 = vunpack.c.h.b16 %v1277
    %v5264 = vunpack.c.l.b16 %v1278
    %v5265 = vunpack.c.l.b16 %v1279
    %v5266 = vunpack.c.h.b16 %v1279
    %v5267 = vunpack.c.l.b16 %v1280
    %v5268 = vunpack.c.h.b16 %v1280
    %v5269 = vunpack.c.l.b16 %v1281
    %v5270 = vunpack.c.h.b16 %v1281
    %v5271 = vunpack.c.l.b16 %v1282
    %v5272 = vunpack.c.h.b16 %v1282
    %v5273 = vunpack.c.l.b16 %v1283
    %v5274 = vunpack.c.h.b16 %v1283
    %v5275 = vunpack.c.l.b16 %v1284
    %v5276 = vunpack.c.h.b16 %v1284
    %v5277 = vunpack.c.l.b16 %v1285
    %v5278 = vunpack.c.h.b16 %v1285
    %v5279 = vunpack.c.l.b16 %v1286
    %v5280 = vunpack.c.h.b16 %v1286
    %v5281 = vunpack.c.l.b16 %v1287
    %v5282 = vunpack.c.h.b16 %v1287
    %v5283 = vunpack.c.l.b16 %v1288
    %v5284 = vunpack.c.h.b16 %v1288
    %v5285 = vunpack.c.l.b16 %v1289
    %v5286 = vunpack.c.h.b16 %v1289
    %v5287 = vunpack.c.l.b16 %v1290
    %v5288 = vunpack.c.h.b16 %v1290
    %v5289 = vunpack.c.l.b16 %v1291
    %v5290 = vunpack.c.h.b16 %v1291
    %v5291 = vunpack.c.l.b16 %v1292
    %v5292 = vunpack.c.h.b16 %v1292
    %v5293 = vunpack.c.l.b16 %v1293
    %v5294 = vunpack.c.l.b16 %v1294
    %v5295 = vunpack.c.h.b16 %v1294
    %v5296 = vunpack.c.l.b16 %v1295
    %v5297 = vunpack.c.h.b16 %v1295
    %v5298 = vunpack.c.l.b16 %v1296
    %v5299 = vunpack.c.h.b16 %v1296
    %v5300 = vunpack.c.l.b16 %v1297
    %v5301 = vunpack.c.h.b16 %v1297
    %v5302 = vunpack.c.l.b16 %v1298
    %v5303 = vunpack.c.h.b16 %v1298
    %v5304 = vunpack.c.l.b16 %v1299
    %v5305 = vunpack.c.h.b16 %v1299
    %v5306 = vunpack.c.l.b16 %v1300
    %v5307 = vunpack.c.h.b16 %v1300
    %v5308 = vunpack.c.l.b16 %v1301
    %v5309 = vunpack.c.h.b16 %v1301
    %v5310 = vunpack.c.l.b16 %v1302
    %v5311 = vunpack.c.h.b16 %v1302
    %v5312 = vunpack.c.l.b16 %v1303
    %v5313 = vunpack.c.h.b16 %v1303
    %v5314 = vunpack.c.l.b16 %v1304
    %v5315 = vunpack.c.h.b16 %v1304
    %v5316 = vunpack.c.l.b16 %v1305
    %v5317 = vunpack.c.h.b16 %v1305
    %v5318 = vunpack.c.l.b16 %v1306
    %v5319 = vunpack.c.h.b16 %v1306
    %v5320 = vunpack.c.l.b16 %v1307
    %v5321 = vunpack.c.h.b16 %v1307
    %v5322 = vunpack.c.l.b16 %v1308
    %v5323 = vunpack.c.l.b16 %v1309
    %v5324 = vunpack.c.h.b16 %v1309
    %v5325 = vunpack.c.l.b16 %v1310
    %v5326 = vunpack.c.h.b16 %v1310
    %v5327 = vunpack.c.l.b16 %v1311
    %v5328 = vunpack.c.h.b16 %v1311
    %v5329 = vunpack.c.l.b16 %v1312
    %v5330 = vunpack.c.h.b16 %v1312
    %v5331 = vunpack.c.l.b16 %v1313
    %v5332 = vunpack.c.h.b16 %v1313
    %v5333 = vunpack.c.l.b16 %v1314
    %v5334 = vunpack.c.h.b16 %v1314
    %v5335 = vunpack.c.l.b16 %v1315
    %v5336 = vunpack.c.h.b16 %v1315
    %v5337 = vunpack.c.l.b16 %v1316
    %v5338 = vunpack.c.h.b16 %v1316
    %v5339 = vunpack.c.l.b16 %v1317
    %v5340 = vunpack.c.h.b16 %v1317
    %v5341 = vunpack.c.l.b16 %v1318
    %v5342 = vunpack.c.h.b16 %v1318
    %v5343 = vunpack.c.l.b16 %v1319
    %v5344 = vunpack.c.h.b16 %v1319
    %v5345 = vunpack.c.l.b16 %v1320
    %v5346 = vunpack.c.h.b16 %v1320
    %v5347 = vunpack.c.l.b16 %v1321
    %v5348 = vunpack.c.h.b16 %v1321
    %v5349 = vunpack.c.l.b16 %v1322
    %v5350 = vunpack.c.h.b16 %v1322
    %v5351 = vunpack.c.l.b16 %v1323
    %v5352 = vunpack.c.l.b16 %v1324
    %v5353 = vunpack.c.h.b16 %v1324
    %v5354 = vunpack.c.l.b16 %v1325
    %v5355 = vunpack.c.h.b16 %v1325
    %v5356 = vunpack.c.l.b16 %v1326
    %v5357 = vunpack.c.h.b16 %v1326
    %v5358 = vunpack.c.l.b16 %v1327
    %v5359 = vunpack.c.h.b16 %v1327
    %v5360 = vunpack.c.l.b16 %v1328
    %v5361 = vunpack.c.h.b16 %v1328
    %v5362 = vunpack.c.l.b16 %v1329
    %v5363 = vunpack.c.h.b16 %v1329
    %v5364 = vunpack.c.l.b16 %v1330
    %v5365 = vunpack.c.h.b16 %v1330
    %v5366 = vunpack.c.l.b16 %v1331
    %v5367 = vunpack.c.h.b16 %v1331
    %v5368 = vunpack.c.l.b16 %v1332
    %v5369 = vunpack.c.h.b16 %v1332
    %v5370 = vunpack.c.l.b16 %v1333
    %v5371 = vunpack.c.h.b16 %v1333
    %v5372 = vunpack.c.l.b16 %v1334
    %v5373 = vunpack.c.h.b16 %v1334
    %v5374 = vunpack.c.l.b16 %v1335
    %v5375 = vunpack.c.h.b16 %v1335
    %v5376 = vunpack.c.l.b16 %v1336
    %v5377 = vunpack.c.h.b16 %v1336
    %v5378 = vunpack.c.l.b16 %v1337
    %v5379 = vunpack.c.h.b16 %v1337
    %v5380 = vunpack.c.l.b16 %v1338
    %v5381 = vunpack.c.l.b16 %v1339
    %v5382 = vunpack.c.h.b16 %v1339
    %v5383 = vunpack.c.l.b16 %v1340
    %v5384 = vunpack.c.h.b16 %v1340
    %v5385 = vunpack.c.l.b16 %v1341
    %v5386 = vunpack.c.h.b16 %v1341
    %v5387 = vunpack.c.l.b16 %v1342
    %v5388 = vunpack.c.h.b16 %v1342
    %v5389 = vunpack.c.l.b16 %v1343
    %v5390 = vunpack.c.h.b16 %v1343
    %v5391 = vunpack.c.l.b16 %v1344
    %v5392 = vunpack.c.h.b16 %v1344
    %v5393 = vunpack.c.l.b16 %v1345
    %v5394 = vunpack.c.h.b16 %v1345
    %v5395 = vunpack.c.l.b16 %v1346
    %v5396 = vunpack.c.h.b16 %v1346
    %v5397 = vunpack.c.l.b16 %v1347
    %v5398 = vunpack.c.h.b16 %v1347
    %v5399 = vunpack.c.l.b16 %v1348
    %v5400 = vunpack.c.h.b16 %v1348
    %v5401 = vunpack.c.l.b16 %v1349
    %v5402 = vunpack.c.h.b16 %v1349
    %v5403 = vunpack.c.l.b16 %v1350
    %v5404 = vunpack.c.h.b16 %v1350
    %v5405 = vunpack.c.l.b16 %v1351
    %v5406 = vunpack.c.h.b16 %v1351
    %v5407 = vunpack.c.l.b16 %v1352
    %v5408 = vunpack.c.h.b16 %v1352
    %v5409 = vunpack.c.l.b16 %v1353
    %v5410 = vunpack.c.l.b16 %v1354
    %v5411 = vunpack.c.h.b16 %v1354
    %v5412 = vunpack.c.l.b16 %v1355
    %v5413 = vunpack.c.h.b16 %v1355
    %v5414 = vunpack.c.l.b16 %v1356
    %v5415 = vunpack.c.h.b16 %v1356
    %v5416 = vunpack.c.l.b16 %v1357
    %v5417 = vunpack.c.h.b16 %v1357
    %v5418 = vunpack.c.l.b16 %v1358
    %v5419 = vunpack.c.h.b16 %v1358
    %v5420 = vunpack.c.l.b16 %v1359
    %v5421 = vunpack.c.h.b16 %v1359
    %v5422 = vunpack.c.l.b16 %v1360
    %v5423 = vunpack.c.h.b16 %v1360
    %v5424 = vunpack.c.l.b16 %v1361
    %v5425 = vunpack.c.h.b16 %v1361
    %v5426 = vunpack.c.l.b16 %v1362
    %v5427 = vunpack.c.h.b16 %v1362
    %v5428 = vunpack.c.l.b16 %v1363
    %v5429 = vunpack.c.h.b16 %v1363
    %v5430 = vunpack.c.l.b16 %v1364
    %v5431 = vunpack.c.h.b16 %v1364
    %v5432 = vunpack.c.l.b16 %v1365
    %v5433 = vunpack.c.h.b16 %v1365
    %v5434 = vunpack.c.l.b16 %v1366
    %v5435 = vunpack.c.h.b16 %v1366
    %v5436 = vunpack.c.l.b16 %v1367
    %v5437 = vunpack.c.h.b16 %v1367
    %v5438 = vunpack.c.l.b16 %v1368
    %v5439 = vunpack.c.l.b16 %v1369
    %v5440 = vunpack.c.h.b16 %v1369
    %v5441 = vunpack.c.l.b16 %v1370
    %v5442 = vunpack.c.h.b16 %v1370
    %v5443 = vunpack.c.l.b16 %v1371
    %v5444 = vunpack.c.h.b16 %v1371
    %v5445 = vunpack.c.l.b16 %v1372
    %v5446 = vunpack.c.h.b16 %v1372
    %v5447 = vunpack.c.l.b16 %v1373
    %v5448 = vunpack.c.h.b16 %v1373
    %v5449 = vunpack.c.l.b16 %v1374
    %v5450 = vunpack.c.h.b16 %v1374
    %v5451 = vunpack.c.l.b16 %v1375
    %v5452 = vunpack.c.h.b16 %v1375
    %v5453 = vunpack.c.l.b16 %v1376
    %v5454 = vunpack.c.h.b16 %v1376
    %v5455 = vunpack.c.l.b16 %v1377
    %v5456 = vunpack.c.h.b16 %v1377
    %v5457 = vunpack.c.l.b16 %v1378
    %v5458 = vunpack.c.h.b16 %v1378
    %v5459 = vunpack.c.l.b16 %v1379
    %v5460 = vunpack.c.h.b16 %v1379
    %v5461 = vunpack.c.l.b16 %v1380
    %v5462 = vunpack.c.h.b16 %v1380
    %v5463 = vunpack.c.l.b16 %v1381
    %v5464 = vunpack.c.h.b16 %v1381
    %v5465 = vunpack.c.l.b16 %v1382
    %v5466 = vunpack.c.h.b16 %v1382
    %v5467 = vunpack.c.l.b16 %v1383
    %v5468 = vunpack.c.l.b16 %v1384
    %v5469 = vunpack.c.h.b16 %v1384
    %v5470 = vunpack.c.l.b16 %v1385
    %v5471 = vunpack.c.h.b16 %v1385
    %v5472 = vunpack.c.l.b16 %v1386
    %v5473 = vunpack.c.h.b16 %v1386
    %v5474 = vunpack.c.l.b16 %v1387
    %v5475 = vunpack.c.h.b16 %v1387
    %v5476 = vunpack.c.l.b16 %v1388
    %v5477 = vunpack.c.h.b16 %v1388
    %v5478 = vunpack.c.l.b16 %v1389
    %v5479 = vunpack.c.h.b16 %v1389
    %v5480 = vunpack.c.l.b16 %v1390
    %v5481 = vunpack.c.h.b16 %v1390
    %v5482 = vunpack.c.l.b16 %v1391
    %v5483 = vunpack.c.h.b16 %v1391
    %v5484 = vunpack.c.l.b16 %v1392
    %v5485 = vunpack.c.h.b16 %v1392
    %v5486 = vunpack.c.l.b16 %v1393
    %v5487 = vunpack.c.h.b16 %v1393
    %v5488 = vunpack.c.l.b16 %v1394
    %v5489 = vunpack.c.h.b16 %v1394
    %v5490 = vunpack.c.l.b16 %v1395
    %v5491 = vunpack.c.h.b16 %v1395
    %v5492 = vunpack.c.l.b16 %v1396
    %v5493 = vunpack.c.h.b16 %v1396
    %v5494 = vunpack.c.l.b16 %v1397
    %v5495 = vunpack.c.h.b16 %v1397
    %v5496 = vunpack.c.l.b16 %v1398
    %v5497 = vunpack.c.l.b16 %v1399
    %v5498 = vunpack.c.h.b16 %v1399
    %v5499 = vunpack.c.l.b16 %v1400
    %v5500 = vunpack.c.h.b16 %v1400
    %v5501 = vunpack.c.l.b16 %v1401
    %v5502 = vunpack.c.h.b16 %v1401
    %v5503 = vunpack.c.l.b16 %v1402
    %v5504 = vunpack.c.h.b16 %v1402
    %v5505 = vunpack.c.l.b16 %v1403
    %v5506 = vunpack.c.h.b16 %v1403
    %v5507 = vunpack.c.l.b16 %v1404
    %v5508 = vunpack.c.h.b16 %v1404
    %v5509 = vunpack.c.l.b16 %v1405
    %v5510 = vunpack.c.h.b16 %v1405
    %v5511 = vunpack.c.l.b16 %v1406
    %v5512 = vunpack.c.h.b16 %v1406
    %v5513 = vunpack.c.l.b16 %v1407
    %v5514 = vunpack.c.h.b16 %v1407
    %v5515 = vunpack.c.l.b16 %v1408
    %v5516 = vunpack.c.h.b16 %v1408
    %v5517 = vunpack.c.l.b16 %v1409
    %v5518 = vunpack.c.h.b16 %v1409
    %v5519 = vunpack.c.l.b16 %v1410
    %v5520 = vunpack.c.h.b16 %v1410
    %v5521 = vunpack.c.l.b16 %v1411
    %v5522 = vunpack.c.h.b16 %v1411
    %v5523 = vunpack.c.l.b16 %v1412
    %v5524 = vunpack.c.h.b16 %v1412
    %v5525 = vunpack.c.l.b16 %v1413
    %v5526 = vunpack.c.l.b16 %v1414
    %v5527 = vunpack.c.h.b16 %v1414
    %v5528 = vunpack.c.l.b16 %v1415
    %v5529 = vunpack.c.h.b16 %v1415
    %v5530 = vunpack.c.l.b16 %v1416
    %v5531 = vunpack.c.h.b16 %v1416
    %v5532 = vunpack.c.l.b16 %v1417
    %v5533 = vunpack.c.h.b16 %v1417
    %v5534 = vunpack.c.l.b16 %v1418
    %v5535 = vunpack.c.h.b16 %v1418
    %v5536 = vunpack.c.l.b16 %v1419
    %v5537 = vunpack.c.h.b16 %v1419
    %v5538 = vunpack.c.l.b16 %v1420
    %v5539 = vunpack.c.h.b16 %v1420
    %v5540 = vunpack.c.l.b16 %v1421
    %v5541 = vunpack.c.h.b16 %v1421
    %v5542 = vunpack.c.l.b16 %v1422
    %v5543 = vunpack.c.h.b16 %v1422
    %v5544 = vunpack.c.l.b16 %v1423
    %v5545 = vunpack.c.h.b16 %v1423
    %v5546 = vunpack.c.l.b16 %v1424
    %v5547 = vunpack.c.h.b16 %v1424
    %v5548 = vunpack.c.l.b16 %v1425
    %v5549 = vunpack.c.h.b16 %v1425
    %v5550 = vunpack.c.l.b16 %v1426
    %v5551 = vunpack.c.h.b16 %v1426
    %v5552 = vunpack.c.l.b16 %v1427
    %v5553 = vunpack.c.h.b16 %v1427
    %v5554 = vunpack.c.l.b16 %v1428
    %v5555 = vunpack.c.l.b16 %v1429
    %v5556 = vunpack.c.h.b16 %v1429
    %v5557 = vunpack.c.l.b16 %v1430
    %v5558 = vunpack.c.h.b16 %v1430
    %v5559 = vunpack.c.l.b16 %v1431
    %v5560 = vunpack.c.h.b16 %v1431
    %v5561 = vunpack.c.l.b16 %v1432
    %v5562 = vunpack.c.h.b16 %v1432
    %v5563 = vunpack.c.l.b16 %v1433
    %v5564 = vunpack.c.h.b16 %v1433
    %v5565 = vunpack.c.l.b16 %v1434
    %v5566 = vunpack.c.h.b16 %v1434
    %v5567 = vunpack.c.l.b16 %v1435
    %v5568 = vunpack.c.h.b16 %v1435
    %v5569 = vunpack.c.l.b16 %v1436
    %v5570 = vunpack.c.h.b16 %v1436
    %v5571 = vunpack.c.l.b16 %v1437
    %v5572 = vunpack.c.h.b16 %v1437
    %v5573 = vunpack.c.l.b16 %v1438
    %v5574 = vunpack.c.h.b16 %v1438
    %v5575 = vunpack.c.l.b16 %v1439
    %v5576 = vunpack.c.h.b16 %v1439
    %v5577 = vunpack.c.l.b16 %v1440
    %v5578 = vunpack.c.h.b16 %v1440
    %v5579 = vunpack.c.l.b16 %v1441
    %v5580 = vunpack.c.h.b16 %v1441
    %v5581 = vunpack.c.l.b16 %v1442
    %v5582 = vunpack.c.h.b16 %v1442
    %v5583 = vunpack.c.l.b16 %v1443
    %v5584 = vunpack.c.l.b16 %v1444
    %v5585 = vunpack.c.h.b16 %v1444
    %v5586 = vunpack.c.l.b16 %v1445
    %v5587 = vunpack.c.h.b16 %v1445
    %v5588 = vunpack.c.l.b16 %v1446
    %v5589 = vunpack.c.h.b16 %v1446
    %v5590 = vunpack.c.l.b16 %v1447
    %v5591 = vunpack.c.h.b16 %v1447
    %v5592 = vunpack.c.l.b16 %v1448
    %v5593 = vunpack.c.h.b16 %v1448
    %v5594 = vunpack.c.l.b16 %v1449
    %v5595 = vunpack.c.h.b16 %v1449
    %v5596 = vunpack.c.l.b16 %v1450
    %v5597 = vunpack.c.h.b16 %v1450
    %v5598 = vunpack.c.l.b16 %v1451
    %v5599 = vunpack.c.h.b16 %v1451
    %v5600 = vunpack.c.l.b16 %v1452
    %v5601 = vunpack.c.h.b16 %v1452
    %v5602 = vunpack.c.l.b16 %v1453
    %v5603 = vunpack.c.h.b16 %v1453
    %v5604 = vunpack.c.l.b16 %v1454
    %v5605 = vunpack.c.h.b16 %v1454
    %v5606 = vunpack.c.l.b16 %v1455
    %v5607 = vunpack.c.h.b16 %v1455
    %v5608 = vunpack.c.l.b16 %v1456
    %v5609 = vunpack.c.h.b16 %v1456
    %v5610 = vunpack.c.l.b16 %v1457
    %v5611 = vunpack.c.h.b16 %v1457
    %v5612 = vunpack.c.l.b16 %v1458
    %v5613 = vunpack.c.l.b16 %v1459
    %v5614 = vunpack.c.h.b16 %v1459
    %v5615 = vunpack.c.l.b16 %v1460
    %v5616 = vunpack.c.h.b16 %v1460
    %v5617 = vunpack.c.l.b16 %v1461
    %v5618 = vunpack.c.h.b16 %v1461
    %v5619 = vunpack.c.l.b16 %v1462
    %v5620 = vunpack.c.h.b16 %v1462
    %v5621 = vunpack.c.l.b16 %v1463
    %v5622 = vunpack.c.h.b16 %v1463
    %v5623 = vunpack.c.l.b16 %v1464
    %v5624 = vunpack.c.h.b16 %v1464
    %v5625 = vunpack.c.l.b16 %v1465
    %v5626 = vunpack.c.h.b16 %v1465
    %v5627 = vunpack.c.l.b16 %v1466
    %v5628 = vunpack.c.h.b16 %v1466
    %v5629 = vunpack.c.l.b16 %v1467
    %v5630 = vunpack.c.h.b16 %v1467
    %v5631 = vunpack.c.l.b16 %v1468
    %v5632 = vunpack.c.h.b16 %v1468
    %v5633 = vunpack.c.l.b16 %v1469
    %v5634 = vunpack.c.h.b16 %v1469
    %v5635 = vunpack.c.l.b16 %v1470
    %v5636 = vunpack.c.h.b16 %v1470
    %v5637 = vunpack.c.l.b16 %v1471
    %v5638 = vunpack.c.h.b16 %v1471
    %v5639 = vunpack.c.l.b16 %v1472
    %v5640 = vunpack.c.h.b16 %v1472
    %v5641 = vunpack.c.l.b16 %v1473
    %v5642 = vunpack.c.l.b16 %v1474
    %v5643 = vunpack.c.h.b16 %v1474
    %v5644 = vunpack.c.l.b16 %v1475
    %v5645 = vunpack.c.h.b16 %v1475
    %v5646 = vunpack.c.l.b16 %v1476
    %v5647 = vunpack.c.h.b16 %v1476
    %v5648 = vunpack.c.l.b16 %v1477
    %v5649 = vunpack.c.h.b16 %v1477
    %v5650 = vunpack.c.l.b16 %v1478
    %v5651 = vunpack.c.h.b16 %v1478
    %v5652 = vunpack.c.l.b16 %v1479
    %v5653 = vunpack.c.h.b16 %v1479
    %v5654 = vunpack.c.l.b16 %v1480
    %v5655 = vunpack.c.h.b16 %v1480
    %v5656 = vunpack.c.l.b16 %v1481
    %v5657 = vunpack.c.h.b16 %v1481
    %v5658 = vunpack.c.l.b16 %v1482
    %v5659 = vunpack.c.h.b16 %v1482
    %v5660 = vunpack.c.l.b16 %v1483
    %v5661 = vunpack.c.h.b16 %v1483
    %v5662 = vunpack.c.l.b16 %v1484
    %v5663 = vunpack.c.h.b16 %v1484
    %v5664 = vunpack.c.l.b16 %v1485
    %v5665 = vunpack.c.h.b16 %v1485
    %v5666 = vunpack.c.l.b16 %v1486
    %v5667 = vunpack.c.h.b16 %v1486
    %v5668 = vunpack.c.l.b16 %v1487
    %v5669 = vunpack.c.h.b16 %v1487
    %v5670 = vunpack.c.l.b16 %v1488
    %v5671 = vunpack.c.l.b16 %v1489
    %v5672 = vunpack.c.h.b16 %v1489
    %v5673 = vunpack.c.l.b16 %v1490
    %v5674 = vunpack.c.h.b16 %v1490
    %v5675 = vunpack.c.l.b16 %v1491
    %v5676 = vunpack.c.h.b16 %v1491
    %v5677 = vunpack.c.l.b16 %v1492
    %v5678 = vunpack.c.h.b16 %v1492
    %v5679 = vunpack.c.l.b16 %v1493
    %v5680 = vunpack.c.h.b16 %v1493
    %v5681 = vunpack.c.l.b16 %v1494
    %v5682 = vunpack.c.h.b16 %v1494
    %v5683 = vunpack.c.l.b16 %v1495
    %v5684 = vunpack.c.h.b16 %v1495
    %v5685 = vunpack.c.l.b16 %v1496
    %v5686 = vunpack.c.h.b16 %v1496
    %v5687 = vunpack.c.l.b16 %v1497
    %v5688 = vunpack.c.h.b16 %v1497
    %v5689 = vunpack.c.l.b16 %v1498
    %v5690 = vunpack.c.h.b16 %v1498
    %v5691 = vunpack.c.l.b16 %v1499
    %v5692 = vunpack.c.h.b16 %v1499
    %v5693 = vunpack.c.l.b16 %v1500
    %v5694 = vunpack.c.h.b16 %v1500
    %v5695 = vunpack.c.l.b16 %v1501
    %v5696 = vunpack.c.h.b16 %v1501
    %v5697 = vunpack.c.l.b16 %v1502
    %v5698 = vunpack.c.h.b16 %v1502
    %v5699 = vunpack.c.l.b16 %v1503
    %v5700 = vunpack.c.l.b16 %v1504
    %v5701 = vunpack.c.h.b16 %v1504
    %v5702 = vunpack.c.l.b16 %v1505
    %v5703 = vunpack.c.h.b16 %v1505
    %v5704 = vunpack.c.l.b16 %v1506
    %v5705 = vunpack.c.h.b16 %v1506
    %v5706 = vunpack.c.l.b16 %v1507
    %v5707 = vunpack.c.h.b16 %v1507
    %v5708 = vunpack.c.l.b16 %v1508
    %v5709 = vunpack.c.h.b16 %v1508
    %v5710 = vunpack.c.l.b16 %v1509
    %v5711 = vunpack.c.h.b16 %v1509
    %v5712 = vunpack.c.l.b16 %v1510
    %v5713 = vunpack.c.h.b16 %v1510
    %v5714 = vunpack.c.l.b16 %v1511
    %v5715 = vunpack.c.h.b16 %v1511
    %v5716 = vunpack.c.l.b16 %v1512
    %v5717 = vunpack.c.h.b16 %v1512
    %v5718 = vunpack.c.l.b16 %v1513
    %v5719 = vunpack.c.h.b16 %v1513
    %v5720 = vunpack.c.l.b16 %v1514
    %v5721 = vunpack.c.h.b16 %v1514
    %v5722 = vunpack.c.l.b16 %v1515
    %v5723 = vunpack.c.h.b16 %v1515
    %v5724 = vunpack.c.l.b16 %v1516
    %v5725 = vunpack.c.h.b16 %v1516
    %v5726 = vunpack.c.l.b16 %v1517
    %v5727 = vunpack.c.h.b16 %v1517
    %v5728 = vunpack.c.l.b16 %v1518
    %v5729 = vunpack.c.l.b16 %v1519
    %v5730 = vunpack.c.h.b16 %v1519
    %v5731 = vunpack.c.l.b16 %v1520
    %v5732 = vunpack.c.h.b16 %v1520
    %v5733 = vunpack.c.l.b16 %v1521
    %v5734 = vunpack.c.h.b16 %v1521
    %v5735 = vunpack.c.l.b16 %v1522
    %v5736 = vunpack.c.h.b16 %v1522
    %v5737 = vunpack.c.l.b16 %v1523
    %v5738 = vunpack.c.h.b16 %v1523
    %v5739 = vunpack.c.l.b16 %v1524
    %v5740 = vunpack.c.h.b16 %v1524
    %v5741 = vunpack.c.l.b16 %v1525
    %v5742 = vunpack.c.h.b16 %v1525
    %v5743 = vunpack.c.l.b16 %v1526
    %v5744 = vunpack.c.h.b16 %v1526
    %v5745 = vunpack.c.l.b16 %v1527
    %v5746 = vunpack.c.h.b16 %v1527
    %v5747 = vunpack.c.l.b16 %v1528
    %v5748 = vunpack.c.h.b16 %v1528
    %v5749 = vunpack.c.l.b16 %v1529
    %v5750 = vunpack.c.h.b16 %v1529
    %v5751 = vunpack.c.l.b16 %v1530
    %v5752 = vunpack.c.h.b16 %v1530
    %v5753 = vunpack.c.l.b16 %v1531
    %v5754 = vunpack.c.h.b16 %v1531
    %v5755 = vunpack.c.l.b16 %v1532
    %v5756 = vunpack.c.h.b16 %v1532
    %v5757 = vunpack.c.l.b16 %v1533
    %v5758 = vpack.c.b16 %v3003, %v2974
    %v5759 = vpack.c.b16 %v3004, %v2975
    %v5760 = vpack.c.b16 %v3005, %v2976
    %v5761 = vpack.c.b16 %v3006, %v2977
    %v5762 = vpack.c.b16 %v3007, %v2978
    %v5763 = vpack.c.b16 %v3008, %v2979
    %v5764 = vpack.c.b16 %v3009, %v2980
    %v5765 = vpack.c.b16 %v3010, %v2981
    %v5766 = vpack.c.b16 %v3011, %v2982
    %v5767 = vpack.c.b16 %v3012, %v2983
    %v5768 = vpack.c.b16 %v3013, %v2984
    %v5769 = vpack.c.b16 %v3014, %v2985
    %v5770 = vpack.c.b16 %v3015, %v2986
    %v5771 = vpack.c.b16 %v3016, %v2987
    %v5772 = vpack.c.b16 %v3017, %v2988
    %v5773 = vpack.c.b16 %v3018, %v2989
    %v5774 = vpack.c.b16 %v3019, %v2990
    %v5775 = vpack.c.b16 %v3020, %v2991
    %v5776 = vpack.c.b16 %v3021, %v2992
    %v5777 = vpack.c.b16 %v3022, %v2993
    %v5778 = vpack.c.b16 %v3023, %v2994
    %v5779 = vpack.c.b16 %v3024, %v2995
    %v5780 = vpack.c.b16 %v3025, %v2996
    %v5781 = vpack.c.b16 %v3026, %v2997
    %v5782 = vpack.c.b16 %v3027, %v2998
    %v5783 = vpack.c.b16 %v3028, %v2999
    %v5784 = vpack.c.b16 %v3029, %v3000
    %v5785 = vpack.c.b16 %v3030, %v3001
    %v5786 = vpack.c.b16 %v3031, %v3002
    %v5787 = vpack.c.b16 %v3061, %v3032
    %v5788 = vpack.c.b16 %v3062, %v3033
    %v5789 = vpack.c.b16 %v3063, %v3034
    %v5790 = vpack.c.b16 %v3064, %v3035
    %v5791 = vpack.c.b16 %v3065, %v3036
    %v5792 = vpack.c.b16 %v3066, %v3037
    %v5793 = vpack.c.b16 %v3067, %v3038
    %v5794 = vpack.c.b16 %v3068, %v3039
    %v5795 = vpack.c.b16 %v3069, %v3040
    %v5796 = vpack.c.b16 %v3070, %v3041
    %v5797 = vpack.c.b16 %v3071, %v3042
    %v5798 = vpack.c.b16 %v3072, %v3043
    %v5799 = vpack.c.b16 %v3073, %v3044
    %v5800 = vpack.c.b16 %v3074, %v3045
    %v5801 = vpack.c.b16 %v3075, %v3046
    %v5802 = vpack.c.b16 %v3076, %v3047
    %v5803 = vpack.c.b16 %v3077, %v3048
    %v5804 = vpack.c.b16 %v3078, %v3049
    %v5805 = vpack.c.b16 %v3079, %v3050
    %v5806 = vpack.c.b16 %v3080, %v3051
    %v5807 = vpack.c.b16 %v3081, %v3052
    %v5808 = vpack.c.b16 %v3082, %v3053
    %v5809 = vpack.c.b16 %v3083, %v3054
    %v5810 = vpack.c.b16 %v3084, %v3055
    %v5811 = vpack.c.b16 %v3085, %v3056
    %v5812 = vpack.c.b16 %v3086, %v3057
    %v5813 = vpack.c.b16 %v3087, %v3058
    %v5814 = vpack.c.b16 %v3088, %v3059
    %v5815 = vpack.c.b16 %v3089, %v3060
    %v5816 = vpack.c.b16 %v3119, %v3090
    %v5817 = vpack.c.b16 %v3120, %v3091
    %v5818 = vpack.c.b16 %v3121, %v3092
    %v5819 = vpack.c.b16 %v3122, %v3093
    %v5820 = vpack.c.b16 %v3123, %v3094
    %v5821 = vpack.c.b16 %v3124, %v3095
    %v5822 = vpack.c.b16 %v3125, %v3096
    %v5823 = vpack.c.b16 %v3126, %v3097
    %v5824 = vpack.c.b16 %v3127, %v3098
    %v5825 = vpack.c.b16 %v3128, %v3099
    %v5826 = vpack.c.b16 %v3129, %v3100
    %v5827 = vpack.c.b16 %v3130, %v3101
    %v5828 = vpack.c.b16 %v3131, %v3102
    %v5829 = vpack.c.b16 %v3132, %v3103
    %v5830 = vpack.c.b16 %v3133, %v3104
    %v5831 = vpack.c.b16 %v3134, %v3105
    %v5832 = vpack.c.b16 %v3135, %v3106
    %v5833 = vpack.c.b16 %v3136, %v3107
    %v5834 = vpack.c.b16 %v3137, %v3108
    %v5835 = vpack.c.b16 %v3138, %v3109
    %v5836 = vpack.c.b16 %v3139, %v3110
    %v5837 = vpack.c.b16 %v3140, %v3111
    %v5838 = vpack.c.b16 %v3141, %v3112
    %v5839 = vpack.c.b16 %v3142, %v3113
    %v5840 = vpack.c.b16 %v3143, %v3114
    %v5841 = vpack.c.b16 %v3144, %v3115
    %v5842 = vpack.c.b16 %v3145, %v3116
    %v5843 = vpack.c.b16 %v3146, %v3117
    %v5844 = vpack.c.b16 %v3147, %v3118
    %v5845 = vpack.c.b16 %v3177, %v3148
    %v5846 = vpack.c.b16 %v3178, %v3149
    %v5847 = vpack.c.b16 %v3179, %v3150
    %v5848 = vpack.c.b16 %v3180, %v3151
    %v5849 = vpack.c.b16 %v3181, %v3152
    %v5850 = vpack.c.b16 %v3182, %v3153
    %v5851 = vpack.c.b16 %v3183, %v3154
    %v5852 = vpack.c.b16 %v3184, %v3155
    %v5853 = vpack.c.b16 %v3185, %v3156
    %v5854 = vpack.c.b16 %v3186, %v3157
    %v5855 = vpack.c.b16 %v3187, %v3158
    %v5856 = vpack.c.b16 %v3188, %v3159
    %v5857 = vpack.c.b16 %v3189, %v3160
    %v5858 = vpack.c.b16 %v3190, %v3161
    %v5859 = vpack.c.b16 %v3191, %v3162
    %v5860 = vpack.c.b16 %v3192, %v3163
    %v5861 = vpack.c.b16 %v3193, %v3164
    %v5862 = vpack.c.b16 %v3194, %v3165
    %v5863 = vpack.c.b16 %v3195, %v3166
    %v5864 = vpack.c.b16 %v3196, %v3167
    %v5865 = vpack.c.b16 %v3197, %v3168
    %v5866 = vpack.c.b16 %v3198, %v3169
    %v5867 = vpack.c.b16 %v3199, %v3170
    %v5868 = vpack.c.b16 %v3200, %v3171
    %v5869 = vpack.c.b16 %v3201, %v3172
    %v5870 = vpack.c.b16 %v3202, %v3173
    %v5871 = vpack.c.b16 %v3203, %v3174
    %v5872 = vpack.c.b16 %v3204, %v3175
    %v5873 = vpack.c.b16 %v3205, %v3176
    %v5874 = vpack.c.b16 %v3235, %v3206
    %v5875 = vpack.c.b16 %v3236, %v3207
    %v5876 = vpack.c.b16 %v3237, %v3208
    %v5877 = vpack.c.b16 %v3238, %v3209
    %v5878 = vpack.c.b16 %v3239, %v3210
    %v5879 = vpack.c.b16 %v3240, %v3211
    %v5880 = vpack.c.b16 %v3241, %v3212
    %v5881 = vpack.c.b16 %v3242, %v3213
    %v5882 = vpack.c.b16 %v3243, %v3214
    %v5883 = vpack.c.b16 %v3244, %v3215
    %v5884 = vpack.c.b16 %v3245, %v3216
    %v5885 = vpack.c.b16 %v3246, %v3217
    %v5886 = vpack.c.b16 %v3247, %v3218
    %v5887 = vpack.c.b16 %v3248, %v3219
    %v5888 = vpack.c.b16 %v3249, %v3220
    %v5889 = vpack.c.b16 %v3250, %v3221
    %v5890 = vpack.c.b16 %v3251, %v3222
    %v5891 = vpack.c.b16 %v3252, %v3223
    %v5892 = vpack.c.b16 %v3253, %v3224
    %v5893 = vpack.c.b16 %v3254, %v3225
    %v5894 = vpack.c.b16 %v3255, %v3226
    %v5895 = vpack.c.b16 %v3256, %v3227
    %v5896 = vpack.c.b16 %v3257, %v3228
    %v5897 = vpack.c.b16 %v3258, %v3229
    %v5898 = vpack.c.b16 %v3259, %v3230
    %v5899 = vpack.c.b16 %v3260, %v3231
    %v5900 = vpack.c.b16 %v3261, %v3232
    %v5901 = vpack.c.b16 %v3262, %v3233
    %v5902 = vpack.c.b16 %v3263, %v3234
    %v5903 = vpack.c.b16 %v3293, %v3264
    %v5904 = vpack.c.b16 %v3294, %v3265
    %v5905 = vpack.c.b16 %v3295, %v3266
    %v5906 = vpack.c.b16 %v3296, %v3267
    %v5907 = vpack.c.b16 %v3297, %v3268
    %v5908 = vpack.c.b16 %v3298, %v3269
    %v5909 = vpack.c.b16 %v3299, %v3270
    %v5910 = vpack.c.b16 %v3300, %v3271
    %v5911 = vpack.c.b16 %v3301, %v3272
    %v5912 = vpack.c.b16 %v3302, %v3273
    %v5913 = vpack.c.b16 %v3303, %v3274
    %v5914 = vpack.c.b16 %v3304, %v3275
    %v5915 = vpack.c.b16 %v3305, %v3276
    %v5916 = vpack.c.b16 %v3306, %v3277
    %v5917 = vpack.c.b16 %v3307, %v3278
    %v5918 = vpack.c.b16 %v3308, %v3279
    %v5919 = vpack.c.b16 %v3309, %v3280
    %v5920 = vpack.c.b16 %v3310, %v3281
    %v5921 = vpack.c.b16 %v3311, %v3282
    %v5922 = vpack.c.b16 %v3312, %v3283
    %v5923 = vpack.c.b16 %v3313, %v3284
    %v5924 = vpack.c.b16 %v3314, %v3285
    %v5925 = vpack.c.b16 %v3315, %v3286
    %v5926 = vpack.c.b16 %v3316, %v3287
    %v5927 = vpack.c.b16 %v3317, %v3288
    %v5928 = vpack.c.b16 %v3318, %v3289
    %v5929 = vpack.c.b16 %v3319, %v3290
    %v5930 = vpack.c.b16 %v3320, %v3291
    %v5931 = vpack.c.b16 %v3321, %v3292
    %v5932 = vpack.c.b16 %v3351, %v3322
    %v5933 = vpack.c.b16 %v3352, %v3323
    %v5934 = vpack.c.b16 %v3353, %v3324
    %v5935 = vpack.c.b16 %v3354, %v3325
    %v5936 = vpack.c.b16 %v3355, %v3326
    %v5937 = vpack.c.b16 %v3356, %v3327
    %v5938 = vpack.c.b16 %v3357, %v3328
    %v5939 = vpack.c.b16 %v3358, %v3329
    %v5940 = vpack.c.b16 %v3359, %v3330
    %v5941 = vpack.c.b16 %v3360, %v3331
    %v5942 = vpack.c.b16 %v3361, %v3332
    %v5943 = vpack.c.b16 %v3362, %v3333
    %v5944 = vpack.c.b16 %v3363, %v3334
    %v5945 = vpack.c.b16 %v3364, %v3335
    %v5946 = vpack.c.b16 %v3365, %v3336
    %v5947 = vpack.c.b16 %v3366, %v3337
    %v5948 = vpack.c.b16 %v3367, %v3338
    %v5949 = vpack.c.b16 %v3368, %v3339
    %v5950 = vpack.c.b16 %v3369, %v3340
    %v5951 = vpack.c.b16 %v3370, %v3341
    %v5952 = vpack.c.b16 %v3371, %v3342
    %v5953 = vpack.c.b16 %v3372, %v3343
    %v5954 = vpack.c.b16 %v3373, %v3344
    %v5955 = vpack.c.b16 %v3374, %v3345
    %v5956 = vpack.c.b16 %v3375, %v3346
    %v5957 = vpack.c.b16 %v3376, %v3347
    %v5958 = vpack.c.b16 %v3377, %v3348
    %v5959 = vpack.c.b16 %v3378, %v3349
    %v5960 = vpack.c.b16 %v3379, %v3350
    %v5961 = vpack.c.b16 %v3409, %v3380
    %v5962 = vpack.c.b16 %v3410, %v3381
    %v5963 = vpack.c.b16 %v3411, %v3382
    %v5964 = vpack.c.b16 %v3412, %v3383
    %v5965 = vpack.c.b16 %v3413, %v3384
    %v5966 = vpack.c.b16 %v3414, %v3385
    %v5967 = vpack.c.b16 %v3415, %v3386
    %v5968 = vpack.c.b16 %v3416, %v3387
    %v5969 = vpack.c.b16 %v3417, %v3388
    %v5970 = vpack.c.b16 %v3418, %v3389
    %v5971 = vpack.c.b16 %v3419, %v3390
    %v5972 = vpack.c.b16 %v3420, %v3391
    %v5973 = vpack.c.b16 %v3421, %v3392
    %v5974 = vpack.c.b16 %v3422, %v3393
    %v5975 = vpack.c.b16 %v3423, %v3394
    %v5976 = vpack.c.b16 %v3424, %v3395
    %v5977 = vpack.c.b16 %v3425, %v3396
    %v5978 = vpack.c.b16 %v3426, %v3397
    %v5979 = vpack.c.b16 %v3427, %v3398
    %v5980 = vpack.c.b16 %v3428, %v3399
    %v5981 = vpack.c.b16 %v3429, %v3400
    %v5982 = vpack.c.b16 %v3430, %v3401
    %v5983 = vpack.c.b16 %v3431, %v3402
    %v5984 = vpack.c.b16 %v3432, %v3403
    %v5985 = vpack.c.b16 %v3433, %v3404
    %v5986 = vpack.c.b16 %v3434, %v3405
    %v5987 = vpack.c.b16 %v3435, %v3406
    %v5988 = vpack.c.b16 %v3436, %v3407
    %v5989 = vpack.c.b16 %v3437, %v3408
    %v5990 = vpack.c.b16 %v3467, %v3438
    %v5991 = vpack.c.b16 %v3468, %v3439
    %v5992 = vpack.c.b16 %v3469, %v3440
    %v5993 = vpack.c.b16 %v3470, %v3441
    %v5994 = vpack.c.b16 %v3471, %v3442
    %v5995 = vpack.c.b16 %v3472, %v3443
    %v5996 = vpack.c.b16 %v3473, %v3444
    %v5997 = vpack.c.b16 %v3474, %v3445
    %v5998 = vpack.c.b16 %v3475, %v3446
    %v5999 = vpack.c.b16 %v3476, %v3447
    %v6000 = vpack.c.b16 %v3477, %v3448
    %v6001 = vpack.c.b16 %v3478, %v3449
    %v6002 = vpack.c.b16 %v3479, %v3450
    %v6003 = vpack.c.b16 %v3480, %v3451
    %v6004 = vpack.c.b16 %v3481, %v3452
    %v6005 = vpack.c.b16 %v3482, %v3453
    %v6006 = vpack.c.b16 %v3483, %v3454
    %v6007 = vpack.c.b16 %v3484, %v3455
    %v6008 = vpack.c.b16 %v3485, %v3456
    %v6009 = vpack.c.b16 %v3486, %v3457
    %v6010 = vpack.c.b16 %v3487, %v3458
    %v6011 = vpack.c.b16 %v3488, %v3459
    %v6012 = vpack.c.b16 %v3489, %v3460
    %v6013 = vpack.c.b16 %v3490, %v3461
    %v6014 = vpack.c.b16 %v3491, %v3462
    %v6015 = vpack.c.b16 %v3492, %v3463
    %v6016 = vpack.c.b16 %v3493, %v3464
    %v6017 = vpack.c.b16 %v3494, %v3465
    %v6018 = vpack.c.b16 %v3495, %v3466
    %v6019 = vpack.c.b16 %v3525, %v3496
    %v6020 = vpack.c.b16 %v3526, %v3497
    %v6021 = vpack.c.b16 %v3527, %v3498
    %v6022 = vpack.c.b16 %v3528, %v3499
    %v6023 = vpack.c.b16 %v3529, %v3500
    %v6024 = vpack.c.b16 %v3530, %v3501
    %v6025 = vpack.c.b16 %v3531, %v3502
    %v6026 = vpack.c.b16 %v3532, %v3503
    %v6027 = vpack.c.b16 %v3533, %v3504
    %v6028 = vpack.c.b16 %v3534, %v3505
    %v6029 = vpack.c.b16 %v3535, %v3506
    %v6030 = vpack.c.b16 %v3536, %v3507
    %v6031 = vpack.c.b16 %v3537, %v3508
    %v6032 = vpack.c.b16 %v3538, %v3509
    %v6033 = vpack.c.b16 %v3539, %v3510
    %v6034 = vpack.c.b16 %v3540, %v3511
    %v6035 = vpack.c.b16 %v3541, %v3512
    %v6036 = vpack.c.b16 %v3542, %v3513
    %v6037 = vpack.c.b16 %v3543, %v3514
    %v6038 = vpack.c.b16 %v3544, %v3515
    %v6039 = vpack.c.b16 %v3545, %v3516
    %v6040 = vpack.c.b16 %v3546, %v3517
    %v6041 = vpack.c.b16 %v3547, %v3518
    %v6042 = vpack.c.b16 %v3548, %v3519
    %v6043 = vpack.c.b16 %v3549, %v3520
    %v6044 = vpack.c.b16 %v3550, %v3521
    %v6045 = vpack.c.b16 %v3551, %v3522
    %v6046 = vpack.c.b16 %v3552, %v3523
    %v6047 = vpack.c.b16 %v3553, %v3524
    %v6048 = vpack.c.b16 %v3583, %v3554
    %v6049 = vpack.c.b16 %v3584, %v3555
    %v6050 = vpack.c.b16 %v3585, %v3556
    %v6051 = vpack.c.b16 %v3586, %v3557
    %v6052 = vpack.c.b16 %v3587, %v3558
    %v6053 = vpack.c.b16 %v3588, %v3559
    %v6054 = vpack.c.b16 %v3589, %v3560
    %v6055 = vpack.c.b16 %v3590, %v3561
    %v6056 = vpack.c.b16 %v3591, %v3562
    %v6057 = vpack.c.b16 %v3592, %v3563
    %v6058 = vpack.c.b16 %v3593, %v3564
    %v6059 = vpack.c.b16 %v3594, %v3565
    %v6060 = vpack.c.b16 %v3595, %v3566
    %v6061 = vpack.c.b16 %v3596, %v3567
    %v6062 = vpack.c.b16 %v3597, %v3568
    %v6063 = vpack.c.b16 %v3598, %v3569
    %v6064 = vpack.c.b16 %v3599, %v3570
    %v6065 = vpack.c.b16 %v3600, %v3571
    %v6066 = vpack.c.b16 %v3601, %v3572
    %v6067 = vpack.c.b16 %v3602, %v3573
    %v6068 = vpack.c.b16 %v3603, %v3574
    %v6069 = vpack.c.b16 %v3604, %v3575
    %v6070 = vpack.c.b16 %v3605, %v3576
    %v6071 = vpack.c.b16 %v3606, %v3577
    %v6072 = vpack.c.b16 %v3607, %v3578
    %v6073 = vpack.c.b16 %v3608, %v3579
    %v6074 = vpack.c.b16 %v3609, %v3580
    %v6075 = vpack.c.b16 %v3610, %v3581
    %v6076 = vpack.c.b16 %v3611, %v3582
    %v6077 = vpack.c.b16 %v3641, %v3612
    %v6078 = vpack.c.b16 %v3642, %v3613
    %v6079 = vpack.c.b16 %v3643, %v3614
    %v6080 = vpack.c.b16 %v3644, %v3615
    %v6081 = vpack.c.b16 %v3645, %v3616
    %v6082 = vpack.c.b16 %v3646, %v3617
    %v6083 = vpack.c.b16 %v3647, %v3618
    %v6084 = vpack.c.b16 %v3648, %v3619
    %v6085 = vpack.c.b16 %v3649, %v3620
    %v6086 = vpack.c.b16 %v3650, %v3621
    %v6087 = vpack.c.b16 %v3651, %v3622
    %v6088 = vpack.c.b16 %v3652, %v3623
    %v6089 = vpack.c.b16 %v3653, %v3624
    %v6090 = vpack.c.b16 %v3654, %v3625
    %v6091 = vpack.c.b16 %v3655, %v3626
    %v6092 = vpack.c.b16 %v3656, %v3627
    %v6093 = vpack.c.b16 %v3657, %v3628
    %v6094 = vpack.c.b16 %v3658, %v3629
    %v6095 = vpack.c.b16 %v3659, %v3630
    %v6096 = vpack.c.b16 %v3660, %v3631
    %v6097 = vpack.c.b16 %v3661, %v3632
    %v6098 = vpack.c.b16 %v3662, %v3633
    %v6099 = vpack.c.b16 %v3663, %v3634
    %v6100 = vpack.c.b16 %v3664, %v3635
    %v6101 = vpack.c.b16 %v3665, %v3636
    %v6102 = vpack.c.b16 %v3666, %v3637
    %v6103 = vpack.c.b16 %v3667, %v3638
    %v6104 = vpack.c.b16 %v3668, %v3639
    %v6105 = vpack.c.b16 %v3669, %v3640
    %v6106 = vpack.c.b16 %v3699, %v3670
    %v6107 = vpack.c.b16 %v3700, %v3671
    %v6108 = vpack.c.b16 %v3701, %v3672
    %v6109 = vpack.c.b16 %v3702, %v3673
    %v6110 = vpack.c.b16 %v3703, %v3674
    %v6111 = vpack.c.b16 %v3704, %v3675
    %v6112 = vpack.c.b16 %v3705, %v3676
    %v6113 = vpack.c.b16 %v3706, %v3677
    %v6114 = vpack.c.b16 %v3707, %v3678
    %v6115 = vpack.c.b16 %v3708, %v3679
    %v6116 = vpack.c.b16 %v3709, %v3680
    %v6117 = vpack.c.b16 %v3710, %v3681
    %v6118 = vpack.c.b16 %v3711, %v3682
    %v6119 = vpack.c.b16 %v3712, %v3683
    %v6120 = vpack.c.b16 %v3713, %v3684
    %v6121 = vpack.c.b16 %v3714, %v3685
    %v6122 = vpack.c.b16 %v3715, %v3686
    %v6123 = vpack.c.b16 %v3716, %v3687
    %v6124 = vpack.c.b16 %v3717, %v3688
    %v6125 = vpack.c.b16 %v3718, %v3689
    %v6126 = vpack.c.b16 %v3719, %v3690
    %v6127 = vpack.c.b16 %v3720, %v3691
    %v6128 = vpack.c.b16 %v3721, %v3692
    %v6129 = vpack.c.b16 %v3722, %v3693
    %v6130 = vpack.c.b16 %v3723, %v3694
    %v6131 = vpack.c.b16 %v3724, %v3695
    %v6132 = vpack.c.b16 %v3725, %v3696
    %v6133 = vpack.c.b16 %v3726, %v3697
    %v6134 = vpack.c.b16 %v3727, %v3698
    %v6135 = vpack.c.b16 %v3757, %v3728
    %v6136 = vpack.c.b16 %v3758, %v3729
    %v6137 = vpack.c.b16 %v3759, %v3730
    %v6138 = vpack.c.b16 %v3760, %v3731
    %v6139 = vpack.c.b16 %v3761, %v3732
    %v6140 = vpack.c.b16 %v3762, %v3733
    %v6141 = vpack.c.b16 %v3763, %v3734
    %v6142 = vpack.c.b16 %v3764, %v3735
    %v6143 = vpack.c.b16 %v3765, %v3736
    %v6144 = vpack.c.b16 %v3766, %v3737
    %v6145 = vpack.c.b16 %v3767, %v3738
    %v6146 = vpack.c.b16 %v3768, %v3739
    %v6147 = vpack.c.b16 %v3769, %v3740
    %v6148 = vpack.c.b16 %v3770, %v3741
    %v6149 = vpack.c.b16 %v3771, %v3742
    %v6150 = vpack.c.b16 %v3772, %v3743
    %v6151 = vpack.c.b16 %v3773, %v3744
    %v6152 = vpack.c.b16 %v3774, %v3745
    %v6153 = vpack.c.b16 %v3775, %v3746
    %v6154 = vpack.c.b16 %v3776, %v3747
    %v6155 = vpack.c.b16 %v3777, %v3748
    %v6156 = vpack.c.b16 %v3778, %v3749
    %v6157 = vpack.c.b16 %v3779, %v3750
    %v6158 = vpack.c.b16 %v3780, %v3751
    %v6159 = vpack.c.b16 %v3781, %v3752
    %v6160 = vpack.c.b16 %v3782, %v3753
    %v6161 = vpack.c.b16 %v3783, %v3754
    %v6162 = vpack.c.b16 %v3784, %v3755
    %v6163 = vpack.c.b16 %v3785, %v3756
    %v6164 = vpack.c.b16 %v3815, %v3786
    %v6165 = vpack.c.b16 %v3816, %v3787
    %v6166 = vpack.c.b16 %v3817, %v3788
    %v6167 = vpack.c.b16 %v3818, %v3789
    %v6168 = vpack.c.b16 %v3819, %v3790
    %v6169 = vpack.c.b16 %v3820, %v3791
    %v6170 = vpack.c.b16 %v3821, %v3792
    %v6171 = vpack.c.b16 %v3822, %v3793
    %v6172 = vpack.c.b16 %v3823, %v3794
    %v6173 = vpack.c.b16 %v3824, %v3795
    %v6174 = vpack.c.b16 %v3825, %v3796
    %v6175 = vpack.c.b16 %v3826, %v3797
    %v6176 = vpack.c.b16 %v3827, %v3798
    %v6177 = vpack.c.b16 %v3828, %v3799
    %v6178 = vpack.c.b16 %v3829, %v3800
    %v6179 = vpack.c.b16 %v3830, %v3801
    %v6180 = vpack.c.b16 %v3831, %v3802
    %v6181 = vpack.c.b16 %v3832, %v3803
    %v6182 = vpack.c.b16 %v3833, %v3804
    %v6183 = vpack.c.b16 %v3834, %v3805
    %v6184 = vpack.c.b16 %v3835, %v3806
    %v6185 = vpack.c.b16 %v3836, %v3807
    %v6186 = vpack.c.b16 %v3837, %v3808
    %v6187 = vpack.c.b16 %v3838, %v3809
    %v6188 = vpack.c.b16 %v3839, %v3810
    %v6189 = vpack.c.b16 %v3840, %v3811
    %v6190 = vpack.c.b16 %v3841, %v3812
    %v6191 = vpack.c.b16 %v3842, %v3813
    %v6192 = vpack.c.b16 %v3843, %v3814
    %v6193 = vpack.c.b16 %v3873, %v3844
    %v6194 = vpack.c.b16 %v3874, %v3845
    %v6195 = vpack.c.b16 %v3875, %v3846
    %v6196 = vpack.c.b16 %v3876, %v3847
    %v6197 = vpack.c.b16 %v3877, %v3848
    %v6198 = vpack.c.b16 %v3878, %v3849
    %v6199 = vpack.c.b16 %v3879, %v3850
    %v6200 = vpack.c.b16 %v3880, %v3851
    %v6201 = vpack.c.b16 %v3881, %v3852
    %v6202 = vpack.c.b16 %v3882, %v3853
    %v6203 = vpack.c.b16 %v3883, %v3854
    %v6204 = vpack.c.b16 %v3884, %v3855
    %v6205 = vpack.c.b16 %v3885, %v3856
    %v6206 = vpack.c.b16 %v3886, %v3857
    %v6207 = vpack.c.b16 %v3887, %v3858
    %v6208 = vpack.c.b16 %v3888, %v3859
    %v6209 = vpack.c.b16 %v3889, %v3860
    %v6210 = vpack.c.b16 %v3890, %v3861
    %v6211 = vpack.c.b16 %v3891, %v3862
    %v6212 = vpack.c.b16 %v3892, %v3863
    %v6213 = vpack.c.b16 %v3893, %v3864
    %v6214 = vpack.c.b16 %v3894, %v3865
    %v6215 = vpack.c.b16 %v3895, %v3866
    %v6216 = vpack.c.b16 %v3896, %v3867
    %v6217 = vpack.c.b16 %v3897, %v3868
    %v6218 = vpack.c.b16 %v3898, %v3869
    %v6219 = vpack.c.b16 %v3899, %v3870
    %v6220 = vpack.c.b16 %v3900, %v3871
    %v6221 = vpack.c.b16 %v3901, %v3872
    %v6222 = vpack.c.b16 %v3931, %v3902
    %v6223 = vpack.c.b16 %v3932, %v3903
    %v6224 = vpack.c.b16 %v3933, %v3904
    %v6225 = vpack.c.b16 %v3934, %v3905
    %v6226 = vpack.c.b16 %v3935, %v3906
    %v6227 = vpack.c.b16 %v3936, %v3907
    %v6228 = vpack.c.b16 %v3937, %v3908
    %v6229 = vpack.c.b16 %v3938, %v3909
    %v6230 = vpack.c.b16 %v3939, %v3910
    %v6231 = vpack.c.b16 %v3940, %v3911
    %v6232 = vpack.c.b16 %v3941, %v3912
    %v6233 = vpack.c.b16 %v3942, %v3913
    %v6234 = vpack.c.b16 %v3943, %v3914
    %v6235 = vpack.c.b16 %v3944, %v3915
    %v6236 = vpack.c.b16 %v3945, %v3916
    %v6237 = vpack.c.b16 %v3946, %v3917
    %v6238 = vpack.c.b16 %v3947, %v3918
    %v6239 = vpack.c.b16 %v3948, %v3919
    %v6240 = vpack.c.b16 %v3949, %v3920
    %v6241 = vpack.c.b16 %v3950, %v3921
    %v6242 = vpack.c.b16 %v3951, %v3922
    %v6243 = vpack.c.b16 %v3952, %v3923
    %v6244 = vpack.c.b16 %v3953, %v3924
    %v6245 = vpack.c.b16 %v3954, %v3925
    %v6246 = vpack.c.b16 %v3955, %v3926
    %v6247 = vpack.c.b16 %v3956, %v3927
    %v6248 = vpack.c.b16 %v3957, %v3928
    %v6249 = vpack.c.b16 %v3958, %v3929
    %v6250 = vpack.c.b16 %v3959, %v3930
    %v6251 = vpack.c.b16 %v3989, %v3960
    %v6252 = vpack.c.b16 %v3990, %v3961
    %v6253 = vpack.c.b16 %v3991, %v3962
    %v6254 = vpack.c.b16 %v3992, %v3963
    %v6255 = vpack.c.b16 %v3993, %v3964
    %v6256 = vpack.c.b16 %v3994, %v3965
    %v6257 = vpack.c.b16 %v3995, %v3966
    %v6258 = vpack.c.b16 %v3996, %v3967
    %v6259 = vpack.c.b16 %v3997, %v3968
    %v6260 = vpack.c.b16 %v3998, %v3969
    %v6261 = vpack.c.b16 %v3999, %v3970
    %v6262 = vpack.c.b16 %v4000, %v3971
    %v6263 = vpack.c.b16 %v4001, %v3972
    %v6264 = vpack.c.b16 %v4002, %v3973
    %v6265 = vpack.c.b16 %v4003, %v3974
    %v6266 = vpack.c.b16 %v4004, %v3975
    %v6267 = vpack.c.b16 %v4005, %v3976
    %v6268 = vpack.c.b16 %v4006, %v3977
    %v6269 = vpack.c.b16 %v4007, %v3978
    %v6270 = vpack.c.b16 %v4008, %v3979
    %v6271 = vpack.c.b16 %v4009, %v3980
    %v6272 = vpack.c.b16 %v4010, %v3981
    %v6273 = vpack.c.b16 %v4011, %v3982
    %v6274 = vpack.c.b16 %v4012, %v3983
    %v6275 = vpack.c.b16 %v4013, %v3984
    %v6276 = vpack.c.b16 %v4014, %v3985
    %v6277 = vpack.c.b16 %v4015, %v3986
    %v6278 = vpack.c.b16 %v4016, %v3987
    %v6279 = vpack.c.b16 %v4017, %v3988
    %v6280 = vpack.c.b16 %v4047, %v4018
    %v6281 = vpack.c.b16 %v4048, %v4019
    %v6282 = vpack.c.b16 %v4049, %v4020
    %v6283 = vpack.c.b16 %v4050, %v4021
    %v6284 = vpack.c.b16 %v4051, %v4022
    %v6285 = vpack.c.b16 %v4052, %v4023
    %v6286 = vpack.c.b16 %v4053, %v4024
    %v6287 = vpack.c.b16 %v4054, %v4025
    %v6288 = vpack.c.b16 %v4055, %v4026
    %v6289 = vpack.c.b16 %v4056, %v4027
    %v6290 = vpack.c.b16 %v4057, %v4028
    %v6291 = vpack.c.b16 %v4058, %v4029
    %v6292 = vpack.c.b16 %v4059, %v4030
    %v6293 = vpack.c.b16 %v4060, %v4031
    %v6294 = vpack.c.b16 %v4061, %v4032
    %v6295 = vpack.c.b16 %v4062, %v4033
    %v6296 = vpack.c.b16 %v4063, %v4034
    %v6297 = vpack.c.b16 %v4064, %v4035
    %v6298 = vpack.c.b16 %v4065, %v4036
    %v6299 = vpack.c.b16 %v4066, %v4037
    %v6300 = vpack.c.b16 %v4067, %v4038
    %v6301 = vpack.c.b16 %v4068, %v4039
    %v6302 = vpack.c.b16 %v4069, %v4040
    %v6303 = vpack.c.b16 %v4070, %v4041
    %v6304 = vpack.c.b16 %v4071, %v4042
    %v6305 = vpack.c.b16 %v4072, %v4043
    %v6306 = vpack.c.b16 %v4073, %v4044
    %v6307 = vpack.c.b16 %v4074, %v4045
    %v6308 = vpack.c.b16 %v4075, %v4046
    %v6309 = vpack.c.b16 %v4105, %v4076
    %v6310 = vpack.c.b16 %v4106, %v4077
    %v6311 = vpack.c.b16 %v4107, %v4078
    %v6312 = vpack.c.b16 %v4108, %v4079
    %v6313 = vpack.c.b16 %v4109, %v4080
    %v6314 = vpack.c.b16 %v4110, %v4081
    %v6315 = vpack.c.b16 %v4111, %v4082
    %v6316 = vpack.c.b16 %v4112, %v4083
    %v6317 = vpack.c.b16 %v4113, %v4084
    %v6318 = vpack.c.b16 %v4114, %v4085
    %v6319 = vpack.c.b16 %v4115, %v4086
    %v6320 = vpack.c.b16 %v4116, %v4087
    %v6321 = vpack.c.b16 %v4117, %v4088
    %v6322 = vpack.c.b16 %v4118, %v4089
    %v6323 = vpack.c.b16 %v4119, %v4090
    %v6324 = vpack.c.b16 %v4120, %v4091
    %v6325 = vpack.c.b16 %v4121, %v4092
    %v6326 = vpack.c.b16 %v4122, %v4093
    %v6327 = vpack.c.b16 %v4123, %v4094
    %v6328 = vpack.c.b16 %v4124, %v4095
    %v6329 = vpack.c.b16 %v4125, %v4096
    %v6330 = vpack.c.b16 %v4126, %v4097
    %v6331 = vpack.c.b16 %v4127, %v4098
    %v6332 = vpack.c.b16 %v4128, %v4099
    %v6333 = vpack.c.b16 %v4129, %v4100
    %v6334 = vpack.c.b16 %v4130, %v4101
    %v6335 = vpack.c.b16 %v4131, %v4102
    %v6336 = vpack.c.b16 %v4132, %v4103
    %v6337 = vpack.c.b16 %v4133, %v4104
    %v6338 = vpack.c.b16 %v4163, %v4134
    %v6339 = vpack.c.b16 %v4164, %v4135
    %v6340 = vpack.c.b16 %v4165, %v4136
    %v6341 = vpack.c.b16 %v4166, %v4137
    %v6342 = vpack.c.b16 %v4167, %v4138
    %v6343 = vpack.c.b16 %v4168, %v4139
    %v6344 = vpack.c.b16 %v4169, %v4140
    %v6345 = vpack.c.b16 %v4170, %v4141
    %v6346 = vpack.c.b16 %v4171, %v4142
    %v6347 = vpack.c.b16 %v4172, %v4143
    %v6348 = vpack.c.b16 %v4173, %v4144
    %v6349 = vpack.c.b16 %v4174, %v4145
    %v6350 = vpack.c.b16 %v4175, %v4146
    %v6351 = vpack.c.b16 %v4176, %v4147
    %v6352 = vpack.c.b16 %v4177, %v4148
    %v6353 = vpack.c.b16 %v4178, %v4149
    %v6354 = vpack.c.b16 %v4179, %v4150
    %v6355 = vpack.c.b16 %v4180, %v4151
    %v6356 = vpack.c.b16 %v4181, %v4152
    %v6357 = vpack.c.b16 %v4182, %v4153
    %v6358 = vpack.c.b16 %v4183, %v4154
    %v6359 = vpack.c.b16 %v4184, %v4155
    %v6360 = vpack.c.b16 %v4185, %v4156
    %v6361 = vpack.c.b16 %v4186, %v4157
    %v6362 = vpack.c.b16 %v4187, %v4158
    %v6363 = vpack.c.b16 %v4188, %v4159
    %v6364 = vpack.c.b16 %v4189, %v4160
    %v6365 = vpack.c.b16 %v4190, %v4161
    %v6366 = vpack.c.b16 %v4191, %v4162
    %v6367 = vpack.c.b16 %v4221, %v4192
    %v6368 = vpack.c.b16 %v4222, %v4193
    %v6369 = vpack.c.b16 %v4223, %v4194
    %v6370 = vpack.c.b16 %v4224, %v4195
    %v6371 = vpack.c.b16 %v4225, %v4196
    %v6372 = vpack.c.b16 %v4226, %v4197
    %v6373 = vpack.c.b16 %v4227, %v4198
    %v6374 = vpack.c.b16 %v4228, %v4199
    %v6375 = vpack.c.b16 %v4229, %v4200
    %v6376 = vpack.c.b16 %v4230, %v4201
    %v6377 = vpack.c.b16 %v4231, %v4202
    %v6378 = vpack.c.b16 %v4232, %v4203
    %v6379 = vpack.c.b16 %v4233, %v4204
    %v6380 = vpack.c.b16 %v4234, %v4205
    %v6381 = vpack.c.b16 %v4235, %v4206
    %v6382 = vpack.c.b16 %v4236, %v4207
    %v6383 = vpack.c.b16 %v4237, %v4208
    %v6384 = vpack.c.b16 %v4238, %v4209
    %v6385 = vpack.c.b16 %v4239, %v4210
    %v6386 = vpack.c.b16 %v4240, %v4211
    %v6387 = vpack.c.b16 %v4241, %v4212
    %v6388 = vpack.c.b16 %v4242, %v4213
    %v6389 = vpack.c.b16 %v4243, %v4214
    %v6390 = vpack.c.b16 %v4244, %v4215
    %v6391 = vpack.c.b16 %v4245, %v4216
    %v6392 = vpack.c.b16 %v4246, %v4217
    %v6393 = vpack.c.b16 %v4247, %v4218
    %v6394 = vpack.c.b16 %v4248, %v4219
    %v6395 = vpack.c.b16 %v4249, %v4220
    %v6396 = vpack.c.b16 %v4279, %v4250
    %v6397 = vpack.c.b16 %v4280, %v4251
    %v6398 = vpack.c.b16 %v4281, %v4252
    %v6399 = vpack.c.b16 %v4282, %v4253
    %v6400 = vpack.c.b16 %v4283, %v4254
    %v6401 = vpack.c.b16 %v4284, %v4255
    %v6402 = vpack.c.b16 %v4285, %v4256
    %v6403 = vpack.c.b16 %v4286, %v4257
    %v6404 = vpack.c.b16 %v4287, %v4258
    %v6405 = vpack.c.b16 %v4288, %v4259
    %v6406 = vpack.c.b16 %v4289, %v4260
    %v6407 = vpack.c.b16 %v4290, %v4261
    %v6408 = vpack.c.b16 %v4291, %v4262
    %v6409 = vpack.c.b16 %v4292, %v4263
    %v6410 = vpack.c.b16 %v4293, %v4264
    %v6411 = vpack.c.b16 %v4294, %v4265
    %v6412 = vpack.c.b16 %v4295, %v4266
    %v6413 = vpack.c.b16 %v4296, %v4267
    %v6414 = vpack.c.b16 %v4297, %v4268
    %v6415 = vpack.c.b16 %v4298, %v4269
    %v6416 = vpack.c.b16 %v4299, %v4270
    %v6417 = vpack.c.b16 %v4300, %v4271
    %v6418 = vpack.c.b16 %v4301, %v4272
    %v6419 = vpack.c.b16 %v4302, %v4273
    %v6420 = vpack.c.b16 %v4303, %v4274
    %v6421 = vpack.c.b16 %v4304, %v4275
    %v6422 = vpack.c.b16 %v4305, %v4276
    %v6423 = vpack.c.b16 %v4306, %v4277
    %v6424 = vpack.c.b16 %v4307, %v4278
    %v6425 = vpack.c.b16 %v4337, %v4308
    %v6426 = vpack.c.b16 %v4338, %v4309
    %v6427 = vpack.c.b16 %v4339, %v4310
    %v6428 = vpack.c.b16 %v4340, %v4311
    %v6429 = vpack.c.b16 %v4341, %v4312
    %v6430 = vpack.c.b16 %v4342, %v4313
    %v6431 = vpack.c.b16 %v4343, %v4314
    %v6432 = vpack.c.b16 %v4344, %v4315
    %v6433 = vpack.c.b16 %v4345, %v4316
    %v6434 = vpack.c.b16 %v4346, %v4317
    %v6435 = vpack.c.b16 %v4347, %v4318
    %v6436 = vpack.c.b16 %v4348, %v4319
    %v6437 = vpack.c.b16 %v4349, %v4320
    %v6438 = vpack.c.b16 %v4350, %v4321
    %v6439 = vpack.c.b16 %v4351, %v4322
    %v6440 = vpack.c.b16 %v4352, %v4323
    %v6441 = vpack.c.b16 %v4353, %v4324
    %v6442 = vpack.c.b16 %v4354, %v4325
    %v6443 = vpack.c.b16 %v4355, %v4326
    %v6444 = vpack.c.b16 %v4356, %v4327
    %v6445 = vpack.c.b16 %v4357, %v4328
    %v6446 = vpack.c.b16 %v4358, %v4329
    %v6447 = vpack.c.b16 %v4359, %v4330
    %v6448 = vpack.c.b16 %v4360, %v4331
    %v6449 = vpack.c.b16 %v4361, %v4332
    %v6450 = vpack.c.b16 %v4362, %v4333
    %v6451 = vpack.c.b16 %v4363, %v4334
    %v6452 = vpack.c.b16 %v4364, %v4335
    %v6453 = vpack.c.b16 %v4365, %v4336
    %v6454 = vpack.c.b16 %v4395, %v4366
    %v6455 = vpack.c.b16 %v4396, %v4367
    %v6456 = vpack.c.b16 %v4397, %v4368
    %v6457 = vpack.c.b16 %v4398, %v4369
    %v6458 = vpack.c.b16 %v4399, %v4370
    %v6459 = vpack.c.b16 %v4400, %v4371
    %v6460 = vpack.c.b16 %v4401, %v4372
    %v6461 = vpack.c.b16 %v4402, %v4373
    %v6462 = vpack.c.b16 %v4403, %v4374
    %v6463 = vpack.c.b16 %v4404, %v4375
    %v6464 = vpack.c.b16 %v4405, %v4376
    %v6465 = vpack.c.b16 %v4406, %v4377
    %v6466 = vpack.c.b16 %v4407, %v4378
    %v6467 = vpack.c.b16 %v4408, %v4379
    %v6468 = vpack.c.b16 %v4409, %v4380
    %v6469 = vpack.c.b16 %v4410, %v4381
    %v6470 = vpack.c.b16 %v4411, %v4382
    %v6471 = vpack.c.b16 %v4412, %v4383
    %v6472 = vpack.c.b16 %v4413, %v4384
    %v6473 = vpack.c.b16 %v4414, %v4385
    %v6474 = vpack.c.b16 %v4415, %v4386
    %v6475 = vpack.c.b16 %v4416, %v4387
    %v6476 = vpack.c.b16 %v4417, %v4388
    %v6477 = vpack.c.b16 %v4418, %v4389
    %v6478 = vpack.c.b16 %v4419, %v4390
    %v6479 = vpack.c.b16 %v4420, %v4391
    %v6480 = vpack.c.b16 %v4421, %v4392
    %v6481 = vpack.c.b16 %v4422, %v4393
    %v6482 = vpack.c.b16 %v4423, %v4394
    %v6483 = vpack.c.b16 %v4453, %v4424
    %v6484 = vpack.c.b16 %v4454, %v4425
    %v6485 = vpack.c.b16 %v4455, %v4426
    %v6486 = vpack.c.b16 %v4456, %v4427
    %v6487 = vpack.c.b16 %v4457, %v4428
    %v6488 = vpack.c.b16 %v4458, %v4429
    %v6489 = vpack.c.b16 %v4459, %v4430
    %v6490 = vpack.c.b16 %v4460, %v4431
    %v6491 = vpack.c.b16 %v4461, %v4432
    %v6492 = vpack.c.b16 %v4462, %v4433
    %v6493 = vpack.c.b16 %v4463, %v4434
    %v6494 = vpack.c.b16 %v4464, %v4435
    %v6495 = vpack.c.b16 %v4465, %v4436
    %v6496 = vpack.c.b16 %v4466, %v4437
    %v6497 = vpack.c.b16 %v4467, %v4438
    %v6498 = vpack.c.b16 %v4468, %v4439
    %v6499 = vpack.c.b16 %v4469, %v4440
    %v6500 = vpack.c.b16 %v4470, %v4441
    %v6501 = vpack.c.b16 %v4471, %v4442
    %v6502 = vpack.c.b16 %v4472, %v4443
    %v6503 = vpack.c.b16 %v4473, %v4444
    %v6504 = vpack.c.b16 %v4474, %v4445
    %v6505 = vpack.c.b16 %v4475, %v4446
    %v6506 = vpack.c.b16 %v4476, %v4447
    %v6507 = vpack.c.b16 %v4477, %v4448
    %v6508 = vpack.c.b16 %v4478, %v4449
    %v6509 = vpack.c.b16 %v4479, %v4450
    %v6510 = vpack.c.b16 %v4480, %v4451
    %v6511 = vpack.c.b16 %v4481, %v4452
    %v6512 = vpack.c.b16 %v4511, %v4482
    %v6513 = vpack.c.b16 %v4512, %v4483
    %v6514 = vpack.c.b16 %v4513, %v4484
    %v6515 = vpack.c.b16 %v4514, %v4485
    %v6516 = vpack.c.b16 %v4515, %v4486
    %v6517 = vpack.c.b16 %v4516, %v4487
    %v6518 = vpack.c.b16 %v4517, %v4488
    %v6519 = vpack.c.b16 %v4518, %v4489
    %v6520 = vpack.c.b16 %v4519, %v4490
    %v6521 = vpack.c.b16 %v4520, %v4491
    %v6522 = vpack.c.b16 %v4521, %v4492
    %v6523 = vpack.c.b16 %v4522, %v4493
    %v6524 = vpack.c.b16 %v4523, %v4494
    %v6525 = vpack.c.b16 %v4524, %v4495
    %v6526 = vpack.c.b16 %v4525, %v4496
    %v6527 = vpack.c.b16 %v4526, %v4497
    %v6528 = vpack.c.b16 %v4527, %v4498
    %v6529 = vpack.c.b16 %v4528, %v4499
    %v6530 = vpack.c.b16 %v4529, %v4500
    %v6531 = vpack.c.b16 %v4530, %v4501
    %v6532 = vpack.c.b16 %v4531, %v4502
    %v6533 = vpack.c.b16 %v4532, %v4503
    %v6534 = vpack.c.b16 %v4533, %v4504
    %v6535 = vpack.c.b16 %v4534, %v4505
    %v6536 = vpack.c.b16 %v4535, %v4506
    %v6537 = vpack.c.b16 %v4536, %v4507
    %v6538 = vpack.c.b16 %v4537, %v4508
    %v6539 = vpack.c.b16 %v4538, %v4509
    %v6540 = vpack.c.b16 %v4539, %v4510
    %v6541 = vpack.c.b16 %v4569, %v4540
    %v6542 = vpack.c.b16 %v4570, %v4541
    %v6543 = vpack.c.b16 %v4571, %v4542
    %v6544 = vpack.c.b16 %v4572, %v4543
    %v6545 = vpack.c.b16 %v4573, %v4544
    %v6546 = vpack.c.b16 %v4574, %v4545
    %v6547 = vpack.c.b16 %v4575, %v4546
    %v6548 = vpack.c.b16 %v4576, %v4547
    %v6549 = vpack.c.b16 %v4577, %v4548
    %v6550 = vpack.c.b16 %v4578, %v4549
    %v6551 = vpack.c.b16 %v4579, %v4550
    %v6552 = vpack.c.b16 %v4580, %v4551
    %v6553 = vpack.c.b16 %v4581, %v4552
    %v6554 = vpack.c.b16 %v4582, %v4553
    %v6555 = vpack.c.b16 %v4583, %v4554
    %v6556 = vpack.c.b16 %v4584, %v4555
    %v6557 = vpack.c.b16 %v4585, %v4556
    %v6558 = vpack.c.b16 %v4586, %v4557
    %v6559 = vpack.c.b16 %v4587, %v4558
    %v6560 = vpack.c.b16 %v4588, %v4559
    %v6561 = vpack.c.b16 %v4589, %v4560
    %v6562 = vpack.c.b16 %v4590, %v4561
    %v6563 = vpack.c.b16 %v4591, %v4562
    %v6564 = vpack.c.b16 %v4592, %v4563
    %v6565 = vpack.c.b16 %v4593, %v4564
    %v6566 = vpack.c.b16 %v4594, %v4565
    %v6567 = vpack.c.b16 %v4595, %v4566
    %v6568 = vpack.c.b16 %v4596, %v4567
    %v6569 = vpack.c.b16 %v4597, %v4568
    %v6570 = vpack.c.b16 %v4627, %v4598
    %v6571 = vpack.c.b16 %v4628, %v4599
    %v6572 = vpack.c.b16 %v4629, %v4600
    %v6573 = vpack.c.b16 %v4630, %v4601
    %v6574 = vpack.c.b16 %v4631, %v4602
    %v6575 = vpack.c.b16 %v4632, %v4603
    %v6576 = vpack.c.b16 %v4633, %v4604
    %v6577 = vpack.c.b16 %v4634, %v4605
    %v6578 = vpack.c.b16 %v4635, %v4606
    %v6579 = vpack.c.b16 %v4636, %v4607
    %v6580 = vpack.c.b16 %v4637, %v4608
    %v6581 = vpack.c.b16 %v4638, %v4609
    %v6582 = vpack.c.b16 %v4639, %v4610
    %v6583 = vpack.c.b16 %v4640, %v4611
    %v6584 = vpack.c.b16 %v4641, %v4612
    %v6585 = vpack.c.b16 %v4642, %v4613
    %v6586 = vpack.c.b16 %v4643, %v4614
    %v6587 = vpack.c.b16 %v4644, %v4615
    %v6588 = vpack.c.b16 %v4645, %v4616
    %v6589 = vpack.c.b16 %v4646, %v4617
    %v6590 = vpack.c.b16 %v4647, %v4618
    %v6591 = vpack.c.b16 %v4648, %v4619
    %v6592 = vpack.c.b16 %v4649, %v4620
    %v6593 = vpack.c.b16 %v4650, %v4621
    %v6594 = vpack.c.b16 %v4651, %v4622
    %v6595 = vpack.c.b16 %v4652, %v4623
    %v6596 = vpack.c.b16 %v4653, %v4624
    %v6597 = vpack.c.b16 %v4654, %v4625
    %v6598 = vpack.c.b16 %v4655, %v4626
    %v6599 = vpack.c.b16 %v4685, %v4656
    %v6600 = vpack.c.b16 %v4686, %v4657
    %v6601 = vpack.c.b16 %v4687, %v4658
    %v6602 = vpack.c.b16 %v4688, %v4659
    %v6603 = vpack.c.b16 %v4689, %v4660
    %v6604 = vpack.c.b16 %v4690, %v4661
    %v6605 = vpack.c.b16 %v4691, %v4662
    %v6606 = vpack.c.b16 %v4692, %v4663
    %v6607 = vpack.c.b16 %v4693, %v4664
    %v6608 = vpack.c.b16 %v4694, %v4665
    %v6609 = vpack.c.b16 %v4695, %v4666
    %v6610 = vpack.c.b16 %v4696, %v4667
    %v6611 = vpack.c.b16 %v4697, %v4668
    %v6612 = vpack.c.b16 %v4698, %v4669
    %v6613 = vpack.c.b16 %v4699, %v4670
    %v6614 = vpack.c.b16 %v4700, %v4671
    %v6615 = vpack.c.b16 %v4701, %v4672
    %v6616 = vpack.c.b16 %v4702, %v4673
    %v6617 = vpack.c.b16 %v4703, %v4674
    %v6618 = vpack.c.b16 %v4704, %v4675
    %v6619 = vpack.c.b16 %v4705, %v4676
    %v6620 = vpack.c.b16 %v4706, %v4677
    %v6621 = vpack.c.b16 %v4707, %v4678
    %v6622 = vpack.c.b16 %v4708, %v4679
    %v6623 = vpack.c.b16 %v4709, %v4680
    %v6624 = vpack.c.b16 %v4710, %v4681
    %v6625 = vpack.c.b16 %v4711, %v4682
    %v6626 = vpack.c.b16 %v4712, %v4683
    %v6627 = vpack.c.b16 %v4713, %v4684
    %v6628 = vpack.c.b16 %v4743, %v4714
    %v6629 = vpack.c.b16 %v4744, %v4715
    %v6630 = vpack.c.b16 %v4745, %v4716
    %v6631 = vpack.c.b16 %v4746, %v4717
    %v6632 = vpack.c.b16 %v4747, %v4718
    %v6633 = vpack.c.b16 %v4748, %v4719
    %v6634 = vpack.c.b16 %v4749, %v4720
    %v6635 = vpack.c.b16 %v4750, %v4721
    %v6636 = vpack.c.b16 %v4751, %v4722
    %v6637 = vpack.c.b16 %v4752, %v4723
    %v6638 = vpack.c.b16 %v4753, %v4724
    %v6639 = vpack.c.b16 %v4754, %v4725
    %v6640 = vpack.c.b16 %v4755, %v4726
    %v6641 = vpack.c.b16 %v4756, %v4727
    %v6642 = vpack.c.b16 %v4757, %v4728
    %v6643 = vpack.c.b16 %v4758, %v4729
    %v6644 = vpack.c.b16 %v4759, %v4730
    %v6645 = vpack.c.b16 %v4760, %v4731
    %v6646 = vpack.c.b16 %v4761, %v4732
    %v6647 = vpack.c.b16 %v4762, %v4733
    %v6648 = vpack.c.b16 %v4763, %v4734
    %v6649 = vpack.c.b16 %v4764, %v4735
    %v6650 = vpack.c.b16 %v4765, %v4736
    %v6651 = vpack.c.b16 %v4766, %v4737
    %v6652 = vpack.c.b16 %v4767, %v4738
    %v6653 = vpack.c.b16 %v4768, %v4739
    %v6654 = vpack.c.b16 %v4769, %v4740
    %v6655 = vpack.c.b16 %v4770, %v4741
    %v6656 = vpack.c.b16 %v4771, %v4742
    %v6657 = vpack.c.b16 %v4801, %v4772
    %v6658 = vpack.c.b16 %v4802, %v4773
    %v6659 = vpack.c.b16 %v4803, %v4774
    %v6660 = vpack.c.b16 %v4804, %v4775
    %v6661 = vpack.c.b16 %v4805, %v4776
    %v6662 = vpack.c.b16 %v4806, %v4777
    %v6663 = vpack.c.b16 %v4807, %v4778
    %v6664 = vpack.c.b16 %v4808, %v4779
    %v6665 = vpack.c.b16 %v4809, %v4780
    %v6666 = vpack.c.b16 %v4810, %v4781
    %v6667 = vpack.c.b16 %v4811, %v4782
    %v6668 = vpack.c.b16 %v4812, %v4783
    %v6669 = vpack.c.b16 %v4813, %v4784
    %v6670 = vpack.c.b16 %v4814, %v4785
    %v6671 = vpack.c.b16 %v4815, %v4786
    %v6672 = vpack.c.b16 %v4816, %v4787
    %v6673 = vpack.c.b16 %v4817, %v4788
    %v6674 = vpack.c.b16 %v4818, %v4789
    %v6675 = vpack.c.b16 %v4819, %v4790
    %v6676 = vpack.c.b16 %v4820, %v4791
    %v6677 = vpack.c.b16 %v4821, %v4792
    %v6678 = vpack.c.b16 %v4822, %v4793
    %v6679 = vpack.c.b16 %v4823, %v4794
    %v6680 = vpack.c.b16 %v4824, %v4795
    %v6681 = vpack.c.b16 %v4825, %v4796
    %v6682 = vpack.c.b16 %v4826, %v4797
    %v6683 = vpack.c.b16 %v4827, %v4798
    %v6684 = vpack.c.b16 %v4828, %v4799
    %v6685 = vpack.c.b16 %v4829, %v4800
    %v6686 = vpack.c.b16 %v4859, %v4830
    %v6687 = vpack.c.b16 %v4860, %v4831
    %v6688 = vpack.c.b16 %v4861, %v4832
    %v6689 = vpack.c.b16 %v4862, %v4833
    %v6690 = vpack.c.b16 %v4863, %v4834
    %v6691 = vpack.c.b16 %v4864, %v4835
    %v6692 = vpack.c.b16 %v4865, %v4836
    %v6693 = vpack.c.b16 %v4866, %v4837
    %v6694 = vpack.c.b16 %v4867, %v4838
    %v6695 = vpack.c.b16 %v4868, %v4839
    %v6696 = vpack.c.b16 %v4869, %v4840
    %v6697 = vpack.c.b16 %v4870, %v4841
    %v6698 = vpack.c.b16 %v4871, %v4842
    %v6699 = vpack.c.b16 %v4872, %v4843
    %v6700 = vpack.c.b16 %v4873, %v4844
    %v6701 = vpack.c.b16 %v4874, %v4845
    %v6702 = vpack.c.b16 %v4875, %v4846
    %v6703 = vpack.c.b16 %v4876, %v4847
    %v6704 = vpack.c.b16 %v4877, %v4848
    %v6705 = vpack.c.b16 %v4878, %v4849
    %v6706 = vpack.c.b16 %v4879, %v4850
    %v6707 = vpack.c.b16 %v4880, %v4851
    %v6708 = vpack.c.b16 %v4881, %v4852
    %v6709 = vpack.c.b16 %v4882, %v4853
    %v6710 = vpack.c.b16 %v4883, %v4854
    %v6711 = vpack.c.b16 %v4884, %v4855
    %v6712 = vpack.c.b16 %v4885, %v4856
    %v6713 = vpack.c.b16 %v4886, %v4857
    %v6714 = vpack.c.b16 %v4887, %v4858
    %v6715 = vpack.c.b16 %v4917, %v4888
    %v6716 = vpack.c.b16 %v4918, %v4889
    %v6717 = vpack.c.b16 %v4919, %v4890
    %v6718 = vpack.c.b16 %v4920, %v4891
    %v6719 = vpack.c.b16 %v4921, %v4892
    %v6720 = vpack.c.b16 %v4922, %v4893
    %v6721 = vpack.c.b16 %v4923, %v4894
    %v6722 = vpack.c.b16 %v4924, %v4895
    %v6723 = vpack.c.b16 %v4925, %v4896
    %v6724 = vpack.c.b16 %v4926, %v4897
    %v6725 = vpack.c.b16 %v4927, %v4898
    %v6726 = vpack.c.b16 %v4928, %v4899
    %v6727 = vpack.c.b16 %v4929, %v4900
    %v6728 = vpack.c.b16 %v4930, %v4901
    %v6729 = vpack.c.b16 %v4931, %v4902
    %v6730 = vpack.c.b16 %v4932, %v4903
    %v6731 = vpack.c.b16 %v4933, %v4904
    %v6732 = vpack.c.b16 %v4934, %v4905
    %v6733 = vpack.c.b16 %v4935, %v4906
    %v6734 = vpack.c.b16 %v4936, %v4907
    %v6735 = vpack.c.b16 %v4937, %v4908
    %v6736 = vpack.c.b16 %v4938, %v4909
    %v6737 = vpack.c.b16 %v4939, %v4910
    %v6738 = vpack.c.b16 %v4940, %v4911
    %v6739 = vpack.c.b16 %v4941, %v4912
    %v6740 = vpack.c.b16 %v4942, %v4913
    %v6741 = vpack.c.b16 %v4943, %v4914
    %v6742 = vpack.c.b16 %v4944, %v4915
    %v6743 = vpack.c.b16 %v4945, %v4916
    %v6744 = vpack.c.b16 %v4975, %v4946
    %v6745 = vpack.c.b16 %v4976, %v4947
    %v6746 = vpack.c.b16 %v4977, %v4948
    %v6747 = vpack.c.b16 %v4978, %v4949
    %v6748 = vpack.c.b16 %v4979, %v4950
    %v6749 = vpack.c.b16 %v4980, %v4951
    %v6750 = vpack.c.b16 %v4981, %v4952
    %v6751 = vpack.c.b16 %v4982, %v4953
    %v6752 = vpack.c.b16 %v4983, %v4954
    %v6753 = vpack.c.b16 %v4984, %v4955
    %v6754 = vpack.c.b16 %v4985, %v4956
    %v6755 = vpack.c.b16 %v4986, %v4957
    %v6756 = vpack.c.b16 %v4987, %v4958
    %v6757 = vpack.c.b16 %v4988, %v4959
    %v6758 = vpack.c.b16 %v4989, %v4960
    %v6759 = vpack.c.b16 %v4990, %v4961
    %v6760 = vpack.c.b16 %v4991, %v4962
    %v6761 = vpack.c.b16 %v4992, %v4963
    %v6762 = vpack.c.b16 %v4993, %v4964
    %v6763 = vpack.c.b16 %v4994, %v4965
    %v6764 = vpack.c.b16 %v4995, %v4966
    %v6765 = vpack.c.b16 %v4996, %v4967
    %v6766 = vpack.c.b16 %v4997, %v4968
    %v6767 = vpack.c.b16 %v4998, %v4969
    %v6768 = vpack.c.b16 %v4999, %v4970
    %v6769 = vpack.c.b16 %v5000, %v4971
    %v6770 = vpack.c.b16 %v5001, %v4972
    %v6771 = vpack.c.b16 %v5002, %v4973
    %v6772 = vpack.c.b16 %v5003, %v4974
    %v6773 = vpack.c.b16 %v5033, %v5004
    %v6774 = vpack.c.b16 %v5034, %v5005
    %v6775 = vpack.c.b16 %v5035, %v5006
    %v6776 = vpack.c.b16 %v5036, %v5007
    %v6777 = vpack.c.b16 %v5037, %v5008
    %v6778 = vpack.c.b16 %v5038, %v5009
    %v6779 = vpack.c.b16 %v5039, %v5010
    %v6780 = vpack.c.b16 %v5040, %v5011
    %v6781 = vpack.c.b16 %v5041, %v5012
    %v6782 = vpack.c.b16 %v5042, %v5013
    %v6783 = vpack.c.b16 %v5043, %v5014
    %v6784 = vpack.c.b16 %v5044, %v5015
    %v6785 = vpack.c.b16 %v5045, %v5016
    %v6786 = vpack.c.b16 %v5046, %v5017
    %v6787 = vpack.c.b16 %v5047, %v5018
    %v6788 = vpack.c.b16 %v5048, %v5019
    %v6789 = vpack.c.b16 %v5049, %v5020
    %v6790 = vpack.c.b16 %v5050, %v5021
    %v6791 = vpack.c.b16 %v5051, %v5022
    %v6792 = vpack.c.b16 %v5052, %v5023
    %v6793 = vpack.c.b16 %v5053, %v5024
    %v6794 = vpack.c.b16 %v5054, %v5025
    %v6795 = vpack.c.b16 %v5055, %v5026
    %v6796 = vpack.c.b16 %v5056, %v5027
    %v6797 = vpack.c.b16 %v5057, %v5028
    %v6798 = vpack.c.b16 %v5058, %v5029
    %v6799 = vpack.c.b16 %v5059, %v5030
    %v6800 = vpack.c.b16 %v5060, %v5031
    %v6801 = vpack.c.b16 %v5061, %v5032
    %v6802 = vpack.c.b16 %v5091, %v5062
    %v6803 = vpack.c.b16 %v5092, %v5063
    %v6804 = vpack.c.b16 %v5093, %v5064
    %v6805 = vpack.c.b16 %v5094, %v5065
    %v6806 = vpack.c.b16 %v5095, %v5066
    %v6807 = vpack.c.b16 %v5096, %v5067
    %v6808 = vpack.c.b16 %v5097, %v5068
    %v6809 = vpack.c.b16 %v5098, %v5069
    %v6810 = vpack.c.b16 %v5099, %v5070
    %v6811 = vpack.c.b16 %v5100, %v5071
    %v6812 = vpack.c.b16 %v5101, %v5072
    %v6813 = vpack.c.b16 %v5102, %v5073
    %v6814 = vpack.c.b16 %v5103, %v5074
    %v6815 = vpack.c.b16 %v5104, %v5075
    %v6816 = vpack.c.b16 %v5105, %v5076
    %v6817 = vpack.c.b16 %v5106, %v5077
    %v6818 = vpack.c.b16 %v5107, %v5078
    %v6819 = vpack.c.b16 %v5108, %v5079
    %v6820 = vpack.c.b16 %v5109, %v5080
    %v6821 = vpack.c.b16 %v5110, %v5081
    %v6822 = vpack.c.b16 %v5111, %v5082
    %v6823 = vpack.c.b16 %v5112, %v5083
    %v6824 = vpack.c.b16 %v5113, %v5084
    %v6825 = vpack.c.b16 %v5114, %v5085
    %v6826 = vpack.c.b16 %v5115, %v5086
    %v6827 = vpack.c.b16 %v5116, %v5087
    %v6828 = vpack.c.b16 %v5117, %v5088
    %v6829 = vpack.c.b16 %v5118, %v5089
    %v6830 = vpack.c.b16 %v5119, %v5090
    %v6831 = vpack.c.b16 %v5149, %v5120
    %v6832 = vpack.c.b16 %v5150, %v5121
    %v6833 = vpack.c.b16 %v5151, %v5122
    %v6834 = vpack.c.b16 %v5152, %v5123
    %v6835 = vpack.c.b16 %v5153, %v5124
    %v6836 = vpack.c.b16 %v5154, %v5125
    %v6837 = vpack.c.b16 %v5155, %v5126
    %v6838 = vpack.c.b16 %v5156, %v5127
    %v6839 = vpack.c.b16 %v5157, %v5128
    %v6840 = vpack.c.b16 %v5158, %v5129
    %v6841 = vpack.c.b16 %v5159, %v5130
    %v6842 = vpack.c.b16 %v5160, %v5131
    %v6843 = vpack.c.b16 %v5161, %v5132
    %v6844 = vpack.c.b16 %v5162, %v5133
    %v6845 = vpack.c.b16 %v5163, %v5134
    %v6846 = vpack.c.b16 %v5164, %v5135
    %v6847 = vpack.c.b16 %v5165, %v5136
    %v6848 = vpack.c.b16 %v5166, %v5137
    %v6849 = vpack.c.b16 %v5167, %v5138
    %v6850 = vpack.c.b16 %v5168, %v5139
    %v6851 = vpack.c.b16 %v5169, %v5140
    %v6852 = vpack.c.b16 %v5170, %v5141
    %v6853 = vpack.c.b16 %v5171, %v5142
    %v6854 = vpack.c.b16 %v5172, %v5143
    %v6855 = vpack.c.b16 %v5173, %v5144
    %v6856 = vpack.c.b16 %v5174, %v5145
    %v6857 = vpack.c.b16 %v5175, %v5146
    %v6858 = vpack.c.b16 %v5176, %v5147
    %v6859 = vpack.c.b16 %v5177, %v5148
    %v6860 = vpack.c.b16 %v5207, %v5178
    %v6861 = vpack.c.b16 %v5208, %v5179
    %v6862 = vpack.c.b16 %v5209, %v5180
    %v6863 = vpack.c.b16 %v5210, %v5181
    %v6864 = vpack.c.b16 %v5211, %v5182
    %v6865 = vpack.c.b16 %v5212, %v5183
    %v6866 = vpack.c.b16 %v5213, %v5184
    %v6867 = vpack.c.b16 %v5214, %v5185
    %v6868 = vpack.c.b16 %v5215, %v5186
    %v6869 = vpack.c.b16 %v5216, %v5187
    %v6870 = vpack.c.b16 %v5217, %v5188
    %v6871 = vpack.c.b16 %v5218, %v5189
    %v6872 = vpack.c.b16 %v5219, %v5190
    %v6873 = vpack.c.b16 %v5220, %v5191
    %v6874 = vpack.c.b16 %v5221, %v5192
    %v6875 = vpack.c.b16 %v5222, %v5193
    %v6876 = vpack.c.b16 %v5223, %v5194
    %v6877 = vpack.c.b16 %v5224, %v5195
    %v6878 = vpack.c.b16 %v5225, %v5196
    %v6879 = vpack.c.b16 %v5226, %v5197
    %v6880 = vpack.c.b16 %v5227, %v5198
    %v6881 = vpack.c.b16 %v5228, %v5199
    %v6882 = vpack.c.b16 %v5229, %v5200
    %v6883 = vpack.c.b16 %v5230, %v5201
    %v6884 = vpack.c.b16 %v5231, %v5202
    %v6885 = vpack.c.b16 %v5232, %v5203
    %v6886 = vpack.c.b16 %v5233, %v5204
    %v6887 = vpack.c.b16 %v5234, %v5205
    %v6888 = vpack.c.b16 %v5235, %v5206
    %v6889 = vpack.c.b16 %v5265, %v5236
    %v6890 = vpack.c.b16 %v5266, %v5237
    %v6891 = vpack.c.b16 %v5267, %v5238
    %v6892 = vpack.c.b16 %v5268, %v5239
    %v6893 = vpack.c.b16 %v5269, %v5240
    %v6894 = vpack.c.b16 %v5270, %v5241
    %v6895 = vpack.c.b16 %v5271, %v5242
    %v6896 = vpack.c.b16 %v5272, %v5243
    %v6897 = vpack.c.b16 %v5273, %v5244
    %v6898 = vpack.c.b16 %v5274, %v5245
    %v6899 = vpack.c.b16 %v5275, %v5246
    %v6900 = vpack.c.b16 %v5276, %v5247
    %v6901 = vpack.c.b16 %v5277, %v5248
    %v6902 = vpack.c.b16 %v5278, %v5249
    %v6903 = vpack.c.b16 %v5279, %v5250
    %v6904 = vpack.c.b16 %v5280, %v5251
    %v6905 = vpack.c.b16 %v5281, %v5252
    %v6906 = vpack.c.b16 %v5282, %v5253
    %v6907 = vpack.c.b16 %v5283, %v5254
    %v6908 = vpack.c.b16 %v5284, %v5255
    %v6909 = vpack.c.b16 %v5285, %v5256
    %v6910 = vpack.c.b16 %v5286, %v5257
    %v6911 = vpack.c.b16 %v5287, %v5258
    %v6912 = vpack.c.b16 %v5288, %v5259
    %v6913 = vpack.c.b16 %v5289, %v5260
    %v6914 = vpack.c.b16 %v5290, %v5261
    %v6915 = vpack.c.b16 %v5291, %v5262
    %v6916 = vpack.c.b16 %v5292, %v5263
    %v6917 = vpack.c.b16 %v5293, %v5264
    %v6918 = vpack.c.b16 %v5323, %v5294
    %v6919 = vpack.c.b16 %v5324, %v5295
    %v6920 = vpack.c.b16 %v5325, %v5296
    %v6921 = vpack.c.b16 %v5326, %v5297
    %v6922 = vpack.c.b16 %v5327, %v5298
    %v6923 = vpack.c.b16 %v5328, %v5299
    %v6924 = vpack.c.b16 %v5329, %v5300
    %v6925 = vpack.c.b16 %v5330, %v5301
    %v6926 = vpack.c.b16 %v5331, %v5302
    %v6927 = vpack.c.b16 %v5332, %v5303
    %v6928 = vpack.c.b16 %v5333, %v5304
    %v6929 = vpack.c.b16 %v5334, %v5305
    %v6930 = vpack.c.b16 %v5335, %v5306
    %v6931 = vpack.c.b16 %v5336, %v5307
    %v6932 = vpack.c.b16 %v5337, %v5308
    %v6933 = vpack.c.b16 %v5338, %v5309
    %v6934 = vpack.c.b16 %v5339, %v5310
    %v6935 = vpack.c.b16 %v5340, %v5311
    %v6936 = vpack.c.b16 %v5341, %v5312
    %v6937 = vpack.c.b16 %v5342, %v5313
    %v6938 = vpack.c.b16 %v5343, %v5314
    %v6939 = vpack.c.b16 %v5344, %v5315
    %v6940 = vpack.c.b16 %v5345, %v5316
    %v6941 = vpack.c.b16 %v5346, %v5317
    %v6942 = vpack.c.b16 %v5347, %v5318
    %v6943 = vpack.c.b16 %v5348, %v5319
    %v6944 = vpack.c.b16 %v5349, %v5320
    %v6945 = vpack.c.b16 %v5350, %v5321
    %v6946 = vpack.c.b16 %v5351, %v5322
    %v6947 = vpack.c.b16 %v5381, %v5352
    %v6948 = vpack.c.b16 %v5382, %v5353
    %v6949 = vpack.c.b16 %v5383, %v5354
    %v6950 = vpack.c.b16 %v5384, %v5355
    %v6951 = vpack.c.b16 %v5385, %v5356
    %v6952 = vpack.c.b16 %v5386, %v5357
    %v6953 = vpack.c.b16 %v5387, %v5358
    %v6954 = vpack.c.b16 %v5388, %v5359
    %v6955 = vpack.c.b16 %v5389, %v5360
    %v6956 = vpack.c.b16 %v5390, %v5361
    %v6957 = vpack.c.b16 %v5391, %v5362
    %v6958 = vpack.c.b16 %v5392, %v5363
    %v6959 = vpack.c.b16 %v5393, %v5364
    %v6960 = vpack.c.b16 %v5394, %v5365
    %v6961 = vpack.c.b16 %v5395, %v5366
    %v6962 = vpack.c.b16 %v5396, %v5367
    %v6963 = vpack.c.b16 %v5397, %v5368
    %v6964 = vpack.c.b16 %v5398, %v5369
    %v6965 = vpack.c.b16 %v5399, %v5370
    %v6966 = vpack.c.b16 %v5400, %v5371
    %v6967 = vpack.c.b16 %v5401, %v5372
    %v6968 = vpack.c.b16 %v5402, %v5373
    %v6969 = vpack.c.b16 %v5403, %v5374
    %v6970 = vpack.c.b16 %v5404, %v5375
    %v6971 = vpack.c.b16 %v5405, %v5376
    %v6972 = vpack.c.b16 %v5406, %v5377
    %v6973 = vpack.c.b16 %v5407, %v5378
    %v6974 = vpack.c.b16 %v5408, %v5379
    %v6975 = vpack.c.b16 %v5409, %v5380
    %v6976 = vpack.c.b16 %v5439, %v5410
    %v6977 = vpack.c.b16 %v5440, %v5411
    %v6978 = vpack.c.b16 %v5441, %v5412
    %v6979 = vpack.c.b16 %v5442, %v5413
    %v6980 = vpack.c.b16 %v5443, %v5414
    %v6981 = vpack.c.b16 %v5444, %v5415
    %v6982 = vpack.c.b16 %v5445, %v5416
    %v6983 = vpack.c.b16 %v5446, %v5417
    %v6984 = vpack.c.b16 %v5447, %v5418
    %v6985 = vpack.c.b16 %v5448, %v5419
    %v6986 = vpack.c.b16 %v5449, %v5420
    %v6987 = vpack.c.b16 %v5450, %v5421
    %v6988 = vpack.c.b16 %v5451, %v5422
    %v6989 = vpack.c.b16 %v5452, %v5423
    %v6990 = vpack.c.b16 %v5453, %v5424
    %v6991 = vpack.c.b16 %v5454, %v5425
    %v6992 = vpack.c.b16 %v5455, %v5426
    %v6993 = vpack.c.b16 %v5456, %v5427
    %v6994 = vpack.c.b16 %v5457, %v5428
    %v6995 = vpack.c.b16 %v5458, %v5429
    %v6996 = vpack.c.b16 %v5459, %v5430
    %v6997 = vpack.c.b16 %v5460, %v5431
    %v6998 = vpack.c.b16 %v5461, %v5432
    %v6999 = vpack.c.b16 %v5462, %v5433
    %v7000 = vpack.c.b16 %v5463, %v5434
    %v7001 = vpack.c.b16 %v5464, %v5435
    %v7002 = vpack.c.b16 %v5465, %v5436
    %v7003 = vpack.c.b16 %v5466, %v5437
    %v7004 = vpack.c.b16 %v5467, %v5438
    %v7005 = vpack.c.b16 %v5497, %v5468
    %v7006 = vpack.c.b16 %v5498, %v5469
    %v7007 = vpack.c.b16 %v5499, %v5470
    %v7008 = vpack.c.b16 %v5500, %v5471
    %v7009 = vpack.c.b16 %v5501, %v5472
    %v7010 = vpack.c.b16 %v5502, %v5473
    %v7011 = vpack.c.b16 %v5503, %v5474
    %v7012 = vpack.c.b16 %v5504, %v5475
    %v7013 = vpack.c.b16 %v5505, %v5476
    %v7014 = vpack.c.b16 %v5506, %v5477
    %v7015 = vpack.c.b16 %v5507, %v5478
    %v7016 = vpack.c.b16 %v5508, %v5479
    %v7017 = vpack.c.b16 %v5509, %v5480
    %v7018 = vpack.c.b16 %v5510, %v5481
    %v7019 = vpack.c.b16 %v5511, %v5482
    %v7020 = vpack.c.b16 %v5512, %v5483
    %v7021 = vpack.c.b16 %v5513, %v5484
    %v7022 = vpack.c.b16 %v5514, %v5485
    %v7023 = vpack.c.b16 %v5515, %v5486
    %v7024 = vpack.c.b16 %v5516, %v5487
    %v7025 = vpack.c.b16 %v5517, %v5488
    %v7026 = vpack.c.b16 %v5518, %v5489
    %v7027 = vpack.c.b16 %v5519, %v5490
    %v7028 = vpack.c.b16 %v5520, %v5491
    %v7029 = vpack.c.b16 %v5521, %v5492
    %v7030 = vpack.c.b16 %v5522, %v5493
    %v7031 = vpack.c.b16 %v5523, %v5494
    %v7032 = vpack.c.b16 %v5524, %v5495
    %v7033 = vpack.c.b16 %v5525, %v5496
    %v7034 = vpack.c.b16 %v5555, %v5526
    %v7035 = vpack.c.b16 %v5556, %v5527
    %v7036 = vpack.c.b16 %v5557, %v5528
    %v7037 = vpack.c.b16 %v5558, %v5529
    %v7038 = vpack.c.b16 %v5559, %v5530
    %v7039 = vpack.c.b16 %v5560, %v5531
    %v7040 = vpack.c.b16 %v5561, %v5532
    %v7041 = vpack.c.b16 %v5562, %v5533
    %v7042 = vpack.c.b16 %v5563, %v5534
    %v7043 = vpack.c.b16 %v5564, %v5535
    %v7044 = vpack.c.b16 %v5565, %v5536
    %v7045 = vpack.c.b16 %v5566, %v5537
    %v7046 = vpack.c.b16 %v5567, %v5538
    %v7047 = vpack.c.b16 %v5568, %v5539
    %v7048 = vpack.c.b16 %v5569, %v5540
    %v7049 = vpack.c.b16 %v5570, %v5541
    %v7050 = vpack.c.b16 %v5571, %v5542
    %v7051 = vpack.c.b16 %v5572, %v5543
    %v7052 = vpack.c.b16 %v5573, %v5544
    %v7053 = vpack.c.b16 %v5574, %v5545
    %v7054 = vpack.c.b16 %v5575, %v5546
    %v7055 = vpack.c.b16 %v5576, %v5547
    %v7056 = vpack.c.b16 %v5577, %v5548
    %v7057 = vpack.c.b16 %v5578, %v5549
    %v7058 = vpack.c.b16 %v5579, %v5550
    %v7059 = vpack.c.b16 %v5580, %v5551
    %v7060 = vpack.c.b16 %v5581, %v5552
    %v7061 = vpack.c.b16 %v5582, %v5553
    %v7062 = vpack.c.b16 %v5583, %v5554
    %v7063 = vpack.c.b16 %v5613, %v5584
    %v7064 = vpack.c.b16 %v5614, %v5585
    %v7065 = vpack.c.b16 %v5615, %v5586
    %v7066 = vpack.c.b16 %v5616, %v5587
    %v7067 = vpack.c.b16 %v5617, %v5588
    %v7068 = vpack.c.b16 %v5618, %v5589
    %v7069 = vpack.c.b16 %v5619, %v5590
    %v7070 = vpack.c.b16 %v5620, %v5591
    %v7071 = vpack.c.b16 %v5621, %v5592
    %v7072 = vpack.c.b16 %v5622, %v5593
    %v7073 = vpack.c.b16 %v5623, %v5594
    %v7074 = vpack.c.b16 %v5624, %v5595
    %v7075 = vpack.c.b16 %v5625, %v5596
    %v7076 = vpack.c.b16 %v5626, %v5597
    %v7077 = vpack.c.b16 %v5627, %v5598
    %v7078 = vpack.c.b16 %v5628, %v5599
    %v7079 = vpack.c.b16 %v5629, %v5600
    %v7080 = vpack.c.b16 %v5630, %v5601
    %v7081 = vpack.c.b16 %v5631, %v5602
    %v7082 = vpack.c.b16 %v5632, %v5603
    %v7083 = vpack.c.b16 %v5633, %v5604
    %v7084 = vpack.c.b16 %v5634, %v5605
    %v7085 = vpack.c.b16 %v5635, %v5606
    %v7086 = vpack.c.b16 %v5636, %v5607
    %v7087 = vpack.c.b16 %v5637, %v5608
    %v7088 = vpack.c.b16 %v5638, %v5609
    %v7089 = vpack.c.b16 %v5639, %v5610
    %v7090 = vpack.c.b16 %v5640, %v5611
    %v7091 = vpack.c.b16 %v5641, %v5612
    %v7092 = vpack.c.b16 %v5671, %v5642
    %v7093 = vpack.c.b16 %v5672, %v5643
    %v7094 = vpack.c.b16 %v5673, %v5644
    %v7095 = vpack.c.b16 %v5674, %v5645
    %v7096 = vpack.c.b16 %v5675, %v5646
    %v7097 = vpack.c.b16 %v5676, %v5647
    %v7098 = vpack.c.b16 %v5677, %v5648
    %v7099 = vpack.c.b16 %v5678, %v5649
    %v7100 = vpack.c.b16 %v5679, %v5650
    %v7101 = vpack.c.b16 %v5680, %v5651
    %v7102 = vpack.c.b16 %v5681, %v5652
    %v7103 = vpack.c.b16 %v5682, %v5653
    %v7104 = vpack.c.b16 %v5683, %v5654
    %v7105 = vpack.c.b16 %v5684, %v5655
    %v7106 = vpack.c.b16 %v5685, %v5656
    %v7107 = vpack.c.b16 %v5686, %v5657
    %v7108 = vpack.c.b16 %v5687, %v5658
    %v7109 = vpack.c.b16 %v5688, %v5659
    %v7110 = vpack.c.b16 %v5689, %v5660
    %v7111 = vpack.c.b16 %v5690, %v5661
    %v7112 = vpack.c.b16 %v5691, %v5662
    %v7113 = vpack.c.b16 %v5692, %v5663
    %v7114 = vpack.c.b16 %v5693, %v5664
    %v7115 = vpack.c.b16 %v5694, %v5665
    %v7116 = vpack.c.b16 %v5695, %v5666
    %v7117 = vpack.c.b16 %v5696, %v5667
    %v7118 = vpack.c.b16 %v5697, %v5668
    %v7119 = vpack.c.b16 %v5698, %v5669
    %v7120 = vpack.c.b16 %v5699, %v5670
    %v7121 = vpack.c.b16 %v5729, %v5700
    %v7122 = vpack.c.b16 %v5730, %v5701
    %v7123 = vpack.c.b16 %v5731, %v5702
    %v7124 = vpack.c.b16 %v5732, %v5703
    %v7125 = vpack.c.b16 %v5733, %v5704
    %v7126 = vpack.c.b16 %v5734, %v5705
    %v7127 = vpack.c.b16 %v5735, %v5706
    %v7128 = vpack.c.b16 %v5736, %v5707
    %v7129 = vpack.c.b16 %v5737, %v5708
    %v7130 = vpack.c.b16 %v5738, %v5709
    %v7131 = vpack.c.b16 %v5739, %v5710
    %v7132 = vpack.c.b16 %v5740, %v5711
    %v7133 = vpack.c.b16 %v5741, %v5712
    %v7134 = vpack.c.b16 %v5742, %v5713
    %v7135 = vpack.c.b16 %v5743, %v5714
    %v7136 = vpack.c.b16 %v5744, %v5715
    %v7137 = vpack.c.b16 %v5745, %v5716
    %v7138 = vpack.c.b16 %v5746, %v5717
    %v7139 = vpack.c.b16 %v5747, %v5718
    %v7140 = vpack.c.b16 %v5748, %v5719
    %v7141 = vpack.c.b16 %v5749, %v5720
    %v7142 = vpack.c.b16 %v5750, %v5721
    %v7143 = vpack.c.b16 %v5751, %v5722
    %v7144 = vpack.c.b16 %v5752, %v5723
    %v7145 = vpack.c.b16 %v5753, %v5724
    %v7146 = vpack.c.b16 %v5754, %v5725
    %v7147 = vpack.c.b16 %v5755, %v5726
    %v7148 = vpack.c.b16 %v5756, %v5727
    %v7149 = vpack.c.b16 %v5757, %v5728
    %8542 = vmatprep.subr.bf16.mxu0 %v5759
    %8543 = vmatpush1.bf16.msra.mxu0 %v5758
    %8544 = vmatprep.subr.bf16.mxu0 %v5788
    %8545 = vmatpush1.bf16.msra.mxu0 %v5787
    %8546 = vmatprep.subr.bf16.mxu0 %v5817
    %8547 = vmatpush1.bf16.msra.mxu0 %v5816
    %8548 = vmatprep.subr.bf16.mxu0 %v5846
    %8549 = vmatpush1.bf16.msra.mxu0 %v5845
    %8550 = vmatprep.subr.bf16.mxu0 %v5875
    %8551 = vmatpush1.bf16.msra.mxu0 %v5874
    %8552 = vmatprep.subr.bf16.mxu0 %v5904
    %8553 = vmatpush1.bf16.msra.mxu0 %v5903
    %8554 = vmatprep.subr.bf16.mxu0 %v5933
    %8555 = vmatpush1.bf16.msra.mxu0 %v5932
    %8556 = vmatprep.subr.bf16.mxu0 %v5962
    %8557 = vmatpush1.bf16.msra.mxu0 %v5961
    %8558 = vmatprep.subr.bf16.mxu0 %v5991
    %8559 = vmatpush1.bf16.msra.mxu0 %v5990
    %8560 = vmatprep.subr.bf16.mxu0 %v6020
    %8561 = vmatpush1.bf16.msra.mxu0 %v6019
    %8562 = vmatprep.subr.bf16.mxu0 %v6049
    %8563 = vmatpush1.bf16.msra.mxu0 %v6048
    %8564 = vmatprep.subr.bf16.mxu0 %v6078
    %8565 = vmatpush1.bf16.msra.mxu0 %v6077
    %8566 = vmatprep.subr.bf16.mxu0 %v6107
    %8567 = vmatpush1.bf16.msra.mxu0 %v6106
    %8568 = vmatprep.subr.bf16.mxu0 %v6136
    %8569 = vmatpush1.bf16.msra.mxu0 %v6135
    %8570 = vmatprep.subr.bf16.mxu0 %v6165
    %8571 = vmatpush1.bf16.msra.mxu0 %v6164
    %8572 = vmatprep.subr.bf16.mxu0 %v6194
    %8573 = vmatpush1.bf16.msra.mxu0 %v6193
    %8574 = vmatprep.mubr.bf16.mxu0 %v81
    %8575 = vmatmul.mubr.bf16.gmra.mrb[0].mxu0 %v80
    %v8576 = vpop.f32.mrb[0].mxu0
    %v8577 = vadd.f32 0.0, %v8576
    %v8578 = vpop.f32.mrb[0].mxu0
    %v8579 = vadd.f32 0.0, %v8578
    %v8580 = vpop.f32.mrb[0].mxu0
    %v8581 = vpop.f32.mrb[0].mxu0
    %8582 = vdwg.mxu0
    %8583 = vmatprep.subr.bf16.mxu0 %v6223
    %8584 = vmatpush1.bf16.msra.mxu0 %v6222
    %8585 = vmatprep.subr.bf16.mxu0 %v6252
    %8586 = vmatpush1.bf16.msra.mxu0 %v6251
    %8587 = vmatprep.subr.bf16.mxu0 %v6281
    %8588 = vmatpush1.bf16.msra.mxu0 %v6280
    %8589 = vmatprep.subr.bf16.mxu0 %v6310
    %8590 = vmatpush1.bf16.msra.mxu0 %v6309
    %8591 = vmatprep.subr.bf16.mxu0 %v6339
    %8592 = vmatpush1.bf16.msra.mxu0 %v6338
    %8593 = vmatprep.subr.bf16.mxu0 %v6368
    %8594 = vmatpush1.bf16.msra.mxu0 %v6367
    %8595 = vmatprep.subr.bf16.mxu0 %v6397
    %8596 = vmatpush1.bf16.msra.mxu0 %v6396
    %8597 = vmatprep.subr.bf16.mxu0 %v6426
    %8598 = vmatpush1.bf16.msra.mxu0 %v6425
    %8599 = vmatprep.subr.bf16.mxu0 %v6455
    %8600 = vmatpush1.bf16.msra.mxu0 %v6454
    %8601 = vmatprep.subr.bf16.mxu0 %v6484
    %8602 = vmatpush1.bf16.msra.mxu0 %v6483
    %8603 = vmatprep.subr.bf16.mxu0 %v6513
    %8604 = vmatpush1.bf16.msra.mxu0 %v6512
    %8605 = vmatprep.subr.bf16.mxu0 %v6542
    %8606 = vmatpush1.bf16.msra.mxu0 %v6541
    %8607 = vmatprep.subr.bf16.mxu0 %v6571
    %8608 = vmatpush1.bf16.msra.mxu0 %v6570
    %8609 = vmatprep.subr.bf16.mxu0 %v6600
    %8610 = vmatpush1.bf16.msra.mxu0 %v6599
    %8611 = vmatprep.subr.bf16.mxu0 %v6629
    %8612 = vmatpush1.bf16.msra.mxu0 %v6628
    %8613 = vmatprep.subr.bf16.mxu0 %v6658
    %8614 = vmatpush1.bf16.msra.mxu0 %v6657
    %8615 = vmatprep.mubr.bf16.mxu0 %v83
    %8616 = vmatmul.mubr.bf16.gmra.mrb[0].mxu0 %v82
    %v8617 = vpop.f32.mrb[0].mxu0
    %v8618 = vadd.f32 %v8577, %v8617
    %v8619 = vpop.f32.mrb[0].mxu0
    %v8620 = vadd.f32 %v8579, %v8619
    %v8621 = vpop.f32.mrb[0].mxu0
    %v8622 = vpop.f32.mrb[0].mxu0
    %8623 = vdwg.mxu0
    %8624 = vmatprep.subr.bf16.mxu0 %v6687
    %8625 = vmatpush1.bf16.msra.mxu0 %v6686
    %8626 = vmatprep.subr.bf16.mxu0 %v6716
    %8627 = vmatpush1.bf16.msra.mxu0 %v6715
    %8628 = vmatprep.subr.bf16.mxu0 %v6745
    %8629 = vmatpush1.bf16.msra.mxu0 %v6744
    %8630 = vmatprep.subr.bf16.mxu0 %v6774
    %8631 = vmatpush1.bf16.msra.mxu0 %v6773
    %8632 = vmatprep.subr.bf16.mxu0 %v6803
    %8633 = vmatpush1.bf16.msra.mxu0 %v6802
    %8634 = vmatprep.subr.bf16.mxu0 %v6832
    %8635 = vmatpush1.bf16.msra.mxu0 %v6831
    %8636 = vmatprep.subr.bf16.mxu0 %v6861
    %8637 = vmatpush1.bf16.msra.mxu0 %v6860
    %8638 = vmatprep.subr.bf16.mxu0 %v6890
    %8639 = vmatpush1.bf16.msra.mxu0 %v6889
    %8640 = vmatprep.subr.bf16.mxu0 %v6919
    %8641 = vmatpush1.bf16.msra.mxu0 %v6918
    %8642 = vmatprep.subr.bf16.mxu0 %v6948
    %8643 = vmatpush1.bf16.msra.mxu0 %v6947
    %8644 = vmatprep.subr.bf16.mxu0 %v6977
    %8645 = vmatpush1.bf16.msra.mxu0 %v6976
    %8646 = vmatprep.subr.bf16.mxu0 %v7006
    %8647 = vmatpush1.bf16.msra.mxu0 %v7005
    %8648 = vmatprep.subr.bf16.mxu0 %v7035
    %8649 = vmatpush1.bf16.msra.mxu0 %v7034
    %8650 = vmatprep.subr.bf16.mxu0 %v7064
    %8651 = vmatpush1.bf16.msra.mxu0 %v7063
    %8652 = vmatprep.subr.bf16.mxu0 %v7093
    %8653 = vmatpush1.bf16.msra.mxu0 %v7092
    %8654 = vmatprep.subr.bf16.mxu0 %v7122
    %8655 = vmatpush1.bf16.msra.mxu0 %v7121
    %8656 = vmatprep.mubr.bf16.mxu0 %v85
    %8657 = vmatmul.mubr.bf16.gmra.mrb[0].mxu0 %v84
    %v8658 = vpop.f32.mrb[0].mxu0
    %v8659 = vadd.f32 %v8618, %v8658
    %v8660 = vpop.f32.mrb[0].mxu0
    %v8661 = vadd.f32 %v8620, %v8660
    %v8662 = vpop.f32.mrb[0].mxu0
    %v8663 = vpop.f32.mrb[0].mxu0
    %8664 = vdwg.mxu0
    %8665 = vmatprep.subr.bf16.mxu0 %v5761
    %8666 = vmatpush1.bf16.msra.mxu0 %v5760
    %8667 = vmatprep.subr.bf16.mxu0 %v5790
    %8668 = vmatpush1.bf16.msra.mxu0 %v5789
    %8669 = vmatprep.subr.bf16.mxu0 %v5819
    %8670 = vmatpush1.bf16.msra.mxu0 %v5818
    %8671 = vmatprep.subr.bf16.mxu0 %v5848
    %8672 = vmatpush1.bf16.msra.mxu0 %v5847
    %8673 = vmatprep.subr.bf16.mxu0 %v5877
    %8674 = vmatpush1.bf16.msra.mxu0 %v5876
    %8675 = vmatprep.subr.bf16.mxu0 %v5906
    %8676 = vmatpush1.bf16.msra.mxu0 %v5905
    %8677 = vmatprep.subr.bf16.mxu0 %v5935
    %8678 = vmatpush1.bf16.msra.mxu0 %v5934
    %8679 = vmatprep.subr.bf16.mxu0 %v5964
    %8680 = vmatpush1.bf16.msra.mxu0 %v5963
    %8681 = vmatprep.subr.bf16.mxu0 %v5993
    %8682 = vmatpush1.bf16.msra.mxu0 %v5992
    %8683 = vmatprep.subr.bf16.mxu0 %v6022
    %8684 = vmatpush1.bf16.msra.mxu0 %v6021
    %8685 = vmatprep.subr.bf16.mxu0 %v6051
    %8686 = vmatpush1.bf16.msra.mxu0 %v6050
    %8687 = vmatprep.subr.bf16.mxu0 %v6080
    %8688 = vmatpush1.bf16.msra.mxu0 %v6079
    %8689 = vmatprep.subr.bf16.mxu0 %v6109
    %8690 = vmatpush1.bf16.msra.mxu0 %v6108
    %8691 = vmatprep.subr.bf16.mxu0 %v6138
    %8692 = vmatpush1.bf16.msra.mxu0 %v6137
    %8693 = vmatprep.subr.bf16.mxu0 %v6167
    %8694 = vmatpush1.bf16.msra.mxu0 %v6166
    %8695 = vmatprep.subr.bf16.mxu0 %v6196
    %8696 = vmatpush1.bf16.msra.mxu0 %v6195
    %8697 = vmatprep.mubr.bf16.mxu0 %v81
    %8698 = vmatmul.mubr.bf16.gmra.mrb[0].mxu0 %v80
    %v8699 = vpop.f32.mrb[0].mxu0
    %v8700 = vadd.f32 0.0, %v8699
    %v8701 = vpop.f32.mrb[0].mxu0
    %v8702 = vadd.f32 0.0, %v8701
    %v8703 = vpop.f32.mrb[0].mxu0
    %v8704 = vpop.f32.mrb[0].mxu0
    %8705 = vdwg.mxu0
    %8706 = vmatprep.subr.bf16.mxu0 %v6225
    %8707 = vmatpush1.bf16.msra.mxu0 %v6224
    %8708 = vmatprep.subr.bf16.mxu0 %v6254
    %8709 = vmatpush1.bf16.msra.mxu0 %v6253
    %8710 = vmatprep.subr.bf16.mxu0 %v6283
    %8711 = vmatpush1.bf16.msra.mxu0 %v6282
    %8712 = vmatprep.subr.bf16.mxu0 %v6312
    %8713 = vmatpush1.bf16.msra.mxu0 %v6311
    %8714 = vmatprep.subr.bf16.mxu0 %v6341
    %8715 = vmatpush1.bf16.msra.mxu0 %v6340
    %8716 = vmatprep.subr.bf16.mxu0 %v6370
    %8717 = vmatpush1.bf16.msra.mxu0 %v6369
    %8718 = vmatprep.subr.bf16.mxu0 %v6399
    %8719 = vmatpush1.bf16.msra.mxu0 %v6398
    %8720 = vmatprep.subr.bf16.mxu0 %v6428
    %8721 = vmatpush1.bf16.msra.mxu0 %v6427
    %8722 = vmatprep.subr.bf16.mxu0 %v6457
    %8723 = vmatpush1.bf16.msra.mxu0 %v6456
    %8724 = vmatprep.subr.bf16.mxu0 %v6486
    %8725 = vmatpush1.bf16.msra.mxu0 %v6485
    %8726 = vmatprep.subr.bf16.mxu0 %v6515
    %8727 = vmatpush1.bf16.msra.mxu0 %v6514
    %8728 = vmatprep.subr.bf16.mxu0 %v6544
    %8729 = vmatpush1.bf16.msra.mxu0 %v6543
    %8730 = vmatprep.subr.bf16.mxu0 %v6573
    %8731 = vmatpush1.bf16.msra.mxu0 %v6572
    %8732 = vmatprep.subr.bf16.mxu0 %v6602
    %8733 = vmatpush1.bf16.msra.mxu0 %v6601
    %8734 = vmatprep.subr.bf16.mxu0 %v6631
    %8735 = vmatpush1.bf16.msra.mxu0 %v6630
    %8736 = vmatprep.subr.bf16.mxu0 %v6660
    %8737 = vmatpush1.bf16.msra.mxu0 %v6659
    %8738 = vmatprep.mubr.bf16.mxu0 %v83
    %8739 = vmatmul.mubr.bf16.gmra.mrb[0].mxu0 %v82
    %v8740 = vpop.f32.mrb[0].mxu0
    %v8741 = vadd.f32 %v8700, %v8740
    %v8742 = vpop.f32.mrb[0].mxu0
    %v8743 = vadd.f32 %v8702, %v8742
    %v8744 = vpop.f32.mrb[0].mxu0
    %v8745 = vpop.f32.mrb[0].mxu0
    %8746 = vdwg.mxu0
    %8747 = vmatprep.subr.bf16.mxu0 %v6689
    %8748 = vmatpush1.bf16.msra.mxu0 %v6688
    %8749 = vmatprep.subr.bf16.mxu0 %v6718
    %8750 = vmatpush1.bf16.msra.mxu0 %v6717
    %8751 = vmatprep.subr.bf16.mxu0 %v6747
    %8752 = vmatpush1.bf16.msra.mxu0 %v6746
    %8753 = vmatprep.subr.bf16.mxu0 %v6776
    %8754 = vmatpush1.bf16.msra.mxu0 %v6775
    %8755 = vmatprep.subr.bf16.mxu0 %v6805
    %8756 = vmatpush1.bf16.msra.mxu0 %v6804
    %8757 = vmatprep.subr.bf16.mxu0 %v6834
    %8758 = vmatpush1.bf16.msra.mxu0 %v6833
    %8759 = vmatprep.subr.bf16.mxu0 %v6863
    %8760 = vmatpush1.bf16.msra.mxu0 %v6862
    %8761 = vmatprep.subr.bf16.mxu0 %v6892
    %8762 = vmatpush1.bf16.msra.mxu0 %v6891
    %8763 = vmatprep.subr.bf16.mxu0 %v6921
    %8764 = vmatpush1.bf16.msra.mxu0 %v6920
    %8765 = vmatprep.subr.bf16.mxu0 %v6950
    %8766 = vmatpush1.bf16.msra.mxu0 %v6949
    %8767 = vmatprep.subr.bf16.mxu0 %v6979
    %8768 = vmatpush1.bf16.msra.mxu0 %v6978
    %8769 = vmatprep.subr.bf16.mxu0 %v7008
    %8770 = vmatpush1.bf16.msra.mxu0 %v7007
    %8771 = vmatprep.subr.bf16.mxu0 %v7037
    %8772 = vmatpush1.bf16.msra.mxu0 %v7036
    %8773 = vmatprep.subr.bf16.mxu0 %v7066
    %8774 = vmatpush1.bf16.msra.mxu0 %v7065
    %8775 = vmatprep.subr.bf16.mxu0 %v7095
    %8776 = vmatpush1.bf16.msra.mxu0 %v7094
    %8777 = vmatprep.subr.bf16.mxu0 %v7124
    %8778 = vmatpush1.bf16.msra.mxu0 %v7123
    %8779 = vmatprep.mubr.bf16.mxu0 %v85
    %8780 = vmatmul.mubr.bf16.gmra.mrb[0].mxu0 %v84
    %v8781 = vpop.f32.mrb[0].mxu0
    %v8782 = vadd.f32 %v8741, %v8781
    %v8783 = vpop.f32.mrb[0].mxu0
    %v8784 = vadd.f32 %v8743, %v8783
    %v8785 = vpop.f32.mrb[0].mxu0
    %v8786 = vpop.f32.mrb[0].mxu0
    %8787 = vdwg.mxu0
    %8788 = vmatprep.subr.bf16.mxu0 %v5763
    %8789 = vmatpush1.bf16.msra.mxu0 %v5762
    %8790 = vmatprep.subr.bf16.mxu0 %v5792
    %8791 = vmatpush1.bf16.msra.mxu0 %v5791
    %8792 = vmatprep.subr.bf16.mxu0 %v5821
    %8793 = vmatpush1.bf16.msra.mxu0 %v5820
    %8794 = vmatprep.subr.bf16.mxu0 %v5850
    %8795 = vmatpush1.bf16.msra.mxu0 %v5849
    %8796 = vmatprep.subr.bf16.mxu0 %v5879
    %8797 = vmatpush1.bf16.msra.mxu0 %v5878
    %8798 = vmatprep.subr.bf16.mxu0 %v5908
    %8799 = vmatpush1.bf16.msra.mxu0 %v5907
    %8800 = vmatprep.subr.bf16.mxu0 %v5937
    %8801 = vmatpush1.bf16.msra.mxu0 %v5936
    %8802 = vmatprep.subr.bf16.mxu0 %v5966
    %8803 = vmatpush1.bf16.msra.mxu0 %v5965
    %8804 = vmatprep.subr.bf16.mxu0 %v5995
    %8805 = vmatpush1.bf16.msra.mxu0 %v5994
    %8806 = vmatprep.subr.bf16.mxu0 %v6024
    %8807 = vmatpush1.bf16.msra.mxu0 %v6023
    %8808 = vmatprep.subr.bf16.mxu0 %v6053
    %8809 = vmatpush1.bf16.msra.mxu0 %v6052
    %8810 = vmatprep.subr.bf16.mxu0 %v6082
    %8811 = vmatpush1.bf16.msra.mxu0 %v6081
    %8812 = vmatprep.subr.bf16.mxu0 %v6111
    %8813 = vmatpush1.bf16.msra.mxu0 %v6110
    %8814 = vmatprep.subr.bf16.mxu0 %v6140
    %8815 = vmatpush1.bf16.msra.mxu0 %v6139
    %8816 = vmatprep.subr.bf16.mxu0 %v6169
    %8817 = vmatpush1.bf16.msra.mxu0 %v6168
    %8818 = vmatprep.subr.bf16.mxu0 %v6198
    %8819 = vmatpush1.bf16.msra.mxu0 %v6197
    %8820 = vmatprep.mubr.bf16.mxu0 %v81
    %8821 = vmatmul.mubr.bf16.gmra.mrb[0].mxu0 %v80
    %v8822 = vpop.f32.mrb[0].mxu0
    %v8823 = vadd.f32 0.0, %v8822
    %v8824 = vpop.f32.mrb[0].mxu0
    %v8825 = vadd.f32 0.0, %v8824
    %v8826 = vpop.f32.mrb[0].mxu0
    %v8827 = vpop.f32.mrb[0].mxu0
    %8828 = vdwg.mxu0
    %8829 = vmatprep.subr.bf16.mxu0 %v6227
    %8830 = vmatpush1.bf16.msra.mxu0 %v6226
    %8831 = vmatprep.subr.bf16.mxu0 %v6256
    %8832 = vmatpush1.bf16.msra.mxu0 %v6255
    %8833 = vmatprep.subr.bf16.mxu0 %v6285
    %8834 = vmatpush1.bf16.msra.mxu0 %v6284
    %8835 = vmatprep.subr.bf16.mxu0 %v6314
    %8836 = vmatpush1.bf16.msra.mxu0 %v6313
    %8837 = vmatprep.subr.bf16.mxu0 %v6343
    %8838 = vmatpush1.bf16.msra.mxu0 %v6342
    %8839 = vmatprep.subr.bf16.mxu0 %v6372
    %8840 = vmatpush1.bf16.msra.mxu0 %v6371
    %8841 = vmatprep.subr.bf16.mxu0 %v6401
    %8842 = vmatpush1.bf16.msra.mxu0 %v6400
    %8843 = vmatprep.subr.bf16.mxu0 %v6430
    %8844 = vmatpush1.bf16.msra.mxu0 %v6429
    %8845 = vmatprep.subr.bf16.mxu0 %v6459
    %8846 = vmatpush1.bf16.msra.mxu0 %v6458
    %8847 = vmatprep.subr.bf16.mxu0 %v6488
    %8848 = vmatpush1.bf16.msra.mxu0 %v6487
    %8849 = vmatprep.subr.bf16.mxu0 %v6517
    %8850 = vmatpush1.bf16.msra.mxu0 %v6516
    %8851 = vmatprep.subr.bf16.mxu0 %v6546
    %8852 = vmatpush1.bf16.msra.mxu0 %v6545
    %8853 = vmatprep.subr.bf16.mxu0 %v6575
    %8854 = vmatpush1.bf16.msra.mxu0 %v6574
    %8855 = vmatprep.subr.bf16.mxu0 %v6604
    %8856 = vmatpush1.bf16.msra.mxu0 %v6603
    %8857 = vmatprep.subr.bf16.mxu0 %v6633
    %8858 = vmatpush1.bf16.msra.mxu0 %v6632
    %8859 = vmatprep.subr.bf16.mxu0 %v6662
    %8860 = vmatpush1.bf16.msra.mxu0 %v6661
    %8861 = vmatprep.mubr.bf16.mxu0 %v83
    %8862 = vmatmul.mubr.bf16.gmra.mrb[0].mxu0 %v82
    %v8863 = vpop.f32.mrb[0].mxu0
    %v8864 = vadd.f32 %v8823, %v8863
    %v8865 = vpop.f32.mrb[0].mxu0
    %v8866 = vadd.f32 %v8825, %v8865
    %v8867 = vpop.f32.mrb[0].mxu0
    %v8868 = vpop.f32.mrb[0].mxu0
    %8869 = vdwg.mxu0
    %8870 = vmatprep.subr.bf16.mxu0 %v6691
    %8871 = vmatpush1.bf16.msra.mxu0 %v6690
    %8872 = vmatprep.subr.bf16.mxu0 %v6720
    %8873 = vmatpush1.bf16.msra.mxu0 %v6719
    %8874 = vmatprep.subr.bf16.mxu0 %v6749
    %8875 = vmatpush1.bf16.msra.mxu0 %v6748
    %8876 = vmatprep.subr.bf16.mxu0 %v6778
    %8877 = vmatpush1.bf16.msra.mxu0 %v6777
    %8878 = vmatprep.subr.bf16.mxu0 %v6807
    %8879 = vmatpush1.bf16.msra.mxu0 %v6806
    %8880 = vmatprep.subr.bf16.mxu0 %v6836
    %8881 = vmatpush1.bf16.msra.mxu0 %v6835
    %8882 = vmatprep.subr.bf16.mxu0 %v6865
    %8883 = vmatpush1.bf16.msra.mxu0 %v6864
    %8884 = vmatprep.subr.bf16.mxu0 %v6894
    %8885 = vmatpush1.bf16.msra.mxu0 %v6893
    %8886 = vmatprep.subr.bf16.mxu0 %v6923
    %8887 = vmatpush1.bf16.msra.mxu0 %v6922
    %8888 = vmatprep.subr.bf16.mxu0 %v6952
    %8889 = vmatpush1.bf16.msra.mxu0 %v6951
    %8890 = vmatprep.subr.bf16.mxu0 %v6981
    %8891 = vmatpush1.bf16.msra.mxu0 %v6980
    %8892 = vmatprep.subr.bf16.mxu0 %v7010
    %8893 = vmatpush1.bf16.msra.mxu0 %v7009
    %8894 = vmatprep.subr.bf16.mxu0 %v7039
    %8895 = vmatpush1.bf16.msra.mxu0 %v7038
    %8896 = vmatprep.subr.bf16.mxu0 %v7068
    %8897 = vmatpush1.bf16.msra.mxu0 %v7067
    %8898 = vmatprep.subr.bf16.mxu0 %v7097
    %8899 = vmatpush1.bf16.msra.mxu0 %v7096
    %8900 = vmatprep.subr.bf16.mxu0 %v7126
    %8901 = vmatpush1.bf16.msra.mxu0 %v7125
    %8902 = vmatprep.mubr.bf16.mxu0 %v85
    %8903 = vmatmul.mubr.bf16.gmra.mrb[0].mxu0 %v84
    %v8904 = vpop.f32.mrb[0].mxu0
    %v8905 = vadd.f32 %v8864, %v8904
    %v8906 = vpop.f32.mrb[0].mxu0
    %v8907 = vadd.f32 %v8866, %v8906
    %v8908 = vpop.f32.mrb[0].mxu0
    %v8909 = vpop.f32.mrb[0].mxu0
    %8910 = vdwg.mxu0
    %8911 = vmatprep.subr.bf16.mxu0 %v5765
    %8912 = vmatpush1.bf16.msra.mxu0 %v5764
    %8913 = vmatprep.subr.bf16.mxu0 %v5794
    %8914 = vmatpush1.bf16.msra.mxu0 %v5793
    %8915 = vmatprep.subr.bf16.mxu0 %v5823
    %8916 = vmatpush1.bf16.msra.mxu0 %v5822
    %8917 = vmatprep.subr.bf16.mxu0 %v5852
    %8918 = vmatpush1.bf16.msra.mxu0 %v5851
    %8919 = vmatprep.subr.bf16.mxu0 %v5881
    %8920 = vmatpush1.bf16.msra.mxu0 %v5880
    %8921 = vmatprep.subr.bf16.mxu0 %v5910
    %8922 = vmatpush1.bf16.msra.mxu0 %v5909
    %8923 = vmatprep.subr.bf16.mxu0 %v5939
    %8924 = vmatpush1.bf16.msra.mxu0 %v5938
    %8925 = vmatprep.subr.bf16.mxu0 %v5968
    %8926 = vmatpush1.bf16.msra.mxu0 %v5967
    %8927 = vmatprep.subr.bf16.mxu0 %v5997
    %8928 = vmatpush1.bf16.msra.mxu0 %v5996
    %8929 = vmatprep.subr.bf16.mxu0 %v6026
    %8930 = vmatpush1.bf16.msra.mxu0 %v6025
    %8931 = vmatprep.subr.bf16.mxu0 %v6055
    %8932 = vmatpush1.bf16.msra.mxu0 %v6054
    %8933 = vmatprep.subr.bf16.mxu0 %v6084
    %8934 = vmatpush1.bf16.msra.mxu0 %v6083
    %8935 = vmatprep.subr.bf16.mxu0 %v6113
    %8936 = vmatpush1.bf16.msra.mxu0 %v6112
    %8937 = vmatprep.subr.bf16.mxu0 %v6142
    %8938 = vmatpush1.bf16.msra.mxu0 %v6141
    %8939 = vmatprep.subr.bf16.mxu0 %v6171
    %8940 = vmatpush1.bf16.msra.mxu0 %v6170
    %8941 = vmatprep.subr.bf16.mxu0 %v6200
    %8942 = vmatpush1.bf16.msra.mxu0 %v6199
    %8943 = vmatprep.mubr.bf16.mxu0 %v81
    %8944 = vmatmul.mubr.bf16.gmra.mrb[0].mxu0 %v80
    %v8945 = vpop.f32.mrb[0].mxu0
    %v8946 = vadd.f32 0.0, %v8945
    %v8947 = vpop.f32.mrb[0].mxu0
    %v8948 = vadd.f32 0.0, %v8947
    %v8949 = vpop.f32.mrb[0].mxu0
    %v8950 = vpop.f32.mrb[0].mxu0
    %8951 = vdwg.mxu0
    %8952 = vmatprep.subr.bf16.mxu0 %v6229
    %8953 = vmatpush1.bf16.msra.mxu0 %v6228
    %8954 = vmatprep.subr.bf16.mxu0 %v6258
    %8955 = vmatpush1.bf16.msra.mxu0 %v6257
    %8956 = vmatprep.subr.bf16.mxu0 %v6287
    %8957 = vmatpush1.bf16.msra.mxu0 %v6286
    %8958 = vmatprep.subr.bf16.mxu0 %v6316
    %8959 = vmatpush1.bf16.msra.mxu0 %v6315
    %8960 = vmatprep.subr.bf16.mxu0 %v6345
    %8961 = vmatpush1.bf16.msra.mxu0 %v6344
    %8962 = vmatprep.subr.bf16.mxu0 %v6374
    %8963 = vmatpush1.bf16.msra.mxu0 %v6373
    %8964 = vmatprep.subr.bf16.mxu0 %v6403
    %8965 = vmatpush1.bf16.msra.mxu0 %v6402
    %8966 = vmatprep.subr.bf16.mxu0 %v6432
    %8967 = vmatpush1.bf16.msra.mxu0 %v6431
    %8968 = vmatprep.subr.bf16.mxu0 %v6461
    %8969 = vmatpush1.bf16.msra.mxu0 %v6460
    %8970 = vmatprep.subr.bf16.mxu0 %v6490
    %8971 = vmatpush1.bf16.msra.mxu0 %v6489
    %8972 = vmatprep.subr.bf16.mxu0 %v6519
    %8973 = vmatpush1.bf16.msra.mxu0 %v6518
    %8974 = vmatprep.subr.bf16.mxu0 %v6548
    %8975 = vmatpush1.bf16.msra.mxu0 %v6547
    %8976 = vmatprep.subr.bf16.mxu0 %v6577
    %8977 = vmatpush1.bf16.msra.mxu0 %v6576
    %8978 = vmatprep.subr.bf16.mxu0 %v6606
    %8979 = vmatpush1.bf16.msra.mxu0 %v6605
    %8980 = vmatprep.subr.bf16.mxu0 %v6635
    %8981 = vmatpush1.bf16.msra.mxu0 %v6634
    %8982 = vmatprep.subr.bf16.mxu0 %v6664
    %8983 = vmatpush1.bf16.msra.mxu0 %v6663
    %8984 = vmatprep.mubr.bf16.mxu0 %v83
    %8985 = vmatmul.mubr.bf16.gmra.mrb[0].mxu0 %v82
    %v8986 = vpop.f32.mrb[0].mxu0
    %v8987 = vadd.f32 %v8946, %v8986
    %v8988 = vpop.f32.mrb[0].mxu0
    %v8989 = vadd.f32 %v8948, %v8988
    %v8990 = vpop.f32.mrb[0].mxu0
    %v8991 = vpop.f32.mrb[0].mxu0
    %8992 = vdwg.mxu0
    %8993 = vmatprep.subr.bf16.mxu0 %v6693
    %8994 = vmatpush1.bf16.msra.mxu0 %v6692
    %8995 = vmatprep.subr.bf16.mxu0 %v6722
    %8996 = vmatpush1.bf16.msra.mxu0 %v6721
    %8997 = vmatprep.subr.bf16.mxu0 %v6751
    %8998 = vmatpush1.bf16.msra.mxu0 %v6750
    %8999 = vmatprep.subr.bf16.mxu0 %v6780
    %9000 = vmatpush1.bf16.msra.mxu0 %v6779
    %9001 = vmatprep.subr.bf16.mxu0 %v6809
    %9002 = vmatpush1.bf16.msra.mxu0 %v6808
    %9003 = vmatprep.subr.bf16.mxu0 %v6838
    %9004 = vmatpush1.bf16.msra.mxu0 %v6837
    %9005 = vmatprep.subr.bf16.mxu0 %v6867
    %9006 = vmatpush1.bf16.msra.mxu0 %v6866
    %9007 = vmatprep.subr.bf16.mxu0 %v6896
    %9008 = vmatpush1.bf16.msra.mxu0 %v6895
    %9009 = vmatprep.subr.bf16.mxu0 %v6925
    %9010 = vmatpush1.bf16.msra.mxu0 %v6924
    %9011 = vmatprep.subr.bf16.mxu0 %v6954
    %9012 = vmatpush1.bf16.msra.mxu0 %v6953
    %9013 = vmatprep.subr.bf16.mxu0 %v6983
    %9014 = vmatpush1.bf16.msra.mxu0 %v6982
    %9015 = vmatprep.subr.bf16.mxu0 %v7012
    %9016 = vmatpush1.bf16.msra.mxu0 %v7011
    %9017 = vmatprep.subr.bf16.mxu0 %v7041
    %9018 = vmatpush1.bf16.msra.mxu0 %v7040
    %9019 = vmatprep.subr.bf16.mxu0 %v7070
    %9020 = vmatpush1.bf16.msra.mxu0 %v7069
    %9021 = vmatprep.subr.bf16.mxu0 %v7099
    %9022 = vmatpush1.bf16.msra.mxu0 %v7098
    %9023 = vmatprep.subr.bf16.mxu0 %v7128
    %9024 = vmatpush1.bf16.msra.mxu0 %v7127
    %9025 = vmatprep.mubr.bf16.mxu0 %v85
    %9026 = vmatmul.mubr.bf16.gmra.mrb[0].mxu0 %v84
    %v9027 = vpop.f32.mrb[0].mxu0
    %v9028 = vadd.f32 %v8987, %v9027
    %v9029 = vpop.f32.mrb[0].mxu0
    %v9030 = vadd.f32 %v8989, %v9029
    %v9031 = vpop.f32.mrb[0].mxu0
    %v9032 = vpop.f32.mrb[0].mxu0
    %9033 = vdwg.mxu0
    %9034 = vmatprep.subr.bf16.mxu0 %v5767
    %9035 = vmatpush1.bf16.msra.mxu0 %v5766
    %9036 = vmatprep.subr.bf16.mxu0 %v5796
    %9037 = vmatpush1.bf16.msra.mxu0 %v5795
    %9038 = vmatprep.subr.bf16.mxu0 %v5825
    %9039 = vmatpush1.bf16.msra.mxu0 %v5824
    %9040 = vmatprep.subr.bf16.mxu0 %v5854
    %9041 = vmatpush1.bf16.msra.mxu0 %v5853
    %9042 = vmatprep.subr.bf16.mxu0 %v5883
    %9043 = vmatpush1.bf16.msra.mxu0 %v5882
    %9044 = vmatprep.subr.bf16.mxu0 %v5912
    %9045 = vmatpush1.bf16.msra.mxu0 %v5911
    %9046 = vmatprep.subr.bf16.mxu0 %v5941
    %9047 = vmatpush1.bf16.msra.mxu0 %v5940
    %9048 = vmatprep.subr.bf16.mxu0 %v5970
    %9049 = vmatpush1.bf16.msra.mxu0 %v5969
    %9050 = vmatprep.subr.bf16.mxu0 %v5999
    %9051 = vmatpush1.bf16.msra.mxu0 %v5998
    %9052 = vmatprep.subr.bf16.mxu0 %v6028
    %9053 = vmatpush1.bf16.msra.mxu0 %v6027
    %9054 = vmatprep.subr.bf16.mxu0 %v6057
    %9055 = vmatpush1.bf16.msra.mxu0 %v6056
    %9056 = vmatprep.subr.bf16.mxu0 %v6086
    %9057 = vmatpush1.bf16.msra.mxu0 %v6085
    %9058 = vmatprep.subr.bf16.mxu0 %v6115
    %9059 = vmatpush1.bf16.msra.mxu0 %v6114
    %9060 = vmatprep.subr.bf16.mxu0 %v6144
    %9061 = vmatpush1.bf16.msra.mxu0 %v6143
    %9062 = vmatprep.subr.bf16.mxu0 %v6173
    %9063 = vmatpush1.bf16.msra.mxu0 %v6172
    %9064 = vmatprep.subr.bf16.mxu0 %v6202
    %9065 = vmatpush1.bf16.msra.mxu0 %v6201
    %9066 = vmatprep.mubr.bf16.mxu0 %v81
    %9067 = vmatmul.mubr.bf16.gmra.mrb[0].mxu0 %v80
    %v9068 = vpop.f32.mrb[0].mxu0
    %v9069 = vadd.f32 0.0, %v9068
    %v9070 = vpop.f32.mrb[0].mxu0
    %v9071 = vadd.f32 0.0, %v9070
    %v9072 = vpop.f32.mrb[0].mxu0
    %v9073 = vpop.f32.mrb[0].mxu0
    %9074 = vdwg.mxu0
    %9075 = vmatprep.subr.bf16.mxu0 %v6231
    %9076 = vmatpush1.bf16.msra.mxu0 %v6230
    %9077 = vmatprep.subr.bf16.mxu0 %v6260
    %9078 = vmatpush1.bf16.msra.mxu0 %v6259
    %9079 = vmatprep.subr.bf16.mxu0 %v6289
    %9080 = vmatpush1.bf16.msra.mxu0 %v6288
    %9081 = vmatprep.subr.bf16.mxu0 %v6318
    %9082 = vmatpush1.bf16.msra.mxu0 %v6317
    %9083 = vmatprep.subr.bf16.mxu0 %v6347
    %9084 = vmatpush1.bf16.msra.mxu0 %v6346
    %9085 = vmatprep.subr.bf16.mxu0 %v6376
    %9086 = vmatpush1.bf16.msra.mxu0 %v6375
    %9087 = vmatprep.subr.bf16.mxu0 %v6405
    %9088 = vmatpush1.bf16.msra.mxu0 %v6404
    %9089 = vmatprep.subr.bf16.mxu0 %v6434
    %9090 = vmatpush1.bf16.msra.mxu0 %v6433
    %9091 = vmatprep.subr.bf16.mxu0 %v6463
    %9092 = vmatpush1.bf16.msra.mxu0 %v6462
    %9093 = vmatprep.subr.bf16.mxu0 %v6492
    %9094 = vmatpush1.bf16.msra.mxu0 %v6491
    %9095 = vmatprep.subr.bf16.mxu0 %v6521
    %9096 = vmatpush1.bf16.msra.mxu0 %v6520
    %9097 = vmatprep.subr.bf16.mxu0 %v6550
    %9098 = vmatpush1.bf16.msra.mxu0 %v6549
    %9099 = vmatprep.subr.bf16.mxu0 %v6579
    %9100 = vmatpush1.bf16.msra.mxu0 %v6578
    %9101 = vmatprep.subr.bf16.mxu0 %v6608
    %9102 = vmatpush1.bf16.msra.mxu0 %v6607
    %9103 = vmatprep.subr.bf16.mxu0 %v6637
    %9104 = vmatpush1.bf16.msra.mxu0 %v6636
    %9105 = vmatprep.subr.bf16.mxu0 %v6666
    %9106 = vmatpush1.bf16.msra.mxu0 %v6665
    %9107 = vmatprep.mubr.bf16.mxu0 %v83
    %9108 = vmatmul.mubr.bf16.gmra.mrb[0].mxu0 %v82
    %v9109 = vpop.f32.mrb[0].mxu0
    %v9110 = vadd.f32 %v9069, %v9109
    %v9111 = vpop.f32.mrb[0].mxu0
    %v9112 = vadd.f32 %v9071, %v9111
    %v9113 = vpop.f32.mrb[0].mxu0
    %v9114 = vpop.f32.mrb[0].mxu0
    %9115 = vdwg.mxu0
    %9116 = vmatprep.subr.bf16.mxu0 %v6695
    %9117 = vmatpush1.bf16.msra.mxu0 %v6694
    %9118 = vmatprep.subr.bf16.mxu0 %v6724
    %9119 = vmatpush1.bf16.msra.mxu0 %v6723
    %9120 = vmatprep.subr.bf16.mxu0 %v6753
    %9121 = vmatpush1.bf16.msra.mxu0 %v6752
    %9122 = vmatprep.subr.bf16.mxu0 %v6782
    %9123 = vmatpush1.bf16.msra.mxu0 %v6781
    %9124 = vmatprep.subr.bf16.mxu0 %v6811
    %9125 = vmatpush1.bf16.msra.mxu0 %v6810
    %9126 = vmatprep.subr.bf16.mxu0 %v6840
    %9127 = vmatpush1.bf16.msra.mxu0 %v6839
    %9128 = vmatprep.subr.bf16.mxu0 %v6869
    %9129 = vmatpush1.bf16.msra.mxu0 %v6868
    %9130 = vmatprep.subr.bf16.mxu0 %v6898
    %9131 = vmatpush1.bf16.msra.mxu0 %v6897
    %9132 = vmatprep.subr.bf16.mxu0 %v6927
    %9133 = vmatpush1.bf16.msra.mxu0 %v6926
    %9134 = vmatprep.subr.bf16.mxu0 %v6956
    %9135 = vmatpush1.bf16.msra.mxu0 %v6955
    %9136 = vmatprep.subr.bf16.mxu0 %v6985
    %9137 = vmatpush1.bf16.msra.mxu0 %v6984
    %9138 = vmatprep.subr.bf16.mxu0 %v7014
    %9139 = vmatpush1.bf16.msra.mxu0 %v7013
    %9140 = vmatprep.subr.bf16.mxu0 %v7043
    %9141 = vmatpush1.bf16.msra.mxu0 %v7042
    %9142 = vmatprep.subr.bf16.mxu0 %v7072
    %9143 = vmatpush1.bf16.msra.mxu0 %v7071
    %9144 = vmatprep.subr.bf16.mxu0 %v7101
    %9145 = vmatpush1.bf16.msra.mxu0 %v7100
    %9146 = vmatprep.subr.bf16.mxu0 %v7130
    %9147 = vmatpush1.bf16.msra.mxu0 %v7129
    %9148 = vmatprep.mubr.bf16.mxu0 %v85
    %9149 = vmatmul.mubr.bf16.gmra.mrb[0].mxu0 %v84
    %v9150 = vpop.f32.mrb[0].mxu0
    %v9151 = vadd.f32 %v9110, %v9150
    %v9152 = vpop.f32.mrb[0].mxu0
    %v9153 = vadd.f32 %v9112, %v9152
    %v9154 = vpop.f32.mrb[0].mxu0
    %v9155 = vpop.f32.mrb[0].mxu0
    %9156 = vdwg.mxu0
    %9157 = vmatprep.subr.bf16.mxu0 %v5769
    %9158 = vmatpush1.bf16.msra.mxu0 %v5768
    %9159 = vmatprep.subr.bf16.mxu0 %v5798
    %9160 = vmatpush1.bf16.msra.mxu0 %v5797
    %9161 = vmatprep.subr.bf16.mxu0 %v5827
    %9162 = vmatpush1.bf16.msra.mxu0 %v5826
    %9163 = vmatprep.subr.bf16.mxu0 %v5856
    %9164 = vmatpush1.bf16.msra.mxu0 %v5855
    %9165 = vmatprep.subr.bf16.mxu0 %v5885
    %9166 = vmatpush1.bf16.msra.mxu0 %v5884
    %9167 = vmatprep.subr.bf16.mxu0 %v5914
    %9168 = vmatpush1.bf16.msra.mxu0 %v5913
    %9169 = vmatprep.subr.bf16.mxu0 %v5943
    %9170 = vmatpush1.bf16.msra.mxu0 %v5942
    %9171 = vmatprep.subr.bf16.mxu0 %v5972
    %9172 = vmatpush1.bf16.msra.mxu0 %v5971
    %9173 = vmatprep.subr.bf16.mxu0 %v6001
    %9174 = vmatpush1.bf16.msra.mxu0 %v6000
    %9175 = vmatprep.subr.bf16.mxu0 %v6030
    %9176 = vmatpush1.bf16.msra.mxu0 %v6029
    %9177 = vmatprep.subr.bf16.mxu0 %v6059
    %9178 = vmatpush1.bf16.msra.mxu0 %v6058
    %9179 = vmatprep.subr.bf16.mxu0 %v6088
    %9180 = vmatpush1.bf16.msra.mxu0 %v6087
    %9181 = vmatprep.subr.bf16.mxu0 %v6117
    %9182 = vmatpush1.bf16.msra.mxu0 %v6116
    %9183 = vmatprep.subr.bf16.mxu0 %v6146
    %9184 = vmatpush1.bf16.msra.mxu0 %v6145
    %9185 = vmatprep.subr.bf16.mxu0 %v6175
    %9186 = vmatpush1.bf16.msra.mxu0 %v6174
    %9187 = vmatprep.subr.bf16.mxu0 %v6204
    %9188 = vmatpush1.bf16.msra.mxu0 %v6203
    %9189 = vmatprep.mubr.bf16.mxu0 %v81
    %9190 = vmatmul.mubr.bf16.gmra.mrb[0].mxu0 %v80
    %v9191 = vpop.f32.mrb[0].mxu0
    %v9192 = vadd.f32 0.0, %v9191
    %v9193 = vpop.f32.mrb[0].mxu0
    %v9194 = vadd.f32 0.0, %v9193
    %v9195 = vpop.f32.mrb[0].mxu0
    %v9196 = vpop.f32.mrb[0].mxu0
    %9197 = vdwg.mxu0
    %9198 = vmatprep.subr.bf16.mxu0 %v6233
    %9199 = vmatpush1.bf16.msra.mxu0 %v6232
    %9200 = vmatprep.subr.bf16.mxu0 %v6262
    %9201 = vmatpush1.bf16.msra.mxu0 %v6261
    %9202 = vmatprep.subr.bf16.mxu0 %v6291
    %9203 = vmatpush1.bf16.msra.mxu0 %v6290
    %9204 = vmatprep.subr.bf16.mxu0 %v6320
    %9205 = vmatpush1.bf16.msra.mxu0 %v6319
    %9206 = vmatprep.subr.bf16.mxu0 %v6349
    %9207 = vmatpush1.bf16.msra.mxu0 %v6348
    %9208 = vmatprep.subr.bf16.mxu0 %v6378
    %9209 = vmatpush1.bf16.msra.mxu0 %v6377
    %9210 = vmatprep.subr.bf16.mxu0 %v6407
    %9211 = vmatpush1.bf16.msra.mxu0 %v6406
    %9212 = vmatprep.subr.bf16.mxu0 %v6436
    %9213 = vmatpush1.bf16.msra.mxu0 %v6435
    %9214 = vmatprep.subr.bf16.mxu0 %v6465
    %9215 = vmatpush1.bf16.msra.mxu0 %v6464
    %9216 = vmatprep.subr.bf16.mxu0 %v6494
    %9217 = vmatpush1.bf16.msra.mxu0 %v6493
    %9218 = vmatprep.subr.bf16.mxu0 %v6523
    %9219 = vmatpush1.bf16.msra.mxu0 %v6522
    %9220 = vmatprep.subr.bf16.mxu0 %v6552
    %9221 = vmatpush1.bf16.msra.mxu0 %v6551
    %9222 = vmatprep.subr.bf16.mxu0 %v6581
    %9223 = vmatpush1.bf16.msra.mxu0 %v6580
    %9224 = vmatprep.subr.bf16.mxu0 %v6610
    %9225 = vmatpush1.bf16.msra.mxu0 %v6609
    %9226 = vmatprep.subr.bf16.mxu0 %v6639
    %9227 = vmatpush1.bf16.msra.mxu0 %v6638
    %9228 = vmatprep.subr.bf16.mxu0 %v6668
    %9229 = vmatpush1.bf16.msra.mxu0 %v6667
    %9230 = vmatprep.mubr.bf16.mxu0 %v83
    %9231 = vmatmul.mubr.bf16.gmra.mrb[0].mxu0 %v82
    %v9232 = vpop.f32.mrb[0].mxu0
    %v9233 = vadd.f32 %v9192, %v9232
    %v9234 = vpop.f32.mrb[0].mxu0
    %v9235 = vadd.f32 %v9194, %v9234
    %v9236 = vpop.f32.mrb[0].mxu0
    %v9237 = vpop.f32.mrb[0].mxu0
    %9238 = vdwg.mxu0
    %9239 = vmatprep.subr.bf16.mxu0 %v6697
    %9240 = vmatpush1.bf16.msra.mxu0 %v6696
    %9241 = vmatprep.subr.bf16.mxu0 %v6726
    %9242 = vmatpush1.bf16.msra.mxu0 %v6725
    %9243 = vmatprep.subr.bf16.mxu0 %v6755
    %9244 = vmatpush1.bf16.msra.mxu0 %v6754
    %9245 = vmatprep.subr.bf16.mxu0 %v6784
    %9246 = vmatpush1.bf16.msra.mxu0 %v6783
    %9247 = vmatprep.subr.bf16.mxu0 %v6813
    %9248 = vmatpush1.bf16.msra.mxu0 %v6812
    %9249 = vmatprep.subr.bf16.mxu0 %v6842
    %9250 = vmatpush1.bf16.msra.mxu0 %v6841
    %9251 = vmatprep.subr.bf16.mxu0 %v6871
    %9252 = vmatpush1.bf16.msra.mxu0 %v6870
    %9253 = vmatprep.subr.bf16.mxu0 %v6900
    %9254 = vmatpush1.bf16.msra.mxu0 %v6899
    %9255 = vmatprep.subr.bf16.mxu0 %v6929
    %9256 = vmatpush1.bf16.msra.mxu0 %v6928
    %9257 = vmatprep.subr.bf16.mxu0 %v6958
    %9258 = vmatpush1.bf16.msra.mxu0 %v6957
    %9259 = vmatprep.subr.bf16.mxu0 %v6987
    %9260 = vmatpush1.bf16.msra.mxu0 %v6986
    %9261 = vmatprep.subr.bf16.mxu0 %v7016
    %9262 = vmatpush1.bf16.msra.mxu0 %v7015
    %9263 = vmatprep.subr.bf16.mxu0 %v7045
    %9264 = vmatpush1.bf16.msra.mxu0 %v7044
    %9265 = vmatprep.subr.bf16.mxu0 %v7074
    %9266 = vmatpush1.bf16.msra.mxu0 %v7073
    %9267 = vmatprep.subr.bf16.mxu0 %v7103
    %9268 = vmatpush1.bf16.msra.mxu0 %v7102
    %9269 = vmatprep.subr.bf16.mxu0 %v7132
    %9270 = vmatpush1.bf16.msra.mxu0 %v7131
    %9271 = vmatprep.mubr.bf16.mxu0 %v85
    %9272 = vmatmul.mubr.bf16.gmra.mrb[0].mxu0 %v84
    %v9273 = vpop.f32.mrb[0].mxu0
    %v9274 = vadd.f32 %v9233, %v9273
    %v9275 = vpop.f32.mrb[0].mxu0
    %v9276 = vadd.f32 %v9235, %v9275
    %v9277 = vpop.f32.mrb[0].mxu0
    %v9278 = vpop.f32.mrb[0].mxu0
    %9279 = vdwg.mxu0
    %9280 = vmatprep.subr.bf16.mxu0 %v5771
    %9281 = vmatpush1.bf16.msra.mxu0 %v5770
    %9282 = vmatprep.subr.bf16.mxu0 %v5800
    %9283 = vmatpush1.bf16.msra.mxu0 %v5799
    %9284 = vmatprep.subr.bf16.mxu0 %v5829
    %9285 = vmatpush1.bf16.msra.mxu0 %v5828
    %9286 = vmatprep.subr.bf16.mxu0 %v5858
    %9287 = vmatpush1.bf16.msra.mxu0 %v5857
    %9288 = vmatprep.subr.bf16.mxu0 %v5887
    %9289 = vmatpush1.bf16.msra.mxu0 %v5886
    %9290 = vmatprep.subr.bf16.mxu0 %v5916
    %9291 = vmatpush1.bf16.msra.mxu0 %v5915
    %9292 = vmatprep.subr.bf16.mxu0 %v5945
    %9293 = vmatpush1.bf16.msra.mxu0 %v5944
    %9294 = vmatprep.subr.bf16.mxu0 %v5974
    %9295 = vmatpush1.bf16.msra.mxu0 %v5973
    %9296 = vmatprep.subr.bf16.mxu0 %v6003
    %9297 = vmatpush1.bf16.msra.mxu0 %v6002
    %9298 = vmatprep.subr.bf16.mxu0 %v6032
    %9299 = vmatpush1.bf16.msra.mxu0 %v6031
    %9300 = vmatprep.subr.bf16.mxu0 %v6061
    %9301 = vmatpush1.bf16.msra.mxu0 %v6060
    %9302 = vmatprep.subr.bf16.mxu0 %v6090
    %9303 = vmatpush1.bf16.msra.mxu0 %v6089
    %9304 = vmatprep.subr.bf16.mxu0 %v6119
    %9305 = vmatpush1.bf16.msra.mxu0 %v6118
    %9306 = vmatprep.subr.bf16.mxu0 %v6148
    %9307 = vmatpush1.bf16.msra.mxu0 %v6147
    %9308 = vmatprep.subr.bf16.mxu0 %v6177
    %9309 = vmatpush1.bf16.msra.mxu0 %v6176
    %9310 = vmatprep.subr.bf16.mxu0 %v6206
    %9311 = vmatpush1.bf16.msra.mxu0 %v6205
    %9312 = vmatprep.mubr.bf16.mxu0 %v81
    %9313 = vmatmul.mubr.bf16.gmra.mrb[0].mxu0 %v80
    %v9314 = vpop.f32.mrb[0].mxu0
    %v9315 = vadd.f32 0.0, %v9314
    %v9316 = vpop.f32.mrb[0].mxu0
    %v9317 = vadd.f32 0.0, %v9316
    %v9318 = vpop.f32.mrb[0].mxu0
    %v9319 = vpop.f32.mrb[0].mxu0
    %9320 = vdwg.mxu0
    %9321 = vmatprep.subr.bf16.mxu0 %v6235
    %9322 = vmatpush1.bf16.msra.mxu0 %v6234
    %9323 = vmatprep.subr.bf16.mxu0 %v6264
    %9324 = vmatpush1.bf16.msra.mxu0 %v6263
    %9325 = vmatprep.subr.bf16.mxu0 %v6293
    %9326 = vmatpush1.bf16.msra.mxu0 %v6292
    %9327 = vmatprep.subr.bf16.mxu0 %v6322
    %9328 = vmatpush1.bf16.msra.mxu0 %v6321
    %9329 = vmatprep.subr.bf16.mxu0 %v6351
    %9330 = vmatpush1.bf16.msra.mxu0 %v6350
    %9331 = vmatprep.subr.bf16.mxu0 %v6380
    %9332 = vmatpush1.bf16.msra.mxu0 %v6379
    %9333 = vmatprep.subr.bf16.mxu0 %v6409
    %9334 = vmatpush1.bf16.msra.mxu0 %v6408
    %9335 = vmatprep.subr.bf16.mxu0 %v6438
    %9336 = vmatpush1.bf16.msra.mxu0 %v6437
    %9337 = vmatprep.subr.bf16.mxu0 %v6467
    %9338 = vmatpush1.bf16.msra.mxu0 %v6466
    %9339 = vmatprep.subr.bf16.mxu0 %v6496
    %9340 = vmatpush1.bf16.msra.mxu0 %v6495
    %9341 = vmatprep.subr.bf16.mxu0 %v6525
    %9342 = vmatpush1.bf16.msra.mxu0 %v6524
    %9343 = vmatprep.subr.bf16.mxu0 %v6554
    %9344 = vmatpush1.bf16.msra.mxu0 %v6553
    %9345 = vmatprep.subr.bf16.mxu0 %v6583
    %9346 = vmatpush1.bf16.msra.mxu0 %v6582
    %9347 = vmatprep.subr.bf16.mxu0 %v6612
    %9348 = vmatpush1.bf16.msra.mxu0 %v6611
    %9349 = vmatprep.subr.bf16.mxu0 %v6641
    %9350 = vmatpush1.bf16.msra.mxu0 %v6640
    %9351 = vmatprep.subr.bf16.mxu0 %v6670
    %9352 = vmatpush1.bf16.msra.mxu0 %v6669
    %9353 = vmatprep.mubr.bf16.mxu0 %v83
    %9354 = vmatmul.mubr.bf16.gmra.mrb[0].mxu0 %v82
    %v9355 = vpop.f32.mrb[0].mxu0
    %v9356 = vadd.f32 %v9315, %v9355
    %v9357 = vpop.f32.mrb[0].mxu0
    %v9358 = vadd.f32 %v9317, %v9357
    %v9359 = vpop.f32.mrb[0].mxu0
    %v9360 = vpop.f32.mrb[0].mxu0
    %9361 = vdwg.mxu0
    %9362 = vmatprep.subr.bf16.mxu0 %v6699
    %9363 = vmatpush1.bf16.msra.mxu0 %v6698
    %9364 = vmatprep.subr.bf16.mxu0 %v6728
    %9365 = vmatpush1.bf16.msra.mxu0 %v6727
    %9366 = vmatprep.subr.bf16.mxu0 %v6757
    %9367 = vmatpush1.bf16.msra.mxu0 %v6756
    %9368 = vmatprep.subr.bf16.mxu0 %v6786
    %9369 = vmatpush1.bf16.msra.mxu0 %v6785
    %9370 = vmatprep.subr.bf16.mxu0 %v6815
    %9371 = vmatpush1.bf16.msra.mxu0 %v6814
    %9372 = vmatprep.subr.bf16.mxu0 %v6844
    %9373 = vmatpush1.bf16.msra.mxu0 %v6843
    %9374 = vmatprep.subr.bf16.mxu0 %v6873
    %9375 = vmatpush1.bf16.msra.mxu0 %v6872
    %9376 = vmatprep.subr.bf16.mxu0 %v6902
    %9377 = vmatpush1.bf16.msra.mxu0 %v6901
    %9378 = vmatprep.subr.bf16.mxu0 %v6931
    %9379 = vmatpush1.bf16.msra.mxu0 %v6930
    %9380 = vmatprep.subr.bf16.mxu0 %v6960
    %9381 = vmatpush1.bf16.msra.mxu0 %v6959
    %9382 = vmatprep.subr.bf16.mxu0 %v6989
    %9383 = vmatpush1.bf16.msra.mxu0 %v6988
    %9384 = vmatprep.subr.bf16.mxu0 %v7018
    %9385 = vmatpush1.bf16.msra.mxu0 %v7017
    %9386 = vmatprep.subr.bf16.mxu0 %v7047
    %9387 = vmatpush1.bf16.msra.mxu0 %v7046
    %9388 = vmatprep.subr.bf16.mxu0 %v7076
    %9389 = vmatpush1.bf16.msra.mxu0 %v7075
    %9390 = vmatprep.subr.bf16.mxu0 %v7105
    %9391 = vmatpush1.bf16.msra.mxu0 %v7104
    %9392 = vmatprep.subr.bf16.mxu0 %v7134
    %9393 = vmatpush1.bf16.msra.mxu0 %v7133
    %9394 = vmatprep.mubr.bf16.mxu0 %v85
    %9395 = vmatmul.mubr.bf16.gmra.mrb[0].mxu0 %v84
    %v9396 = vpop.f32.mrb[0].mxu0
    %v9397 = vadd.f32 %v9356, %v9396
    %v9398 = vpop.f32.mrb[0].mxu0
    %v9399 = vadd.f32 %v9358, %v9398
    %v9400 = vpop.f32.mrb[0].mxu0
    %v9401 = vpop.f32.mrb[0].mxu0
    %9402 = vdwg.mxu0
    %9403 = vmatprep.subr.bf16.mxu0 %v5773
    %9404 = vmatpush1.bf16.msra.mxu0 %v5772
    %9405 = vmatprep.subr.bf16.mxu0 %v5802
    %9406 = vmatpush1.bf16.msra.mxu0 %v5801
    %9407 = vmatprep.subr.bf16.mxu0 %v5831
    %9408 = vmatpush1.bf16.msra.mxu0 %v5830
    %9409 = vmatprep.subr.bf16.mxu0 %v5860
    %9410 = vmatpush1.bf16.msra.mxu0 %v5859
    %9411 = vmatprep.subr.bf16.mxu0 %v5889
    %9412 = vmatpush1.bf16.msra.mxu0 %v5888
    %9413 = vmatprep.subr.bf16.mxu0 %v5918
    %9414 = vmatpush1.bf16.msra.mxu0 %v5917
    %9415 = vmatprep.subr.bf16.mxu0 %v5947
    %9416 = vmatpush1.bf16.msra.mxu0 %v5946
    %9417 = vmatprep.subr.bf16.mxu0 %v5976
    %9418 = vmatpush1.bf16.msra.mxu0 %v5975
    %9419 = vmatprep.subr.bf16.mxu0 %v6005
    %9420 = vmatpush1.bf16.msra.mxu0 %v6004
    %9421 = vmatprep.subr.bf16.mxu0 %v6034
    %9422 = vmatpush1.bf16.msra.mxu0 %v6033
    %9423 = vmatprep.subr.bf16.mxu0 %v6063
    %9424 = vmatpush1.bf16.msra.mxu0 %v6062
    %9425 = vmatprep.subr.bf16.mxu0 %v6092
    %9426 = vmatpush1.bf16.msra.mxu0 %v6091
    %9427 = vmatprep.subr.bf16.mxu0 %v6121
    %9428 = vmatpush1.bf16.msra.mxu0 %v6120
    %9429 = vmatprep.subr.bf16.mxu0 %v6150
    %9430 = vmatpush1.bf16.msra.mxu0 %v6149
    %9431 = vmatprep.subr.bf16.mxu0 %v6179
    %9432 = vmatpush1.bf16.msra.mxu0 %v6178
    %9433 = vmatprep.subr.bf16.mxu0 %v6208
    %9434 = vmatpush1.bf16.msra.mxu0 %v6207
    %9435 = vmatprep.mubr.bf16.mxu0 %v81
    %9436 = vmatmul.mubr.bf16.gmra.mrb[0].mxu0 %v80
    %v9437 = vpop.f32.mrb[0].mxu0
    %v9438 = vadd.f32 0.0, %v9437
    %v9439 = vpop.f32.mrb[0].mxu0
    %v9440 = vadd.f32 0.0, %v9439
    %v9441 = vpop.f32.mrb[0].mxu0
    %v9442 = vpop.f32.mrb[0].mxu0
    %9443 = vdwg.mxu0
    %9444 = vmatprep.subr.bf16.mxu0 %v6237
    %9445 = vmatpush1.bf16.msra.mxu0 %v6236
    %9446 = vmatprep.subr.bf16.mxu0 %v6266
    %9447 = vmatpush1.bf16.msra.mxu0 %v6265
    %9448 = vmatprep.subr.bf16.mxu0 %v6295
    %9449 = vmatpush1.bf16.msra.mxu0 %v6294
    %9450 = vmatprep.subr.bf16.mxu0 %v6324
    %9451 = vmatpush1.bf16.msra.mxu0 %v6323
    %9452 = vmatprep.subr.bf16.mxu0 %v6353
    %9453 = vmatpush1.bf16.msra.mxu0 %v6352
    %9454 = vmatprep.subr.bf16.mxu0 %v6382
    %9455 = vmatpush1.bf16.msra.mxu0 %v6381
    %9456 = vmatprep.subr.bf16.mxu0 %v6411
    %9457 = vmatpush1.bf16.msra.mxu0 %v6410
    %9458 = vmatprep.subr.bf16.mxu0 %v6440
    %9459 = vmatpush1.bf16.msra.mxu0 %v6439
    %9460 = vmatprep.subr.bf16.mxu0 %v6469
    %9461 = vmatpush1.bf16.msra.mxu0 %v6468
    %9462 = vmatprep.subr.bf16.mxu0 %v6498
    %9463 = vmatpush1.bf16.msra.mxu0 %v6497
    %9464 = vmatprep.subr.bf16.mxu0 %v6527
    %9465 = vmatpush1.bf16.msra.mxu0 %v6526
    %9466 = vmatprep.subr.bf16.mxu0 %v6556
    %9467 = vmatpush1.bf16.msra.mxu0 %v6555
    %9468 = vmatprep.subr.bf16.mxu0 %v6585
    %9469 = vmatpush1.bf16.msra.mxu0 %v6584
    %9470 = vmatprep.subr.bf16.mxu0 %v6614
    %9471 = vmatpush1.bf16.msra.mxu0 %v6613
    %9472 = vmatprep.subr.bf16.mxu0 %v6643
    %9473 = vmatpush1.bf16.msra.mxu0 %v6642
    %9474 = vmatprep.subr.bf16.mxu0 %v6672
    %9475 = vmatpush1.bf16.msra.mxu0 %v6671
    %9476 = vmatprep.mubr.bf16.mxu0 %v83
    %9477 = vmatmul.mubr.bf16.gmra.mrb[0].mxu0 %v82
    %v9478 = vpop.f32.mrb[0].mxu0
    %v9479 = vadd.f32 %v9438, %v9478
    %v9480 = vpop.f32.mrb[0].mxu0
    %v9481 = vadd.f32 %v9440, %v9480
    %v9482 = vpop.f32.mrb[0].mxu0
    %v9483 = vpop.f32.mrb[0].mxu0
    %9484 = vdwg.mxu0
    %9485 = vmatprep.subr.bf16.mxu0 %v6701
    %9486 = vmatpush1.bf16.msra.mxu0 %v6700
    %9487 = vmatprep.subr.bf16.mxu0 %v6730
    %9488 = vmatpush1.bf16.msra.mxu0 %v6729
    %9489 = vmatprep.subr.bf16.mxu0 %v6759
    %9490 = vmatpush1.bf16.msra.mxu0 %v6758
    %9491 = vmatprep.subr.bf16.mxu0 %v6788
    %9492 = vmatpush1.bf16.msra.mxu0 %v6787
    %9493 = vmatprep.subr.bf16.mxu0 %v6817
    %9494 = vmatpush1.bf16.msra.mxu0 %v6816
    %9495 = vmatprep.subr.bf16.mxu0 %v6846
    %9496 = vmatpush1.bf16.msra.mxu0 %v6845
    %9497 = vmatprep.subr.bf16.mxu0 %v6875
    %9498 = vmatpush1.bf16.msra.mxu0 %v6874
    %9499 = vmatprep.subr.bf16.mxu0 %v6904
    %9500 = vmatpush1.bf16.msra.mxu0 %v6903
    %9501 = vmatprep.subr.bf16.mxu0 %v6933
    %9502 = vmatpush1.bf16.msra.mxu0 %v6932
    %9503 = vmatprep.subr.bf16.mxu0 %v6962
    %9504 = vmatpush1.bf16.msra.mxu0 %v6961
    %9505 = vmatprep.subr.bf16.mxu0 %v6991
    %9506 = vmatpush1.bf16.msra.mxu0 %v6990
    %9507 = vmatprep.subr.bf16.mxu0 %v7020
    %9508 = vmatpush1.bf16.msra.mxu0 %v7019
    %9509 = vmatprep.subr.bf16.mxu0 %v7049
    %9510 = vmatpush1.bf16.msra.mxu0 %v7048
    %9511 = vmatprep.subr.bf16.mxu0 %v7078
    %9512 = vmatpush1.bf16.msra.mxu0 %v7077
    %9513 = vmatprep.subr.bf16.mxu0 %v7107
    %9514 = vmatpush1.bf16.msra.mxu0 %v7106
    %9515 = vmatprep.subr.bf16.mxu0 %v7136
    %9516 = vmatpush1.bf16.msra.mxu0 %v7135
    %9517 = vmatprep.mubr.bf16.mxu0 %v85
    %9518 = vmatmul.mubr.bf16.gmra.mrb[0].mxu0 %v84
    %v9519 = vpop.f32.mrb[0].mxu0
    %v9520 = vadd.f32 %v9479, %v9519
    %v9521 = vpop.f32.mrb[0].mxu0
    %v9522 = vadd.f32 %v9481, %v9521
    %v9523 = vpop.f32.mrb[0].mxu0
    %v9524 = vpop.f32.mrb[0].mxu0
    %9525 = vdwg.mxu0
    %9526 = vmatprep.subr.bf16.mxu0 %v5775
    %9527 = vmatpush1.bf16.msra.mxu0 %v5774
    %9528 = vmatprep.subr.bf16.mxu0 %v5804
    %9529 = vmatpush1.bf16.msra.mxu0 %v5803
    %9530 = vmatprep.subr.bf16.mxu0 %v5833
    %9531 = vmatpush1.bf16.msra.mxu0 %v5832
    %9532 = vmatprep.subr.bf16.mxu0 %v5862
    %9533 = vmatpush1.bf16.msra.mxu0 %v5861
    %9534 = vmatprep.subr.bf16.mxu0 %v5891
    %9535 = vmatpush1.bf16.msra.mxu0 %v5890
    %9536 = vmatprep.subr.bf16.mxu0 %v5920
    %9537 = vmatpush1.bf16.msra.mxu0 %v5919
    %9538 = vmatprep.subr.bf16.mxu0 %v5949
    %9539 = vmatpush1.bf16.msra.mxu0 %v5948
    %9540 = vmatprep.subr.bf16.mxu0 %v5978
    %9541 = vmatpush1.bf16.msra.mxu0 %v5977
    %9542 = vmatprep.subr.bf16.mxu0 %v6007
    %9543 = vmatpush1.bf16.msra.mxu0 %v6006
    %9544 = vmatprep.subr.bf16.mxu0 %v6036
    %9545 = vmatpush1.bf16.msra.mxu0 %v6035
    %9546 = vmatprep.subr.bf16.mxu0 %v6065
    %9547 = vmatpush1.bf16.msra.mxu0 %v6064
    %9548 = vmatprep.subr.bf16.mxu0 %v6094
    %9549 = vmatpush1.bf16.msra.mxu0 %v6093
    %9550 = vmatprep.subr.bf16.mxu0 %v6123
    %9551 = vmatpush1.bf16.msra.mxu0 %v6122
    %9552 = vmatprep.subr.bf16.mxu0 %v6152
    %9553 = vmatpush1.bf16.msra.mxu0 %v6151
    %9554 = vmatprep.subr.bf16.mxu0 %v6181
    %9555 = vmatpush1.bf16.msra.mxu0 %v6180
    %9556 = vmatprep.subr.bf16.mxu0 %v6210
    %9557 = vmatpush1.bf16.msra.mxu0 %v6209
    %9558 = vmatprep.mubr.bf16.mxu0 %v81
    %9559 = vmatmul.mubr.bf16.gmra.mrb[0].mxu0 %v80
    %v9560 = vpop.f32.mrb[0].mxu0
    %v9561 = vadd.f32 0.0, %v9560
    %v9562 = vpop.f32.mrb[0].mxu0
    %v9563 = vadd.f32 0.0, %v9562
    %v9564 = vpop.f32.mrb[0].mxu0
    %v9565 = vpop.f32.mrb[0].mxu0
    %9566 = vdwg.mxu0
    %9567 = vmatprep.subr.bf16.mxu0 %v6239
    %9568 = vmatpush1.bf16.msra.mxu0 %v6238
    %9569 = vmatprep.subr.bf16.mxu0 %v6268
    %9570 = vmatpush1.bf16.msra.mxu0 %v6267
    %9571 = vmatprep.subr.bf16.mxu0 %v6297
    %9572 = vmatpush1.bf16.msra.mxu0 %v6296
    %9573 = vmatprep.subr.bf16.mxu0 %v6326
    %9574 = vmatpush1.bf16.msra.mxu0 %v6325
    %9575 = vmatprep.subr.bf16.mxu0 %v6355
    %9576 = vmatpush1.bf16.msra.mxu0 %v6354
    %9577 = vmatprep.subr.bf16.mxu0 %v6384
    %9578 = vmatpush1.bf16.msra.mxu0 %v6383
    %9579 = vmatprep.subr.bf16.mxu0 %v6413
    %9580 = vmatpush1.bf16.msra.mxu0 %v6412
    %9581 = vmatprep.subr.bf16.mxu0 %v6442
    %9582 = vmatpush1.bf16.msra.mxu0 %v6441
    %9583 = vmatprep.subr.bf16.mxu0 %v6471
    %9584 = vmatpush1.bf16.msra.mxu0 %v6470
    %9585 = vmatprep.subr.bf16.mxu0 %v6500
    %9586 = vmatpush1.bf16.msra.mxu0 %v6499
    %9587 = vmatprep.subr.bf16.mxu0 %v6529
    %9588 = vmatpush1.bf16.msra.mxu0 %v6528
    %9589 = vmatprep.subr.bf16.mxu0 %v6558
    %9590 = vmatpush1.bf16.msra.mxu0 %v6557
    %9591 = vmatprep.subr.bf16.mxu0 %v6587
    %9592 = vmatpush1.bf16.msra.mxu0 %v6586
    %9593 = vmatprep.subr.bf16.mxu0 %v6616
    %9594 = vmatpush1.bf16.msra.mxu0 %v6615
    %9595 = vmatprep.subr.bf16.mxu0 %v6645
    %9596 = vmatpush1.bf16.msra.mxu0 %v6644
    %9597 = vmatprep.subr.bf16.mxu0 %v6674
    %9598 = vmatpush1.bf16.msra.mxu0 %v6673
    %9599 = vmatprep.mubr.bf16.mxu0 %v83
    %9600 = vmatmul.mubr.bf16.gmra.mrb[0].mxu0 %v82
    %v9601 = vpop.f32.mrb[0].mxu0
    %v9602 = vadd.f32 %v9561, %v9601
    %v9603 = vpop.f32.mrb[0].mxu0
    %v9604 = vadd.f32 %v9563, %v9603
    %v9605 = vpop.f32.mrb[0].mxu0
    %v9606 = vpop.f32.mrb[0].mxu0
    %9607 = vdwg.mxu0
    %9608 = vmatprep.subr.bf16.mxu0 %v6703
    %9609 = vmatpush1.bf16.msra.mxu0 %v6702
    %9610 = vmatprep.subr.bf16.mxu0 %v6732
    %9611 = vmatpush1.bf16.msra.mxu0 %v6731
    %9612 = vmatprep.subr.bf16.mxu0 %v6761
    %9613 = vmatpush1.bf16.msra.mxu0 %v6760
    %9614 = vmatprep.subr.bf16.mxu0 %v6790
    %9615 = vmatpush1.bf16.msra.mxu0 %v6789
    %9616 = vmatprep.subr.bf16.mxu0 %v6819
    %9617 = vmatpush1.bf16.msra.mxu0 %v6818
    %9618 = vmatprep.subr.bf16.mxu0 %v6848
    %9619 = vmatpush1.bf16.msra.mxu0 %v6847
    %9620 = vmatprep.subr.bf16.mxu0 %v6877
    %9621 = vmatpush1.bf16.msra.mxu0 %v6876
    %9622 = vmatprep.subr.bf16.mxu0 %v6906
    %9623 = vmatpush1.bf16.msra.mxu0 %v6905
    %9624 = vmatprep.subr.bf16.mxu0 %v6935
    %9625 = vmatpush1.bf16.msra.mxu0 %v6934
    %9626 = vmatprep.subr.bf16.mxu0 %v6964
    %9627 = vmatpush1.bf16.msra.mxu0 %v6963
    %9628 = vmatprep.subr.bf16.mxu0 %v6993
    %9629 = vmatpush1.bf16.msra.mxu0 %v6992
    %9630 = vmatprep.subr.bf16.mxu0 %v7022
    %9631 = vmatpush1.bf16.msra.mxu0 %v7021
    %9632 = vmatprep.subr.bf16.mxu0 %v7051
    %9633 = vmatpush1.bf16.msra.mxu0 %v7050
    %9634 = vmatprep.subr.bf16.mxu0 %v7080
    %9635 = vmatpush1.bf16.msra.mxu0 %v7079
    %9636 = vmatprep.subr.bf16.mxu0 %v7109
    %9637 = vmatpush1.bf16.msra.mxu0 %v7108
    %9638 = vmatprep.subr.bf16.mxu0 %v7138
    %9639 = vmatpush1.bf16.msra.mxu0 %v7137
    %9640 = vmatprep.mubr.bf16.mxu0 %v85
    %9641 = vmatmul.mubr.bf16.gmra.mrb[0].mxu0 %v84
    %v9642 = vpop.f32.mrb[0].mxu0
    %v9643 = vadd.f32 %v9602, %v9642
    %v9644 = vpop.f32.mrb[0].mxu0
    %v9645 = vadd.f32 %v9604, %v9644
    %v9646 = vpop.f32.mrb[0].mxu0
    %v9647 = vpop.f32.mrb[0].mxu0
    %9648 = vdwg.mxu0
    %9649 = vmatprep.subr.bf16.mxu0 %v5777
    %9650 = vmatpush1.bf16.msra.mxu0 %v5776
    %9651 = vmatprep.subr.bf16.mxu0 %v5806
    %9652 = vmatpush1.bf16.msra.mxu0 %v5805
    %9653 = vmatprep.subr.bf16.mxu0 %v5835
    %9654 = vmatpush1.bf16.msra.mxu0 %v5834
    %9655 = vmatprep.subr.bf16.mxu0 %v5864
    %9656 = vmatpush1.bf16.msra.mxu0 %v5863
    %9657 = vmatprep.subr.bf16.mxu0 %v5893
    %9658 = vmatpush1.bf16.msra.mxu0 %v5892
    %9659 = vmatprep.subr.bf16.mxu0 %v5922
    %9660 = vmatpush1.bf16.msra.mxu0 %v5921
    %9661 = vmatprep.subr.bf16.mxu0 %v5951
    %9662 = vmatpush1.bf16.msra.mxu0 %v5950
    %9663 = vmatprep.subr.bf16.mxu0 %v5980
    %9664 = vmatpush1.bf16.msra.mxu0 %v5979
    %9665 = vmatprep.subr.bf16.mxu0 %v6009
    %9666 = vmatpush1.bf16.msra.mxu0 %v6008
    %9667 = vmatprep.subr.bf16.mxu0 %v6038
    %9668 = vmatpush1.bf16.msra.mxu0 %v6037
    %9669 = vmatprep.subr.bf16.mxu0 %v6067
    %9670 = vmatpush1.bf16.msra.mxu0 %v6066
    %9671 = vmatprep.subr.bf16.mxu0 %v6096
    %9672 = vmatpush1.bf16.msra.mxu0 %v6095
    %9673 = vmatprep.subr.bf16.mxu0 %v6125
    %9674 = vmatpush1.bf16.msra.mxu0 %v6124
    %9675 = vmatprep.subr.bf16.mxu0 %v6154
    %9676 = vmatpush1.bf16.msra.mxu0 %v6153
    %9677 = vmatprep.subr.bf16.mxu0 %v6183
    %9678 = vmatpush1.bf16.msra.mxu0 %v6182
    %9679 = vmatprep.subr.bf16.mxu0 %v6212
    %9680 = vmatpush1.bf16.msra.mxu0 %v6211
    %9681 = vmatprep.mubr.bf16.mxu0 %v81
    %9682 = vmatmul.mubr.bf16.gmra.mrb[0].mxu0 %v80
    %v9683 = vpop.f32.mrb[0].mxu0
    %v9684 = vadd.f32 0.0, %v9683
    %v9685 = vpop.f32.mrb[0].mxu0
    %v9686 = vadd.f32 0.0, %v9685
    %v9687 = vpop.f32.mrb[0].mxu0
    %v9688 = vpop.f32.mrb[0].mxu0
    %9689 = vdwg.mxu0
    %9690 = vmatprep.subr.bf16.mxu0 %v6241
    %9691 = vmatpush1.bf16.msra.mxu0 %v6240
    %9692 = vmatprep.subr.bf16.mxu0 %v6270
    %9693 = vmatpush1.bf16.msra.mxu0 %v6269
    %9694 = vmatprep.subr.bf16.mxu0 %v6299
    %9695 = vmatpush1.bf16.msra.mxu0 %v6298
    %9696 = vmatprep.subr.bf16.mxu0 %v6328
    %9697 = vmatpush1.bf16.msra.mxu0 %v6327
    %9698 = vmatprep.subr.bf16.mxu0 %v6357
    %9699 = vmatpush1.bf16.msra.mxu0 %v6356
    %9700 = vmatprep.subr.bf16.mxu0 %v6386
    %9701 = vmatpush1.bf16.msra.mxu0 %v6385
    %9702 = vmatprep.subr.bf16.mxu0 %v6415
    %9703 = vmatpush1.bf16.msra.mxu0 %v6414
    %9704 = vmatprep.subr.bf16.mxu0 %v6444
    %9705 = vmatpush1.bf16.msra.mxu0 %v6443
    %9706 = vmatprep.subr.bf16.mxu0 %v6473
    %9707 = vmatpush1.bf16.msra.mxu0 %v6472
    %9708 = vmatprep.subr.bf16.mxu0 %v6502
    %9709 = vmatpush1.bf16.msra.mxu0 %v6501
    %9710 = vmatprep.subr.bf16.mxu0 %v6531
    %9711 = vmatpush1.bf16.msra.mxu0 %v6530
    %9712 = vmatprep.subr.bf16.mxu0 %v6560
    %9713 = vmatpush1.bf16.msra.mxu0 %v6559
    %9714 = vmatprep.subr.bf16.mxu0 %v6589
    %9715 = vmatpush1.bf16.msra.mxu0 %v6588
    %9716 = vmatprep.subr.bf16.mxu0 %v6618
    %9717 = vmatpush1.bf16.msra.mxu0 %v6617
    %9718 = vmatprep.subr.bf16.mxu0 %v6647
    %9719 = vmatpush1.bf16.msra.mxu0 %v6646
    %9720 = vmatprep.subr.bf16.mxu0 %v6676
    %9721 = vmatpush1.bf16.msra.mxu0 %v6675
    %9722 = vmatprep.mubr.bf16.mxu0 %v83
    %9723 = vmatmul.mubr.bf16.gmra.mrb[0].mxu0 %v82
    %v9724 = vpop.f32.mrb[0].mxu0
    %v9725 = vadd.f32 %v9684, %v9724
    %v9726 = vpop.f32.mrb[0].mxu0
    %v9727 = vadd.f32 %v9686, %v9726
    %v9728 = vpop.f32.mrb[0].mxu0
    %v9729 = vpop.f32.mrb[0].mxu0
    %9730 = vdwg.mxu0
    %9731 = vmatprep.subr.bf16.mxu0 %v6705
    %9732 = vmatpush1.bf16.msra.mxu0 %v6704
    %9733 = vmatprep.subr.bf16.mxu0 %v6734
    %9734 = vmatpush1.bf16.msra.mxu0 %v6733
    %9735 = vmatprep.subr.bf16.mxu0 %v6763
    %9736 = vmatpush1.bf16.msra.mxu0 %v6762
    %9737 = vmatprep.subr.bf16.mxu0 %v6792
    %9738 = vmatpush1.bf16.msra.mxu0 %v6791
    %9739 = vmatprep.subr.bf16.mxu0 %v6821
    %9740 = vmatpush1.bf16.msra.mxu0 %v6820
    %9741 = vmatprep.subr.bf16.mxu0 %v6850
    %9742 = vmatpush1.bf16.msra.mxu0 %v6849
    %9743 = vmatprep.subr.bf16.mxu0 %v6879
    %9744 = vmatpush1.bf16.msra.mxu0 %v6878
    %9745 = vmatprep.subr.bf16.mxu0 %v6908
    %9746 = vmatpush1.bf16.msra.mxu0 %v6907
    %9747 = vmatprep.subr.bf16.mxu0 %v6937
    %9748 = vmatpush1.bf16.msra.mxu0 %v6936
    %9749 = vmatprep.subr.bf16.mxu0 %v6966
    %9750 = vmatpush1.bf16.msra.mxu0 %v6965
    %9751 = vmatprep.subr.bf16.mxu0 %v6995
    %9752 = vmatpush1.bf16.msra.mxu0 %v6994
    %9753 = vmatprep.subr.bf16.mxu0 %v7024
    %9754 = vmatpush1.bf16.msra.mxu0 %v7023
    %9755 = vmatprep.subr.bf16.mxu0 %v7053
    %9756 = vmatpush1.bf16.msra.mxu0 %v7052
    %9757 = vmatprep.subr.bf16.mxu0 %v7082
    %9758 = vmatpush1.bf16.msra.mxu0 %v7081
    %9759 = vmatprep.subr.bf16.mxu0 %v7111
    %9760 = vmatpush1.bf16.msra.mxu0 %v7110
    %9761 = vmatprep.subr.bf16.mxu0 %v7140
    %9762 = vmatpush1.bf16.msra.mxu0 %v7139
    %9763 = vmatprep.mubr.bf16.mxu0 %v85
    %9764 = vmatmul.mubr.bf16.gmra.mrb[0].mxu0 %v84
    %v9765 = vpop.f32.mrb[0].mxu0
    %v9766 = vadd.f32 %v9725, %v9765
    %v9767 = vpop.f32.mrb[0].mxu0
    %v9768 = vadd.f32 %v9727, %v9767
    %v9769 = vpop.f32.mrb[0].mxu0
    %v9770 = vpop.f32.mrb[0].mxu0
    %9771 = vdwg.mxu0
    %9772 = vmatprep.subr.bf16.mxu0 %v5779
    %9773 = vmatpush1.bf16.msra.mxu0 %v5778
    %9774 = vmatprep.subr.bf16.mxu0 %v5808
    %9775 = vmatpush1.bf16.msra.mxu0 %v5807
    %9776 = vmatprep.subr.bf16.mxu0 %v5837
    %9777 = vmatpush1.bf16.msra.mxu0 %v5836
    %9778 = vmatprep.subr.bf16.mxu0 %v5866
    %9779 = vmatpush1.bf16.msra.mxu0 %v5865
    %9780 = vmatprep.subr.bf16.mxu0 %v5895
    %9781 = vmatpush1.bf16.msra.mxu0 %v5894
    %9782 = vmatprep.subr.bf16.mxu0 %v5924
    %9783 = vmatpush1.bf16.msra.mxu0 %v5923
    %9784 = vmatprep.subr.bf16.mxu0 %v5953
    %9785 = vmatpush1.bf16.msra.mxu0 %v5952
    %9786 = vmatprep.subr.bf16.mxu0 %v5982
    %9787 = vmatpush1.bf16.msra.mxu0 %v5981
    %9788 = vmatprep.subr.bf16.mxu0 %v6011
    %9789 = vmatpush1.bf16.msra.mxu0 %v6010
    %9790 = vmatprep.subr.bf16.mxu0 %v6040
    %9791 = vmatpush1.bf16.msra.mxu0 %v6039
    %9792 = vmatprep.subr.bf16.mxu0 %v6069
    %9793 = vmatpush1.bf16.msra.mxu0 %v6068
    %9794 = vmatprep.subr.bf16.mxu0 %v6098
    %9795 = vmatpush1.bf16.msra.mxu0 %v6097
    %9796 = vmatprep.subr.bf16.mxu0 %v6127
    %9797 = vmatpush1.bf16.msra.mxu0 %v6126
    %9798 = vmatprep.subr.bf16.mxu0 %v6156
    %9799 = vmatpush1.bf16.msra.mxu0 %v6155
    %9800 = vmatprep.subr.bf16.mxu0 %v6185
    %9801 = vmatpush1.bf16.msra.mxu0 %v6184
    %9802 = vmatprep.subr.bf16.mxu0 %v6214
    %9803 = vmatpush1.bf16.msra.mxu0 %v6213
    %9804 = vmatprep.mubr.bf16.mxu0 %v81
    %9805 = vmatmul.mubr.bf16.gmra.mrb[0].mxu0 %v80
    %v9806 = vpop.f32.mrb[0].mxu0
    %v9807 = vadd.f32 0.0, %v9806
    %v9808 = vpop.f32.mrb[0].mxu0
    %v9809 = vadd.f32 0.0, %v9808
    %v9810 = vpop.f32.mrb[0].mxu0
    %v9811 = vpop.f32.mrb[0].mxu0
    %9812 = vdwg.mxu0
    %9813 = vmatprep.subr.bf16.mxu0 %v6243
    %9814 = vmatpush1.bf16.msra.mxu0 %v6242
    %9815 = vmatprep.subr.bf16.mxu0 %v6272
    %9816 = vmatpush1.bf16.msra.mxu0 %v6271
    %9817 = vmatprep.subr.bf16.mxu0 %v6301
    %9818 = vmatpush1.bf16.msra.mxu0 %v6300
    %9819 = vmatprep.subr.bf16.mxu0 %v6330
    %9820 = vmatpush1.bf16.msra.mxu0 %v6329
    %9821 = vmatprep.subr.bf16.mxu0 %v6359
    %9822 = vmatpush1.bf16.msra.mxu0 %v6358
    %9823 = vmatprep.subr.bf16.mxu0 %v6388
    %9824 = vmatpush1.bf16.msra.mxu0 %v6387
    %9825 = vmatprep.subr.bf16.mxu0 %v6417
    %9826 = vmatpush1.bf16.msra.mxu0 %v6416
    %9827 = vmatprep.subr.bf16.mxu0 %v6446
    %9828 = vmatpush1.bf16.msra.mxu0 %v6445
    %9829 = vmatprep.subr.bf16.mxu0 %v6475
    %9830 = vmatpush1.bf16.msra.mxu0 %v6474
    %9831 = vmatprep.subr.bf16.mxu0 %v6504
    %9832 = vmatpush1.bf16.msra.mxu0 %v6503
    %9833 = vmatprep.subr.bf16.mxu0 %v6533
    %9834 = vmatpush1.bf16.msra.mxu0 %v6532
    %9835 = vmatprep.subr.bf16.mxu0 %v6562
    %9836 = vmatpush1.bf16.msra.mxu0 %v6561
    %9837 = vmatprep.subr.bf16.mxu0 %v6591
    %9838 = vmatpush1.bf16.msra.mxu0 %v6590
    %9839 = vmatprep.subr.bf16.mxu0 %v6620
    %9840 = vmatpush1.bf16.msra.mxu0 %v6619
    %9841 = vmatprep.subr.bf16.mxu0 %v6649
    %9842 = vmatpush1.bf16.msra.mxu0 %v6648
    %9843 = vmatprep.subr.bf16.mxu0 %v6678
    %9844 = vmatpush1.bf16.msra.mxu0 %v6677
    %9845 = vmatprep.mubr.bf16.mxu0 %v83
    %9846 = vmatmul.mubr.bf16.gmra.mrb[0].mxu0 %v82
    %v9847 = vpop.f32.mrb[0].mxu0
    %v9848 = vadd.f32 %v9807, %v9847
    %v9849 = vpop.f32.mrb[0].mxu0
    %v9850 = vadd.f32 %v9809, %v9849
    %v9851 = vpop.f32.mrb[0].mxu0
    %v9852 = vpop.f32.mrb[0].mxu0
    %9853 = vdwg.mxu0
    %9854 = vmatprep.subr.bf16.mxu0 %v6707
    %9855 = vmatpush1.bf16.msra.mxu0 %v6706
    %9856 = vmatprep.subr.bf16.mxu0 %v6736
    %9857 = vmatpush1.bf16.msra.mxu0 %v6735
    %9858 = vmatprep.subr.bf16.mxu0 %v6765
    %9859 = vmatpush1.bf16.msra.mxu0 %v6764
    %9860 = vmatprep.subr.bf16.mxu0 %v6794
    %9861 = vmatpush1.bf16.msra.mxu0 %v6793
    %9862 = vmatprep.subr.bf16.mxu0 %v6823
    %9863 = vmatpush1.bf16.msra.mxu0 %v6822
    %9864 = vmatprep.subr.bf16.mxu0 %v6852
    %9865 = vmatpush1.bf16.msra.mxu0 %v6851
    %9866 = vmatprep.subr.bf16.mxu0 %v6881
    %9867 = vmatpush1.bf16.msra.mxu0 %v6880
    %9868 = vmatprep.subr.bf16.mxu0 %v6910
    %9869 = vmatpush1.bf16.msra.mxu0 %v6909
    %9870 = vmatprep.subr.bf16.mxu0 %v6939
    %9871 = vmatpush1.bf16.msra.mxu0 %v6938
    %9872 = vmatprep.subr.bf16.mxu0 %v6968
    %9873 = vmatpush1.bf16.msra.mxu0 %v6967
    %9874 = vmatprep.subr.bf16.mxu0 %v6997
    %9875 = vmatpush1.bf16.msra.mxu0 %v6996
    %9876 = vmatprep.subr.bf16.mxu0 %v7026
    %9877 = vmatpush1.bf16.msra.mxu0 %v7025
    %9878 = vmatprep.subr.bf16.mxu0 %v7055
    %9879 = vmatpush1.bf16.msra.mxu0 %v7054
    %9880 = vmatprep.subr.bf16.mxu0 %v7084
    %9881 = vmatpush1.bf16.msra.mxu0 %v7083
    %9882 = vmatprep.subr.bf16.mxu0 %v7113
    %9883 = vmatpush1.bf16.msra.mxu0 %v7112
    %9884 = vmatprep.subr.bf16.mxu0 %v7142
    %9885 = vmatpush1.bf16.msra.mxu0 %v7141
    %9886 = vmatprep.mubr.bf16.mxu0 %v85
    %9887 = vmatmul.mubr.bf16.gmra.mrb[0].mxu0 %v84
    %v9888 = vpop.f32.mrb[0].mxu0
    %v9889 = vadd.f32 %v9848, %v9888
    %v9890 = vpop.f32.mrb[0].mxu0
    %v9891 = vadd.f32 %v9850, %v9890
    %v9892 = vpop.f32.mrb[0].mxu0
    %v9893 = vpop.f32.mrb[0].mxu0
    %9894 = vdwg.mxu0
    %9895 = vmatprep.subr.bf16.mxu0 %v5781
    %9896 = vmatpush1.bf16.msra.mxu0 %v5780
    %9897 = vmatprep.subr.bf16.mxu0 %v5810
    %9898 = vmatpush1.bf16.msra.mxu0 %v5809
    %9899 = vmatprep.subr.bf16.mxu0 %v5839
    %9900 = vmatpush1.bf16.msra.mxu0 %v5838
    %9901 = vmatprep.subr.bf16.mxu0 %v5868
    %9902 = vmatpush1.bf16.msra.mxu0 %v5867
    %9903 = vmatprep.subr.bf16.mxu0 %v5897
    %9904 = vmatpush1.bf16.msra.mxu0 %v5896
    %9905 = vmatprep.subr.bf16.mxu0 %v5926
    %9906 = vmatpush1.bf16.msra.mxu0 %v5925
    %9907 = vmatprep.subr.bf16.mxu0 %v5955
    %9908 = vmatpush1.bf16.msra.mxu0 %v5954
    %9909 = vmatprep.subr.bf16.mxu0 %v5984
    %9910 = vmatpush1.bf16.msra.mxu0 %v5983
    %9911 = vmatprep.subr.bf16.mxu0 %v6013
    %9912 = vmatpush1.bf16.msra.mxu0 %v6012
    %9913 = vmatprep.subr.bf16.mxu0 %v6042
    %9914 = vmatpush1.bf16.msra.mxu0 %v6041
    %9915 = vmatprep.subr.bf16.mxu0 %v6071
    %9916 = vmatpush1.bf16.msra.mxu0 %v6070
    %9917 = vmatprep.subr.bf16.mxu0 %v6100
    %9918 = vmatpush1.bf16.msra.mxu0 %v6099
    %9919 = vmatprep.subr.bf16.mxu0 %v6129
    %9920 = vmatpush1.bf16.msra.mxu0 %v6128
    %9921 = vmatprep.subr.bf16.mxu0 %v6158
    %9922 = vmatpush1.bf16.msra.mxu0 %v6157
    %9923 = vmatprep.subr.bf16.mxu0 %v6187
    %9924 = vmatpush1.bf16.msra.mxu0 %v6186
    %9925 = vmatprep.subr.bf16.mxu0 %v6216
    %9926 = vmatpush1.bf16.msra.mxu0 %v6215
    %9927 = vmatprep.mubr.bf16.mxu0 %v81
    %9928 = vmatmul.mubr.bf16.gmra.mrb[0].mxu0 %v80
    %v9929 = vpop.f32.mrb[0].mxu0
    %v9930 = vadd.f32 0.0, %v9929
    %v9931 = vpop.f32.mrb[0].mxu0
    %v9932 = vadd.f32 0.0, %v9931
    %v9933 = vpop.f32.mrb[0].mxu0
    %v9934 = vpop.f32.mrb[0].mxu0
    %9935 = vdwg.mxu0
    %9936 = vmatprep.subr.bf16.mxu0 %v6245
    %9937 = vmatpush1.bf16.msra.mxu0 %v6244
    %9938 = vmatprep.subr.bf16.mxu0 %v6274
    %9939 = vmatpush1.bf16.msra.mxu0 %v6273
    %9940 = vmatprep.subr.bf16.mxu0 %v6303
    %9941 = vmatpush1.bf16.msra.mxu0 %v6302
    %9942 = vmatprep.subr.bf16.mxu0 %v6332
    %9943 = vmatpush1.bf16.msra.mxu0 %v6331
    %9944 = vmatprep.subr.bf16.mxu0 %v6361
    %9945 = vmatpush1.bf16.msra.mxu0 %v6360
    %9946 = vmatprep.subr.bf16.mxu0 %v6390
    %9947 = vmatpush1.bf16.msra.mxu0 %v6389
    %9948 = vmatprep.subr.bf16.mxu0 %v6419
    %9949 = vmatpush1.bf16.msra.mxu0 %v6418
    %9950 = vmatprep.subr.bf16.mxu0 %v6448
    %9951 = vmatpush1.bf16.msra.mxu0 %v6447
    %9952 = vmatprep.subr.bf16.mxu0 %v6477
    %9953 = vmatpush1.bf16.msra.mxu0 %v6476
    %9954 = vmatprep.subr.bf16.mxu0 %v6506
    %9955 = vmatpush1.bf16.msra.mxu0 %v6505
    %9956 = vmatprep.subr.bf16.mxu0 %v6535
    %9957 = vmatpush1.bf16.msra.mxu0 %v6534
    %9958 = vmatprep.subr.bf16.mxu0 %v6564
    %9959 = vmatpush1.bf16.msra.mxu0 %v6563
    %9960 = vmatprep.subr.bf16.mxu0 %v6593
    %9961 = vmatpush1.bf16.msra.mxu0 %v6592
    %9962 = vmatprep.subr.bf16.mxu0 %v6622
    %9963 = vmatpush1.bf16.msra.mxu0 %v6621
    %9964 = vmatprep.subr.bf16.mxu0 %v6651
    %9965 = vmatpush1.bf16.msra.mxu0 %v6650
    %9966 = vmatprep.subr.bf16.mxu0 %v6680
    %9967 = vmatpush1.bf16.msra.mxu0 %v6679
    %9968 = vmatprep.mubr.bf16.mxu0 %v83
    %9969 = vmatmul.mubr.bf16.gmra.mrb[0].mxu0 %v82
    %v9970 = vpop.f32.mrb[0].mxu0
    %v9971 = vadd.f32 %v9930, %v9970
    %v9972 = vpop.f32.mrb[0].mxu0
    %v9973 = vadd.f32 %v9932, %v9972
    %v9974 = vpop.f32.mrb[0].mxu0
    %v9975 = vpop.f32.mrb[0].mxu0
    %9976 = vdwg.mxu0
    %9977 = vmatprep.subr.bf16.mxu0 %v6709
    %9978 = vmatpush1.bf16.msra.mxu0 %v6708
    %9979 = vmatprep.subr.bf16.mxu0 %v6738
    %9980 = vmatpush1.bf16.msra.mxu0 %v6737
    %9981 = vmatprep.subr.bf16.mxu0 %v6767
    %9982 = vmatpush1.bf16.msra.mxu0 %v6766
    %9983 = vmatprep.subr.bf16.mxu0 %v6796
    %9984 = vmatpush1.bf16.msra.mxu0 %v6795
    %9985 = vmatprep.subr.bf16.mxu0 %v6825
    %9986 = vmatpush1.bf16.msra.mxu0 %v6824
    %9987 = vmatprep.subr.bf16.mxu0 %v6854
    %9988 = vmatpush1.bf16.msra.mxu0 %v6853
    %9989 = vmatprep.subr.bf16.mxu0 %v6883
    %9990 = vmatpush1.bf16.msra.mxu0 %v6882
    %9991 = vmatprep.subr.bf16.mxu0 %v6912
    %9992 = vmatpush1.bf16.msra.mxu0 %v6911
    %9993 = vmatprep.subr.bf16.mxu0 %v6941
    %9994 = vmatpush1.bf16.msra.mxu0 %v6940
    %9995 = vmatprep.subr.bf16.mxu0 %v6970
    %9996 = vmatpush1.bf16.msra.mxu0 %v6969
    %9997 = vmatprep.subr.bf16.mxu0 %v6999
    %9998 = vmatpush1.bf16.msra.mxu0 %v6998
    %9999 = vmatprep.subr.bf16.mxu0 %v7028
    %10000 = vmatpush1.bf16.msra.mxu0 %v7027
    %10001 = vmatprep.subr.bf16.mxu0 %v7057
    %10002 = vmatpush1.bf16.msra.mxu0 %v7056
    %10003 = vmatprep.subr.bf16.mxu0 %v7086
    %10004 = vmatpush1.bf16.msra.mxu0 %v7085
    %10005 = vmatprep.subr.bf16.mxu0 %v7115
    %10006 = vmatpush1.bf16.msra.mxu0 %v7114
    %10007 = vmatprep.subr.bf16.mxu0 %v7144
    %10008 = vmatpush1.bf16.msra.mxu0 %v7143
    %10009 = vmatprep.mubr.bf16.mxu0 %v85
    %10010 = vmatmul.mubr.bf16.gmra.mrb[0].mxu0 %v84
    %v10011 = vpop.f32.mrb[0].mxu0
    %v10012 = vadd.f32 %v9971, %v10011
    %v10013 = vpop.f32.mrb[0].mxu0
    %v10014 = vadd.f32 %v9973, %v10013
    %v10015 = vpop.f32.mrb[0].mxu0
    %v10016 = vpop.f32.mrb[0].mxu0
    %10017 = vdwg.mxu0
    %10018 = vmatprep.subr.bf16.mxu0 %v5783
    %10019 = vmatpush1.bf16.msra.mxu0 %v5782
    %10020 = vmatprep.subr.bf16.mxu0 %v5812
    %10021 = vmatpush1.bf16.msra.mxu0 %v5811
    %10022 = vmatprep.subr.bf16.mxu0 %v5841
    %10023 = vmatpush1.bf16.msra.mxu0 %v5840
    %10024 = vmatprep.subr.bf16.mxu0 %v5870
    %10025 = vmatpush1.bf16.msra.mxu0 %v5869
    %10026 = vmatprep.subr.bf16.mxu0 %v5899
    %10027 = vmatpush1.bf16.msra.mxu0 %v5898
    %10028 = vmatprep.subr.bf16.mxu0 %v5928
    %10029 = vmatpush1.bf16.msra.mxu0 %v5927
    %10030 = vmatprep.subr.bf16.mxu0 %v5957
    %10031 = vmatpush1.bf16.msra.mxu0 %v5956
    %10032 = vmatprep.subr.bf16.mxu0 %v5986
    %10033 = vmatpush1.bf16.msra.mxu0 %v5985
    %10034 = vmatprep.subr.bf16.mxu0 %v6015
    %10035 = vmatpush1.bf16.msra.mxu0 %v6014
    %10036 = vmatprep.subr.bf16.mxu0 %v6044
    %10037 = vmatpush1.bf16.msra.mxu0 %v6043
    %10038 = vmatprep.subr.bf16.mxu0 %v6073
    %10039 = vmatpush1.bf16.msra.mxu0 %v6072
    %10040 = vmatprep.subr.bf16.mxu0 %v6102
    %10041 = vmatpush1.bf16.msra.mxu0 %v6101
    %10042 = vmatprep.subr.bf16.mxu0 %v6131
    %10043 = vmatpush1.bf16.msra.mxu0 %v6130
    %10044 = vmatprep.subr.bf16.mxu0 %v6160
    %10045 = vmatpush1.bf16.msra.mxu0 %v6159
    %10046 = vmatprep.subr.bf16.mxu0 %v6189
    %10047 = vmatpush1.bf16.msra.mxu0 %v6188
    %10048 = vmatprep.subr.bf16.mxu0 %v6218
    %10049 = vmatpush1.bf16.msra.mxu0 %v6217
    %10050 = vmatprep.mubr.bf16.mxu0 %v81
    %10051 = vmatmul.mubr.bf16.gmra.mrb[0].mxu0 %v80
    %v10052 = vpop.f32.mrb[0].mxu0
    %v10053 = vadd.f32 0.0, %v10052
    %v10054 = vpop.f32.mrb[0].mxu0
    %v10055 = vadd.f32 0.0, %v10054
    %v10056 = vpop.f32.mrb[0].mxu0
    %v10057 = vpop.f32.mrb[0].mxu0
    %10058 = vdwg.mxu0
    %10059 = vmatprep.subr.bf16.mxu0 %v6247
    %10060 = vmatpush1.bf16.msra.mxu0 %v6246
    %10061 = vmatprep.subr.bf16.mxu0 %v6276
    %10062 = vmatpush1.bf16.msra.mxu0 %v6275
    %10063 = vmatprep.subr.bf16.mxu0 %v6305
    %10064 = vmatpush1.bf16.msra.mxu0 %v6304
    %10065 = vmatprep.subr.bf16.mxu0 %v6334
    %10066 = vmatpush1.bf16.msra.mxu0 %v6333
    %10067 = vmatprep.subr.bf16.mxu0 %v6363
    %10068 = vmatpush1.bf16.msra.mxu0 %v6362
    %10069 = vmatprep.subr.bf16.mxu0 %v6392
    %10070 = vmatpush1.bf16.msra.mxu0 %v6391
    %10071 = vmatprep.subr.bf16.mxu0 %v6421
    %10072 = vmatpush1.bf16.msra.mxu0 %v6420
    %10073 = vmatprep.subr.bf16.mxu0 %v6450
    %10074 = vmatpush1.bf16.msra.mxu0 %v6449
    %10075 = vmatprep.subr.bf16.mxu0 %v6479
    %10076 = vmatpush1.bf16.msra.mxu0 %v6478
    %10077 = vmatprep.subr.bf16.mxu0 %v6508
    %10078 = vmatpush1.bf16.msra.mxu0 %v6507
    %10079 = vmatprep.subr.bf16.mxu0 %v6537
    %10080 = vmatpush1.bf16.msra.mxu0 %v6536
    %10081 = vmatprep.subr.bf16.mxu0 %v6566
    %10082 = vmatpush1.bf16.msra.mxu0 %v6565
    %10083 = vmatprep.subr.bf16.mxu0 %v6595
    %10084 = vmatpush1.bf16.msra.mxu0 %v6594
    %10085 = vmatprep.subr.bf16.mxu0 %v6624
    %10086 = vmatpush1.bf16.msra.mxu0 %v6623
    %10087 = vmatprep.subr.bf16.mxu0 %v6653
    %10088 = vmatpush1.bf16.msra.mxu0 %v6652
    %10089 = vmatprep.subr.bf16.mxu0 %v6682
    %10090 = vmatpush1.bf16.msra.mxu0 %v6681
    %10091 = vmatprep.mubr.bf16.mxu0 %v83
    %10092 = vmatmul.mubr.bf16.gmra.mrb[0].mxu0 %v82
    %v10093 = vpop.f32.mrb[0].mxu0
    %v10094 = vadd.f32 %v10053, %v10093
    %v10095 = vpop.f32.mrb[0].mxu0
    %v10096 = vadd.f32 %v10055, %v10095
    %v10097 = vpop.f32.mrb[0].mxu0
    %v10098 = vpop.f32.mrb[0].mxu0
    %10099 = vdwg.mxu0
    %10100 = vmatprep.subr.bf16.mxu0 %v6711
    %10101 = vmatpush1.bf16.msra.mxu0 %v6710
    %10102 = vmatprep.subr.bf16.mxu0 %v6740
    %10103 = vmatpush1.bf16.msra.mxu0 %v6739
    %10104 = vmatprep.subr.bf16.mxu0 %v6769
    %10105 = vmatpush1.bf16.msra.mxu0 %v6768
    %10106 = vmatprep.subr.bf16.mxu0 %v6798
    %10107 = vmatpush1.bf16.msra.mxu0 %v6797
    %10108 = vmatprep.subr.bf16.mxu0 %v6827
    %10109 = vmatpush1.bf16.msra.mxu0 %v6826
    %10110 = vmatprep.subr.bf16.mxu0 %v6856
    %10111 = vmatpush1.bf16.msra.mxu0 %v6855
    %10112 = vmatprep.subr.bf16.mxu0 %v6885
    %10113 = vmatpush1.bf16.msra.mxu0 %v6884
    %10114 = vmatprep.subr.bf16.mxu0 %v6914
    %10115 = vmatpush1.bf16.msra.mxu0 %v6913
    %10116 = vmatprep.subr.bf16.mxu0 %v6943
    %10117 = vmatpush1.bf16.msra.mxu0 %v6942
    %10118 = vmatprep.subr.bf16.mxu0 %v6972
    %10119 = vmatpush1.bf16.msra.mxu0 %v6971
    %10120 = vmatprep.subr.bf16.mxu0 %v7001
    %10121 = vmatpush1.bf16.msra.mxu0 %v7000
    %10122 = vmatprep.subr.bf16.mxu0 %v7030
    %10123 = vmatpush1.bf16.msra.mxu0 %v7029
    %10124 = vmatprep.subr.bf16.mxu0 %v7059
    %10125 = vmatpush1.bf16.msra.mxu0 %v7058
    %10126 = vmatprep.subr.bf16.mxu0 %v7088
    %10127 = vmatpush1.bf16.msra.mxu0 %v7087
    %10128 = vmatprep.subr.bf16.mxu0 %v7117
    %10129 = vmatpush1.bf16.msra.mxu0 %v7116
    %10130 = vmatprep.subr.bf16.mxu0 %v7146
    %10131 = vmatpush1.bf16.msra.mxu0 %v7145
    %10132 = vmatprep.mubr.bf16.mxu0 %v85
    %10133 = vmatmul.mubr.bf16.gmra.mrb[0].mxu0 %v84
    %v10134 = vpop.f32.mrb[0].mxu0
    %v10135 = vadd.f32 %v10094, %v10134
    %v10136 = vpop.f32.mrb[0].mxu0
    %v10137 = vadd.f32 %v10096, %v10136
    %v10138 = vpop.f32.mrb[0].mxu0
    %v10139 = vpop.f32.mrb[0].mxu0
    %10140 = vdwg.mxu0
    %10141 = vmatprep.subr.bf16.mxu0 %v5785
    %10142 = vmatpush1.bf16.msra.mxu0 %v5784
    %10143 = vmatprep.subr.bf16.mxu0 %v5814
    %10144 = vmatpush1.bf16.msra.mxu0 %v5813
    %10145 = vmatprep.subr.bf16.mxu0 %v5843
    %10146 = vmatpush1.bf16.msra.mxu0 %v5842
    %10147 = vmatprep.subr.bf16.mxu0 %v5872
    %10148 = vmatpush1.bf16.msra.mxu0 %v5871
    %10149 = vmatprep.subr.bf16.mxu0 %v5901
    %10150 = vmatpush1.bf16.msra.mxu0 %v5900
    %10151 = vmatprep.subr.bf16.mxu0 %v5930
    %10152 = vmatpush1.bf16.msra.mxu0 %v5929
    %10153 = vmatprep.subr.bf16.mxu0 %v5959
    %10154 = vmatpush1.bf16.msra.mxu0 %v5958
    %10155 = vmatprep.subr.bf16.mxu0 %v5988
    %10156 = vmatpush1.bf16.msra.mxu0 %v5987
    %10157 = vmatprep.subr.bf16.mxu0 %v6017
    %10158 = vmatpush1.bf16.msra.mxu0 %v6016
    %10159 = vmatprep.subr.bf16.mxu0 %v6046
    %10160 = vmatpush1.bf16.msra.mxu0 %v6045
    %10161 = vmatprep.subr.bf16.mxu0 %v6075
    %10162 = vmatpush1.bf16.msra.mxu0 %v6074
    %10163 = vmatprep.subr.bf16.mxu0 %v6104
    %10164 = vmatpush1.bf16.msra.mxu0 %v6103
    %10165 = vmatprep.subr.bf16.mxu0 %v6133
    %10166 = vmatpush1.bf16.msra.mxu0 %v6132
    %10167 = vmatprep.subr.bf16.mxu0 %v6162
    %10168 = vmatpush1.bf16.msra.mxu0 %v6161
    %10169 = vmatprep.subr.bf16.mxu0 %v6191
    %10170 = vmatpush1.bf16.msra.mxu0 %v6190
    %10171 = vmatprep.subr.bf16.mxu0 %v6220
    %10172 = vmatpush1.bf16.msra.mxu0 %v6219
    %10173 = vmatprep.mubr.bf16.mxu0 %v81
    %10174 = vmatmul.mubr.bf16.gmra.mrb[0].mxu0 %v80
    %v10175 = vpop.f32.mrb[0].mxu0
    %v10176 = vadd.f32 0.0, %v10175
    %v10177 = vpop.f32.mrb[0].mxu0
    %v10178 = vadd.f32 0.0, %v10177
    %v10179 = vpop.f32.mrb[0].mxu0
    %v10180 = vpop.f32.mrb[0].mxu0
    %10181 = vdwg.mxu0
    %10182 = vmatprep.subr.bf16.mxu0 %v6249
    %10183 = vmatpush1.bf16.msra.mxu0 %v6248
    %10184 = vmatprep.subr.bf16.mxu0 %v6278
    %10185 = vmatpush1.bf16.msra.mxu0 %v6277
    %10186 = vmatprep.subr.bf16.mxu0 %v6307
    %10187 = vmatpush1.bf16.msra.mxu0 %v6306
    %10188 = vmatprep.subr.bf16.mxu0 %v6336
    %10189 = vmatpush1.bf16.msra.mxu0 %v6335
    %10190 = vmatprep.subr.bf16.mxu0 %v6365
    %10191 = vmatpush1.bf16.msra.mxu0 %v6364
    %10192 = vmatprep.subr.bf16.mxu0 %v6394
    %10193 = vmatpush1.bf16.msra.mxu0 %v6393
    %10194 = vmatprep.subr.bf16.mxu0 %v6423
    %10195 = vmatpush1.bf16.msra.mxu0 %v6422
    %10196 = vmatprep.subr.bf16.mxu0 %v6452
    %10197 = vmatpush1.bf16.msra.mxu0 %v6451
    %10198 = vmatprep.subr.bf16.mxu0 %v6481
    %10199 = vmatpush1.bf16.msra.mxu0 %v6480
    %10200 = vmatprep.subr.bf16.mxu0 %v6510
    %10201 = vmatpush1.bf16.msra.mxu0 %v6509
    %10202 = vmatprep.subr.bf16.mxu0 %v6539
    %10203 = vmatpush1.bf16.msra.mxu0 %v6538
    %10204 = vmatprep.subr.bf16.mxu0 %v6568
    %10205 = vmatpush1.bf16.msra.mxu0 %v6567
    %10206 = vmatprep.subr.bf16.mxu0 %v6597
    %10207 = vmatpush1.bf16.msra.mxu0 %v6596
    %10208 = vmatprep.subr.bf16.mxu0 %v6626
    %10209 = vmatpush1.bf16.msra.mxu0 %v6625
    %10210 = vmatprep.subr.bf16.mxu0 %v6655
    %10211 = vmatpush1.bf16.msra.mxu0 %v6654
    %10212 = vmatprep.subr.bf16.mxu0 %v6684
    %10213 = vmatpush1.bf16.msra.mxu0 %v6683
    %10214 = vmatprep.mubr.bf16.mxu0 %v83
    %10215 = vmatmul.mubr.bf16.gmra.mrb[0].mxu0 %v82
    %v10216 = vpop.f32.mrb[0].mxu0
    %v10217 = vadd.f32 %v10176, %v10216
    %v10218 = vpop.f32.mrb[0].mxu0
    %v10219 = vadd.f32 %v10178, %v10218
    %v10220 = vpop.f32.mrb[0].mxu0
    %v10221 = vpop.f32.mrb[0].mxu0
    %10222 = vdwg.mxu0
    %10223 = vmatprep.subr.bf16.mxu0 %v6713
    %10224 = vmatpush1.bf16.msra.mxu0 %v6712
    %10225 = vmatprep.subr.bf16.mxu0 %v6742
    %10226 = vmatpush1.bf16.msra.mxu0 %v6741
    %10227 = vmatprep.subr.bf16.mxu0 %v6771
    %10228 = vmatpush1.bf16.msra.mxu0 %v6770
    %10229 = vmatprep.subr.bf16.mxu0 %v6800
    %10230 = vmatpush1.bf16.msra.mxu0 %v6799
    %10231 = vmatprep.subr.bf16.mxu0 %v6829
    %10232 = vmatpush1.bf16.msra.mxu0 %v6828
    %10233 = vmatprep.subr.bf16.mxu0 %v6858
    %10234 = vmatpush1.bf16.msra.mxu0 %v6857
    %10235 = vmatprep.subr.bf16.mxu0 %v6887
    %10236 = vmatpush1.bf16.msra.mxu0 %v6886
    %10237 = vmatprep.subr.bf16.mxu0 %v6916
    %10238 = vmatpush1.bf16.msra.mxu0 %v6915
    %10239 = vmatprep.subr.bf16.mxu0 %v6945
    %10240 = vmatpush1.bf16.msra.mxu0 %v6944
    %10241 = vmatprep.subr.bf16.mxu0 %v6974
    %10242 = vmatpush1.bf16.msra.mxu0 %v6973
    %10243 = vmatprep.subr.bf16.mxu0 %v7003
    %10244 = vmatpush1.bf16.msra.mxu0 %v7002
    %10245 = vmatprep.subr.bf16.mxu0 %v7032
    %10246 = vmatpush1.bf16.msra.mxu0 %v7031
    %10247 = vmatprep.subr.bf16.mxu0 %v7061
    %10248 = vmatpush1.bf16.msra.mxu0 %v7060
    %10249 = vmatprep.subr.bf16.mxu0 %v7090
    %10250 = vmatpush1.bf16.msra.mxu0 %v7089
    %10251 = vmatprep.subr.bf16.mxu0 %v7119
    %10252 = vmatpush1.bf16.msra.mxu0 %v7118
    %10253 = vmatprep.subr.bf16.mxu0 %v7148
    %10254 = vmatpush1.bf16.msra.mxu0 %v7147
    %10255 = vmatprep.mubr.bf16.mxu0 %v85
    %10256 = vmatmul.mubr.bf16.gmra.mrb[0].mxu0 %v84
    %v10257 = vpop.f32.mrb[0].mxu0
    %v10258 = vadd.f32 %v10217, %v10257
    %v10259 = vpop.f32.mrb[0].mxu0
    %v10260 = vadd.f32 %v10219, %v10259
    %v10261 = vpop.f32.mrb[0].mxu0
    %v10262 = vpop.f32.mrb[0].mxu0
    %10263 = vdwg.mxu0
    %10264 = vmatprep.subr.bf16.mxu0 0
    %10265 = vmatpush1.bf16.msra.mxu0 %v5786
    %10266 = vmatprep.subr.bf16.mxu0 0
    %10267 = vmatpush1.bf16.msra.mxu0 %v5815
    %10268 = vmatprep.subr.bf16.mxu0 0
    %10269 = vmatpush1.bf16.msra.mxu0 %v5844
    %10270 = vmatprep.subr.bf16.mxu0 0
    %10271 = vmatpush1.bf16.msra.mxu0 %v5873
    %10272 = vmatprep.subr.bf16.mxu0 0
    %10273 = vmatpush1.bf16.msra.mxu0 %v5902
    %10274 = vmatprep.subr.bf16.mxu0 0
    %10275 = vmatpush1.bf16.msra.mxu0 %v5931
    %10276 = vmatprep.subr.bf16.mxu0 0
    %10277 = vmatpush1.bf16.msra.mxu0 %v5960
    %10278 = vmatprep.subr.bf16.mxu0 0
    %10279 = vmatpush1.bf16.msra.mxu0 %v5989
    %10280 = vmatprep.subr.bf16.mxu0 0
    %10281 = vmatpush1.bf16.msra.mxu0 %v6018
    %10282 = vmatprep.subr.bf16.mxu0 0
    %10283 = vmatpush1.bf16.msra.mxu0 %v6047
    %10284 = vmatprep.subr.bf16.mxu0 0
    %10285 = vmatpush1.bf16.msra.mxu0 %v6076
    %10286 = vmatprep.subr.bf16.mxu0 0
    %10287 = vmatpush1.bf16.msra.mxu0 %v6105
    %10288 = vmatprep.subr.bf16.mxu0 0
    %10289 = vmatpush1.bf16.msra.mxu0 %v6134
    %10290 = vmatprep.subr.bf16.mxu0 0
    %10291 = vmatpush1.bf16.msra.mxu0 %v6163
    %10292 = vmatprep.subr.bf16.mxu0 0
    %10293 = vmatpush1.bf16.msra.mxu0 %v6192
    %10294 = vmatprep.subr.bf16.mxu0 0
    %10295 = vmatpush1.bf16.msra.mxu0 %v6221
    %10296 = vmatprep.mubr.bf16.mxu0 %v81
    %10297 = vmatmul.mubr.bf16.gmra.mrb[0].mxu0 %v80
    %v10298 = vpop.f32.mrb[0].mxu0
    %v10299 = vadd.f32 0.0, %v10298
    %v10300 = vpop.f32.mrb[0].mxu0
    %v10301 = vpop.f32.mrb[0].mxu0
    %v10302 = vpop.f32.mrb[0].mxu0
    %10303 = vdwg.mxu0
    %10304 = vmatprep.subr.bf16.mxu0 0
    %10305 = vmatpush1.bf16.msra.mxu0 %v6250
    %10306 = vmatprep.subr.bf16.mxu0 0
    %10307 = vmatpush1.bf16.msra.mxu0 %v6279
    %10308 = vmatprep.subr.bf16.mxu0 0
    %10309 = vmatpush1.bf16.msra.mxu0 %v6308
    %10310 = vmatprep.subr.bf16.mxu0 0
    %10311 = vmatpush1.bf16.msra.mxu0 %v6337
    %10312 = vmatprep.subr.bf16.mxu0 0
    %10313 = vmatpush1.bf16.msra.mxu0 %v6366
    %10314 = vmatprep.subr.bf16.mxu0 0
    %10315 = vmatpush1.bf16.msra.mxu0 %v6395
    %10316 = vmatprep.subr.bf16.mxu0 0
    %10317 = vmatpush1.bf16.msra.mxu0 %v6424
    %10318 = vmatprep.subr.bf16.mxu0 0
    %10319 = vmatpush1.bf16.msra.mxu0 %v6453
    %10320 = vmatprep.subr.bf16.mxu0 0
    %10321 = vmatpush1.bf16.msra.mxu0 %v6482
    %10322 = vmatprep.subr.bf16.mxu0 0
    %10323 = vmatpush1.bf16.msra.mxu0 %v6511
    %10324 = vmatprep.subr.bf16.mxu0 0
    %10325 = vmatpush1.bf16.msra.mxu0 %v6540
    %10326 = vmatprep.subr.bf16.mxu0 0
    %10327 = vmatpush1.bf16.msra.mxu0 %v6569
    %10328 = vmatprep.subr.bf16.mxu0 0
    %10329 = vmatpush1.bf16.msra.mxu0 %v6598
    %10330 = vmatprep.subr.bf16.mxu0 0
    %10331 = vmatpush1.bf16.msra.mxu0 %v6627
    %10332 = vmatprep.subr.bf16.mxu0 0
    %10333 = vmatpush1.bf16.msra.mxu0 %v6656
    %10334 = vmatprep.subr.bf16.mxu0 0
    %10335 = vmatpush1.bf16.msra.mxu0 %v6685
    %10336 = vmatprep.mubr.bf16.mxu0 %v83
    %10337 = vmatmul.mubr.bf16.gmra.mrb[0].mxu0 %v82
    %v10338 = vpop.f32.mrb[0].mxu0
    %v10339 = vadd.f32 %v10299, %v10338
    %v10340 = vpop.f32.mrb[0].mxu0
    %v10341 = vpop.f32.mrb[0].mxu0
    %v10342 = vpop.f32.mrb[0].mxu0
    %10343 = vdwg.mxu0
    %10344 = vmatprep.subr.bf16.mxu0 0
    %10345 = vmatpush1.bf16.msra.mxu0 %v6714
    %10346 = vmatprep.subr.bf16.mxu0 0
    %10347 = vmatpush1.bf16.msra.mxu0 %v6743
    %10348 = vmatprep.subr.bf16.mxu0 0
    %10349 = vmatpush1.bf16.msra.mxu0 %v6772
    %10350 = vmatprep.subr.bf16.mxu0 0
    %10351 = vmatpush1.bf16.msra.mxu0 %v6801
    %10352 = vmatprep.subr.bf16.mxu0 0
    %10353 = vmatpush1.bf16.msra.mxu0 %v6830
    %10354 = vmatprep.subr.bf16.mxu0 0
    %10355 = vmatpush1.bf16.msra.mxu0 %v6859
    %10356 = vmatprep.subr.bf16.mxu0 0
    %10357 = vmatpush1.bf16.msra.mxu0 %v6888
    %10358 = vmatprep.subr.bf16.mxu0 0
    %10359 = vmatpush1.bf16.msra.mxu0 %v6917
    %10360 = vmatprep.subr.bf16.mxu0 0
    %10361 = vmatpush1.bf16.msra.mxu0 %v6946
    %10362 = vmatprep.subr.bf16.mxu0 0
    %10363 = vmatpush1.bf16.msra.mxu0 %v6975
    %10364 = vmatprep.subr.bf16.mxu0 0
    %10365 = vmatpush1.bf16.msra.mxu0 %v7004
    %10366 = vmatprep.subr.bf16.mxu0 0
    %10367 = vmatpush1.bf16.msra.mxu0 %v7033
    %10368 = vmatprep.subr.bf16.mxu0 0
    %10369 = vmatpush1.bf16.msra.mxu0 %v7062
    %10370 = vmatprep.subr.bf16.mxu0 0
    %10371 = vmatpush1.bf16.msra.mxu0 %v7091
    %10372 = vmatprep.subr.bf16.mxu0 0
    %10373 = vmatpush1.bf16.msra.mxu0 %v7120
    %10374 = vmatprep.subr.bf16.mxu0 0
    %10375 = vmatpush1.bf16.msra.mxu0 %v7149
    %10376 = vmatprep.mubr.bf16.mxu0 %v85
    %10377 = vmatmul.mubr.bf16.gmra.mrb[0].mxu0 %v84
    %v10378 = vpop.f32.mrb[0].mxu0
    %v10379 = vadd.f32 %v10339, %v10378
    %v10380 = vpop.f32.mrb[0].mxu0
    %v10381 = vpop.f32.mrb[0].mxu0
    %v10382 = vpop.f32.mrb[0].mxu0
    %10383 = vdwg.mxu0
    %v10413 = vcombine.low %v8659, %v8661
    %v10414 = vcombine.low %v8782, %v8784
    %v10416 = vunpack.c.l.s4 1983009808
    %v10417 = vunpack.c.0.s8 %v10416
    %v10418 = vlaneseq
    %v10419 = vshrl.u32 %v10418, 7
    %v10420 = vsub.s32 %v10417, %v10419
    %v10421 = vrot.slane %v10413, %v10420
    %v10423 = vunpack.c.l.s4 1983009808
    %v10424 = vunpack.c.0.s8 %v10423
    %v10425 = vlaneseq
    %v10426 = vshrl.u32 %v10425, 7
    %v10427 = vsub.s32 %v10424, %v10426
    %v10428 = vrot.slane %v10414, %v10427
    %v10429 = vcombine.low %v10421, %v10428
    %v10430 = vcombine.low %v8905, %v8907
    %v10431 = vcombine.low %v9028, %v9030
    %v10433 = vunpack.c.l.s4 1983009808
    %v10434 = vunpack.c.0.s8 %v10433
    %v10435 = vlaneseq
    %v10436 = vshrl.u32 %v10435, 7
    %v10437 = vsub.s32 %v10434, %v10436
    %v10438 = vrot.slane %v10430, %v10437
    %v10440 = vunpack.c.l.s4 1983009808
    %v10441 = vunpack.c.0.s8 %v10440
    %v10442 = vlaneseq
    %v10443 = vshrl.u32 %v10442, 7
    %v10444 = vsub.s32 %v10441, %v10443
    %v10445 = vrot.slane %v10431, %v10444
    %v10446 = vcombine.low %v10438, %v10445
    %v10447 = vcombine.low %v9151, %v9153
    %v10448 = vcombine.low %v9274, %v9276
    %v10450 = vunpack.c.l.s4 1983009808
    %v10451 = vunpack.c.0.s8 %v10450
    %v10452 = vlaneseq
    %v10453 = vshrl.u32 %v10452, 7
    %v10454 = vsub.s32 %v10451, %v10453
    %v10455 = vrot.slane %v10447, %v10454
    %v10457 = vunpack.c.l.s4 1983009808
    %v10458 = vunpack.c.0.s8 %v10457
    %v10459 = vlaneseq
    %v10460 = vshrl.u32 %v10459, 7
    %v10461 = vsub.s32 %v10458, %v10460
    %v10462 = vrot.slane %v10448, %v10461
    %v10463 = vcombine.low %v10455, %v10462
    %v10464 = vcombine.low %v9397, %v9399
    %v10465 = vcombine.low %v9520, %v9522
    %v10467 = vunpack.c.l.s4 1983009808
    %v10468 = vunpack.c.0.s8 %v10467
    %v10469 = vlaneseq
    %v10470 = vshrl.u32 %v10469, 7
    %v10471 = vsub.s32 %v10468, %v10470
    %v10472 = vrot.slane %v10464, %v10471
    %v10474 = vunpack.c.l.s4 1983009808
    %v10475 = vunpack.c.0.s8 %v10474
    %v10476 = vlaneseq
    %v10477 = vshrl.u32 %v10476, 7
    %v10478 = vsub.s32 %v10475, %v10477
    %v10479 = vrot.slane %v10465, %v10478
    %v10480 = vcombine.low %v10472, %v10479
    %v10481 = vcombine.low %v9643, %v9645
    %v10482 = vcombine.low %v9766, %v9768
    %v10484 = vunpack.c.l.s4 1983009808
    %v10485 = vunpack.c.0.s8 %v10484
    %v10486 = vlaneseq
    %v10487 = vshrl.u32 %v10486, 7
    %v10488 = vsub.s32 %v10485, %v10487
    %v10489 = vrot.slane %v10481, %v10488
    %v10491 = vunpack.c.l.s4 1983009808
    %v10492 = vunpack.c.0.s8 %v10491
    %v10493 = vlaneseq
    %v10494 = vshrl.u32 %v10493, 7
    %v10495 = vsub.s32 %v10492, %v10494
    %v10496 = vrot.slane %v10482, %v10495
    %v10497 = vcombine.low %v10489, %v10496
    %v10498 = vcombine.low %v9889, %v9891
    %v10499 = vcombine.low %v10012, %v10014
    %v10501 = vunpack.c.l.s4 1983009808
    %v10502 = vunpack.c.0.s8 %v10501
    %v10503 = vlaneseq
    %v10504 = vshrl.u32 %v10503, 7
    %v10505 = vsub.s32 %v10502, %v10504
    %v10506 = vrot.slane %v10498, %v10505
    %v10508 = vunpack.c.l.s4 1983009808
    %v10509 = vunpack.c.0.s8 %v10508
    %v10510 = vlaneseq
    %v10511 = vshrl.u32 %v10510, 7
    %v10512 = vsub.s32 %v10509, %v10511
    %v10513 = vrot.slane %v10499, %v10512
    %v10514 = vcombine.low %v10506, %v10513
    %v10515 = vcombine.low %v10135, %v10137
    %v10516 = vcombine.low %v10258, %v10260
    %v10518 = vunpack.c.l.s4 1983009808
    %v10519 = vunpack.c.0.s8 %v10518
    %v10520 = vlaneseq
    %v10521 = vshrl.u32 %v10520, 7
    %v10522 = vsub.s32 %v10519, %v10521
    %v10523 = vrot.slane %v10515, %v10522
    %v10525 = vunpack.c.l.s4 1983009808
    %v10526 = vunpack.c.0.s8 %v10525
    %v10527 = vlaneseq
    %v10528 = vshrl.u32 %v10527, 7
    %v10529 = vsub.s32 %v10526, %v10528
    %v10530 = vrot.slane %v10516, %v10529
    %v10531 = vcombine.low %v10523, %v10530
    %v10533 = vunpack.c.l.s4 1983009808
    %v10534 = vunpack.c.0.s8 %v10533
    %v10535 = vlaneseq
    %v10536 = vshrl.u32 %v10535, 7
    %v10537 = vsub.s32 %v10534, %v10536
    %v10538 = vrot.slane %v10379, %v10537
    %v10547 = vadd.f32 %v86, %v10429
    %v10548 = vadd.f32 %v87, %v10446
    %v10549 = vadd.f32 %v88, %v10463
    %v10550 = vadd.f32 %v89, %v10480
    %v10551 = vadd.f32 %v90, %v10497
    %v10552 = vadd.f32 %v91, %v10514
    %v10553 = vadd.f32 %v92, %v10531
    %v10554 = vadd.f32 %v93, %v10538
    %10555 = vst [vmem:[#allocation2] sm:$0xff] %v10547
    %10556 = vst [vmem:[#allocation2 + $0x8] sm:$0xff] %v10548
    %10557 = vst [vmem:[#allocation2 + $0x10] sm:$0xff] %v10549
    %10558 = vst [vmem:[#allocation2 + $0x18] sm:$0xff] %v10550
    %10559 = vst [vmem:[#allocation2 + $0x20] sm:$0xff] %v10551
    %10560 = vst [vmem:[#allocation2 + $0x28] sm:$0xff] %v10552
    %10561 = vst [vmem:[#allocation2 + $0x30] sm:$0xff] %v10553
    %vm10562 = vcmask 787456
    %10563 = vst.msk [vmem:[#allocation2 + $0x38] sm:$0x3] %vm10562, %v10554
    // Predicated region
    $region26: #{tpu_custom_call.1} parent=1 // pred_check
      %p10564 = pneg %p32
    $region27: #{tpu_custom_call.1} parent=1 // pred_check_branch
      %10566 = sbr.rel (%p10564) target = $region29
    $region28: #{tpu_custom_call.1} parent=1 // pred_region
      %v10567 = vld [vmem:[#allocation2] sm:$0xff]
      %v10568 = vld [vmem:[#allocation2 + $0x8] sm:$0xff]
      %v10569 = vld [vmem:[#allocation2 + $0x10] sm:$0xff]
      %v10570 = vld [vmem:[#allocation2 + $0x18] sm:$0xff]
      %v10571 = vld [vmem:[#allocation2 + $0x20] sm:$0xff]
      %v10572 = vld [vmem:[#allocation2 + $0x28] sm:$0xff]
      %v10573 = vld [vmem:[#allocation2 + $0x30] sm:$0xff]
      %v10574 = vld [vmem:[#allocation2 + $0x38] sm:$0x3]
      %v10575 = vmax.f32 %v10567, 0.0
      %v10576 = vmax.f32 %v10568, 0.0
      %v10577 = vmax.f32 %v10569, 0.0
      %v10578 = vmax.f32 %v10570, 0.0
      %v10579 = vmax.f32 %v10571, 0.0
      %v10580 = vmax.f32 %v10572, 0.0
      %v10581 = vmax.f32 %v10573, 0.0
      %v10582 = vmax.f32 %v10574, 0.0
      %v10583 = vld [vmem:[%s2] sm:$0xff]
      %v10584 = vld [vmem:[%s2 + $0x8] sm:$0xff]
      %v10585 = vld [vmem:[%s2 + $0x10] sm:$0xff]
      %v10586 = vld [vmem:[%s2 + $0x18] sm:$0xff]
      %v10587 = vld [vmem:[%s2 + $0x20] sm:$0xff]
      %v10588 = vld [vmem:[%s2 + $0x28] sm:$0xff]
      %v10589 = vld [vmem:[%s2 + $0x30] sm:$0xff]
      %v10590 = vld [vmem:[%s2 + $0x38] sm:$0xff]
      %v10591 = vld [vmem:[%s2 + $0x40] sm:$0xff]
      %v10592 = vld [vmem:[%s2 + $0x48] sm:$0xff]
      %v10593 = vld [vmem:[%s2 + $0x50] sm:$0xff]
      %v10594 = vld [vmem:[%s2 + $0x58] sm:$0xff]
      %v10595 = vld [vmem:[%s2 + $0x60] sm:$0xff]
      %v10596 = vld [vmem:[%s2 + $0x68] sm:$0xff]
      %v10597 = vld [vmem:[%s2 + $0x70] sm:$0xff]
      %v10598 = vld [vmem:[%s2 + $0x78] sm:$0xff]
      %v10599 = vld [vmem:[%s2 + $0x80] sm:$0xff]
      %v10600 = vld [vmem:[%s2 + $0x88] sm:$0xff]
      %v10601 = vld [vmem:[%s2 + $0x90] sm:$0xff]
      %v10602 = vld [vmem:[%s2 + $0x98] sm:$0xff]
      %v10603 = vld [vmem:[%s2 + $0xa0] sm:$0xff]
      %v10604 = vld [vmem:[%s2 + $0xa8] sm:$0xff]
      %v10605 = vld [vmem:[%s2 + $0xb0] sm:$0xff]
      %v10606 = vld [vmem:[%s2 + $0xb8] sm:$0xff]
      %v10607 = vld [vmem:[%s2 + $0xc0] sm:$0xff]
      %v10608 = vld [vmem:[%s2 + $0xc8] sm:$0xff]
      %v10609 = vld [vmem:[%s2 + $0xd0] sm:$0xff]
      %v10610 = vld [vmem:[%s2 + $0xd8] sm:$0xff]
      %v10611 = vld [vmem:[%s2 + $0xe0] sm:$0xff]
      %v10612 = vld [vmem:[%s2 + $0xe8] sm:$0xff]
      %v10613 = vld [vmem:[%s2 + $0xf0] sm:$0xff]
      %v10614 = vld [vmem:[%s2 + $0xf8] sm:$0xff]
      %v10615 = vld [vmem:[%s2 + $0x100] sm:$0xff]
      %v10616 = vld [vmem:[%s2 + $0x108] sm:$0xff]
      %v10617 = vld [vmem:[%s2 + $0x110] sm:$0xff]
      %v10618 = vld [vmem:[%s2 + $0x118] sm:$0xff]
      %v10619 = vld [vmem:[%s2 + $0x120] sm:$0xff]
      %v10620 = vld [vmem:[%s2 + $0x128] sm:$0xff]
      %v10621 = vld [vmem:[%s2 + $0x130] sm:$0xff]
      %v10622 = vld [vmem:[%s2 + $0x138] sm:$0xff]
      %v10623 = vld [vmem:[%s2 + $0x140] sm:$0xff]
      %v10624 = vld [vmem:[%s2 + $0x148] sm:$0xff]
      %v10625 = vld [vmem:[%s2 + $0x150] sm:$0xff]
      %v10626 = vld [vmem:[%s2 + $0x158] sm:$0xff]
      %v10627 = vld [vmem:[%s2 + $0x160] sm:$0xff]
      %v10628 = vld [vmem:[%s2 + $0x168] sm:$0xff]
      %v10629 = vld [vmem:[%s2 + $0x170] sm:$0xff]
      %v10630 = vld [vmem:[%s2 + $0x178] sm:$0xff]
      %v10631 = vld [vmem:[%s2 + $0x180] sm:$0xff]
      %v10632 = vld [vmem:[%s2 + $0x188] sm:$0xff]
      %v10633 = vld [vmem:[%s2 + $0x190] sm:$0xff]
      %v10634 = vld [vmem:[%s2 + $0x198] sm:$0xff]
      %v10635 = vld [vmem:[%s2 + $0x1a0] sm:$0xff]
      %v10636 = vld [vmem:[%s2 + $0x1a8] sm:$0xff]
      %v10637 = vld [vmem:[%s2 + $0x1b0] sm:$0xff]
      %v10638 = vld [vmem:[%s2 + $0x1b8] sm:$0xff]
      %v10639 = vld [vmem:[%s2 + $0x1c0] sm:$0xff]
      %v10640 = vld [vmem:[%s2 + $0x1c8] sm:$0xff]
      %v10641 = vld [vmem:[%s2 + $0x1d0] sm:$0xff]
      %v10642 = vld [vmem:[%s2 + $0x1d8] sm:$0xff]
      %v10643 = vld [vmem:[%s2 + $0x1e0] sm:$0xff]
      %v10644 = vld [vmem:[%s2 + $0x1e8] sm:$0xff]
      %v10645 = vld [vmem:[%s2 + $0x1f0] sm:$0xff]
      %v10646 = vld [vmem:[%s2 + $0x1f8] sm:$0xff]
      %v10647 = vld [vmem:[%s2 + $0x200] sm:$0xff]
      %v10648 = vld [vmem:[%s2 + $0x208] sm:$0xff]
      %v10649 = vld [vmem:[%s2 + $0x210] sm:$0xff]
      %v10650 = vld [vmem:[%s2 + $0x218] sm:$0xff]
      %v10651 = vld [vmem:[%s2 + $0x220] sm:$0xff]
      %v10652 = vld [vmem:[%s2 + $0x228] sm:$0xff]
      %v10653 = vld [vmem:[%s2 + $0x230] sm:$0xff]
      %v10654 = vld [vmem:[%s2 + $0x238] sm:$0xff]
      %v10655 = vld [vmem:[%s2 + $0x240] sm:$0xff]
      %v10656 = vld [vmem:[%s2 + $0x248] sm:$0xff]
      %v10657 = vld [vmem:[%s2 + $0x250] sm:$0xff]
      %v10658 = vld [vmem:[%s2 + $0x258] sm:$0xff]
      %v10659 = vld [vmem:[%s2 + $0x260] sm:$0xff]
      %v10660 = vld [vmem:[%s2 + $0x268] sm:$0xff]
      %v10661 = vld [vmem:[%s2 + $0x270] sm:$0xff]
      %v10662 = vld [vmem:[%s2 + $0x278] sm:$0xff]
      %v10663 = vld [vmem:[%s2 + $0x280] sm:$0xff]
      %v10664 = vld [vmem:[%s2 + $0x288] sm:$0xff]
      %v10665 = vld [vmem:[%s2 + $0x290] sm:$0xff]
      %v10666 = vld [vmem:[%s2 + $0x298] sm:$0xff]
      %v10667 = vld [vmem:[%s2 + $0x2a0] sm:$0xff]
      %v10668 = vld [vmem:[%s2 + $0x2a8] sm:$0xff]
      %v10669 = vld [vmem:[%s2 + $0x2b0] sm:$0xff]
      %v10670 = vld [vmem:[%s2 + $0x2b8] sm:$0xff]
      %v10671 = vld [vmem:[%s2 + $0x2c0] sm:$0xff]
      %v10672 = vld [vmem:[%s2 + $0x2c8] sm:$0xff]
      %v10673 = vld [vmem:[%s2 + $0x2d0] sm:$0xff]
      %v10674 = vld [vmem:[%s2 + $0x2d8] sm:$0xff]
      %v10675 = vld [vmem:[%s2 + $0x2e0] sm:$0xff]
      %v10676 = vld [vmem:[%s2 + $0x2e8] sm:$0xff]
      %v10677 = vld [vmem:[%s2 + $0x2f0] sm:$0xff]
      %v10678 = vld [vmem:[%s2 + $0x2f8] sm:$0xff]
      %v10679 = vld [vmem:[%s2 + $0x300] sm:$0xff]
      %v10680 = vld [vmem:[%s2 + $0x308] sm:$0xff]
      %v10681 = vld [vmem:[%s2 + $0x310] sm:$0xff]
      %v10682 = vld [vmem:[%s2 + $0x318] sm:$0xff]
      %v10683 = vld [vmem:[%s2 + $0x320] sm:$0xff]
      %v10684 = vld [vmem:[%s2 + $0x328] sm:$0xff]
      %v10685 = vld [vmem:[%s2 + $0x330] sm:$0xff]
      %v10686 = vld [vmem:[%s2 + $0x338] sm:$0xff]
      %v10687 = vld [vmem:[%s2 + $0x340] sm:$0xff]
      %v10688 = vld [vmem:[%s2 + $0x348] sm:$0xff]
      %v10689 = vld [vmem:[%s2 + $0x350] sm:$0xff]
      %v10690 = vld [vmem:[%s2 + $0x358] sm:$0xff]
      %v10691 = vld [vmem:[%s2 + $0x360] sm:$0xff]
      %v10692 = vld [vmem:[%s2 + $0x368] sm:$0xff]
      %v10693 = vld [vmem:[%s2 + $0x370] sm:$0xff]
      %v10694 = vld [vmem:[%s2 + $0x378] sm:$0xff]
      %v10695 = vld [vmem:[%s2 + $0x380] sm:$0xff]
      %v10696 = vld [vmem:[%s2 + $0x388] sm:$0xff]
      %v10697 = vld [vmem:[%s2 + $0x390] sm:$0xff]
      %v10698 = vld [vmem:[%s2 + $0x398] sm:$0xff]
      %v10699 = vld [vmem:[%s2 + $0x3a0] sm:$0xff]
      %v10700 = vld [vmem:[%s2 + $0x3a8] sm:$0xff]
      %v10701 = vld [vmem:[%s2 + $0x3b0] sm:$0xff]
      %v10702 = vld [vmem:[%s2 + $0x3b8] sm:$0xff]
      %v10703 = vld [vmem:[%s2 + $0x3c0] sm:$0xff]
      %v10704 = vld [vmem:[%s2 + $0x3c8] sm:$0xff]
      %v10705 = vld [vmem:[%s2 + $0x3d0] sm:$0xff]
      %v10706 = vld [vmem:[%s2 + $0x3d8] sm:$0xff]
      %v10707 = vld [vmem:[%s2 + $0x3e0] sm:$0xff]
      %v10708 = vld [vmem:[%s2 + $0x3e8] sm:$0xff]
      %v10709 = vld [vmem:[%s2 + $0x3f0] sm:$0xff]
      %v10710 = vld [vmem:[%s2 + $0x3f8] sm:$0xff]
      %v10711 = vld [vmem:[%s2 + $0x400] sm:$0xff]
      %v10712 = vld [vmem:[%s2 + $0x408] sm:$0xff]
      %v10713 = vld [vmem:[%s2 + $0x410] sm:$0xff]
      %v10714 = vld [vmem:[%s2 + $0x418] sm:$0xff]
      %v10715 = vld [vmem:[%s2 + $0x420] sm:$0xff]
      %v10716 = vld [vmem:[%s2 + $0x428] sm:$0xff]
      %v10717 = vld [vmem:[%s2 + $0x430] sm:$0xff]
      %v10718 = vld [vmem:[%s2 + $0x438] sm:$0xff]
      %v10719 = vld [vmem:[%s2 + $0x440] sm:$0xff]
      %v10720 = vld [vmem:[%s2 + $0x448] sm:$0xff]
      %v10721 = vld [vmem:[%s2 + $0x450] sm:$0xff]
      %v10722 = vld [vmem:[%s2 + $0x458] sm:$0xff]
      %v10723 = vld [vmem:[%s2 + $0x460] sm:$0xff]
      %v10724 = vld [vmem:[%s2 + $0x468] sm:$0xff]
      %v10725 = vld [vmem:[%s2 + $0x470] sm:$0xff]
      %v10726 = vld [vmem:[%s2 + $0x478] sm:$0xff]
      %v10727 = vld [vmem:[%s2 + $0x480] sm:$0xff]
      %v10728 = vld [vmem:[%s2 + $0x488] sm:$0xff]
      %v10729 = vld [vmem:[%s2 + $0x490] sm:$0xff]
      %v10730 = vld [vmem:[%s2 + $0x498] sm:$0xff]
      %v10731 = vld [vmem:[%s2 + $0x4a0] sm:$0xff]
      %v10732 = vld [vmem:[%s2 + $0x4a8] sm:$0xff]
      %v10733 = vld [vmem:[%s2 + $0x4b0] sm:$0xff]
      %v10734 = vld [vmem:[%s2 + $0x4b8] sm:$0xff]
      %v10735 = vld [vmem:[%s2 + $0x4c0] sm:$0xff]
      %v10736 = vld [vmem:[%s2 + $0x4c8] sm:$0xff]
      %v10737 = vld [vmem:[%s2 + $0x4d0] sm:$0xff]
      %v10738 = vld [vmem:[%s2 + $0x4d8] sm:$0xff]
      %v10739 = vld [vmem:[%s2 + $0x4e0] sm:$0xff]
      %v10740 = vld [vmem:[%s2 + $0x4e8] sm:$0xff]
      %v10741 = vld [vmem:[%s2 + $0x4f0] sm:$0xff]
      %v10742 = vld [vmem:[%s2 + $0x4f8] sm:$0xff]
      %v10743 = vld [vmem:[%s2 + $0x500] sm:$0xff]
      %v10744 = vld [vmem:[%s2 + $0x508] sm:$0xff]
      %v10745 = vld [vmem:[%s2 + $0x510] sm:$0xff]
      %v10746 = vld [vmem:[%s2 + $0x518] sm:$0xff]
      %v10747 = vld [vmem:[%s2 + $0x520] sm:$0xff]
      %v10748 = vld [vmem:[%s2 + $0x528] sm:$0xff]
      %v10749 = vld [vmem:[%s2 + $0x530] sm:$0xff]
      %v10750 = vld [vmem:[%s2 + $0x538] sm:$0xff]
      %v10751 = vld [vmem:[%s2 + $0x540] sm:$0xff]
      %v10752 = vld [vmem:[%s2 + $0x548] sm:$0xff]
      %v10753 = vld [vmem:[%s2 + $0x550] sm:$0xff]
      %v10754 = vld [vmem:[%s2 + $0x558] sm:$0xff]
      %v10755 = vld [vmem:[%s2 + $0x560] sm:$0xff]
      %v10756 = vld [vmem:[%s2 + $0x568] sm:$0xff]
      %v10757 = vld [vmem:[%s2 + $0x570] sm:$0xff]
      %v10758 = vld [vmem:[%s2 + $0x578] sm:$0xff]
      %v10759 = vld [vmem:[%s2 + $0x580] sm:$0xff]
      %v10760 = vld [vmem:[%s2 + $0x588] sm:$0xff]
      %v10761 = vld [vmem:[%s2 + $0x590] sm:$0xff]
      %v10762 = vld [vmem:[%s2 + $0x598] sm:$0xff]
      %v10763 = vld [vmem:[%s2 + $0x5a0] sm:$0xff]
      %v10764 = vld [vmem:[%s2 + $0x5a8] sm:$0xff]
      %v10765 = vld [vmem:[%s2 + $0x5b0] sm:$0xff]
      %v10766 = vld [vmem:[%s2 + $0x5b8] sm:$0xff]
      %v10767 = vld [vmem:[%s2 + $0x5c0] sm:$0xff]
      %v10768 = vld [vmem:[%s2 + $0x5c8] sm:$0xff]
      %v10769 = vld [vmem:[%s2 + $0x5d0] sm:$0xff]
      %v10770 = vld [vmem:[%s2 + $0x5d8] sm:$0xff]
      %v10771 = vld [vmem:[%s2 + $0x5e0] sm:$0xff]
      %v10772 = vld [vmem:[%s2 + $0x5e8] sm:$0xff]
      %v10773 = vld [vmem:[%s2 + $0x5f0] sm:$0xff]
      %v10774 = vld [vmem:[%s2 + $0x5f8] sm:$0xff]
      %v10775 = vld [vmem:[%s2 + $0x600] sm:$0xff]
      %v10776 = vld [vmem:[%s2 + $0x608] sm:$0xff]
      %v10777 = vld [vmem:[%s2 + $0x610] sm:$0xff]
      %v10778 = vld [vmem:[%s2 + $0x618] sm:$0xff]
      %v10779 = vld [vmem:[%s2 + $0x620] sm:$0xff]
      %v10780 = vld [vmem:[%s2 + $0x628] sm:$0xff]
      %v10781 = vld [vmem:[%s2 + $0x630] sm:$0xff]
      %v10782 = vld [vmem:[%s2 + $0x638] sm:$0xff]
      %v10783 = vld [vmem:[%s2 + $0x640] sm:$0xff]
      %v10784 = vld [vmem:[%s2 + $0x648] sm:$0xff]
      %v10785 = vld [vmem:[%s2 + $0x650] sm:$0xff]
      %v10786 = vld [vmem:[%s2 + $0x658] sm:$0xff]
      %v10787 = vld [vmem:[%s2 + $0x660] sm:$0xff]
      %v10788 = vld [vmem:[%s2 + $0x668] sm:$0xff]
      %v10789 = vld [vmem:[%s2 + $0x670] sm:$0xff]
      %v10790 = vld [vmem:[%s2 + $0x678] sm:$0xff]
      %v10791 = vld [vmem:[%s2 + $0x680] sm:$0xff]
      %v10792 = vld [vmem:[%s2 + $0x688] sm:$0xff]
      %v10793 = vld [vmem:[%s2 + $0x690] sm:$0xff]
      %v10794 = vld [vmem:[%s2 + $0x698] sm:$0xff]
      %v10795 = vld [vmem:[%s2 + $0x6a0] sm:$0xff]
      %v10796 = vld [vmem:[%s2 + $0x6a8] sm:$0xff]
      %v10797 = vld [vmem:[%s2 + $0x6b0] sm:$0xff]
      %v10798 = vld [vmem:[%s2 + $0x6b8] sm:$0xff]
      %v10799 = vld [vmem:[%s2 + $0x6c0] sm:$0xff]
      %v10800 = vld [vmem:[%s2 + $0x6c8] sm:$0xff]
      %v10801 = vld [vmem:[%s2 + $0x6d0] sm:$0xff]
      %v10802 = vld [vmem:[%s2 + $0x6d8] sm:$0xff]
      %v10803 = vld [vmem:[%s2 + $0x6e0] sm:$0xff]
      %v10804 = vld [vmem:[%s2 + $0x6e8] sm:$0xff]
      %v10805 = vld [vmem:[%s2 + $0x6f0] sm:$0xff]
      %v10806 = vld [vmem:[%s2 + $0x6f8] sm:$0xff]
      %v10807 = vld [vmem:[%s2 + $0x700] sm:$0xff]
      %v10808 = vld [vmem:[%s2 + $0x708] sm:$0xff]
      %v10809 = vld [vmem:[%s2 + $0x710] sm:$0xff]
      %v10810 = vld [vmem:[%s2 + $0x718] sm:$0xff]
      %v10811 = vld [vmem:[%s2 + $0x720] sm:$0xff]
      %v10812 = vld [vmem:[%s2 + $0x728] sm:$0xff]
      %v10813 = vld [vmem:[%s2 + $0x730] sm:$0xff]
      %v10814 = vld [vmem:[%s2 + $0x738] sm:$0xff]
      %v10815 = vld [vmem:[%s2 + $0x740] sm:$0xff]
      %v10816 = vld [vmem:[%s2 + $0x748] sm:$0xff]
      %v10817 = vld [vmem:[%s2 + $0x750] sm:$0xff]
      %v10818 = vld [vmem:[%s2 + $0x758] sm:$0xff]
      %v10819 = vld [vmem:[%s2 + $0x760] sm:$0xff]
      %v10820 = vld [vmem:[%s2 + $0x768] sm:$0xff]
      %v10821 = vld [vmem:[%s2 + $0x770] sm:$0xff]
      %v10822 = vld [vmem:[%s2 + $0x778] sm:$0xff]
      %v10823 = vld [vmem:[%s2 + $0x780] sm:$0xff]
      %v10824 = vld [vmem:[%s2 + $0x788] sm:$0xff]
      %v10825 = vld [vmem:[%s2 + $0x790] sm:$0xff]
      %v10826 = vld [vmem:[%s2 + $0x798] sm:$0xff]
      %v10827 = vld [vmem:[%s2 + $0x7a0] sm:$0xff]
      %v10828 = vld [vmem:[%s2 + $0x7a8] sm:$0xff]
      %v10829 = vld [vmem:[%s2 + $0x7b0] sm:$0xff]
      %v10830 = vld [vmem:[%s2 + $0x7b8] sm:$0xff]
      %v10831 = vld [vmem:[%s2 + $0x7c0] sm:$0xff]
      %v10832 = vld [vmem:[%s2 + $0x7c8] sm:$0xff]
      %v10833 = vld [vmem:[%s2 + $0x7d0] sm:$0xff]
      %v10834 = vld [vmem:[%s2 + $0x7d8] sm:$0xff]
      %v10835 = vld [vmem:[%s2 + $0x7e0] sm:$0xff]
      %v10836 = vld [vmem:[%s2 + $0x7e8] sm:$0xff]
      %v10837 = vld [vmem:[%s2 + $0x7f0] sm:$0xff]
      %v10838 = vld [vmem:[%s2 + $0x7f8] sm:$0xff]
      %v10839 = vld [vmem:[%s2 + $0x800] sm:$0xff]
      %v10840 = vld [vmem:[%s2 + $0x808] sm:$0xff]
      %v10841 = vld [vmem:[%s2 + $0x810] sm:$0xff]
      %v10842 = vld [vmem:[%s2 + $0x818] sm:$0xff]
      %v10843 = vld [vmem:[%s2 + $0x820] sm:$0xff]
      %v10844 = vld [vmem:[%s2 + $0x828] sm:$0xff]
      %v10845 = vld [vmem:[%s2 + $0x830] sm:$0xff]
      %v10846 = vld [vmem:[%s2 + $0x838] sm:$0xff]
      %v10847 = vld [vmem:[%s2 + $0x840] sm:$0xff]
      %v10848 = vld [vmem:[%s2 + $0x848] sm:$0xff]
      %v10849 = vld [vmem:[%s2 + $0x850] sm:$0xff]
      %v10850 = vld [vmem:[%s2 + $0x858] sm:$0xff]
      %v10851 = vld [vmem:[%s2 + $0x860] sm:$0xff]
      %v10852 = vld [vmem:[%s2 + $0x868] sm:$0xff]
      %v10853 = vld [vmem:[%s2 + $0x870] sm:$0xff]
      %v10854 = vld [vmem:[%s2 + $0x878] sm:$0xff]
      %v10855 = vld [vmem:[%s2 + $0x880] sm:$0xff]
      %v10856 = vld [vmem:[%s2 + $0x888] sm:$0xff]
      %v10857 = vld [vmem:[%s2 + $0x890] sm:$0xff]
      %v10858 = vld [vmem:[%s2 + $0x898] sm:$0xff]
      %v10859 = vld [vmem:[%s2 + $0x8a0] sm:$0xff]
      %v10860 = vld [vmem:[%s2 + $0x8a8] sm:$0xff]
      %v10861 = vld [vmem:[%s2 + $0x8b0] sm:$0xff]
      %v10862 = vld [vmem:[%s2 + $0x8b8] sm:$0xff]
      %v10863 = vld [vmem:[%s2 + $0x8c0] sm:$0xff]
      %v10864 = vld [vmem:[%s2 + $0x8c8] sm:$0xff]
      %v10865 = vld [vmem:[%s2 + $0x8d0] sm:$0xff]
      %v10866 = vld [vmem:[%s2 + $0x8d8] sm:$0xff]
      %v10867 = vld [vmem:[%s2 + $0x8e0] sm:$0xff]
      %v10868 = vld [vmem:[%s2 + $0x8e8] sm:$0xff]
      %v10869 = vld [vmem:[%s2 + $0x8f0] sm:$0xff]
      %v10870 = vld [vmem:[%s2 + $0x8f8] sm:$0xff]
      %v10871 = vld [vmem:[%s2 + $0x900] sm:$0xff]
      %v10872 = vld [vmem:[%s2 + $0x908] sm:$0xff]
      %v10873 = vld [vmem:[%s2 + $0x910] sm:$0xff]
      %v10874 = vld [vmem:[%s2 + $0x918] sm:$0xff]
      %v10875 = vld [vmem:[%s2 + $0x920] sm:$0xff]
      %v10876 = vld [vmem:[%s2 + $0x928] sm:$0xff]
      %v10877 = vld [vmem:[%s2 + $0x930] sm:$0xff]
      %v10878 = vld [vmem:[%s2 + $0x938] sm:$0xff]
      %v10879 = vld [vmem:[%s2 + $0x940] sm:$0xff]
      %v10880 = vld [vmem:[%s2 + $0x948] sm:$0xff]
      %v10881 = vld [vmem:[%s2 + $0x950] sm:$0xff]
      %v10882 = vld [vmem:[%s2 + $0x958] sm:$0xff]
      %v10883 = vld [vmem:[%s2 + $0x960] sm:$0xff]
      %v10884 = vld [vmem:[%s2 + $0x968] sm:$0xff]
      %v10885 = vld [vmem:[%s2 + $0x970] sm:$0xff]
      %v10886 = vld [vmem:[%s2 + $0x978] sm:$0xff]
      %v10887 = vld [vmem:[%s2 + $0x980] sm:$0xff]
      %v10888 = vld [vmem:[%s2 + $0x988] sm:$0xff]
      %v10889 = vld [vmem:[%s2 + $0x990] sm:$0xff]
      %v10890 = vld [vmem:[%s2 + $0x998] sm:$0xff]
      %v10891 = vld [vmem:[%s2 + $0x9a0] sm:$0xff]
      %v10892 = vld [vmem:[%s2 + $0x9a8] sm:$0xff]
      %v10893 = vld [vmem:[%s2 + $0x9b0] sm:$0xff]
      %v10894 = vld [vmem:[%s2 + $0x9b8] sm:$0xff]
      %v10895 = vld [vmem:[%s2 + $0x9c0] sm:$0xff]
      %v10896 = vld [vmem:[%s2 + $0x9c8] sm:$0xff]
      %v10897 = vld [vmem:[%s2 + $0x9d0] sm:$0xff]
      %v10898 = vld [vmem:[%s2 + $0x9d8] sm:$0xff]
      %v10899 = vld [vmem:[%s2 + $0x9e0] sm:$0xff]
      %v10900 = vld [vmem:[%s2 + $0x9e8] sm:$0xff]
      %v10901 = vld [vmem:[%s2 + $0x9f0] sm:$0xff]
      %v10902 = vld [vmem:[%s2 + $0x9f8] sm:$0xff]
      %v10903 = vld [vmem:[%s2 + $0xa00] sm:$0xff]
      %v10904 = vld [vmem:[%s2 + $0xa08] sm:$0xff]
      %v10905 = vld [vmem:[%s2 + $0xa10] sm:$0xff]
      %v10906 = vld [vmem:[%s2 + $0xa18] sm:$0xff]
      %v10907 = vld [vmem:[%s2 + $0xa20] sm:$0xff]
      %v10908 = vld [vmem:[%s2 + $0xa28] sm:$0xff]
      %v10909 = vld [vmem:[%s2 + $0xa30] sm:$0xff]
      %v10910 = vld [vmem:[%s2 + $0xa38] sm:$0xff]
      %v10911 = vld [vmem:[%s2 + $0xa40] sm:$0xff]
      %v10912 = vld [vmem:[%s2 + $0xa48] sm:$0xff]
      %v10913 = vld [vmem:[%s2 + $0xa50] sm:$0xff]
      %v10914 = vld [vmem:[%s2 + $0xa58] sm:$0xff]
      %v10915 = vld [vmem:[%s2 + $0xa60] sm:$0xff]
      %v10916 = vld [vmem:[%s2 + $0xa68] sm:$0xff]
      %v10917 = vld [vmem:[%s2 + $0xa70] sm:$0xff]
      %v10918 = vld [vmem:[%s2 + $0xa78] sm:$0xff]
      %v10919 = vld [vmem:[%s2 + $0xa80] sm:$0xff]
      %v10920 = vld [vmem:[%s2 + $0xa88] sm:$0xff]
      %v10921 = vld [vmem:[%s2 + $0xa90] sm:$0xff]
      %v10922 = vld [vmem:[%s2 + $0xa98] sm:$0xff]
      %v10923 = vld [vmem:[%s2 + $0xaa0] sm:$0xff]
      %v10924 = vld [vmem:[%s2 + $0xaa8] sm:$0xff]
      %v10925 = vld [vmem:[%s2 + $0xab0] sm:$0xff]
      %v10926 = vld [vmem:[%s2 + $0xab8] sm:$0xff]
      %v10927 = vld [vmem:[%s2 + $0xac0] sm:$0xff]
      %v10928 = vld [vmem:[%s2 + $0xac8] sm:$0xff]
      %v10929 = vld [vmem:[%s2 + $0xad0] sm:$0xff]
      %v10930 = vld [vmem:[%s2 + $0xad8] sm:$0xff]
      %v10931 = vld [vmem:[%s2 + $0xae0] sm:$0xff]
      %v10932 = vld [vmem:[%s2 + $0xae8] sm:$0xff]
      %v10933 = vld [vmem:[%s2 + $0xaf0] sm:$0xff]
      %v10934 = vld [vmem:[%s2 + $0xaf8] sm:$0xff]
      %v10935 = vld [vmem:[%s2 + $0xb00] sm:$0xff]
      %v10936 = vld [vmem:[%s2 + $0xb08] sm:$0xff]
      %v10937 = vld [vmem:[%s2 + $0xb10] sm:$0xff]
      %v10938 = vld [vmem:[%s2 + $0xb18] sm:$0xff]
      %v10939 = vld [vmem:[%s2 + $0xb20] sm:$0xff]
      %v10940 = vld [vmem:[%s2 + $0xb28] sm:$0xff]
      %v10941 = vld [vmem:[%s2 + $0xb30] sm:$0xff]
      %v10942 = vld [vmem:[%s2 + $0xb38] sm:$0xff]
      %v10943 = vld [vmem:[%s2 + $0xb40] sm:$0xff]
      %v10944 = vld [vmem:[%s2 + $0xb48] sm:$0xff]
      %v10945 = vld [vmem:[%s2 + $0xb50] sm:$0xff]
      %v10946 = vld [vmem:[%s2 + $0xb58] sm:$0xff]
      %v10947 = vld [vmem:[%s2 + $0xb60] sm:$0xff]
      %v10948 = vld [vmem:[%s2 + $0xb68] sm:$0xff]
      %v10949 = vld [vmem:[%s2 + $0xb70] sm:$0xff]
      %v10950 = vld [vmem:[%s2 + $0xb78] sm:$0xff]
      %v10951 = vld [vmem:[%s2 + $0xb80] sm:$0xff]
      %v10952 = vld [vmem:[%s2 + $0xb88] sm:$0xff]
      %v10953 = vld [vmem:[%s2 + $0xb90] sm:$0xff]
      %v10954 = vld [vmem:[%s2 + $0xb98] sm:$0xff]
      %v10955 = vld [vmem:[%s2 + $0xba0] sm:$0xff]
      %v10956 = vld [vmem:[%s2 + $0xba8] sm:$0xff]
      %v10957 = vld [vmem:[%s2 + $0xbb0] sm:$0xff]
      %v10958 = vld [vmem:[%s2 + $0xbb8] sm:$0xff]
      %v10959 = vld [vmem:[%s2 + $0xbc0] sm:$0xff]
      %v10960 = vld [vmem:[%s2 + $0xbc8] sm:$0xff]
      %v10961 = vld [vmem:[%s2 + $0xbd0] sm:$0xff]
      %v10962 = vld [vmem:[%s2 + $0xbd8] sm:$0xff]
      %v10963 = vld [vmem:[%s2 + $0xbe0] sm:$0xff]
      %v10964 = vld [vmem:[%s2 + $0xbe8] sm:$0xff]
      %v10965 = vld [vmem:[%s2 + $0xbf0] sm:$0xff]
      %v10966 = vld [vmem:[%s2 + $0xbf8] sm:$0xff]
      %v10967 = vld [vmem:[%s2 + $0xc00] sm:$0xff]
      %v10968 = vld [vmem:[%s2 + $0xc08] sm:$0xff]
      %v10969 = vld [vmem:[%s2 + $0xc10] sm:$0xff]
      %v10970 = vld [vmem:[%s2 + $0xc18] sm:$0xff]
      %v10971 = vld [vmem:[%s2 + $0xc20] sm:$0xff]
      %v10972 = vld [vmem:[%s2 + $0xc28] sm:$0xff]
      %v10973 = vld [vmem:[%s2 + $0xc30] sm:$0xff]
      %v10974 = vld [vmem:[%s2 + $0xc38] sm:$0xff]
      %v10975 = vld [vmem:[%s2 + $0xc40] sm:$0xff]
      %v10976 = vld [vmem:[%s2 + $0xc48] sm:$0xff]
      %v10977 = vld [vmem:[%s2 + $0xc50] sm:$0xff]
      %v10978 = vld [vmem:[%s2 + $0xc58] sm:$0xff]
      %v10979 = vld [vmem:[%s2 + $0xc60] sm:$0xff]
      %v10980 = vld [vmem:[%s2 + $0xc68] sm:$0xff]
      %v10981 = vld [vmem:[%s2 + $0xc70] sm:$0xff]
      %v10982 = vld [vmem:[%s2 + $0xc78] sm:$0xff]
      %v10983 = vld [vmem:[%s2 + $0xc80] sm:$0xff]
      %v10984 = vld [vmem:[%s2 + $0xc88] sm:$0xff]
      %v10985 = vld [vmem:[%s2 + $0xc90] sm:$0xff]
      %v10986 = vld [vmem:[%s2 + $0xc98] sm:$0xff]
      %v10987 = vld [vmem:[%s2 + $0xca0] sm:$0xff]
      %v10988 = vld [vmem:[%s2 + $0xca8] sm:$0xff]
      %v10989 = vld [vmem:[%s2 + $0xcb0] sm:$0xff]
      %v10990 = vld [vmem:[%s2 + $0xcb8] sm:$0xff]
      %v10991 = vld [vmem:[%s2 + $0xcc0] sm:$0xff]
      %v10992 = vld [vmem:[%s2 + $0xcc8] sm:$0xff]
      %v10993 = vld [vmem:[%s2 + $0xcd0] sm:$0xff]
      %v10994 = vld [vmem:[%s2 + $0xcd8] sm:$0xff]
      %v10995 = vld [vmem:[%s2 + $0xce0] sm:$0xff]
      %v10996 = vld [vmem:[%s2 + $0xce8] sm:$0xff]
      %v10997 = vld [vmem:[%s2 + $0xcf0] sm:$0xff]
      %v10998 = vld [vmem:[%s2 + $0xcf8] sm:$0xff]
      %v10999 = vld [vmem:[%s2 + $0xd00] sm:$0xff]
      %v11000 = vld [vmem:[%s2 + $0xd08] sm:$0xff]
      %v11001 = vld [vmem:[%s2 + $0xd10] sm:$0xff]
      %v11002 = vld [vmem:[%s2 + $0xd18] sm:$0xff]
      %v11003 = vld [vmem:[%s2 + $0xd20] sm:$0xff]
      %v11004 = vld [vmem:[%s2 + $0xd28] sm:$0xff]
      %v11005 = vld [vmem:[%s2 + $0xd30] sm:$0xff]
      %v11006 = vld [vmem:[%s2 + $0xd38] sm:$0xff]
      %v11007 = vld [vmem:[%s2 + $0xd40] sm:$0xff]
      %v11008 = vld [vmem:[%s2 + $0xd48] sm:$0xff]
      %v11009 = vld [vmem:[%s2 + $0xd50] sm:$0xff]
      %v11010 = vld [vmem:[%s2 + $0xd58] sm:$0xff]
      %v11011 = vld [vmem:[%s2 + $0xd60] sm:$0xff]
      %v11012 = vld [vmem:[%s2 + $0xd68] sm:$0xff]
      %v11013 = vld [vmem:[%s2 + $0xd70] sm:$0xff]
      %v11014 = vld [vmem:[%s2 + $0xd78] sm:$0xff]
      %v11015 = vld [vmem:[%s2 + $0xd80] sm:$0xff]
      %v11016 = vld [vmem:[%s2 + $0xd88] sm:$0xff]
      %v11017 = vld [vmem:[%s2 + $0xd90] sm:$0xff]
      %v11018 = vld [vmem:[%s2 + $0xd98] sm:$0xff]
      %v11019 = vld [vmem:[%s2 + $0xda0] sm:$0xff]
      %v11020 = vld [vmem:[%s2 + $0xda8] sm:$0xff]
      %v11021 = vld [vmem:[%s2 + $0xdb0] sm:$0xff]
      %v11022 = vld [vmem:[%s2 + $0xdb8] sm:$0xff]
      %v11023 = vld [vmem:[%s2 + $0xdc0] sm:$0xff]
      %v11024 = vld [vmem:[%s2 + $0xdc8] sm:$0xff]
      %v11025 = vld [vmem:[%s2 + $0xdd0] sm:$0xff]
      %v11026 = vld [vmem:[%s2 + $0xdd8] sm:$0xff]
      %v11027 = vld [vmem:[%s2 + $0xde0] sm:$0xff]
      %v11028 = vld [vmem:[%s2 + $0xde8] sm:$0xff]
      %v11029 = vld [vmem:[%s2 + $0xdf0] sm:$0xff]
      %v11030 = vld [vmem:[%s2 + $0xdf8] sm:$0xff]
      %v11031 = vld [vmem:[%s2 + $0xe00] sm:$0xff]
      %v11032 = vld [vmem:[%s2 + $0xe08] sm:$0xff]
      %v11033 = vld [vmem:[%s2 + $0xe10] sm:$0xff]
      %v11034 = vld [vmem:[%s2 + $0xe18] sm:$0xff]
      %v11035 = vld [vmem:[%s2 + $0xe20] sm:$0xff]
      %v11036 = vld [vmem:[%s2 + $0xe28] sm:$0xff]
      %v11037 = vld [vmem:[%s2 + $0xe30] sm:$0xff]
      %v11038 = vld [vmem:[%s2 + $0xe38] sm:$0xff]
      %v11039 = vld [vmem:[%s2 + $0xe40] sm:$0xff]
      %v11040 = vld [vmem:[%s2 + $0xe48] sm:$0xff]
      %v11041 = vld [vmem:[%s2 + $0xe50] sm:$0xff]
      %v11042 = vld [vmem:[%s2 + $0xe58] sm:$0xff]
      %v11043 = vld [vmem:[%s2 + $0xe60] sm:$0x1]
      %v11052 = vcombine.high %v10575, %v10575
      %v11054 = vunpack.c.l.s4 1983009808
      %v11055 = vunpack.c.0.s8 %v11054
      %v11056 = vlaneseq
      %v11057 = vshrl.u32 %v11056, 7
      %v11058 = vsub.s32 %v11055, %v11057
      %v11059 = vrot.slane %v10575, %v11058
      %v11061 = vunpack.c.l.s4 1983009808
      %v11062 = vunpack.c.0.s8 %v11061
      %v11063 = vlaneseq
      %v11064 = vshrl.u32 %v11063, 7
      %v11065 = vsub.s32 %v11062, %v11064
      %v11066 = vrot.slane %v11052, %v11065
      %v11067 = vcombine.high %v11059, %v11059
      %v11068 = vcombine.high %v11066, %v11066
      %v11069 = vcombine.high %v10576, %v10576
      %v11071 = vunpack.c.l.s4 1983009808
      %v11072 = vunpack.c.0.s8 %v11071
      %v11073 = vlaneseq
      %v11074 = vshrl.u32 %v11073, 7
      %v11075 = vsub.s32 %v11072, %v11074
      %v11076 = vrot.slane %v10576, %v11075
      %v11078 = vunpack.c.l.s4 1983009808
      %v11079 = vunpack.c.0.s8 %v11078
      %v11080 = vlaneseq
      %v11081 = vshrl.u32 %v11080, 7
      %v11082 = vsub.s32 %v11079, %v11081
      %v11083 = vrot.slane %v11069, %v11082
      %v11084 = vcombine.high %v11076, %v11076
      %v11085 = vcombine.high %v11083, %v11083
      %v11086 = vcombine.high %v10577, %v10577
      %v11088 = vunpack.c.l.s4 1983009808
      %v11089 = vunpack.c.0.s8 %v11088
      %v11090 = vlaneseq
      %v11091 = vshrl.u32 %v11090, 7
      %v11092 = vsub.s32 %v11089, %v11091
      %v11093 = vrot.slane %v10577, %v11092
      %v11095 = vunpack.c.l.s4 1983009808
      %v11096 = vunpack.c.0.s8 %v11095
      %v11097 = vlaneseq
      %v11098 = vshrl.u32 %v11097, 7
      %v11099 = vsub.s32 %v11096, %v11098
      %v11100 = vrot.slane %v11086, %v11099
      %v11101 = vcombine.high %v11093, %v11093
      %v11102 = vcombine.high %v11100, %v11100
      %v11103 = vcombine.high %v10578, %v10578
      %v11105 = vunpack.c.l.s4 1983009808
      %v11106 = vunpack.c.0.s8 %v11105
      %v11107 = vlaneseq
      %v11108 = vshrl.u32 %v11107, 7
      %v11109 = vsub.s32 %v11106, %v11108
      %v11110 = vrot.slane %v10578, %v11109
      %v11112 = vunpack.c.l.s4 1983009808
      %v11113 = vunpack.c.0.s8 %v11112
      %v11114 = vlaneseq
      %v11115 = vshrl.u32 %v11114, 7
      %v11116 = vsub.s32 %v11113, %v11115
      %v11117 = vrot.slane %v11103, %v11116
      %v11118 = vcombine.high %v11110, %v11110
      %v11119 = vcombine.high %v11117, %v11117
      %v11120 = vcombine.high %v10579, %v10579
      %v11122 = vunpack.c.l.s4 1983009808
      %v11123 = vunpack.c.0.s8 %v11122
      %v11124 = vlaneseq
      %v11125 = vshrl.u32 %v11124, 7
      %v11126 = vsub.s32 %v11123, %v11125
      %v11127 = vrot.slane %v10579, %v11126
      %v11129 = vunpack.c.l.s4 1983009808
      %v11130 = vunpack.c.0.s8 %v11129
      %v11131 = vlaneseq
      %v11132 = vshrl.u32 %v11131, 7
      %v11133 = vsub.s32 %v11130, %v11132
      %v11134 = vrot.slane %v11120, %v11133
      %v11135 = vcombine.high %v11127, %v11127
      %v11136 = vcombine.high %v11134, %v11134
      %v11137 = vcombine.high %v10580, %v10580
      %v11139 = vunpack.c.l.s4 1983009808
      %v11140 = vunpack.c.0.s8 %v11139
      %v11141 = vlaneseq
      %v11142 = vshrl.u32 %v11141, 7
      %v11143 = vsub.s32 %v11140, %v11142
      %v11144 = vrot.slane %v10580, %v11143
      %v11146 = vunpack.c.l.s4 1983009808
      %v11147 = vunpack.c.0.s8 %v11146
      %v11148 = vlaneseq
      %v11149 = vshrl.u32 %v11148, 7
      %v11150 = vsub.s32 %v11147, %v11149
      %v11151 = vrot.slane %v11137, %v11150
      %v11152 = vcombine.high %v11144, %v11144
      %v11153 = vcombine.high %v11151, %v11151
      %v11154 = vcombine.high %v10581, %v10581
      %v11156 = vunpack.c.l.s4 1983009808
      %v11157 = vunpack.c.0.s8 %v11156
      %v11158 = vlaneseq
      %v11159 = vshrl.u32 %v11158, 7
      %v11160 = vsub.s32 %v11157, %v11159
      %v11161 = vrot.slane %v10581, %v11160
      %v11163 = vunpack.c.l.s4 1983009808
      %v11164 = vunpack.c.0.s8 %v11163
      %v11165 = vlaneseq
      %v11166 = vshrl.u32 %v11165, 7
      %v11167 = vsub.s32 %v11164, %v11166
      %v11168 = vrot.slane %v11154, %v11167
      %v11169 = vcombine.high %v11161, %v11161
      %v11170 = vcombine.high %v11168, %v11168
      %v11172 = vunpack.c.l.s4 1983009808
      %v11173 = vunpack.c.0.s8 %v11172
      %v11174 = vlaneseq
      %v11175 = vshrl.u32 %v11174, 7
      %v11176 = vsub.s32 %v11173, %v11175
      %v11177 = vrot.slane %v10582, %v11176
      %vm11206 = vcmask 793600
      %v11207 = vsel %vm11206, %v11177, 0
      %vm11209 = vcmask 1040384
      %v11211 = vsel %vm11209, %v11043, 0
      %11213 = vmatprep.subr.mxu0 0.0
      %11214 = vmatpush1.msra.mxu0 %v10583
      %11215 = vmatprep.subr.mxu0 0.0
      %11216 = vmatpush1.msra.mxu0 %v10584
      %11217 = vmatprep.subr.mxu0 0.0
      %11218 = vmatpush1.msra.mxu0 %v10585
      %11219 = vmatprep.subr.mxu0 0.0
      %11220 = vmatpush1.msra.mxu0 %v10586
      %11221 = vmatprep.subr.mxu0 0.0
      %11222 = vmatpush1.msra.mxu0 %v10587
      %11223 = vmatprep.subr.mxu0 0.0
      %11224 = vmatpush1.msra.mxu0 %v10588
      %11225 = vmatprep.subr.mxu0 0.0
      %11226 = vmatpush1.msra.mxu0 %v10589
      %11227 = vmatprep.subr.mxu0 0.0
      %11228 = vmatpush1.msra.mxu0 %v10590
      %11229 = vmatprep.subr.mxu0 0.0
      %11230 = vmatpush1.msra.mxu0 %v10591
      %11231 = vmatprep.subr.mxu0 0.0
      %11232 = vmatpush1.msra.mxu0 %v10592
      %11233 = vmatprep.subr.mxu0 0.0
      %11234 = vmatpush1.msra.mxu0 %v10593
      %11235 = vmatprep.subr.mxu0 0.0
      %11236 = vmatpush1.msra.mxu0 %v10594
      %11237 = vmatprep.subr.mxu0 0.0
      %11238 = vmatpush1.msra.mxu0 %v10595
      %11239 = vmatprep.subr.mxu0 0.0
      %11240 = vmatpush1.msra.mxu0 %v10596
      %11241 = vmatprep.subr.mxu0 0.0
      %11242 = vmatpush1.msra.mxu0 %v10597
      %11243 = vmatprep.subr.mxu0 0.0
      %11244 = vmatpush1.msra.mxu0 %v10598
      %11245 = vmatprep.subr.mxu0 0.0
      %11246 = vmatpush1.msra.mxu0 %v10599
      %11247 = vmatprep.subr.mxu0 0.0
      %11248 = vmatpush1.msra.mxu0 %v10600
      %11249 = vmatprep.subr.mxu0 0.0
      %11250 = vmatpush1.msra.mxu0 %v10601
      %11251 = vmatprep.subr.mxu0 0.0
      %11252 = vmatpush1.msra.mxu0 %v10602
      %11253 = vmatprep.subr.mxu0 0.0
      %11254 = vmatpush1.msra.mxu0 %v10603
      %11255 = vmatprep.subr.mxu0 0.0
      %11256 = vmatpush1.msra.mxu0 %v10604
      %11257 = vmatprep.subr.mxu0 0.0
      %11258 = vmatpush1.msra.mxu0 %v10605
      %11259 = vmatprep.subr.mxu0 0.0
      %11260 = vmatpush1.msra.mxu0 %v10606
      %11261 = vmatprep.subr.mxu0 0.0
      %11262 = vmatpush1.msra.mxu0 %v10607
      %11263 = vmatprep.subr.mxu0 0.0
      %11264 = vmatpush1.msra.mxu0 %v10608
      %11265 = vmatprep.subr.mxu0 0.0
      %11266 = vmatpush1.msra.mxu0 %v10609
      %11267 = vmatprep.subr.mxu0 0.0
      %11268 = vmatpush1.msra.mxu0 %v10610
      %11269 = vmatprep.subr.mxu0 0.0
      %11270 = vmatpush1.msra.mxu0 %v10611
      %11271 = vmatprep.subr.mxu0 0.0
      %11272 = vmatpush1.msra.mxu0 %v10612
      %11273 = vmatprep.subr.mxu0 0.0
      %11274 = vmatpush1.msra.mxu0 %v10613
      %11275 = vmatprep.subr.mxu0 0.0
      %11276 = vmatpush1.msra.mxu0 %v10614
      %11277 = vmatprep.mubr.f32.mxu0 %v11067
      %11278 = vmatmul.mubr.f32.gmra.mrb[0].mxu0 %v11059
      %v11279 = vpop.f32.mrb[0].mxu0
      %v11280 = vadd.f32 0.0, %v11279
      %v11281 = vpop.f32.mrb[0].mxu0
      %11282 = vdwg.mxu0
      %11283 = vmatprep.subr.mxu0 0.0
      %11284 = vmatpush1.msra.mxu0 %v10615
      %11285 = vmatprep.subr.mxu0 0.0
      %11286 = vmatpush1.msra.mxu0 %v10616
      %11287 = vmatprep.subr.mxu0 0.0
      %11288 = vmatpush1.msra.mxu0 %v10617
      %11289 = vmatprep.subr.mxu0 0.0
      %11290 = vmatpush1.msra.mxu0 %v10618
      %11291 = vmatprep.subr.mxu0 0.0
      %11292 = vmatpush1.msra.mxu0 %v10619
      %11293 = vmatprep.subr.mxu0 0.0
      %11294 = vmatpush1.msra.mxu0 %v10620
      %11295 = vmatprep.subr.mxu0 0.0
      %11296 = vmatpush1.msra.mxu0 %v10621
      %11297 = vmatprep.subr.mxu0 0.0
      %11298 = vmatpush1.msra.mxu0 %v10622
      %11299 = vmatprep.subr.mxu0 0.0
      %11300 = vmatpush1.msra.mxu0 %v10623
      %11301 = vmatprep.subr.mxu0 0.0
      %11302 = vmatpush1.msra.mxu0 %v10624
      %11303 = vmatprep.subr.mxu0 0.0
      %11304 = vmatpush1.msra.mxu0 %v10625
      %11305 = vmatprep.subr.mxu0 0.0
      %11306 = vmatpush1.msra.mxu0 %v10626
      %11307 = vmatprep.subr.mxu0 0.0
      %11308 = vmatpush1.msra.mxu0 %v10627
      %11309 = vmatprep.subr.mxu0 0.0
      %11310 = vmatpush1.msra.mxu0 %v10628
      %11311 = vmatprep.subr.mxu0 0.0
      %11312 = vmatpush1.msra.mxu0 %v10629
      %11313 = vmatprep.subr.mxu0 0.0
      %11314 = vmatpush1.msra.mxu0 %v10630
      %11315 = vmatprep.subr.mxu0 0.0
      %11316 = vmatpush1.msra.mxu0 %v10631
      %11317 = vmatprep.subr.mxu0 0.0
      %11318 = vmatpush1.msra.mxu0 %v10632
      %11319 = vmatprep.subr.mxu0 0.0
      %11320 = vmatpush1.msra.mxu0 %v10633
      %11321 = vmatprep.subr.mxu0 0.0
      %11322 = vmatpush1.msra.mxu0 %v10634
      %11323 = vmatprep.subr.mxu0 0.0
      %11324 = vmatpush1.msra.mxu0 %v10635
      %11325 = vmatprep.subr.mxu0 0.0
      %11326 = vmatpush1.msra.mxu0 %v10636
      %11327 = vmatprep.subr.mxu0 0.0
      %11328 = vmatpush1.msra.mxu0 %v10637
      %11329 = vmatprep.subr.mxu0 0.0
      %11330 = vmatpush1.msra.mxu0 %v10638
      %11331 = vmatprep.subr.mxu0 0.0
      %11332 = vmatpush1.msra.mxu0 %v10639
      %11333 = vmatprep.subr.mxu0 0.0
      %11334 = vmatpush1.msra.mxu0 %v10640
      %11335 = vmatprep.subr.mxu0 0.0
      %11336 = vmatpush1.msra.mxu0 %v10641
      %11337 = vmatprep.subr.mxu0 0.0
      %11338 = vmatpush1.msra.mxu0 %v10642
      %11339 = vmatprep.subr.mxu0 0.0
      %11340 = vmatpush1.msra.mxu0 %v10643
      %11341 = vmatprep.subr.mxu0 0.0
      %11342 = vmatpush1.msra.mxu0 %v10644
      %11343 = vmatprep.subr.mxu0 0.0
      %11344 = vmatpush1.msra.mxu0 %v10645
      %11345 = vmatprep.subr.mxu0 0.0
      %11346 = vmatpush1.msra.mxu0 %v10646
      %11347 = vmatprep.mubr.f32.mxu0 %v11068
      %11348 = vmatmul.mubr.f32.gmra.mrb[0].mxu0 %v11066
      %v11349 = vpop.f32.mrb[0].mxu0
      %v11350 = vadd.f32 %v11280, %v11349
      %v11351 = vpop.f32.mrb[0].mxu0
      %11352 = vdwg.mxu0
      %11353 = vmatprep.subr.mxu0 0.0
      %11354 = vmatpush1.msra.mxu0 %v10647
      %11355 = vmatprep.subr.mxu0 0.0
      %11356 = vmatpush1.msra.mxu0 %v10648
      %11357 = vmatprep.subr.mxu0 0.0
      %11358 = vmatpush1.msra.mxu0 %v10649
      %11359 = vmatprep.subr.mxu0 0.0
      %11360 = vmatpush1.msra.mxu0 %v10650
      %11361 = vmatprep.subr.mxu0 0.0
      %11362 = vmatpush1.msra.mxu0 %v10651
      %11363 = vmatprep.subr.mxu0 0.0
      %11364 = vmatpush1.msra.mxu0 %v10652
      %11365 = vmatprep.subr.mxu0 0.0
      %11366 = vmatpush1.msra.mxu0 %v10653
      %11367 = vmatprep.subr.mxu0 0.0
      %11368 = vmatpush1.msra.mxu0 %v10654
      %11369 = vmatprep.subr.mxu0 0.0
      %11370 = vmatpush1.msra.mxu0 %v10655
      %11371 = vmatprep.subr.mxu0 0.0
      %11372 = vmatpush1.msra.mxu0 %v10656
      %11373 = vmatprep.subr.mxu0 0.0
      %11374 = vmatpush1.msra.mxu0 %v10657
      %11375 = vmatprep.subr.mxu0 0.0
      %11376 = vmatpush1.msra.mxu0 %v10658
      %11377 = vmatprep.subr.mxu0 0.0
      %11378 = vmatpush1.msra.mxu0 %v10659
      %11379 = vmatprep.subr.mxu0 0.0
      %11380 = vmatpush1.msra.mxu0 %v10660
      %11381 = vmatprep.subr.mxu0 0.0
      %11382 = vmatpush1.msra.mxu0 %v10661
      %11383 = vmatprep.subr.mxu0 0.0
      %11384 = vmatpush1.msra.mxu0 %v10662
      %11385 = vmatprep.subr.mxu0 0.0
      %11386 = vmatpush1.msra.mxu0 %v10663
      %11387 = vmatprep.subr.mxu0 0.0
      %11388 = vmatpush1.msra.mxu0 %v10664
      %11389 = vmatprep.subr.mxu0 0.0
      %11390 = vmatpush1.msra.mxu0 %v10665
      %11391 = vmatprep.subr.mxu0 0.0
      %11392 = vmatpush1.msra.mxu0 %v10666
      %11393 = vmatprep.subr.mxu0 0.0
      %11394 = vmatpush1.msra.mxu0 %v10667
      %11395 = vmatprep.subr.mxu0 0.0
      %11396 = vmatpush1.msra.mxu0 %v10668
      %11397 = vmatprep.subr.mxu0 0.0
      %11398 = vmatpush1.msra.mxu0 %v10669
      %11399 = vmatprep.subr.mxu0 0.0
      %11400 = vmatpush1.msra.mxu0 %v10670
      %11401 = vmatprep.subr.mxu0 0.0
      %11402 = vmatpush1.msra.mxu0 %v10671
      %11403 = vmatprep.subr.mxu0 0.0
      %11404 = vmatpush1.msra.mxu0 %v10672
      %11405 = vmatprep.subr.mxu0 0.0
      %11406 = vmatpush1.msra.mxu0 %v10673
      %11407 = vmatprep.subr.mxu0 0.0
      %11408 = vmatpush1.msra.mxu0 %v10674
      %11409 = vmatprep.subr.mxu0 0.0
      %11410 = vmatpush1.msra.mxu0 %v10675
      %11411 = vmatprep.subr.mxu0 0.0
      %11412 = vmatpush1.msra.mxu0 %v10676
      %11413 = vmatprep.subr.mxu0 0.0
      %11414 = vmatpush1.msra.mxu0 %v10677
      %11415 = vmatprep.subr.mxu0 0.0
      %11416 = vmatpush1.msra.mxu0 %v10678
      %11417 = vmatprep.mubr.f32.mxu0 %v11084
      %11418 = vmatmul.mubr.f32.gmra.mrb[0].mxu0 %v11076
      %v11419 = vpop.f32.mrb[0].mxu0
      %v11420 = vadd.f32 %v11350, %v11419
      %v11421 = vpop.f32.mrb[0].mxu0
      %11422 = vdwg.mxu0
      %11423 = vmatprep.subr.mxu0 0.0
      %11424 = vmatpush1.msra.mxu0 %v10679
      %11425 = vmatprep.subr.mxu0 0.0
      %11426 = vmatpush1.msra.mxu0 %v10680
      %11427 = vmatprep.subr.mxu0 0.0
      %11428 = vmatpush1.msra.mxu0 %v10681
      %11429 = vmatprep.subr.mxu0 0.0
      %11430 = vmatpush1.msra.mxu0 %v10682
      %11431 = vmatprep.subr.mxu0 0.0
      %11432 = vmatpush1.msra.mxu0 %v10683
      %11433 = vmatprep.subr.mxu0 0.0
      %11434 = vmatpush1.msra.mxu0 %v10684
      %11435 = vmatprep.subr.mxu0 0.0
      %11436 = vmatpush1.msra.mxu0 %v10685
      %11437 = vmatprep.subr.mxu0 0.0
      %11438 = vmatpush1.msra.mxu0 %v10686
      %11439 = vmatprep.subr.mxu0 0.0
      %11440 = vmatpush1.msra.mxu0 %v10687
      %11441 = vmatprep.subr.mxu0 0.0
      %11442 = vmatpush1.msra.mxu0 %v10688
      %11443 = vmatprep.subr.mxu0 0.0
      %11444 = vmatpush1.msra.mxu0 %v10689
      %11445 = vmatprep.subr.mxu0 0.0
      %11446 = vmatpush1.msra.mxu0 %v10690
      %11447 = vmatprep.subr.mxu0 0.0
      %11448 = vmatpush1.msra.mxu0 %v10691
      %11449 = vmatprep.subr.mxu0 0.0
      %11450 = vmatpush1.msra.mxu0 %v10692
      %11451 = vmatprep.subr.mxu0 0.0
      %11452 = vmatpush1.msra.mxu0 %v10693
      %11453 = vmatprep.subr.mxu0 0.0
      %11454 = vmatpush1.msra.mxu0 %v10694
      %11455 = vmatprep.subr.mxu0 0.0
      %11456 = vmatpush1.msra.mxu0 %v10695
      %11457 = vmatprep.subr.mxu0 0.0
      %11458 = vmatpush1.msra.mxu0 %v10696
      %11459 = vmatprep.subr.mxu0 0.0
      %11460 = vmatpush1.msra.mxu0 %v10697
      %11461 = vmatprep.subr.mxu0 0.0
      %11462 = vmatpush1.msra.mxu0 %v10698
      %11463 = vmatprep.subr.mxu0 0.0
      %11464 = vmatpush1.msra.mxu0 %v10699
      %11465 = vmatprep.subr.mxu0 0.0
      %11466 = vmatpush1.msra.mxu0 %v10700
      %11467 = vmatprep.subr.mxu0 0.0
      %11468 = vmatpush1.msra.mxu0 %v10701
      %11469 = vmatprep.subr.mxu0 0.0
      %11470 = vmatpush1.msra.mxu0 %v10702
      %11471 = vmatprep.subr.mxu0 0.0
      %11472 = vmatpush1.msra.mxu0 %v10703
      %11473 = vmatprep.subr.mxu0 0.0
      %11474 = vmatpush1.msra.mxu0 %v10704
      %11475 = vmatprep.subr.mxu0 0.0
      %11476 = vmatpush1.msra.mxu0 %v10705
      %11477 = vmatprep.subr.mxu0 0.0
      %11478 = vmatpush1.msra.mxu0 %v10706
      %11479 = vmatprep.subr.mxu0 0.0
      %11480 = vmatpush1.msra.mxu0 %v10707
      %11481 = vmatprep.subr.mxu0 0.0
      %11482 = vmatpush1.msra.mxu0 %v10708
      %11483 = vmatprep.subr.mxu0 0.0
      %11484 = vmatpush1.msra.mxu0 %v10709
      %11485 = vmatprep.subr.mxu0 0.0
      %11486 = vmatpush1.msra.mxu0 %v10710
      %11487 = vmatprep.mubr.f32.mxu0 %v11085
      %11488 = vmatmul.mubr.f32.gmra.mrb[0].mxu0 %v11083
      %v11489 = vpop.f32.mrb[0].mxu0
      %v11490 = vadd.f32 %v11420, %v11489
      %v11491 = vpop.f32.mrb[0].mxu0
      %11492 = vdwg.mxu0
      %11493 = vmatprep.subr.mxu0 0.0
      %11494 = vmatpush1.msra.mxu0 %v10711
      %11495 = vmatprep.subr.mxu0 0.0
      %11496 = vmatpush1.msra.mxu0 %v10712
      %11497 = vmatprep.subr.mxu0 0.0
      %11498 = vmatpush1.msra.mxu0 %v10713
      %11499 = vmatprep.subr.mxu0 0.0
      %11500 = vmatpush1.msra.mxu0 %v10714
      %11501 = vmatprep.subr.mxu0 0.0
      %11502 = vmatpush1.msra.mxu0 %v10715
      %11503 = vmatprep.subr.mxu0 0.0
      %11504 = vmatpush1.msra.mxu0 %v10716
      %11505 = vmatprep.subr.mxu0 0.0
      %11506 = vmatpush1.msra.mxu0 %v10717
      %11507 = vmatprep.subr.mxu0 0.0
      %11508 = vmatpush1.msra.mxu0 %v10718
      %11509 = vmatprep.subr.mxu0 0.0
      %11510 = vmatpush1.msra.mxu0 %v10719
      %11511 = vmatprep.subr.mxu0 0.0
      %11512 = vmatpush1.msra.mxu0 %v10720
      %11513 = vmatprep.subr.mxu0 0.0
      %11514 = vmatpush1.msra.mxu0 %v10721
      %11515 = vmatprep.subr.mxu0 0.0
      %11516 = vmatpush1.msra.mxu0 %v10722
      %11517 = vmatprep.subr.mxu0 0.0
      %11518 = vmatpush1.msra.mxu0 %v10723
      %11519 = vmatprep.subr.mxu0 0.0
      %11520 = vmatpush1.msra.mxu0 %v10724
      %11521 = vmatprep.subr.mxu0 0.0
      %11522 = vmatpush1.msra.mxu0 %v10725
      %11523 = vmatprep.subr.mxu0 0.0
      %11524 = vmatpush1.msra.mxu0 %v10726
      %11525 = vmatprep.subr.mxu0 0.0
      %11526 = vmatpush1.msra.mxu0 %v10727
      %11527 = vmatprep.subr.mxu0 0.0
      %11528 = vmatpush1.msra.mxu0 %v10728
      %11529 = vmatprep.subr.mxu0 0.0
      %11530 = vmatpush1.msra.mxu0 %v10729
      %11531 = vmatprep.subr.mxu0 0.0
      %11532 = vmatpush1.msra.mxu0 %v10730
      %11533 = vmatprep.subr.mxu0 0.0
      %11534 = vmatpush1.msra.mxu0 %v10731
      %11535 = vmatprep.subr.mxu0 0.0
      %11536 = vmatpush1.msra.mxu0 %v10732
      %11537 = vmatprep.subr.mxu0 0.0
      %11538 = vmatpush1.msra.mxu0 %v10733
      %11539 = vmatprep.subr.mxu0 0.0
      %11540 = vmatpush1.msra.mxu0 %v10734
      %11541 = vmatprep.subr.mxu0 0.0
      %11542 = vmatpush1.msra.mxu0 %v10735
      %11543 = vmatprep.subr.mxu0 0.0
      %11544 = vmatpush1.msra.mxu0 %v10736
      %11545 = vmatprep.subr.mxu0 0.0
      %11546 = vmatpush1.msra.mxu0 %v10737
      %11547 = vmatprep.subr.mxu0 0.0
      %11548 = vmatpush1.msra.mxu0 %v10738
      %11549 = vmatprep.subr.mxu0 0.0
      %11550 = vmatpush1.msra.mxu0 %v10739
      %11551 = vmatprep.subr.mxu0 0.0
      %11552 = vmatpush1.msra.mxu0 %v10740
      %11553 = vmatprep.subr.mxu0 0.0
      %11554 = vmatpush1.msra.mxu0 %v10741
      %11555 = vmatprep.subr.mxu0 0.0
      %11556 = vmatpush1.msra.mxu0 %v10742
      %11557 = vmatprep.mubr.f32.mxu0 %v11101
      %11558 = vmatmul.mubr.f32.gmra.mrb[0].mxu0 %v11093
      %v11559 = vpop.f32.mrb[0].mxu0
      %v11560 = vadd.f32 %v11490, %v11559
      %v11561 = vpop.f32.mrb[0].mxu0
      %11562 = vdwg.mxu0
      %11563 = vmatprep.subr.mxu0 0.0
      %11564 = vmatpush1.msra.mxu0 %v10743
      %11565 = vmatprep.subr.mxu0 0.0
      %11566 = vmatpush1.msra.mxu0 %v10744
      %11567 = vmatprep.subr.mxu0 0.0
      %11568 = vmatpush1.msra.mxu0 %v10745
      %11569 = vmatprep.subr.mxu0 0.0
      %11570 = vmatpush1.msra.mxu0 %v10746
      %11571 = vmatprep.subr.mxu0 0.0
      %11572 = vmatpush1.msra.mxu0 %v10747
      %11573 = vmatprep.subr.mxu0 0.0
      %11574 = vmatpush1.msra.mxu0 %v10748
      %11575 = vmatprep.subr.mxu0 0.0
      %11576 = vmatpush1.msra.mxu0 %v10749
      %11577 = vmatprep.subr.mxu0 0.0
      %11578 = vmatpush1.msra.mxu0 %v10750
      %11579 = vmatprep.subr.mxu0 0.0
      %11580 = vmatpush1.msra.mxu0 %v10751
      %11581 = vmatprep.subr.mxu0 0.0
      %11582 = vmatpush1.msra.mxu0 %v10752
      %11583 = vmatprep.subr.mxu0 0.0
      %11584 = vmatpush1.msra.mxu0 %v10753
      %11585 = vmatprep.subr.mxu0 0.0
      %11586 = vmatpush1.msra.mxu0 %v10754
      %11587 = vmatprep.subr.mxu0 0.0
      %11588 = vmatpush1.msra.mxu0 %v10755
      %11589 = vmatprep.subr.mxu0 0.0
      %11590 = vmatpush1.msra.mxu0 %v10756
      %11591 = vmatprep.subr.mxu0 0.0
      %11592 = vmatpush1.msra.mxu0 %v10757
      %11593 = vmatprep.subr.mxu0 0.0
      %11594 = vmatpush1.msra.mxu0 %v10758
      %11595 = vmatprep.subr.mxu0 0.0
      %11596 = vmatpush1.msra.mxu0 %v10759
      %11597 = vmatprep.subr.mxu0 0.0
      %11598 = vmatpush1.msra.mxu0 %v10760
      %11599 = vmatprep.subr.mxu0 0.0
      %11600 = vmatpush1.msra.mxu0 %v10761
      %11601 = vmatprep.subr.mxu0 0.0
      %11602 = vmatpush1.msra.mxu0 %v10762
      %11603 = vmatprep.subr.mxu0 0.0
      %11604 = vmatpush1.msra.mxu0 %v10763
      %11605 = vmatprep.subr.mxu0 0.0
      %11606 = vmatpush1.msra.mxu0 %v10764
      %11607 = vmatprep.subr.mxu0 0.0
      %11608 = vmatpush1.msra.mxu0 %v10765
      %11609 = vmatprep.subr.mxu0 0.0
      %11610 = vmatpush1.msra.mxu0 %v10766
      %11611 = vmatprep.subr.mxu0 0.0
      %11612 = vmatpush1.msra.mxu0 %v10767
      %11613 = vmatprep.subr.mxu0 0.0
      %11614 = vmatpush1.msra.mxu0 %v10768
      %11615 = vmatprep.subr.mxu0 0.0
      %11616 = vmatpush1.msra.mxu0 %v10769
      %11617 = vmatprep.subr.mxu0 0.0
      %11618 = vmatpush1.msra.mxu0 %v10770
      %11619 = vmatprep.subr.mxu0 0.0
      %11620 = vmatpush1.msra.mxu0 %v10771
      %11621 = vmatprep.subr.mxu0 0.0
      %11622 = vmatpush1.msra.mxu0 %v10772
      %11623 = vmatprep.subr.mxu0 0.0
      %11624 = vmatpush1.msra.mxu0 %v10773
      %11625 = vmatprep.subr.mxu0 0.0
      %11626 = vmatpush1.msra.mxu0 %v10774
      %11627 = vmatprep.mubr.f32.mxu0 %v11102
      %11628 = vmatmul.mubr.f32.gmra.mrb[0].mxu0 %v11100
      %v11629 = vpop.f32.mrb[0].mxu0
      %v11630 = vadd.f32 %v11560, %v11629
      %v11631 = vpop.f32.mrb[0].mxu0
      %11632 = vdwg.mxu0
      %11633 = vmatprep.subr.mxu0 0.0
      %11634 = vmatpush1.msra.mxu0 %v10775
      %11635 = vmatprep.subr.mxu0 0.0
      %11636 = vmatpush1.msra.mxu0 %v10776
      %11637 = vmatprep.subr.mxu0 0.0
      %11638 = vmatpush1.msra.mxu0 %v10777
      %11639 = vmatprep.subr.mxu0 0.0
      %11640 = vmatpush1.msra.mxu0 %v10778
      %11641 = vmatprep.subr.mxu0 0.0
      %11642 = vmatpush1.msra.mxu0 %v10779
      %11643 = vmatprep.subr.mxu0 0.0
      %11644 = vmatpush1.msra.mxu0 %v10780
      %11645 = vmatprep.subr.mxu0 0.0
      %11646 = vmatpush1.msra.mxu0 %v10781
      %11647 = vmatprep.subr.mxu0 0.0
      %11648 = vmatpush1.msra.mxu0 %v10782
      %11649 = vmatprep.subr.mxu0 0.0
      %11650 = vmatpush1.msra.mxu0 %v10783
      %11651 = vmatprep.subr.mxu0 0.0
      %11652 = vmatpush1.msra.mxu0 %v10784
      %11653 = vmatprep.subr.mxu0 0.0
      %11654 = vmatpush1.msra.mxu0 %v10785
      %11655 = vmatprep.subr.mxu0 0.0
      %11656 = vmatpush1.msra.mxu0 %v10786
      %11657 = vmatprep.subr.mxu0 0.0
      %11658 = vmatpush1.msra.mxu0 %v10787
      %11659 = vmatprep.subr.mxu0 0.0
      %11660 = vmatpush1.msra.mxu0 %v10788
      %11661 = vmatprep.subr.mxu0 0.0
      %11662 = vmatpush1.msra.mxu0 %v10789
      %11663 = vmatprep.subr.mxu0 0.0
      %11664 = vmatpush1.msra.mxu0 %v10790
      %11665 = vmatprep.subr.mxu0 0.0
      %11666 = vmatpush1.msra.mxu0 %v10791
      %11667 = vmatprep.subr.mxu0 0.0
      %11668 = vmatpush1.msra.mxu0 %v10792
      %11669 = vmatprep.subr.mxu0 0.0
      %11670 = vmatpush1.msra.mxu0 %v10793
      %11671 = vmatprep.subr.mxu0 0.0
      %11672 = vmatpush1.msra.mxu0 %v10794
      %11673 = vmatprep.subr.mxu0 0.0
      %11674 = vmatpush1.msra.mxu0 %v10795
      %11675 = vmatprep.subr.mxu0 0.0
      %11676 = vmatpush1.msra.mxu0 %v10796
      %11677 = vmatprep.subr.mxu0 0.0
      %11678 = vmatpush1.msra.mxu0 %v10797
      %11679 = vmatprep.subr.mxu0 0.0
      %11680 = vmatpush1.msra.mxu0 %v10798
      %11681 = vmatprep.subr.mxu0 0.0
      %11682 = vmatpush1.msra.mxu0 %v10799
      %11683 = vmatprep.subr.mxu0 0.0
      %11684 = vmatpush1.msra.mxu0 %v10800
      %11685 = vmatprep.subr.mxu0 0.0
      %11686 = vmatpush1.msra.mxu0 %v10801
      %11687 = vmatprep.subr.mxu0 0.0
      %11688 = vmatpush1.msra.mxu0 %v10802
      %11689 = vmatprep.subr.mxu0 0.0
      %11690 = vmatpush1.msra.mxu0 %v10803
      %11691 = vmatprep.subr.mxu0 0.0
      %11692 = vmatpush1.msra.mxu0 %v10804
      %11693 = vmatprep.subr.mxu0 0.0
      %11694 = vmatpush1.msra.mxu0 %v10805
      %11695 = vmatprep.subr.mxu0 0.0
      %11696 = vmatpush1.msra.mxu0 %v10806
      %11697 = vmatprep.mubr.f32.mxu0 %v11118
      %11698 = vmatmul.mubr.f32.gmra.mrb[0].mxu0 %v11110
      %v11699 = vpop.f32.mrb[0].mxu0
      %v11700 = vadd.f32 %v11630, %v11699
      %v11701 = vpop.f32.mrb[0].mxu0
      %11702 = vdwg.mxu0
      %11703 = vmatprep.subr.mxu0 0.0
      %11704 = vmatpush1.msra.mxu0 %v10807
      %11705 = vmatprep.subr.mxu0 0.0
      %11706 = vmatpush1.msra.mxu0 %v10808
      %11707 = vmatprep.subr.mxu0 0.0
      %11708 = vmatpush1.msra.mxu0 %v10809
      %11709 = vmatprep.subr.mxu0 0.0
      %11710 = vmatpush1.msra.mxu0 %v10810
      %11711 = vmatprep.subr.mxu0 0.0
      %11712 = vmatpush1.msra.mxu0 %v10811
      %11713 = vmatprep.subr.mxu0 0.0
      %11714 = vmatpush1.msra.mxu0 %v10812
      %11715 = vmatprep.subr.mxu0 0.0
      %11716 = vmatpush1.msra.mxu0 %v10813
      %11717 = vmatprep.subr.mxu0 0.0
      %11718 = vmatpush1.msra.mxu0 %v10814
      %11719 = vmatprep.subr.mxu0 0.0
      %11720 = vmatpush1.msra.mxu0 %v10815
      %11721 = vmatprep.subr.mxu0 0.0
      %11722 = vmatpush1.msra.mxu0 %v10816
      %11723 = vmatprep.subr.mxu0 0.0
      %11724 = vmatpush1.msra.mxu0 %v10817
      %11725 = vmatprep.subr.mxu0 0.0
      %11726 = vmatpush1.msra.mxu0 %v10818
      %11727 = vmatprep.subr.mxu0 0.0
      %11728 = vmatpush1.msra.mxu0 %v10819
      %11729 = vmatprep.subr.mxu0 0.0
      %11730 = vmatpush1.msra.mxu0 %v10820
      %11731 = vmatprep.subr.mxu0 0.0
      %11732 = vmatpush1.msra.mxu0 %v10821
      %11733 = vmatprep.subr.mxu0 0.0
      %11734 = vmatpush1.msra.mxu0 %v10822
      %11735 = vmatprep.subr.mxu0 0.0
      %11736 = vmatpush1.msra.mxu0 %v10823
      %11737 = vmatprep.subr.mxu0 0.0
      %11738 = vmatpush1.msra.mxu0 %v10824
      %11739 = vmatprep.subr.mxu0 0.0
      %11740 = vmatpush1.msra.mxu0 %v10825
      %11741 = vmatprep.subr.mxu0 0.0
      %11742 = vmatpush1.msra.mxu0 %v10826
      %11743 = vmatprep.subr.mxu0 0.0
      %11744 = vmatpush1.msra.mxu0 %v10827
      %11745 = vmatprep.subr.mxu0 0.0
      %11746 = vmatpush1.msra.mxu0 %v10828
      %11747 = vmatprep.subr.mxu0 0.0
      %11748 = vmatpush1.msra.mxu0 %v10829
      %11749 = vmatprep.subr.mxu0 0.0
      %11750 = vmatpush1.msra.mxu0 %v10830
      %11751 = vmatprep.subr.mxu0 0.0
      %11752 = vmatpush1.msra.mxu0 %v10831
      %11753 = vmatprep.subr.mxu0 0.0
      %11754 = vmatpush1.msra.mxu0 %v10832
      %11755 = vmatprep.subr.mxu0 0.0
      %11756 = vmatpush1.msra.mxu0 %v10833
      %11757 = vmatprep.subr.mxu0 0.0
      %11758 = vmatpush1.msra.mxu0 %v10834
      %11759 = vmatprep.subr.mxu0 0.0
      %11760 = vmatpush1.msra.mxu0 %v10835
      %11761 = vmatprep.subr.mxu0 0.0
      %11762 = vmatpush1.msra.mxu0 %v10836
      %11763 = vmatprep.subr.mxu0 0.0
      %11764 = vmatpush1.msra.mxu0 %v10837
      %11765 = vmatprep.subr.mxu0 0.0
      %11766 = vmatpush1.msra.mxu0 %v10838
      %11767 = vmatprep.mubr.f32.mxu0 %v11119
      %11768 = vmatmul.mubr.f32.gmra.mrb[0].mxu0 %v11117
      %v11769 = vpop.f32.mrb[0].mxu0
      %v11770 = vadd.f32 %v11700, %v11769
      %v11771 = vpop.f32.mrb[0].mxu0
      %11772 = vdwg.mxu0
      %11773 = vmatprep.subr.mxu0 0.0
      %11774 = vmatpush1.msra.mxu0 %v10839
      %11775 = vmatprep.subr.mxu0 0.0
      %11776 = vmatpush1.msra.mxu0 %v10840
      %11777 = vmatprep.subr.mxu0 0.0
      %11778 = vmatpush1.msra.mxu0 %v10841
      %11779 = vmatprep.subr.mxu0 0.0
      %11780 = vmatpush1.msra.mxu0 %v10842
      %11781 = vmatprep.subr.mxu0 0.0
      %11782 = vmatpush1.msra.mxu0 %v10843
      %11783 = vmatprep.subr.mxu0 0.0
      %11784 = vmatpush1.msra.mxu0 %v10844
      %11785 = vmatprep.subr.mxu0 0.0
      %11786 = vmatpush1.msra.mxu0 %v10845
      %11787 = vmatprep.subr.mxu0 0.0
      %11788 = vmatpush1.msra.mxu0 %v10846
      %11789 = vmatprep.subr.mxu0 0.0
      %11790 = vmatpush1.msra.mxu0 %v10847
      %11791 = vmatprep.subr.mxu0 0.0
      %11792 = vmatpush1.msra.mxu0 %v10848
      %11793 = vmatprep.subr.mxu0 0.0
      %11794 = vmatpush1.msra.mxu0 %v10849
      %11795 = vmatprep.subr.mxu0 0.0
      %11796 = vmatpush1.msra.mxu0 %v10850
      %11797 = vmatprep.subr.mxu0 0.0
      %11798 = vmatpush1.msra.mxu0 %v10851
      %11799 = vmatprep.subr.mxu0 0.0
      %11800 = vmatpush1.msra.mxu0 %v10852
      %11801 = vmatprep.subr.mxu0 0.0
      %11802 = vmatpush1.msra.mxu0 %v10853
      %11803 = vmatprep.subr.mxu0 0.0
      %11804 = vmatpush1.msra.mxu0 %v10854
      %11805 = vmatprep.subr.mxu0 0.0
      %11806 = vmatpush1.msra.mxu0 %v10855
      %11807 = vmatprep.subr.mxu0 0.0
      %11808 = vmatpush1.msra.mxu0 %v10856
      %11809 = vmatprep.subr.mxu0 0.0
      %11810 = vmatpush1.msra.mxu0 %v10857
      %11811 = vmatprep.subr.mxu0 0.0
      %11812 = vmatpush1.msra.mxu0 %v10858
      %11813 = vmatprep.subr.mxu0 0.0
      %11814 = vmatpush1.msra.mxu0 %v10859
      %11815 = vmatprep.subr.mxu0 0.0
      %11816 = vmatpush1.msra.mxu0 %v10860
      %11817 = vmatprep.subr.mxu0 0.0
      %11818 = vmatpush1.msra.mxu0 %v10861
      %11819 = vmatprep.subr.mxu0 0.0
      %11820 = vmatpush1.msra.mxu0 %v10862
      %11821 = vmatprep.subr.mxu0 0.0
      %11822 = vmatpush1.msra.mxu0 %v10863
      %11823 = vmatprep.subr.mxu0 0.0
      %11824 = vmatpush1.msra.mxu0 %v10864
      %11825 = vmatprep.subr.mxu0 0.0
      %11826 = vmatpush1.msra.mxu0 %v10865
      %11827 = vmatprep.subr.mxu0 0.0
      %11828 = vmatpush1.msra.mxu0 %v10866
      %11829 = vmatprep.subr.mxu0 0.0
      %11830 = vmatpush1.msra.mxu0 %v10867
      %11831 = vmatprep.subr.mxu0 0.0
      %11832 = vmatpush1.msra.mxu0 %v10868
      %11833 = vmatprep.subr.mxu0 0.0
      %11834 = vmatpush1.msra.mxu0 %v10869
      %11835 = vmatprep.subr.mxu0 0.0
      %11836 = vmatpush1.msra.mxu0 %v10870
      %11837 = vmatprep.mubr.f32.mxu0 %v11135
      %11838 = vmatmul.mubr.f32.gmra.mrb[0].mxu0 %v11127
      %v11839 = vpop.f32.mrb[0].mxu0
      %v11840 = vadd.f32 %v11770, %v11839
      %v11841 = vpop.f32.mrb[0].mxu0
      %11842 = vdwg.mxu0
      %11843 = vmatprep.subr.mxu0 0.0
      %11844 = vmatpush1.msra.mxu0 %v10871
      %11845 = vmatprep.subr.mxu0 0.0
      %11846 = vmatpush1.msra.mxu0 %v10872
      %11847 = vmatprep.subr.mxu0 0.0
      %11848 = vmatpush1.msra.mxu0 %v10873
      %11849 = vmatprep.subr.mxu0 0.0
      %11850 = vmatpush1.msra.mxu0 %v10874
      %11851 = vmatprep.subr.mxu0 0.0
      %11852 = vmatpush1.msra.mxu0 %v10875
      %11853 = vmatprep.subr.mxu0 0.0
      %11854 = vmatpush1.msra.mxu0 %v10876
      %11855 = vmatprep.subr.mxu0 0.0
      %11856 = vmatpush1.msra.mxu0 %v10877
      %11857 = vmatprep.subr.mxu0 0.0
      %11858 = vmatpush1.msra.mxu0 %v10878
      %11859 = vmatprep.subr.mxu0 0.0
      %11860 = vmatpush1.msra.mxu0 %v10879
      %11861 = vmatprep.subr.mxu0 0.0
      %11862 = vmatpush1.msra.mxu0 %v10880
      %11863 = vmatprep.subr.mxu0 0.0
      %11864 = vmatpush1.msra.mxu0 %v10881
      %11865 = vmatprep.subr.mxu0 0.0
      %11866 = vmatpush1.msra.mxu0 %v10882
      %11867 = vmatprep.subr.mxu0 0.0
      %11868 = vmatpush1.msra.mxu0 %v10883
      %11869 = vmatprep.subr.mxu0 0.0
      %11870 = vmatpush1.msra.mxu0 %v10884
      %11871 = vmatprep.subr.mxu0 0.0
      %11872 = vmatpush1.msra.mxu0 %v10885
      %11873 = vmatprep.subr.mxu0 0.0
      %11874 = vmatpush1.msra.mxu0 %v10886
      %11875 = vmatprep.subr.mxu0 0.0
      %11876 = vmatpush1.msra.mxu0 %v10887
      %11877 = vmatprep.subr.mxu0 0.0
      %11878 = vmatpush1.msra.mxu0 %v10888
      %11879 = vmatprep.subr.mxu0 0.0
      %11880 = vmatpush1.msra.mxu0 %v10889
      %11881 = vmatprep.subr.mxu0 0.0
      %11882 = vmatpush1.msra.mxu0 %v10890
      %11883 = vmatprep.subr.mxu0 0.0
      %11884 = vmatpush1.msra.mxu0 %v10891
      %11885 = vmatprep.subr.mxu0 0.0
      %11886 = vmatpush1.msra.mxu0 %v10892
      %11887 = vmatprep.subr.mxu0 0.0
      %11888 = vmatpush1.msra.mxu0 %v10893
      %11889 = vmatprep.subr.mxu0 0.0
      %11890 = vmatpush1.msra.mxu0 %v10894
      %11891 = vmatprep.subr.mxu0 0.0
      %11892 = vmatpush1.msra.mxu0 %v10895
      %11893 = vmatprep.subr.mxu0 0.0
      %11894 = vmatpush1.msra.mxu0 %v10896
      %11895 = vmatprep.subr.mxu0 0.0
      %11896 = vmatpush1.msra.mxu0 %v10897
      %11897 = vmatprep.subr.mxu0 0.0
      %11898 = vmatpush1.msra.mxu0 %v10898
      %11899 = vmatprep.subr.mxu0 0.0
      %11900 = vmatpush1.msra.mxu0 %v10899
      %11901 = vmatprep.subr.mxu0 0.0
      %11902 = vmatpush1.msra.mxu0 %v10900
      %11903 = vmatprep.subr.mxu0 0.0
      %11904 = vmatpush1.msra.mxu0 %v10901
      %11905 = vmatprep.subr.mxu0 0.0
      %11906 = vmatpush1.msra.mxu0 %v10902
      %11907 = vmatprep.mubr.f32.mxu0 %v11136
      %11908 = vmatmul.mubr.f32.gmra.mrb[0].mxu0 %v11134
      %v11909 = vpop.f32.mrb[0].mxu0
      %v11910 = vadd.f32 %v11840, %v11909
      %v11911 = vpop.f32.mrb[0].mxu0
      %11912 = vdwg.mxu0
      %11913 = vmatprep.subr.mxu0 0.0
      %11914 = vmatpush1.msra.mxu0 %v10903
      %11915 = vmatprep.subr.mxu0 0.0
      %11916 = vmatpush1.msra.mxu0 %v10904
      %11917 = vmatprep.subr.mxu0 0.0
      %11918 = vmatpush1.msra.mxu0 %v10905
      %11919 = vmatprep.subr.mxu0 0.0
      %11920 = vmatpush1.msra.mxu0 %v10906
      %11921 = vmatprep.subr.mxu0 0.0
      %11922 = vmatpush1.msra.mxu0 %v10907
      %11923 = vmatprep.subr.mxu0 0.0
      %11924 = vmatpush1.msra.mxu0 %v10908
      %11925 = vmatprep.subr.mxu0 0.0
      %11926 = vmatpush1.msra.mxu0 %v10909
      %11927 = vmatprep.subr.mxu0 0.0
      %11928 = vmatpush1.msra.mxu0 %v10910
      %11929 = vmatprep.subr.mxu0 0.0
      %11930 = vmatpush1.msra.mxu0 %v10911
      %11931 = vmatprep.subr.mxu0 0.0
      %11932 = vmatpush1.msra.mxu0 %v10912
      %11933 = vmatprep.subr.mxu0 0.0
      %11934 = vmatpush1.msra.mxu0 %v10913
      %11935 = vmatprep.subr.mxu0 0.0
      %11936 = vmatpush1.msra.mxu0 %v10914
      %11937 = vmatprep.subr.mxu0 0.0
      %11938 = vmatpush1.msra.mxu0 %v10915
      %11939 = vmatprep.subr.mxu0 0.0
      %11940 = vmatpush1.msra.mxu0 %v10916
      %11941 = vmatprep.subr.mxu0 0.0
      %11942 = vmatpush1.msra.mxu0 %v10917
      %11943 = vmatprep.subr.mxu0 0.0
      %11944 = vmatpush1.msra.mxu0 %v10918
      %11945 = vmatprep.subr.mxu0 0.0
      %11946 = vmatpush1.msra.mxu0 %v10919
      %11947 = vmatprep.subr.mxu0 0.0
      %11948 = vmatpush1.msra.mxu0 %v10920
      %11949 = vmatprep.subr.mxu0 0.0
      %11950 = vmatpush1.msra.mxu0 %v10921
      %11951 = vmatprep.subr.mxu0 0.0
      %11952 = vmatpush1.msra.mxu0 %v10922
      %11953 = vmatprep.subr.mxu0 0.0
      %11954 = vmatpush1.msra.mxu0 %v10923
      %11955 = vmatprep.subr.mxu0 0.0
      %11956 = vmatpush1.msra.mxu0 %v10924
      %11957 = vmatprep.subr.mxu0 0.0
      %11958 = vmatpush1.msra.mxu0 %v10925
      %11959 = vmatprep.subr.mxu0 0.0
      %11960 = vmatpush1.msra.mxu0 %v10926
      %11961 = vmatprep.subr.mxu0 0.0
      %11962 = vmatpush1.msra.mxu0 %v10927
      %11963 = vmatprep.subr.mxu0 0.0
      %11964 = vmatpush1.msra.mxu0 %v10928
      %11965 = vmatprep.subr.mxu0 0.0
      %11966 = vmatpush1.msra.mxu0 %v10929
      %11967 = vmatprep.subr.mxu0 0.0
      %11968 = vmatpush1.msra.mxu0 %v10930
      %11969 = vmatprep.subr.mxu0 0.0
      %11970 = vmatpush1.msra.mxu0 %v10931
      %11971 = vmatprep.subr.mxu0 0.0
      %11972 = vmatpush1.msra.mxu0 %v10932
      %11973 = vmatprep.subr.mxu0 0.0
      %11974 = vmatpush1.msra.mxu0 %v10933
      %11975 = vmatprep.subr.mxu0 0.0
      %11976 = vmatpush1.msra.mxu0 %v10934
      %11977 = vmatprep.mubr.f32.mxu0 %v11152
      %11978 = vmatmul.mubr.f32.gmra.mrb[0].mxu0 %v11144
      %v11979 = vpop.f32.mrb[0].mxu0
      %v11980 = vadd.f32 %v11910, %v11979
      %v11981 = vpop.f32.mrb[0].mxu0
      %11982 = vdwg.mxu0
      %11983 = vmatprep.subr.mxu0 0.0
      %11984 = vmatpush1.msra.mxu0 %v10935
      %11985 = vmatprep.subr.mxu0 0.0
      %11986 = vmatpush1.msra.mxu0 %v10936
      %11987 = vmatprep.subr.mxu0 0.0
      %11988 = vmatpush1.msra.mxu0 %v10937
      %11989 = vmatprep.subr.mxu0 0.0
      %11990 = vmatpush1.msra.mxu0 %v10938
      %11991 = vmatprep.subr.mxu0 0.0
      %11992 = vmatpush1.msra.mxu0 %v10939
      %11993 = vmatprep.subr.mxu0 0.0
      %11994 = vmatpush1.msra.mxu0 %v10940
      %11995 = vmatprep.subr.mxu0 0.0
      %11996 = vmatpush1.msra.mxu0 %v10941
      %11997 = vmatprep.subr.mxu0 0.0
      %11998 = vmatpush1.msra.mxu0 %v10942
      %11999 = vmatprep.subr.mxu0 0.0
      %12000 = vmatpush1.msra.mxu0 %v10943
      %12001 = vmatprep.subr.mxu0 0.0
      %12002 = vmatpush1.msra.mxu0 %v10944
      %12003 = vmatprep.subr.mxu0 0.0
      %12004 = vmatpush1.msra.mxu0 %v10945
      %12005 = vmatprep.subr.mxu0 0.0
      %12006 = vmatpush1.msra.mxu0 %v10946
      %12007 = vmatprep.subr.mxu0 0.0
      %12008 = vmatpush1.msra.mxu0 %v10947
      %12009 = vmatprep.subr.mxu0 0.0
      %12010 = vmatpush1.msra.mxu0 %v10948
      %12011 = vmatprep.subr.mxu0 0.0
      %12012 = vmatpush1.msra.mxu0 %v10949
      %12013 = vmatprep.subr.mxu0 0.0
      %12014 = vmatpush1.msra.mxu0 %v10950
      %12015 = vmatprep.subr.mxu0 0.0
      %12016 = vmatpush1.msra.mxu0 %v10951
      %12017 = vmatprep.subr.mxu0 0.0
      %12018 = vmatpush1.msra.mxu0 %v10952
      %12019 = vmatprep.subr.mxu0 0.0
      %12020 = vmatpush1.msra.mxu0 %v10953
      %12021 = vmatprep.subr.mxu0 0.0
      %12022 = vmatpush1.msra.mxu0 %v10954
      %12023 = vmatprep.subr.mxu0 0.0
      %12024 = vmatpush1.msra.mxu0 %v10955
      %12025 = vmatprep.subr.mxu0 0.0
      %12026 = vmatpush1.msra.mxu0 %v10956
      %12027 = vmatprep.subr.mxu0 0.0
      %12028 = vmatpush1.msra.mxu0 %v10957
      %12029 = vmatprep.subr.mxu0 0.0
      %12030 = vmatpush1.msra.mxu0 %v10958
      %12031 = vmatprep.subr.mxu0 0.0
      %12032 = vmatpush1.msra.mxu0 %v10959
      %12033 = vmatprep.subr.mxu0 0.0
      %12034 = vmatpush1.msra.mxu0 %v10960
      %12035 = vmatprep.subr.mxu0 0.0
      %12036 = vmatpush1.msra.mxu0 %v10961
      %12037 = vmatprep.subr.mxu0 0.0
      %12038 = vmatpush1.msra.mxu0 %v10962
      %12039 = vmatprep.subr.mxu0 0.0
      %12040 = vmatpush1.msra.mxu0 %v10963
      %12041 = vmatprep.subr.mxu0 0.0
      %12042 = vmatpush1.msra.mxu0 %v10964
      %12043 = vmatprep.subr.mxu0 0.0
      %12044 = vmatpush1.msra.mxu0 %v10965
      %12045 = vmatprep.subr.mxu0 0.0
      %12046 = vmatpush1.msra.mxu0 %v10966
      %12047 = vmatprep.mubr.f32.mxu0 %v11153
      %12048 = vmatmul.mubr.f32.gmra.mrb[0].mxu0 %v11151
      %v12049 = vpop.f32.mrb[0].mxu0
      %v12050 = vadd.f32 %v11980, %v12049
      %v12051 = vpop.f32.mrb[0].mxu0
      %12052 = vdwg.mxu0
      %12053 = vmatprep.subr.mxu0 0.0
      %12054 = vmatpush1.msra.mxu0 %v10967
      %12055 = vmatprep.subr.mxu0 0.0
      %12056 = vmatpush1.msra.mxu0 %v10968
      %12057 = vmatprep.subr.mxu0 0.0
      %12058 = vmatpush1.msra.mxu0 %v10969
      %12059 = vmatprep.subr.mxu0 0.0
      %12060 = vmatpush1.msra.mxu0 %v10970
      %12061 = vmatprep.subr.mxu0 0.0
      %12062 = vmatpush1.msra.mxu0 %v10971
      %12063 = vmatprep.subr.mxu0 0.0
      %12064 = vmatpush1.msra.mxu0 %v10972
      %12065 = vmatprep.subr.mxu0 0.0
      %12066 = vmatpush1.msra.mxu0 %v10973
      %12067 = vmatprep.subr.mxu0 0.0
      %12068 = vmatpush1.msra.mxu0 %v10974
      %12069 = vmatprep.subr.mxu0 0.0
      %12070 = vmatpush1.msra.mxu0 %v10975
      %12071 = vmatprep.subr.mxu0 0.0
      %12072 = vmatpush1.msra.mxu0 %v10976
      %12073 = vmatprep.subr.mxu0 0.0
      %12074 = vmatpush1.msra.mxu0 %v10977
      %12075 = vmatprep.subr.mxu0 0.0
      %12076 = vmatpush1.msra.mxu0 %v10978
      %12077 = vmatprep.subr.mxu0 0.0
      %12078 = vmatpush1.msra.mxu0 %v10979
      %12079 = vmatprep.subr.mxu0 0.0
      %12080 = vmatpush1.msra.mxu0 %v10980
      %12081 = vmatprep.subr.mxu0 0.0
      %12082 = vmatpush1.msra.mxu0 %v10981
      %12083 = vmatprep.subr.mxu0 0.0
      %12084 = vmatpush1.msra.mxu0 %v10982
      %12085 = vmatprep.subr.mxu0 0.0
      %12086 = vmatpush1.msra.mxu0 %v10983
      %12087 = vmatprep.subr.mxu0 0.0
      %12088 = vmatpush1.msra.mxu0 %v10984
      %12089 = vmatprep.subr.mxu0 0.0
      %12090 = vmatpush1.msra.mxu0 %v10985
      %12091 = vmatprep.subr.mxu0 0.0
      %12092 = vmatpush1.msra.mxu0 %v10986
      %12093 = vmatprep.subr.mxu0 0.0
      %12094 = vmatpush1.msra.mxu0 %v10987
      %12095 = vmatprep.subr.mxu0 0.0
      %12096 = vmatpush1.msra.mxu0 %v10988
      %12097 = vmatprep.subr.mxu0 0.0
      %12098 = vmatpush1.msra.mxu0 %v10989
      %12099 = vmatprep.subr.mxu0 0.0
      %12100 = vmatpush1.msra.mxu0 %v10990
      %12101 = vmatprep.subr.mxu0 0.0
      %12102 = vmatpush1.msra.mxu0 %v10991
      %12103 = vmatprep.subr.mxu0 0.0
      %12104 = vmatpush1.msra.mxu0 %v10992
      %12105 = vmatprep.subr.mxu0 0.0
      %12106 = vmatpush1.msra.mxu0 %v10993
      %12107 = vmatprep.subr.mxu0 0.0
      %12108 = vmatpush1.msra.mxu0 %v10994
      %12109 = vmatprep.subr.mxu0 0.0
      %12110 = vmatpush1.msra.mxu0 %v10995
      %12111 = vmatprep.subr.mxu0 0.0
      %12112 = vmatpush1.msra.mxu0 %v10996
      %12113 = vmatprep.subr.mxu0 0.0
      %12114 = vmatpush1.msra.mxu0 %v10997
      %12115 = vmatprep.subr.mxu0 0.0
      %12116 = vmatpush1.msra.mxu0 %v10998
      %12117 = vmatprep.mubr.f32.mxu0 %v11169
      %12118 = vmatmul.mubr.f32.gmra.mrb[0].mxu0 %v11161
      %v12119 = vpop.f32.mrb[0].mxu0
      %v12120 = vadd.f32 %v12050, %v12119
      %v12121 = vpop.f32.mrb[0].mxu0
      %12122 = vdwg.mxu0
      %12123 = vmatprep.subr.mxu0 0.0
      %12124 = vmatpush1.msra.mxu0 %v10999
      %12125 = vmatprep.subr.mxu0 0.0
      %12126 = vmatpush1.msra.mxu0 %v11000
      %12127 = vmatprep.subr.mxu0 0.0
      %12128 = vmatpush1.msra.mxu0 %v11001
      %12129 = vmatprep.subr.mxu0 0.0
      %12130 = vmatpush1.msra.mxu0 %v11002
      %12131 = vmatprep.subr.mxu0 0.0
      %12132 = vmatpush1.msra.mxu0 %v11003
      %12133 = vmatprep.subr.mxu0 0.0
      %12134 = vmatpush1.msra.mxu0 %v11004
      %12135 = vmatprep.subr.mxu0 0.0
      %12136 = vmatpush1.msra.mxu0 %v11005
      %12137 = vmatprep.subr.mxu0 0.0
      %12138 = vmatpush1.msra.mxu0 %v11006
      %12139 = vmatprep.subr.mxu0 0.0
      %12140 = vmatpush1.msra.mxu0 %v11007
      %12141 = vmatprep.subr.mxu0 0.0
      %12142 = vmatpush1.msra.mxu0 %v11008
      %12143 = vmatprep.subr.mxu0 0.0
      %12144 = vmatpush1.msra.mxu0 %v11009
      %12145 = vmatprep.subr.mxu0 0.0
      %12146 = vmatpush1.msra.mxu0 %v11010
      %12147 = vmatprep.subr.mxu0 0.0
      %12148 = vmatpush1.msra.mxu0 %v11011
      %12149 = vmatprep.subr.mxu0 0.0
      %12150 = vmatpush1.msra.mxu0 %v11012
      %12151 = vmatprep.subr.mxu0 0.0
      %12152 = vmatpush1.msra.mxu0 %v11013
      %12153 = vmatprep.subr.mxu0 0.0
      %12154 = vmatpush1.msra.mxu0 %v11014
      %12155 = vmatprep.subr.mxu0 0.0
      %12156 = vmatpush1.msra.mxu0 %v11015
      %12157 = vmatprep.subr.mxu0 0.0
      %12158 = vmatpush1.msra.mxu0 %v11016
      %12159 = vmatprep.subr.mxu0 0.0
      %12160 = vmatpush1.msra.mxu0 %v11017
      %12161 = vmatprep.subr.mxu0 0.0
      %12162 = vmatpush1.msra.mxu0 %v11018
      %12163 = vmatprep.subr.mxu0 0.0
      %12164 = vmatpush1.msra.mxu0 %v11019
      %12165 = vmatprep.subr.mxu0 0.0
      %12166 = vmatpush1.msra.mxu0 %v11020
      %12167 = vmatprep.subr.mxu0 0.0
      %12168 = vmatpush1.msra.mxu0 %v11021
      %12169 = vmatprep.subr.mxu0 0.0
      %12170 = vmatpush1.msra.mxu0 %v11022
      %12171 = vmatprep.subr.mxu0 0.0
      %12172 = vmatpush1.msra.mxu0 %v11023
      %12173 = vmatprep.subr.mxu0 0.0
      %12174 = vmatpush1.msra.mxu0 %v11024
      %12175 = vmatprep.subr.mxu0 0.0
      %12176 = vmatpush1.msra.mxu0 %v11025
      %12177 = vmatprep.subr.mxu0 0.0
      %12178 = vmatpush1.msra.mxu0 %v11026
      %12179 = vmatprep.subr.mxu0 0.0
      %12180 = vmatpush1.msra.mxu0 %v11027
      %12181 = vmatprep.subr.mxu0 0.0
      %12182 = vmatpush1.msra.mxu0 %v11028
      %12183 = vmatprep.subr.mxu0 0.0
      %12184 = vmatpush1.msra.mxu0 %v11029
      %12185 = vmatprep.subr.mxu0 0.0
      %12186 = vmatpush1.msra.mxu0 %v11030
      %12187 = vmatprep.mubr.f32.mxu0 %v11170
      %12188 = vmatmul.mubr.f32.gmra.mrb[0].mxu0 %v11168
      %v12189 = vpop.f32.mrb[0].mxu0
      %v12190 = vadd.f32 %v12120, %v12189
      %v12191 = vpop.f32.mrb[0].mxu0
      %12192 = vdwg.mxu0
      %12193 = vmatprep.subr.mxu0 0.0
      %12194 = vmatpush1.msra.mxu0 %v11031
      %12195 = vmatprep.subr.mxu0 0.0
      %12196 = vmatpush1.msra.mxu0 %v11032
      %12197 = vmatprep.subr.mxu0 0.0
      %12198 = vmatpush1.msra.mxu0 %v11033
      %12199 = vmatprep.subr.mxu0 0.0
      %12200 = vmatpush1.msra.mxu0 %v11034
      %12201 = vmatprep.subr.mxu0 0.0
      %12202 = vmatpush1.msra.mxu0 %v11035
      %12203 = vmatprep.subr.mxu0 0.0
      %12204 = vmatpush1.msra.mxu0 %v11036
      %12205 = vmatprep.subr.mxu0 0.0
      %12206 = vmatpush1.msra.mxu0 %v11037
      %12207 = vmatprep.subr.mxu0 0.0
      %12208 = vmatpush1.msra.mxu0 %v11038
      %12209 = vmatprep.subr.mxu0 0.0
      %12210 = vmatpush1.msra.mxu0 %v11039
      %12211 = vmatprep.subr.mxu0 0.0
      %12212 = vmatpush1.msra.mxu0 %v11040
      %12213 = vmatprep.subr.mxu0 0.0
      %12214 = vmatpush1.msra.mxu0 %v11041
      %12215 = vmatprep.subr.mxu0 0.0
      %12216 = vmatpush1.msra.mxu0 %v11042
      %12217 = vmatprep.subr.mxu0 0.0
      %12218 = vmatpush1.msra.mxu0 %v11211
      %12219 = vmatprep.subr.mxu0 0.0
      %12220 = vmatpush1.msra.mxu0 0.0
      %12221 = vmatprep.subr.mxu0 0.0
      %12222 = vmatpush1.msra.mxu0 0.0
      %12223 = vmatprep.subr.mxu0 0.0
      %12224 = vmatpush1.msra.mxu0 0.0
      %12225 = vmatprep.subr.mxu0 0.0
      %12226 = vmatpush1.msra.mxu0 0.0
      %12227 = vmatprep.subr.mxu0 0.0
      %12228 = vmatpush1.msra.mxu0 0.0
      %12229 = vmatprep.subr.mxu0 0.0
      %12230 = vmatpush1.msra.mxu0 0.0
      %12231 = vmatprep.subr.mxu0 0.0
      %12232 = vmatpush1.msra.mxu0 0.0
      %12233 = vmatprep.subr.mxu0 0.0
      %12234 = vmatpush1.msra.mxu0 0.0
      %12235 = vmatprep.subr.mxu0 0.0
      %12236 = vmatpush1.msra.mxu0 0.0
      %12237 = vmatprep.subr.mxu0 0.0
      %12238 = vmatpush1.msra.mxu0 0.0
      %12239 = vmatprep.subr.mxu0 0.0
      %12240 = vmatpush1.msra.mxu0 0.0
      %12241 = vmatprep.subr.mxu0 0.0
      %12242 = vmatpush1.msra.mxu0 0.0
      %12243 = vmatprep.subr.mxu0 0.0
      %12244 = vmatpush1.msra.mxu0 0.0
      %12245 = vmatprep.subr.mxu0 0.0
      %12246 = vmatpush1.msra.mxu0 0.0
      %12247 = vmatprep.subr.mxu0 0.0
      %12248 = vmatpush1.msra.mxu0 0.0
      %12249 = vmatprep.subr.mxu0 0.0
      %12250 = vmatpush1.msra.mxu0 0.0
      %12251 = vmatprep.subr.mxu0 0.0
      %12252 = vmatpush1.msra.mxu0 0.0
      %12253 = vmatprep.subr.mxu0 0.0
      %12254 = vmatpush1.msra.mxu0 0.0
      %12255 = vmatprep.subr.mxu0 0.0
      %12256 = vmatpush1.msra.mxu0 0.0
      %12257 = vmatprep.mubr.f32.mxu0 0.0
      %12258 = vmatmul.mubr.f32.gmra.mrb[0].mxu0 %v11207
      %v12259 = vpop.f32.mrb[0].mxu0
      %v12260 = vadd.f32 %v12190, %v12259
      %v12261 = vpop.f32.mrb[0].mxu0
      %12262 = vdwg.mxu0
      %s12263 = sld [smem:[#allocation3]]
      %v12264 = vstv %s12263
      %v12265 = vadd.f32 %v12260, %v12264
      %vm12266 = vcmask 1024
      %12267 = vst.msk [vmem:[#allocation6] sm:$0x3] %vm12266, %v12265
      %s12268 = sld [smem:[#allocation3 + $0x1]]
      %v12269 = vstv %s12268
      %v12270 = vadd.f32 %v12260, %v12269
      %vm12271 = vcmask 9224
      %12272 = vst.msk [vmem:[#allocation6] sm:$0x3] %vm12271, %v12270
    $region29: #{tpu_custom_call.1} parent=1 // pred_fallthru
      _
    // Predicated region
    $region30: #{tpu_custom_call.1} parent=1 // pred_check
      _
    $region31: #{tpu_custom_call.1} parent=1 // pred_check_branch
      %12274 = sbr.rel (0) target = $region33
    $region32: #{tpu_custom_call.1} parent=1 // pred_region
      %s12276 = ssub.s32 32, 32
      %12277 = vsyncadd [#allocation4], %s12276
      %s12279 = sshll.u32 [#allocation6], 4
      %s12280 = int_to_ptr.vmem [resolvable:$true] %s12279
      %12282 = dma.vmem_to_hbm [thread:$0]  %s12280, 32, %s4, [#allocation4]
    $region33: #{tpu_custom_call.1} parent=1 // pred_fallthru
      _
    // Predicated region
    $region34: #{tpu_custom_call.1} parent=1 // pred_check
      _
    $region35: #{tpu_custom_call.1} parent=1 // pred_check_branch
      %12284 = sbr.rel (0) target = $region37
    $region36: #{tpu_custom_call.1} parent=1 // pred_region
      %12285 = dma.done [#allocation4], 32
    $region37: #{tpu_custom_call.1} parent=1 // pred_fallthru
      _
    %12286 = vsyncpa [#allocation4], 1
    %12287 = vsyncpa [#allocation5], 1

</llo_original>
